<compile_context>
chip_gen: v6e
topology: v6e:2x2x1
jax: 0.10.0
libtpu: 0.0.40
codegen_flags: <defaults>
</compile_context>

<pallas_src>
import functools

import numpy as np
import jax
import jax.numpy as jnp
from jax.experimental import pallas as pl
from jax.experimental.pallas import tpu as pltpu


# -----------------------------------------------------------------------------
# Chip heuristics (trace-time, Python-level).
# -----------------------------------------------------------------------------
def _device_kind():
    try:
        return jax.devices()[0].device_kind.lower()
    except Exception:
        return ""


def _default_dw_dtype():
    k = _device_kind()
    # v6e/v7x VALUs are bf16-capable -> packed bf16 depthwise (16x128 per vreg).
    # v5e and older (or unknown) have no bf16 VPU -> keep f32.
    return jnp.bfloat16 if ("v6" in k or "v7" in k) else jnp.float32


def _default_batch_per_step(n):
    k = _device_kind()
    # v7x has 2 TensorCores/chip -> one image per (parallel) grid step.
    # Single-TC chips: fold the whole batch into one grid step (removes the
    # ~0.35us/step fixed cost and gives the scheduler one big basic block).
    if "v7" in k and n > 1:
        return 1
    return n


# -----------------------------------------------------------------------------
# Fused Pallas kernel factory.
# Layout: activations (C, H*W) f32 -- channels on sublanes, flattened spatial
# on lanes (lane-dense, HW multiple of 128).  NB images are unrolled per step.
# -----------------------------------------------------------------------------
def _make_first_block_kernel(H, W, C, HID, NB, dw_dtype):
    HW = H * W
    bf16 = jnp.bfloat16
    f32 = jnp.float32
    OFF_CENTER_TAPS = (0, 1, 2, 3, 5, 6, 7, 8)

    def kernel(masks_ref, x_ref, we_ref, wd_ref, wp_ref, wc_ref, b_ref,
               c2_ref, c3_ref, c4_ref, c5_ref):

        # 1x1 conv == matmul W(Cout,Cin) @ A(Cin,HW); bf16 operands, f32 acc (MXU).
        def pconv(w_bf16, a):
            return jnp.dot(w_bf16, a.astype(bf16), preferred_element_type=f32)

        # InvertedResidual i: expand(1x1)+ReLU6 -> depthwise 3x3+ReLU6 ->
        # project(1x1) -> residual add.  Depthwise halo = lane roll (XLU) +
        # precomputed positional zero-masks (no pad, no HBM round-trip).
        def inv_res(a, i):
            we = we_ref[i]                                   # (HID, C)  bf16
            wd = wd_ref[i]                                   # (HID, 9)  dw_dtype
            wp = wp_ref[i]                                   # (C, HID)  bf16
            h = jnp.clip(pconv(we, a), 0.0, 6.0).astype(dw_dtype)   # (HID, HW)
            acc = h * wd[:, 4:5]                             # center tap, no mask
            for k in OFF_CENTER_TAPS:
                dy, dx = k // 3 - 1, k % 3 - 1
                s = dy * W + dx                              # out[p] needs in[p+s]
                shifted = pltpu.roll(h, shift=(-s) % HW, axis=1)
                acc = acc + (shifted * wd[:, k:k + 1]) * masks_ref[k]
            hdw = jnp.clip(acc, 0.0, 6.0).astype(bf16)
            return a + jnp.dot(wp, hdw, preferred_element_type=f32)

        # BasicBlock(1x1 conv + bias + ReLU); torch.cat fused on the sublane axis.
        def basic(parts, j):
            kc = (j + 2) * C
            w = wc_ref[j][:, :kc]                            # (C, kc) bf16
            b = b_ref[j]                                     # (C, 1)  f32
            cat = jnp.concatenate([p.astype(bf16) for p in parts], axis=0)
            return jnp.maximum(jnp.dot(w, cat, preferred_element_type=f32) + b, 0.0)

        for n in range(NB):                                  # static unroll
            x = x_ref[n]                                     # (C, HW) f32
            b1 = inv_res(x, 0)
            c2 = basic([x, b1], 0)
            b2 = inv_res(c2, 1)
            c3 = basic([x, b1, b2], 1)
            b3 = inv_res(c3, 2)
            c4 = basic([x, b1, b2, b3], 2)
            b4 = inv_res(c4, 3)
            c5 = basic([x, b1, b2, b3, b4], 3)
            c2_ref[n] = c2.astype(c2_ref.dtype)
            c3_ref[n] = c3.astype(c3_ref.dtype)
            c4_ref[n] = c4.astype(c4_ref.dtype)
            c5_ref[n] = c5.astype(c5_ref.dtype)

    return kernel


# -----------------------------------------------------------------------------
# Host-side packing: precomputed halo masks + consolidated, pre-cast weights.
# -----------------------------------------------------------------------------
def _tap_masks_np(H, W):
    HW = H * W
    p = np.arange(HW)
    y, x = p // W, p % W
    rows = []
    for k in range(9):
        dy, dx = k // 3 - 1, k % 3 - 1
        rows.append((y + dy >= 0) & (y + dy < H) & (x + dx >= 0) & (x + dx < W))
    return np.stack(rows).astype(np.float32)[:, None, :]      # (9, 1, HW)


def pack_params(params, dw_dtype):
    names = ("b1", "b2", "b3", "b4")
    C = params["c2_wT"].shape[0]
    we = jnp.stack([params[n]["we_T"] for n in names]).astype(jnp.bfloat16)   # (4,HID,C)
    wd = jnp.stack([params[n]["wd_T"] for n in names]).astype(dw_dtype)        # (4,HID,9)
    wp = jnp.stack([params[n]["wp_T"] for n in names]).astype(jnp.bfloat16)    # (4,C,HID)
    wcs, bs = [], []
    for j, n in enumerate(("c2", "c3", "c4", "c5"), start=2):
        w = params[n + "_wT"]                                  # (C, j*C)
        wcs.append(jnp.pad(w, ((0, 0), (0, (5 - j) * C))))     # pad to (C, 5C)
        bs.append(params[n + "_b"])                            # (C, 1)
    wc = jnp.stack(wcs).astype(jnp.bfloat16)                   # (4, C, 5C)
    bias = jnp.stack(bs).astype(jnp.float32)                   # (4, C, 1)
    return we, wd, wp, wc, bias


def first_block_forward(x_nchw, params, *, dw_dtype=None, batch_per_step=None):
    """x_nchw: (N, C, H, W) f32 (PyTorch layout). Returns [c2, c3, c4, c5]."""
    N, C, H, W = x_nchw.shape
    HW = H * W
    if dw_dtype is None:
        dw_dtype = _default_dw_dtype()
    if batch_per_step is None:
        batch_per_step = _default_batch_per_step(N)
    if N % batch_per_step != 0:
        batch_per_step = 1
    steps = N // batch_per_step

    x3 = x_nchw.reshape(N, C, HW).astype(jnp.float32)          # flattened NCHW
    masks = jnp.asarray(_tap_masks_np(H, W), dtype=dw_dtype)   # (9, 1, HW)
    we, wd, wp, wc, bias = pack_params(params, dw_dtype)
    HID = we.shape[1]

    def const_spec(arr):
        nd = arr.ndim
        return pl.BlockSpec(arr.shape, lambda b: (0,) * nd)

    batch_spec = pl.BlockSpec((batch_per_step, C, HW), lambda b: (b, 0, 0))

    # Advisory cost estimate (MXU has slack; this just helps XLA's scheduler).
    flops_img = (4 * 2 * HW * (2 * HID * C + 9 * HID)
                 + sum(2 * C * (k * C) * HW for k in (2, 3, 4, 5)))
    w_bytes = sum(int(np.prod(a.shape)) * a.dtype.itemsize
                  for a in (we, wd, wp, wc, bias, masks))
    ce = pl.CostEstimate(flops=N * flops_img, transcendentals=0,
                         bytes_accessed=5 * N * C * HW * 4 + w_bytes)

    outs = pl.pallas_call(
        _make_first_block_kernel(H, W, C, HID, batch_per_step, dw_dtype),
        out_shape=tuple(jax.ShapeDtypeStruct((N, C, HW), jnp.float32)
                        for _ in range(4)),
        grid=(steps,),
        in_specs=[const_spec(masks), batch_spec, const_spec(we), const_spec(wd),
                  const_spec(wp), const_spec(wc), const_spec(bias)],
        out_specs=[batch_spec] * 4,
        compiler_params=pltpu.CompilerParams(dimension_semantics=("parallel",)),
        cost_estimate=ce,
    )(masks, x3, we, wd, wp, wc, bias)

    return [o.reshape(N, C, H, W) for o in outs]


# -----------------------------------------------------------------------------
# Pure-JAX reference (same numerics path: bf16 matmul operands / f32 acc,
# depthwise taps accumulated in the same dtype and the same order).
# -----------------------------------------------------------------------------
def first_block_reference(x_nchw, params, dw_dtype):
    N, C, H, W = x_nchw.shape
    HW = H * W
    bf16 = jnp.bfloat16

    def pconv(w_T, a):
        return jnp.dot(w_T.astype(bf16), a.astype(bf16),
                       preferred_element_type=jnp.float32)

    def dw_relu6(h, wd_T):
        hid = h.shape[0]
        h = h.astype(dw_dtype)
        wd = wd_T.astype(dw_dtype)
        hp = jnp.pad(h.reshape(hid, H, W), ((0, 0), (1, 1), (1, 1)))

        def tap(k):
            dy, dx = k // 3, k % 3
            return hp[:, dy:dy + H, dx:dx + W].reshape(hid, HW) * wd[:, k:k + 1]

        acc = tap(4)
        for k in (0, 1, 2, 3, 5, 6, 7, 8):
            acc = acc + tap(k)
        return jnp.clip(acc, 0.0, 6.0)

    def inv_res(a, p):
        h = jnp.clip(pconv(p["we_T"], a), 0.0, 6.0)
        h = dw_relu6(h, p["wd_T"])
        return a + pconv(p["wp_T"], h)

    def basic(parts, w_T, b):
        cat = jnp.concatenate([q.astype(bf16) for q in parts], axis=0)
        return jnp.maximum(jnp.dot(w_T.astype(bf16), cat,
                                   preferred_element_type=jnp.float32) + b, 0.0)

    outs = [[], [], [], []]
    for n in range(N):
        x = x_nchw[n].reshape(C, HW)
        b1 = inv_res(x, params["b1"])
        c2 = basic([x, b1], params["c2_wT"], params["c2_b"])
        b2 = inv_res(c2, params["b2"])
        c3 = basic([x, b1, b2], params["c3_wT"], params["c3_b"])
        b3 = inv_res(c3, params["b3"])
        c4 = basic([x, b1, b2, b3], params["c4_wT"], params["c4_b"])
        b4 = inv_res(c4, params["b4"])
        c5 = basic([x, b1, b2, b3, b4], params["c5_wT"], params["c5_b"])
        for lst, v in zip(outs, (c2, c3, c4, c5)):
            lst.append(v.reshape(C, H, W))
    return [jnp.stack(v) for v in outs]


# -----------------------------------------------------------------------------
# Deterministic parameter construction (documents the PyTorch -> kernel mapping:
# conv1x1 weight (Cout,Cin,1,1) -> (Cout,Cin); depthwise (C,1,3,3) -> (C,9)).
# -----------------------------------------------------------------------------
def make_params(key, n_feats, exp):
    hidden = n_feats * exp
    keys = jax.random.split(key, 32)
    ki = iter(range(32))

    def nrm(shape, scale=0.1):
        return (scale * jax.random.normal(keys[next(ki)], shape)).astype(jnp.float32)

    params = {}
    for name in ("b1", "b2", "b3", "b4"):
        w_expand = nrm((n_feats, hidden))                    # 1x1, bias=False
        w_dw = nrm((3, 3, hidden))                           # depthwise 3x3
        w_project = nrm((hidden, n_feats))                   # 1x1, bias=False
        params[name] = {
            "we_T": jnp.transpose(w_expand),                 # (hidden, n_feats)
            "wd_T": jnp.transpose(w_dw.reshape(9, hidden)),  # (hidden, 9)
            "wp_T": jnp.transpose(w_project),                # (n_feats, hidden)
        }
    for i, name in enumerate(("c2", "c3", "c4", "c5"), start=2):
        w = nrm((n_feats * i, n_feats))
        b = nrm((n_feats,))
        params[name + "_wT"] = jnp.transpose(w)              # (n_feats, n_feats*i)
        params[name + "_b"] = b.reshape(n_feats, 1)
    return params


# -----------------------------------------------------------------------------
if __name__ == "__main__":
    n_feats, exp = 8, 6
    N, H, W = 2, 16, 16

    key = jax.random.PRNGKey(0)
    k_x, k_p = jax.random.split(key)
    x_nchw = jax.random.normal(k_x, (N, n_feats, H, W), dtype=jnp.float32)
    params = make_params(k_p, n_feats, exp)

    dw_dtype = _default_dw_dtype()
    batch_per_step = _default_batch_per_step(N)

    fwd = jax.jit(functools.partial(first_block_forward, params=params,
                                    dw_dtype=dw_dtype,
                                    batch_per_step=batch_per_step))
    outs = jax.block_until_ready(fwd(x_nchw))

    refs = first_block_reference(x_nchw, params, dw_dtype)

    tol = 2e-3 if dw_dtype == jnp.float32 else 2e-2
    expected = (N, n_feats, H, W)
    for o, r in zip(outs, refs):
        assert tuple(o.shape) == expected, o.shape
        assert bool(jnp.all(jnp.isfinite(o)))
        err = float(jnp.max(jnp.abs(o - r)))
        assert err <= tol, err

    print("KERNEL_OK")
</pallas_src>

<mosaic_0001>
module attributes {stable_mosaic.version = 11 : i64} {
  func.func @kernel(%arg0: i32, %arg1: memref<9x1x256xf32, #tpu.memory_space<vmem>>, %arg2: memref<2x8x256xf32, #tpu.memory_space<vmem>>, %arg3: memref<4x48x8xbf16, #tpu.memory_space<vmem>>, %arg4: memref<4x48x9xf32, #tpu.memory_space<vmem>>, %arg5: memref<4x8x48xbf16, #tpu.memory_space<vmem>>, %arg6: memref<4x8x40xbf16, #tpu.memory_space<vmem>>, %arg7: memref<4x8x1xf32, #tpu.memory_space<vmem>>, %arg8: memref<2x8x256xf32, #tpu.memory_space<vmem>>, %arg9: memref<2x8x256xf32, #tpu.memory_space<vmem>>, %arg10: memref<2x8x256xf32, #tpu.memory_space<vmem>>, %arg11: memref<2x8x256xf32, #tpu.memory_space<vmem>>) attributes {dimension_semantics = [#tpu.dimension_semantics<parallel>], iteration_bounds = array<i64: 1>, scalar_prefetch = 0 : i64, scratch_operands = 0 : i64, tpu.core_type = #tpu.core_type<tc>, window_params = [{pipeline_mode = #tpu.pipeline_mode<synchronous>, transform_indices = @transform_0, window_bounds = array<i64: 9, 1, 256>}, {transform_indices = @transform_1, window_bounds = array<i64: 2, 8, 256>}, {pipeline_mode = #tpu.pipeline_mode<synchronous>, transform_indices = @transform_2, window_bounds = array<i64: 4, 48, 8>}, {pipeline_mode = #tpu.pipeline_mode<synchronous>, transform_indices = @transform_3, window_bounds = array<i64: 4, 48, 9>}, {pipeline_mode = #tpu.pipeline_mode<synchronous>, transform_indices = @transform_4, window_bounds = array<i64: 4, 8, 48>}, {pipeline_mode = #tpu.pipeline_mode<synchronous>, transform_indices = @transform_5, window_bounds = array<i64: 4, 8, 40>}, {pipeline_mode = #tpu.pipeline_mode<synchronous>, transform_indices = @transform_6, window_bounds = array<i64: 4, 8, 1>}, {transform_indices = @transform_7, window_bounds = array<i64: 2, 8, 256>}, {transform_indices = @transform_8, window_bounds = array<i64: 2, 8, 256>}, {transform_indices = @transform_9, window_bounds = array<i64: 2, 8, 256>}, {transform_indices = @transform_10, window_bounds = array<i64: 2, 8, 256>}]} {
    %c0 = arith.constant 0 : index
    %c0_0 = arith.constant 0 : index
    %c0_1 = arith.constant 0 : index
    %0 = vector.load %arg2[%c0, %c0_0, %c0_1] : memref<2x8x256xf32, #tpu.memory_space<vmem>>, vector<1x8x256xf32>
    %1 = vector.shape_cast %0 : vector<1x8x256xf32> to vector<8x256xf32>
    %c0_2 = arith.constant 0 : index
    %c0_3 = arith.constant 0 : index
    %c0_4 = arith.constant 0 : index
    %2 = vector.load %arg3[%c0_2, %c0_3, %c0_4] : memref<4x48x8xbf16, #tpu.memory_space<vmem>>, vector<1x48x8xbf16>
    %3 = vector.shape_cast %2 : vector<1x48x8xbf16> to vector<48x8xbf16>
    %c0_5 = arith.constant 0 : index
    %c0_6 = arith.constant 0 : index
    %c0_7 = arith.constant 0 : index
    %4 = vector.load %arg4[%c0_5, %c0_6, %c0_7] : memref<4x48x9xf32, #tpu.memory_space<vmem>>, vector<1x48x9xf32>
    %5 = vector.shape_cast %4 : vector<1x48x9xf32> to vector<48x9xf32>
    %c0_8 = arith.constant 0 : index
    %c0_9 = arith.constant 0 : index
    %c0_10 = arith.constant 0 : index
    %6 = vector.load %arg5[%c0_8, %c0_9, %c0_10] : memref<4x8x48xbf16, #tpu.memory_space<vmem>>, vector<1x8x48xbf16>
    %7 = vector.shape_cast %6 : vector<1x8x48xbf16> to vector<8x48xbf16>
    %8 = arith.truncf %1 : vector<8x256xf32> to vector<8x256xbf16>
    %cst = arith.constant dense<0.000000e+00> : vector<48x256xf32>
    %9 = tpu.matmul %3, %8, %cst {dimension_numbers = #tpu.dot_dimension_numbers<[1], [0], [0], [1], [0, 0, 1, 1], [], []>} : vector<48x8xbf16>, vector<8x256xbf16>, vector<48x256xf32> -> vector<48x256xf32>
    %cst_11 = arith.constant 0.000000e+00 : f32
    %cst_12 = arith.constant 6.000000e+00 : f32
    %10 = vector.broadcast %cst_11 : f32 to vector<48x256xf32>
    %11 = arith.maximumf %10, %9 : vector<48x256xf32>
    %12 = vector.broadcast %cst_12 : f32 to vector<48x256xf32>
    %13 = arith.minimumf %12, %11 : vector<48x256xf32>
    %14 = vector.extract_strided_slice %5 {offsets = [0, 4], sizes = [48, 1], strides = [1, 1]} : vector<48x9xf32> to vector<48x1xf32>
    %15 = vector.broadcast %14 : vector<48x1xf32> to vector<48x256xf32>
    %16 = arith.mulf %13, %15 : vector<48x256xf32>
    %c17_i32 = arith.constant 17 : i32
    %17 = tpu.dynamic_rotate %13 by %c17_i32 dim 1 : vector<48x256xf32>, i32 -> vector<48x256xf32>
    %18 = vector.extract_strided_slice %5 {offsets = [0, 0], sizes = [48, 1], strides = [1, 1]} : vector<48x9xf32> to vector<48x1xf32>
    %19 = vector.broadcast %18 : vector<48x1xf32> to vector<48x256xf32>
    %20 = arith.mulf %17, %19 : vector<48x256xf32>
    %c0_13 = arith.constant 0 : index
    %c0_14 = arith.constant 0 : index
    %c0_15 = arith.constant 0 : index
    %21 = vector.load %arg1[%c0_13, %c0_14, %c0_15] : memref<9x1x256xf32, #tpu.memory_space<vmem>>, vector<1x1x256xf32>
    %22 = vector.shape_cast %21 : vector<1x1x256xf32> to vector<1x256xf32>
    %23 = vector.broadcast %22 : vector<1x256xf32> to vector<48x256xf32>
    %24 = arith.mulf %20, %23 : vector<48x256xf32>
    %25 = arith.addf %16, %24 : vector<48x256xf32>
    %c16_i32 = arith.constant 16 : i32
    %26 = tpu.dynamic_rotate %13 by %c16_i32 dim 1 : vector<48x256xf32>, i32 -> vector<48x256xf32>
    %27 = vector.extract_strided_slice %5 {offsets = [0, 1], sizes = [48, 1], strides = [1, 1]} : vector<48x9xf32> to vector<48x1xf32>
    %28 = vector.broadcast %27 : vector<48x1xf32> to vector<48x256xf32>
    %29 = arith.mulf %26, %28 : vector<48x256xf32>
    %c1 = arith.constant 1 : index
    %c0_16 = arith.constant 0 : index
    %c0_17 = arith.constant 0 : index
    %30 = vector.load %arg1[%c1, %c0_16, %c0_17] : memref<9x1x256xf32, #tpu.memory_space<vmem>>, vector<1x1x256xf32>
    %31 = vector.shape_cast %30 : vector<1x1x256xf32> to vector<1x256xf32>
    %32 = vector.broadcast %31 : vector<1x256xf32> to vector<48x256xf32>
    %33 = arith.mulf %29, %32 : vector<48x256xf32>
    %34 = arith.addf %25, %33 : vector<48x256xf32>
    %c15_i32 = arith.constant 15 : i32
    %35 = tpu.dynamic_rotate %13 by %c15_i32 dim 1 : vector<48x256xf32>, i32 -> vector<48x256xf32>
    %36 = vector.extract_strided_slice %5 {offsets = [0, 2], sizes = [48, 1], strides = [1, 1]} : vector<48x9xf32> to vector<48x1xf32>
    %37 = vector.broadcast %36 : vector<48x1xf32> to vector<48x256xf32>
    %38 = arith.mulf %35, %37 : vector<48x256xf32>
    %c2 = arith.constant 2 : index
    %c0_18 = arith.constant 0 : index
    %c0_19 = arith.constant 0 : index
    %39 = vector.load %arg1[%c2, %c0_18, %c0_19] : memref<9x1x256xf32, #tpu.memory_space<vmem>>, vector<1x1x256xf32>
    %40 = vector.shape_cast %39 : vector<1x1x256xf32> to vector<1x256xf32>
    %41 = vector.broadcast %40 : vector<1x256xf32> to vector<48x256xf32>
    %42 = arith.mulf %38, %41 : vector<48x256xf32>
    %43 = arith.addf %34, %42 : vector<48x256xf32>
    %c1_i32 = arith.constant 1 : i32
    %44 = tpu.dynamic_rotate %13 by %c1_i32 dim 1 : vector<48x256xf32>, i32 -> vector<48x256xf32>
    %45 = vector.extract_strided_slice %5 {offsets = [0, 3], sizes = [48, 1], strides = [1, 1]} : vector<48x9xf32> to vector<48x1xf32>
    %46 = vector.broadcast %45 : vector<48x1xf32> to vector<48x256xf32>
    %47 = arith.mulf %44, %46 : vector<48x256xf32>
    %c3 = arith.constant 3 : index
    %c0_20 = arith.constant 0 : index
    %c0_21 = arith.constant 0 : index
    %48 = vector.load %arg1[%c3, %c0_20, %c0_21] : memref<9x1x256xf32, #tpu.memory_space<vmem>>, vector<1x1x256xf32>
    %49 = vector.shape_cast %48 : vector<1x1x256xf32> to vector<1x256xf32>
    %50 = vector.broadcast %49 : vector<1x256xf32> to vector<48x256xf32>
    %51 = arith.mulf %47, %50 : vector<48x256xf32>
    %52 = arith.addf %43, %51 : vector<48x256xf32>
    %c255_i32 = arith.constant 255 : i32
    %53 = tpu.dynamic_rotate %13 by %c255_i32 dim 1 : vector<48x256xf32>, i32 -> vector<48x256xf32>
    %54 = vector.extract_strided_slice %5 {offsets = [0, 5], sizes = [48, 1], strides = [1, 1]} : vector<48x9xf32> to vector<48x1xf32>
    %55 = vector.broadcast %54 : vector<48x1xf32> to vector<48x256xf32>
    %56 = arith.mulf %53, %55 : vector<48x256xf32>
    %c5 = arith.constant 5 : index
    %c0_22 = arith.constant 0 : index
    %c0_23 = arith.constant 0 : index
    %57 = vector.load %arg1[%c5, %c0_22, %c0_23] : memref<9x1x256xf32, #tpu.memory_space<vmem>>, vector<1x1x256xf32>
    %58 = vector.shape_cast %57 : vector<1x1x256xf32> to vector<1x256xf32>
    %59 = vector.broadcast %58 : vector<1x256xf32> to vector<48x256xf32>
    %60 = arith.mulf %56, %59 : vector<48x256xf32>
    %61 = arith.addf %52, %60 : vector<48x256xf32>
    %c241_i32 = arith.constant 241 : i32
    %62 = tpu.dynamic_rotate %13 by %c241_i32 dim 1 : vector<48x256xf32>, i32 -> vector<48x256xf32>
    %63 = vector.extract_strided_slice %5 {offsets = [0, 6], sizes = [48, 1], strides = [1, 1]} : vector<48x9xf32> to vector<48x1xf32>
    %64 = vector.broadcast %63 : vector<48x1xf32> to vector<48x256xf32>
    %65 = arith.mulf %62, %64 : vector<48x256xf32>
    %c6 = arith.constant 6 : index
    %c0_24 = arith.constant 0 : index
    %c0_25 = arith.constant 0 : index
    %66 = vector.load %arg1[%c6, %c0_24, %c0_25] : memref<9x1x256xf32, #tpu.memory_space<vmem>>, vector<1x1x256xf32>
    %67 = vector.shape_cast %66 : vector<1x1x256xf32> to vector<1x256xf32>
    %68 = vector.broadcast %67 : vector<1x256xf32> to vector<48x256xf32>
    %69 = arith.mulf %65, %68 : vector<48x256xf32>
    %70 = arith.addf %61, %69 : vector<48x256xf32>
    %c240_i32 = arith.constant 240 : i32
    %71 = tpu.dynamic_rotate %13 by %c240_i32 dim 1 : vector<48x256xf32>, i32 -> vector<48x256xf32>
    %72 = vector.extract_strided_slice %5 {offsets = [0, 7], sizes = [48, 1], strides = [1, 1]} : vector<48x9xf32> to vector<48x1xf32>
    %73 = vector.broadcast %72 : vector<48x1xf32> to vector<48x256xf32>
    %74 = arith.mulf %71, %73 : vector<48x256xf32>
    %c7 = arith.constant 7 : index
    %c0_26 = arith.constant 0 : index
    %c0_27 = arith.constant 0 : index
    %75 = vector.load %arg1[%c7, %c0_26, %c0_27] : memref<9x1x256xf32, #tpu.memory_space<vmem>>, vector<1x1x256xf32>
    %76 = vector.shape_cast %75 : vector<1x1x256xf32> to vector<1x256xf32>
    %77 = vector.broadcast %76 : vector<1x256xf32> to vector<48x256xf32>
    %78 = arith.mulf %74, %77 : vector<48x256xf32>
    %79 = arith.addf %70, %78 : vector<48x256xf32>
    %c239_i32 = arith.constant 239 : i32
    %80 = tpu.dynamic_rotate %13 by %c239_i32 dim 1 : vector<48x256xf32>, i32 -> vector<48x256xf32>
    %81 = vector.extract_strided_slice %5 {offsets = [0, 8], sizes = [48, 1], strides = [1, 1]} : vector<48x9xf32> to vector<48x1xf32>
    %82 = vector.broadcast %81 : vector<48x1xf32> to vector<48x256xf32>
    %83 = arith.mulf %80, %82 : vector<48x256xf32>
    %c8 = arith.constant 8 : index
    %c0_28 = arith.constant 0 : index
    %c0_29 = arith.constant 0 : index
    %84 = vector.load %arg1[%c8, %c0_28, %c0_29] : memref<9x1x256xf32, #tpu.memory_space<vmem>>, vector<1x1x256xf32>
    %85 = vector.shape_cast %84 : vector<1x1x256xf32> to vector<1x256xf32>
    %86 = vector.broadcast %85 : vector<1x256xf32> to vector<48x256xf32>
    %87 = arith.mulf %83, %86 : vector<48x256xf32>
    %88 = arith.addf %79, %87 : vector<48x256xf32>
    %cst_30 = arith.constant 0.000000e+00 : f32
    %cst_31 = arith.constant 6.000000e+00 : f32
    %89 = vector.broadcast %cst_30 : f32 to vector<48x256xf32>
    %90 = arith.maximumf %89, %88 : vector<48x256xf32>
    %91 = vector.broadcast %cst_31 : f32 to vector<48x256xf32>
    %92 = arith.minimumf %91, %90 : vector<48x256xf32>
    %93 = arith.truncf %92 : vector<48x256xf32> to vector<48x256xbf16>
    %cst_32 = arith.constant dense<0.000000e+00> : vector<8x256xf32>
    %94 = tpu.matmul %7, %93, %cst_32 {dimension_numbers = #tpu.dot_dimension_numbers<[1], [0], [0], [1], [0, 0, 1, 1], [], []>} : vector<8x48xbf16>, vector<48x256xbf16>, vector<8x256xf32> -> vector<8x256xf32>
    %95 = arith.addf %1, %94 : vector<8x256xf32>
    %c0_33 = arith.constant 0 : index
    %c0_34 = arith.constant 0 : index
    %c0_35 = arith.constant 0 : index
    %96 = vector.load %arg6[%c0_33, %c0_34, %c0_35] : memref<4x8x40xbf16, #tpu.memory_space<vmem>>, vector<1x8x40xbf16>
    %97 = vector.shape_cast %96 : vector<1x8x40xbf16> to vector<8x40xbf16>
    %98 = vector.extract_strided_slice %97 {offsets = [0, 0], sizes = [8, 16], strides = [1, 1]} : vector<8x40xbf16> to vector<8x16xbf16>
    %c0_36 = arith.constant 0 : index
    %c0_37 = arith.constant 0 : index
    %c0_38 = arith.constant 0 : index
    %99 = vector.load %arg7[%c0_36, %c0_37, %c0_38] : memref<4x8x1xf32, #tpu.memory_space<vmem>>, vector<1x8x1xf32>
    %100 = vector.shape_cast %99 : vector<1x8x1xf32> to vector<8x1xf32>
    %101 = arith.truncf %1 : vector<8x256xf32> to vector<8x256xbf16>
    %102 = arith.truncf %95 : vector<8x256xf32> to vector<8x256xbf16>
    %103 = tpu.concatenate %101, %102 in 0 : vector<8x256xbf16>, vector<8x256xbf16> -> vector<16x256xbf16>
    %cst_39 = arith.constant dense<0.000000e+00> : vector<8x256xf32>
    %104 = tpu.matmul %98, %103, %cst_39 {dimension_numbers = #tpu.dot_dimension_numbers<[1], [0], [0], [1], [0, 0, 1, 1], [], []>} : vector<8x16xbf16>, vector<16x256xbf16>, vector<8x256xf32> -> vector<8x256xf32>
    %105 = vector.broadcast %100 : vector<8x1xf32> to vector<8x256xf32>
    %106 = arith.addf %104, %105 : vector<8x256xf32>
    %cst_40 = arith.constant 0.000000e+00 : f32
    %107 = vector.broadcast %cst_40 : f32 to vector<8x256xf32>
    %108 = arith.maximumf %106, %107 : vector<8x256xf32>
    %c1_41 = arith.constant 1 : index
    %c0_42 = arith.constant 0 : index
    %c0_43 = arith.constant 0 : index
    %109 = vector.load %arg3[%c1_41, %c0_42, %c0_43] : memref<4x48x8xbf16, #tpu.memory_space<vmem>>, vector<1x48x8xbf16>
    %110 = vector.shape_cast %109 : vector<1x48x8xbf16> to vector<48x8xbf16>
    %c1_44 = arith.constant 1 : index
    %c0_45 = arith.constant 0 : index
    %c0_46 = arith.constant 0 : index
    %111 = vector.load %arg4[%c1_44, %c0_45, %c0_46] : memref<4x48x9xf32, #tpu.memory_space<vmem>>, vector<1x48x9xf32>
    %112 = vector.shape_cast %111 : vector<1x48x9xf32> to vector<48x9xf32>
    %c1_47 = arith.constant 1 : index
    %c0_48 = arith.constant 0 : index
    %c0_49 = arith.constant 0 : index
    %113 = vector.load %arg5[%c1_47, %c0_48, %c0_49] : memref<4x8x48xbf16, #tpu.memory_space<vmem>>, vector<1x8x48xbf16>
    %114 = vector.shape_cast %113 : vector<1x8x48xbf16> to vector<8x48xbf16>
    %115 = arith.truncf %108 : vector<8x256xf32> to vector<8x256xbf16>
    %cst_50 = arith.constant dense<0.000000e+00> : vector<48x256xf32>
    %116 = tpu.matmul %110, %115, %cst_50 {dimension_numbers = #tpu.dot_dimension_numbers<[1], [0], [0], [1], [0, 0, 1, 1], [], []>} : vector<48x8xbf16>, vector<8x256xbf16>, vector<48x256xf32> -> vector<48x256xf32>
    %cst_51 = arith.constant 0.000000e+00 : f32
    %cst_52 = arith.constant 6.000000e+00 : f32
    %117 = vector.broadcast %cst_51 : f32 to vector<48x256xf32>
    %118 = arith.maximumf %117, %116 : vector<48x256xf32>
    %119 = vector.broadcast %cst_52 : f32 to vector<48x256xf32>
    %120 = arith.minimumf %119, %118 : vector<48x256xf32>
    %121 = vector.extract_strided_slice %112 {offsets = [0, 4], sizes = [48, 1], strides = [1, 1]} : vector<48x9xf32> to vector<48x1xf32>
    %122 = vector.broadcast %121 : vector<48x1xf32> to vector<48x256xf32>
    %123 = arith.mulf %120, %122 : vector<48x256xf32>
    %c17_i32_53 = arith.constant 17 : i32
    %124 = tpu.dynamic_rotate %120 by %c17_i32_53 dim 1 : vector<48x256xf32>, i32 -> vector<48x256xf32>
    %125 = vector.extract_strided_slice %112 {offsets = [0, 0], sizes = [48, 1], strides = [1, 1]} : vector<48x9xf32> to vector<48x1xf32>
    %126 = vector.broadcast %125 : vector<48x1xf32> to vector<48x256xf32>
    %127 = arith.mulf %124, %126 : vector<48x256xf32>
    %c0_54 = arith.constant 0 : index
    %c0_55 = arith.constant 0 : index
    %c0_56 = arith.constant 0 : index
    %128 = vector.load %arg1[%c0_54, %c0_55, %c0_56] : memref<9x1x256xf32, #tpu.memory_space<vmem>>, vector<1x1x256xf32>
    %129 = vector.shape_cast %128 : vector<1x1x256xf32> to vector<1x256xf32>
    %130 = vector.broadcast %129 : vector<1x256xf32> to vector<48x256xf32>
    %131 = arith.mulf %127, %130 : vector<48x256xf32>
    %132 = arith.addf %123, %131 : vector<48x256xf32>
    %c16_i32_57 = arith.constant 16 : i32
    %133 = tpu.dynamic_rotate %120 by %c16_i32_57 dim 1 : vector<48x256xf32>, i32 -> vector<48x256xf32>
    %134 = vector.extract_strided_slice %112 {offsets = [0, 1], sizes = [48, 1], strides = [1, 1]} : vector<48x9xf32> to vector<48x1xf32>
    %135 = vector.broadcast %134 : vector<48x1xf32> to vector<48x256xf32>
    %136 = arith.mulf %133, %135 : vector<48x256xf32>
    %c1_58 = arith.constant 1 : index
    %c0_59 = arith.constant 0 : index
    %c0_60 = arith.constant 0 : index
    %137 = vector.load %arg1[%c1_58, %c0_59, %c0_60] : memref<9x1x256xf32, #tpu.memory_space<vmem>>, vector<1x1x256xf32>
    %138 = vector.shape_cast %137 : vector<1x1x256xf32> to vector<1x256xf32>
    %139 = vector.broadcast %138 : vector<1x256xf32> to vector<48x256xf32>
    %140 = arith.mulf %136, %139 : vector<48x256xf32>
    %141 = arith.addf %132, %140 : vector<48x256xf32>
    %c15_i32_61 = arith.constant 15 : i32
    %142 = tpu.dynamic_rotate %120 by %c15_i32_61 dim 1 : vector<48x256xf32>, i32 -> vector<48x256xf32>
    %143 = vector.extract_strided_slice %112 {offsets = [0, 2], sizes = [48, 1], strides = [1, 1]} : vector<48x9xf32> to vector<48x1xf32>
    %144 = vector.broadcast %143 : vector<48x1xf32> to vector<48x256xf32>
    %145 = arith.mulf %142, %144 : vector<48x256xf32>
    %c2_62 = arith.constant 2 : index
    %c0_63 = arith.constant 0 : index
    %c0_64 = arith.constant 0 : index
    %146 = vector.load %arg1[%c2_62, %c0_63, %c0_64] : memref<9x1x256xf32, #tpu.memory_space<vmem>>, vector<1x1x256xf32>
    %147 = vector.shape_cast %146 : vector<1x1x256xf32> to vector<1x256xf32>
    %148 = vector.broadcast %147 : vector<1x256xf32> to vector<48x256xf32>
    %149 = arith.mulf %145, %148 : vector<48x256xf32>
    %150 = arith.addf %141, %149 : vector<48x256xf32>
    %c1_i32_65 = arith.constant 1 : i32
    %151 = tpu.dynamic_rotate %120 by %c1_i32_65 dim 1 : vector<48x256xf32>, i32 -> vector<48x256xf32>
    %152 = vector.extract_strided_slice %112 {offsets = [0, 3], sizes = [48, 1], strides = [1, 1]} : vector<48x9xf32> to vector<48x1xf32>
    %153 = vector.broadcast %152 : vector<48x1xf32> to vector<48x256xf32>
    %154 = arith.mulf %151, %153 : vector<48x256xf32>
    %c3_66 = arith.constant 3 : index
    %c0_67 = arith.constant 0 : index
    %c0_68 = arith.constant 0 : index
    %155 = vector.load %arg1[%c3_66, %c0_67, %c0_68] : memref<9x1x256xf32, #tpu.memory_space<vmem>>, vector<1x1x256xf32>
    %156 = vector.shape_cast %155 : vector<1x1x256xf32> to vector<1x256xf32>
    %157 = vector.broadcast %156 : vector<1x256xf32> to vector<48x256xf32>
    %158 = arith.mulf %154, %157 : vector<48x256xf32>
    %159 = arith.addf %150, %158 : vector<48x256xf32>
    %c255_i32_69 = arith.constant 255 : i32
    %160 = tpu.dynamic_rotate %120 by %c255_i32_69 dim 1 : vector<48x256xf32>, i32 -> vector<48x256xf32>
    %161 = vector.extract_strided_slice %112 {offsets = [0, 5], sizes = [48, 1], strides = [1, 1]} : vector<48x9xf32> to vector<48x1xf32>
    %162 = vector.broadcast %161 : vector<48x1xf32> to vector<48x256xf32>
    %163 = arith.mulf %160, %162 : vector<48x256xf32>
    %c5_70 = arith.constant 5 : index
    %c0_71 = arith.constant 0 : index
    %c0_72 = arith.constant 0 : index
    %164 = vector.load %arg1[%c5_70, %c0_71, %c0_72] : memref<9x1x256xf32, #tpu.memory_space<vmem>>, vector<1x1x256xf32>
    %165 = vector.shape_cast %164 : vector<1x1x256xf32> to vector<1x256xf32>
    %166 = vector.broadcast %165 : vector<1x256xf32> to vector<48x256xf32>
    %167 = arith.mulf %163, %166 : vector<48x256xf32>
    %168 = arith.addf %159, %167 : vector<48x256xf32>
    %c241_i32_73 = arith.constant 241 : i32
    %169 = tpu.dynamic_rotate %120 by %c241_i32_73 dim 1 : vector<48x256xf32>, i32 -> vector<48x256xf32>
    %170 = vector.extract_strided_slice %112 {offsets = [0, 6], sizes = [48, 1], strides = [1, 1]} : vector<48x9xf32> to vector<48x1xf32>
    %171 = vector.broadcast %170 : vector<48x1xf32> to vector<48x256xf32>
    %172 = arith.mulf %169, %171 : vector<48x256xf32>
    %c6_74 = arith.constant 6 : index
    %c0_75 = arith.constant 0 : index
    %c0_76 = arith.constant 0 : index
    %173 = vector.load %arg1[%c6_74, %c0_75, %c0_76] : memref<9x1x256xf32, #tpu.memory_space<vmem>>, vector<1x1x256xf32>
    %174 = vector.shape_cast %173 : vector<1x1x256xf32> to vector<1x256xf32>
    %175 = vector.broadcast %174 : vector<1x256xf32> to vector<48x256xf32>
    %176 = arith.mulf %172, %175 : vector<48x256xf32>
    %177 = arith.addf %168, %176 : vector<48x256xf32>
    %c240_i32_77 = arith.constant 240 : i32
    %178 = tpu.dynamic_rotate %120 by %c240_i32_77 dim 1 : vector<48x256xf32>, i32 -> vector<48x256xf32>
    %179 = vector.extract_strided_slice %112 {offsets = [0, 7], sizes = [48, 1], strides = [1, 1]} : vector<48x9xf32> to vector<48x1xf32>
    %180 = vector.broadcast %179 : vector<48x1xf32> to vector<48x256xf32>
    %181 = arith.mulf %178, %180 : vector<48x256xf32>
    %c7_78 = arith.constant 7 : index
    %c0_79 = arith.constant 0 : index
    %c0_80 = arith.constant 0 : index
    %182 = vector.load %arg1[%c7_78, %c0_79, %c0_80] : memref<9x1x256xf32, #tpu.memory_space<vmem>>, vector<1x1x256xf32>
    %183 = vector.shape_cast %182 : vector<1x1x256xf32> to vector<1x256xf32>
    %184 = vector.broadcast %183 : vector<1x256xf32> to vector<48x256xf32>
    %185 = arith.mulf %181, %184 : vector<48x256xf32>
    %186 = arith.addf %177, %185 : vector<48x256xf32>
    %c239_i32_81 = arith.constant 239 : i32
    %187 = tpu.dynamic_rotate %120 by %c239_i32_81 dim 1 : vector<48x256xf32>, i32 -> vector<48x256xf32>
    %188 = vector.extract_strided_slice %112 {offsets = [0, 8], sizes = [48, 1], strides = [1, 1]} : vector<48x9xf32> to vector<48x1xf32>
    %189 = vector.broadcast %188 : vector<48x1xf32> to vector<48x256xf32>
    %190 = arith.mulf %187, %189 : vector<48x256xf32>
    %c8_82 = arith.constant 8 : index
    %c0_83 = arith.constant 0 : index
    %c0_84 = arith.constant 0 : index
    %191 = vector.load %arg1[%c8_82, %c0_83, %c0_84] : memref<9x1x256xf32, #tpu.memory_space<vmem>>, vector<1x1x256xf32>
    %192 = vector.shape_cast %191 : vector<1x1x256xf32> to vector<1x256xf32>
    %193 = vector.broadcast %192 : vector<1x256xf32> to vector<48x256xf32>
    %194 = arith.mulf %190, %193 : vector<48x256xf32>
    %195 = arith.addf %186, %194 : vector<48x256xf32>
    %cst_85 = arith.constant 0.000000e+00 : f32
    %cst_86 = arith.constant 6.000000e+00 : f32
    %196 = vector.broadcast %cst_85 : f32 to vector<48x256xf32>
    %197 = arith.maximumf %196, %195 : vector<48x256xf32>
    %198 = vector.broadcast %cst_86 : f32 to vector<48x256xf32>
    %199 = arith.minimumf %198, %197 : vector<48x256xf32>
    %200 = arith.truncf %199 : vector<48x256xf32> to vector<48x256xbf16>
    %cst_87 = arith.constant dense<0.000000e+00> : vector<8x256xf32>
    %201 = tpu.matmul %114, %200, %cst_87 {dimension_numbers = #tpu.dot_dimension_numbers<[1], [0], [0], [1], [0, 0, 1, 1], [], []>} : vector<8x48xbf16>, vector<48x256xbf16>, vector<8x256xf32> -> vector<8x256xf32>
    %202 = arith.addf %108, %201 : vector<8x256xf32>
    %c1_88 = arith.constant 1 : index
    %c0_89 = arith.constant 0 : index
    %c0_90 = arith.constant 0 : index
    %203 = vector.load %arg6[%c1_88, %c0_89, %c0_90] : memref<4x8x40xbf16, #tpu.memory_space<vmem>>, vector<1x8x40xbf16>
    %204 = vector.shape_cast %203 : vector<1x8x40xbf16> to vector<8x40xbf16>
    %205 = vector.extract_strided_slice %204 {offsets = [0, 0], sizes = [8, 24], strides = [1, 1]} : vector<8x40xbf16> to vector<8x24xbf16>
    %c1_91 = arith.constant 1 : index
    %c0_92 = arith.constant 0 : index
    %c0_93 = arith.constant 0 : index
    %206 = vector.load %arg7[%c1_91, %c0_92, %c0_93] : memref<4x8x1xf32, #tpu.memory_space<vmem>>, vector<1x8x1xf32>
    %207 = vector.shape_cast %206 : vector<1x8x1xf32> to vector<8x1xf32>
    %208 = arith.truncf %1 : vector<8x256xf32> to vector<8x256xbf16>
    %209 = arith.truncf %95 : vector<8x256xf32> to vector<8x256xbf16>
    %210 = arith.truncf %202 : vector<8x256xf32> to vector<8x256xbf16>
    %211 = tpu.concatenate %208, %209, %210 in 0 : vector<8x256xbf16>, vector<8x256xbf16>, vector<8x256xbf16> -> vector<24x256xbf16>
    %cst_94 = arith.constant dense<0.000000e+00> : vector<8x256xf32>
    %212 = tpu.matmul %205, %211, %cst_94 {dimension_numbers = #tpu.dot_dimension_numbers<[1], [0], [0], [1], [0, 0, 1, 1], [], []>} : vector<8x24xbf16>, vector<24x256xbf16>, vector<8x256xf32> -> vector<8x256xf32>
    %213 = vector.broadcast %207 : vector<8x1xf32> to vector<8x256xf32>
    %214 = arith.addf %212, %213 : vector<8x256xf32>
    %cst_95 = arith.constant 0.000000e+00 : f32
    %215 = vector.broadcast %cst_95 : f32 to vector<8x256xf32>
    %216 = arith.maximumf %214, %215 : vector<8x256xf32>
    %c2_96 = arith.constant 2 : index
    %c0_97 = arith.constant 0 : index
    %c0_98 = arith.constant 0 : index
    %217 = vector.load %arg3[%c2_96, %c0_97, %c0_98] : memref<4x48x8xbf16, #tpu.memory_space<vmem>>, vector<1x48x8xbf16>
    %218 = vector.shape_cast %217 : vector<1x48x8xbf16> to vector<48x8xbf16>
    %c2_99 = arith.constant 2 : index
    %c0_100 = arith.constant 0 : index
    %c0_101 = arith.constant 0 : index
    %219 = vector.load %arg4[%c2_99, %c0_100, %c0_101] : memref<4x48x9xf32, #tpu.memory_space<vmem>>, vector<1x48x9xf32>
    %220 = vector.shape_cast %219 : vector<1x48x9xf32> to vector<48x9xf32>
    %c2_102 = arith.constant 2 : index
    %c0_103 = arith.constant 0 : index
    %c0_104 = arith.constant 0 : index
    %221 = vector.load %arg5[%c2_102, %c0_103, %c0_104] : memref<4x8x48xbf16, #tpu.memory_space<vmem>>, vector<1x8x48xbf16>
    %222 = vector.shape_cast %221 : vector<1x8x48xbf16> to vector<8x48xbf16>
    %223 = arith.truncf %216 : vector<8x256xf32> to vector<8x256xbf16>
    %cst_105 = arith.constant dense<0.000000e+00> : vector<48x256xf32>
    %224 = tpu.matmul %218, %223, %cst_105 {dimension_numbers = #tpu.dot_dimension_numbers<[1], [0], [0], [1], [0, 0, 1, 1], [], []>} : vector<48x8xbf16>, vector<8x256xbf16>, vector<48x256xf32> -> vector<48x256xf32>
    %cst_106 = arith.constant 0.000000e+00 : f32
    %cst_107 = arith.constant 6.000000e+00 : f32
    %225 = vector.broadcast %cst_106 : f32 to vector<48x256xf32>
    %226 = arith.maximumf %225, %224 : vector<48x256xf32>
    %227 = vector.broadcast %cst_107 : f32 to vector<48x256xf32>
    %228 = arith.minimumf %227, %226 : vector<48x256xf32>
    %229 = vector.extract_strided_slice %220 {offsets = [0, 4], sizes = [48, 1], strides = [1, 1]} : vector<48x9xf32> to vector<48x1xf32>
    %230 = vector.broadcast %229 : vector<48x1xf32> to vector<48x256xf32>
    %231 = arith.mulf %228, %230 : vector<48x256xf32>
    %c17_i32_108 = arith.constant 17 : i32
    %232 = tpu.dynamic_rotate %228 by %c17_i32_108 dim 1 : vector<48x256xf32>, i32 -> vector<48x256xf32>
    %233 = vector.extract_strided_slice %220 {offsets = [0, 0], sizes = [48, 1], strides = [1, 1]} : vector<48x9xf32> to vector<48x1xf32>
    %234 = vector.broadcast %233 : vector<48x1xf32> to vector<48x256xf32>
    %235 = arith.mulf %232, %234 : vector<48x256xf32>
    %c0_109 = arith.constant 0 : index
    %c0_110 = arith.constant 0 : index
    %c0_111 = arith.constant 0 : index
    %236 = vector.load %arg1[%c0_109, %c0_110, %c0_111] : memref<9x1x256xf32, #tpu.memory_space<vmem>>, vector<1x1x256xf32>
    %237 = vector.shape_cast %236 : vector<1x1x256xf32> to vector<1x256xf32>
    %238 = vector.broadcast %237 : vector<1x256xf32> to vector<48x256xf32>
    %239 = arith.mulf %235, %238 : vector<48x256xf32>
    %240 = arith.addf %231, %239 : vector<48x256xf32>
    %c16_i32_112 = arith.constant 16 : i32
    %241 = tpu.dynamic_rotate %228 by %c16_i32_112 dim 1 : vector<48x256xf32>, i32 -> vector<48x256xf32>
    %242 = vector.extract_strided_slice %220 {offsets = [0, 1], sizes = [48, 1], strides = [1, 1]} : vector<48x9xf32> to vector<48x1xf32>
    %243 = vector.broadcast %242 : vector<48x1xf32> to vector<48x256xf32>
    %244 = arith.mulf %241, %243 : vector<48x256xf32>
    %c1_113 = arith.constant 1 : index
    %c0_114 = arith.constant 0 : index
    %c0_115 = arith.constant 0 : index
    %245 = vector.load %arg1[%c1_113, %c0_114, %c0_115] : memref<9x1x256xf32, #tpu.memory_space<vmem>>, vector<1x1x256xf32>
    %246 = vector.shape_cast %245 : vector<1x1x256xf32> to vector<1x256xf32>
    %247 = vector.broadcast %246 : vector<1x256xf32> to vector<48x256xf32>
    %248 = arith.mulf %244, %247 : vector<48x256xf32>
    %249 = arith.addf %240, %248 : vector<48x256xf32>
    %c15_i32_116 = arith.constant 15 : i32
    %250 = tpu.dynamic_rotate %228 by %c15_i32_116 dim 1 : vector<48x256xf32>, i32 -> vector<48x256xf32>
    %251 = vector.extract_strided_slice %220 {offsets = [0, 2], sizes = [48, 1], strides = [1, 1]} : vector<48x9xf32> to vector<48x1xf32>
    %252 = vector.broadcast %251 : vector<48x1xf32> to vector<48x256xf32>
    %253 = arith.mulf %250, %252 : vector<48x256xf32>
    %c2_117 = arith.constant 2 : index
    %c0_118 = arith.constant 0 : index
    %c0_119 = arith.constant 0 : index
    %254 = vector.load %arg1[%c2_117, %c0_118, %c0_119] : memref<9x1x256xf32, #tpu.memory_space<vmem>>, vector<1x1x256xf32>
    %255 = vector.shape_cast %254 : vector<1x1x256xf32> to vector<1x256xf32>
    %256 = vector.broadcast %255 : vector<1x256xf32> to vector<48x256xf32>
    %257 = arith.mulf %253, %256 : vector<48x256xf32>
    %258 = arith.addf %249, %257 : vector<48x256xf32>
    %c1_i32_120 = arith.constant 1 : i32
    %259 = tpu.dynamic_rotate %228 by %c1_i32_120 dim 1 : vector<48x256xf32>, i32 -> vector<48x256xf32>
    %260 = vector.extract_strided_slice %220 {offsets = [0, 3], sizes = [48, 1], strides = [1, 1]} : vector<48x9xf32> to vector<48x1xf32>
    %261 = vector.broadcast %260 : vector<48x1xf32> to vector<48x256xf32>
    %262 = arith.mulf %259, %261 : vector<48x256xf32>
    %c3_121 = arith.constant 3 : index
    %c0_122 = arith.constant 0 : index
    %c0_123 = arith.constant 0 : index
    %263 = vector.load %arg1[%c3_121, %c0_122, %c0_123] : memref<9x1x256xf32, #tpu.memory_space<vmem>>, vector<1x1x256xf32>
    %264 = vector.shape_cast %263 : vector<1x1x256xf32> to vector<1x256xf32>
    %265 = vector.broadcast %264 : vector<1x256xf32> to vector<48x256xf32>
    %266 = arith.mulf %262, %265 : vector<48x256xf32>
    %267 = arith.addf %258, %266 : vector<48x256xf32>
    %c255_i32_124 = arith.constant 255 : i32
    %268 = tpu.dynamic_rotate %228 by %c255_i32_124 dim 1 : vector<48x256xf32>, i32 -> vector<48x256xf32>
    %269 = vector.extract_strided_slice %220 {offsets = [0, 5], sizes = [48, 1], strides = [1, 1]} : vector<48x9xf32> to vector<48x1xf32>
    %270 = vector.broadcast %269 : vector<48x1xf32> to vector<48x256xf32>
    %271 = arith.mulf %268, %270 : vector<48x256xf32>
    %c5_125 = arith.constant 5 : index
    %c0_126 = arith.constant 0 : index
    %c0_127 = arith.constant 0 : index
    %272 = vector.load %arg1[%c5_125, %c0_126, %c0_127] : memref<9x1x256xf32, #tpu.memory_space<vmem>>, vector<1x1x256xf32>
    %273 = vector.shape_cast %272 : vector<1x1x256xf32> to vector<1x256xf32>
    %274 = vector.broadcast %273 : vector<1x256xf32> to vector<48x256xf32>
    %275 = arith.mulf %271, %274 : vector<48x256xf32>
    %276 = arith.addf %267, %275 : vector<48x256xf32>
    %c241_i32_128 = arith.constant 241 : i32
    %277 = tpu.dynamic_rotate %228 by %c241_i32_128 dim 1 : vector<48x256xf32>, i32 -> vector<48x256xf32>
    %278 = vector.extract_strided_slice %220 {offsets = [0, 6], sizes = [48, 1], strides = [1, 1]} : vector<48x9xf32> to vector<48x1xf32>
    %279 = vector.broadcast %278 : vector<48x1xf32> to vector<48x256xf32>
    %280 = arith.mulf %277, %279 : vector<48x256xf32>
    %c6_129 = arith.constant 6 : index
    %c0_130 = arith.constant 0 : index
    %c0_131 = arith.constant 0 : index
    %281 = vector.load %arg1[%c6_129, %c0_130, %c0_131] : memref<9x1x256xf32, #tpu.memory_space<vmem>>, vector<1x1x256xf32>
    %282 = vector.shape_cast %281 : vector<1x1x256xf32> to vector<1x256xf32>
    %283 = vector.broadcast %282 : vector<1x256xf32> to vector<48x256xf32>
    %284 = arith.mulf %280, %283 : vector<48x256xf32>
    %285 = arith.addf %276, %284 : vector<48x256xf32>
    %c240_i32_132 = arith.constant 240 : i32
    %286 = tpu.dynamic_rotate %228 by %c240_i32_132 dim 1 : vector<48x256xf32>, i32 -> vector<48x256xf32>
    %287 = vector.extract_strided_slice %220 {offsets = [0, 7], sizes = [48, 1], strides = [1, 1]} : vector<48x9xf32> to vector<48x1xf32>
    %288 = vector.broadcast %287 : vector<48x1xf32> to vector<48x256xf32>
    %289 = arith.mulf %286, %288 : vector<48x256xf32>
    %c7_133 = arith.constant 7 : index
    %c0_134 = arith.constant 0 : index
    %c0_135 = arith.constant 0 : index
    %290 = vector.load %arg1[%c7_133, %c0_134, %c0_135] : memref<9x1x256xf32, #tpu.memory_space<vmem>>, vector<1x1x256xf32>
    %291 = vector.shape_cast %290 : vector<1x1x256xf32> to vector<1x256xf32>
    %292 = vector.broadcast %291 : vector<1x256xf32> to vector<48x256xf32>
    %293 = arith.mulf %289, %292 : vector<48x256xf32>
    %294 = arith.addf %285, %293 : vector<48x256xf32>
    %c239_i32_136 = arith.constant 239 : i32
    %295 = tpu.dynamic_rotate %228 by %c239_i32_136 dim 1 : vector<48x256xf32>, i32 -> vector<48x256xf32>
    %296 = vector.extract_strided_slice %220 {offsets = [0, 8], sizes = [48, 1], strides = [1, 1]} : vector<48x9xf32> to vector<48x1xf32>
    %297 = vector.broadcast %296 : vector<48x1xf32> to vector<48x256xf32>
    %298 = arith.mulf %295, %297 : vector<48x256xf32>
    %c8_137 = arith.constant 8 : index
    %c0_138 = arith.constant 0 : index
    %c0_139 = arith.constant 0 : index
    %299 = vector.load %arg1[%c8_137, %c0_138, %c0_139] : memref<9x1x256xf32, #tpu.memory_space<vmem>>, vector<1x1x256xf32>
    %300 = vector.shape_cast %299 : vector<1x1x256xf32> to vector<1x256xf32>
    %301 = vector.broadcast %300 : vector<1x256xf32> to vector<48x256xf32>
    %302 = arith.mulf %298, %301 : vector<48x256xf32>
    %303 = arith.addf %294, %302 : vector<48x256xf32>
    %cst_140 = arith.constant 0.000000e+00 : f32
    %cst_141 = arith.constant 6.000000e+00 : f32
    %304 = vector.broadcast %cst_140 : f32 to vector<48x256xf32>
    %305 = arith.maximumf %304, %303 : vector<48x256xf32>
    %306 = vector.broadcast %cst_141 : f32 to vector<48x256xf32>
    %307 = arith.minimumf %306, %305 : vector<48x256xf32>
    %308 = arith.truncf %307 : vector<48x256xf32> to vector<48x256xbf16>
    %cst_142 = arith.constant dense<0.000000e+00> : vector<8x256xf32>
    %309 = tpu.matmul %222, %308, %cst_142 {dimension_numbers = #tpu.dot_dimension_numbers<[1], [0], [0], [1], [0, 0, 1, 1], [], []>} : vector<8x48xbf16>, vector<48x256xbf16>, vector<8x256xf32> -> vector<8x256xf32>
    %310 = arith.addf %216, %309 : vector<8x256xf32>
    %c2_143 = arith.constant 2 : index
    %c0_144 = arith.constant 0 : index
    %c0_145 = arith.constant 0 : index
    %311 = vector.load %arg6[%c2_143, %c0_144, %c0_145] : memref<4x8x40xbf16, #tpu.memory_space<vmem>>, vector<1x8x40xbf16>
    %312 = vector.shape_cast %311 : vector<1x8x40xbf16> to vector<8x40xbf16>
    %313 = vector.extract_strided_slice %312 {offsets = [0, 0], sizes = [8, 32], strides = [1, 1]} : vector<8x40xbf16> to vector<8x32xbf16>
    %c2_146 = arith.constant 2 : index
    %c0_147 = arith.constant 0 : index
    %c0_148 = arith.constant 0 : index
    %314 = vector.load %arg7[%c2_146, %c0_147, %c0_148] : memref<4x8x1xf32, #tpu.memory_space<vmem>>, vector<1x8x1xf32>
    %315 = vector.shape_cast %314 : vector<1x8x1xf32> to vector<8x1xf32>
    %316 = arith.truncf %1 : vector<8x256xf32> to vector<8x256xbf16>
    %317 = arith.truncf %95 : vector<8x256xf32> to vector<8x256xbf16>
    %318 = arith.truncf %202 : vector<8x256xf32> to vector<8x256xbf16>
    %319 = arith.truncf %310 : vector<8x256xf32> to vector<8x256xbf16>
    %320 = tpu.concatenate %316, %317, %318, %319 in 0 : vector<8x256xbf16>, vector<8x256xbf16>, vector<8x256xbf16>, vector<8x256xbf16> -> vector<32x256xbf16>
    %cst_149 = arith.constant dense<0.000000e+00> : vector<8x256xf32>
    %321 = tpu.matmul %313, %320, %cst_149 {dimension_numbers = #tpu.dot_dimension_numbers<[1], [0], [0], [1], [0, 0, 1, 1], [], []>} : vector<8x32xbf16>, vector<32x256xbf16>, vector<8x256xf32> -> vector<8x256xf32>
    %322 = vector.broadcast %315 : vector<8x1xf32> to vector<8x256xf32>
    %323 = arith.addf %321, %322 : vector<8x256xf32>
    %cst_150 = arith.constant 0.000000e+00 : f32
    %324 = vector.broadcast %cst_150 : f32 to vector<8x256xf32>
    %325 = arith.maximumf %323, %324 : vector<8x256xf32>
    %c3_151 = arith.constant 3 : index
    %c0_152 = arith.constant 0 : index
    %c0_153 = arith.constant 0 : index
    %326 = vector.load %arg3[%c3_151, %c0_152, %c0_153] : memref<4x48x8xbf16, #tpu.memory_space<vmem>>, vector<1x48x8xbf16>
    %327 = vector.shape_cast %326 : vector<1x48x8xbf16> to vector<48x8xbf16>
    %c3_154 = arith.constant 3 : index
    %c0_155 = arith.constant 0 : index
    %c0_156 = arith.constant 0 : index
    %328 = vector.load %arg4[%c3_154, %c0_155, %c0_156] : memref<4x48x9xf32, #tpu.memory_space<vmem>>, vector<1x48x9xf32>
    %329 = vector.shape_cast %328 : vector<1x48x9xf32> to vector<48x9xf32>
    %c3_157 = arith.constant 3 : index
    %c0_158 = arith.constant 0 : index
    %c0_159 = arith.constant 0 : index
    %330 = vector.load %arg5[%c3_157, %c0_158, %c0_159] : memref<4x8x48xbf16, #tpu.memory_space<vmem>>, vector<1x8x48xbf16>
    %331 = vector.shape_cast %330 : vector<1x8x48xbf16> to vector<8x48xbf16>
    %332 = arith.truncf %325 : vector<8x256xf32> to vector<8x256xbf16>
    %cst_160 = arith.constant dense<0.000000e+00> : vector<48x256xf32>
    %333 = tpu.matmul %327, %332, %cst_160 {dimension_numbers = #tpu.dot_dimension_numbers<[1], [0], [0], [1], [0, 0, 1, 1], [], []>} : vector<48x8xbf16>, vector<8x256xbf16>, vector<48x256xf32> -> vector<48x256xf32>
    %cst_161 = arith.constant 0.000000e+00 : f32
    %cst_162 = arith.constant 6.000000e+00 : f32
    %334 = vector.broadcast %cst_161 : f32 to vector<48x256xf32>
    %335 = arith.maximumf %334, %333 : vector<48x256xf32>
    %336 = vector.broadcast %cst_162 : f32 to vector<48x256xf32>
    %337 = arith.minimumf %336, %335 : vector<48x256xf32>
    %338 = vector.extract_strided_slice %329 {offsets = [0, 4], sizes = [48, 1], strides = [1, 1]} : vector<48x9xf32> to vector<48x1xf32>
    %339 = vector.broadcast %338 : vector<48x1xf32> to vector<48x256xf32>
    %340 = arith.mulf %337, %339 : vector<48x256xf32>
    %c17_i32_163 = arith.constant 17 : i32
    %341 = tpu.dynamic_rotate %337 by %c17_i32_163 dim 1 : vector<48x256xf32>, i32 -> vector<48x256xf32>
    %342 = vector.extract_strided_slice %329 {offsets = [0, 0], sizes = [48, 1], strides = [1, 1]} : vector<48x9xf32> to vector<48x1xf32>
    %343 = vector.broadcast %342 : vector<48x1xf32> to vector<48x256xf32>
    %344 = arith.mulf %341, %343 : vector<48x256xf32>
    %c0_164 = arith.constant 0 : index
    %c0_165 = arith.constant 0 : index
    %c0_166 = arith.constant 0 : index
    %345 = vector.load %arg1[%c0_164, %c0_165, %c0_166] : memref<9x1x256xf32, #tpu.memory_space<vmem>>, vector<1x1x256xf32>
    %346 = vector.shape_cast %345 : vector<1x1x256xf32> to vector<1x256xf32>
    %347 = vector.broadcast %346 : vector<1x256xf32> to vector<48x256xf32>
    %348 = arith.mulf %344, %347 : vector<48x256xf32>
    %349 = arith.addf %340, %348 : vector<48x256xf32>
    %c16_i32_167 = arith.constant 16 : i32
    %350 = tpu.dynamic_rotate %337 by %c16_i32_167 dim 1 : vector<48x256xf32>, i32 -> vector<48x256xf32>
    %351 = vector.extract_strided_slice %329 {offsets = [0, 1], sizes = [48, 1], strides = [1, 1]} : vector<48x9xf32> to vector<48x1xf32>
    %352 = vector.broadcast %351 : vector<48x1xf32> to vector<48x256xf32>
    %353 = arith.mulf %350, %352 : vector<48x256xf32>
    %c1_168 = arith.constant 1 : index
    %c0_169 = arith.constant 0 : index
    %c0_170 = arith.constant 0 : index
    %354 = vector.load %arg1[%c1_168, %c0_169, %c0_170] : memref<9x1x256xf32, #tpu.memory_space<vmem>>, vector<1x1x256xf32>
    %355 = vector.shape_cast %354 : vector<1x1x256xf32> to vector<1x256xf32>
    %356 = vector.broadcast %355 : vector<1x256xf32> to vector<48x256xf32>
    %357 = arith.mulf %353, %356 : vector<48x256xf32>
    %358 = arith.addf %349, %357 : vector<48x256xf32>
    %c15_i32_171 = arith.constant 15 : i32
    %359 = tpu.dynamic_rotate %337 by %c15_i32_171 dim 1 : vector<48x256xf32>, i32 -> vector<48x256xf32>
    %360 = vector.extract_strided_slice %329 {offsets = [0, 2], sizes = [48, 1], strides = [1, 1]} : vector<48x9xf32> to vector<48x1xf32>
    %361 = vector.broadcast %360 : vector<48x1xf32> to vector<48x256xf32>
    %362 = arith.mulf %359, %361 : vector<48x256xf32>
    %c2_172 = arith.constant 2 : index
    %c0_173 = arith.constant 0 : index
    %c0_174 = arith.constant 0 : index
    %363 = vector.load %arg1[%c2_172, %c0_173, %c0_174] : memref<9x1x256xf32, #tpu.memory_space<vmem>>, vector<1x1x256xf32>
    %364 = vector.shape_cast %363 : vector<1x1x256xf32> to vector<1x256xf32>
    %365 = vector.broadcast %364 : vector<1x256xf32> to vector<48x256xf32>
    %366 = arith.mulf %362, %365 : vector<48x256xf32>
    %367 = arith.addf %358, %366 : vector<48x256xf32>
    %c1_i32_175 = arith.constant 1 : i32
    %368 = tpu.dynamic_rotate %337 by %c1_i32_175 dim 1 : vector<48x256xf32>, i32 -> vector<48x256xf32>
    %369 = vector.extract_strided_slice %329 {offsets = [0, 3], sizes = [48, 1], strides = [1, 1]} : vector<48x9xf32> to vector<48x1xf32>
    %370 = vector.broadcast %369 : vector<48x1xf32> to vector<48x256xf32>
    %371 = arith.mulf %368, %370 : vector<48x256xf32>
    %c3_176 = arith.constant 3 : index
    %c0_177 = arith.constant 0 : index
    %c0_178 = arith.constant 0 : index
    %372 = vector.load %arg1[%c3_176, %c0_177, %c0_178] : memref<9x1x256xf32, #tpu.memory_space<vmem>>, vector<1x1x256xf32>
    %373 = vector.shape_cast %372 : vector<1x1x256xf32> to vector<1x256xf32>
    %374 = vector.broadcast %373 : vector<1x256xf32> to vector<48x256xf32>
    %375 = arith.mulf %371, %374 : vector<48x256xf32>
    %376 = arith.addf %367, %375 : vector<48x256xf32>
    %c255_i32_179 = arith.constant 255 : i32
    %377 = tpu.dynamic_rotate %337 by %c255_i32_179 dim 1 : vector<48x256xf32>, i32 -> vector<48x256xf32>
    %378 = vector.extract_strided_slice %329 {offsets = [0, 5], sizes = [48, 1], strides = [1, 1]} : vector<48x9xf32> to vector<48x1xf32>
    %379 = vector.broadcast %378 : vector<48x1xf32> to vector<48x256xf32>
    %380 = arith.mulf %377, %379 : vector<48x256xf32>
    %c5_180 = arith.constant 5 : index
    %c0_181 = arith.constant 0 : index
    %c0_182 = arith.constant 0 : index
    %381 = vector.load %arg1[%c5_180, %c0_181, %c0_182] : memref<9x1x256xf32, #tpu.memory_space<vmem>>, vector<1x1x256xf32>
    %382 = vector.shape_cast %381 : vector<1x1x256xf32> to vector<1x256xf32>
    %383 = vector.broadcast %382 : vector<1x256xf32> to vector<48x256xf32>
    %384 = arith.mulf %380, %383 : vector<48x256xf32>
    %385 = arith.addf %376, %384 : vector<48x256xf32>
    %c241_i32_183 = arith.constant 241 : i32
    %386 = tpu.dynamic_rotate %337 by %c241_i32_183 dim 1 : vector<48x256xf32>, i32 -> vector<48x256xf32>
    %387 = vector.extract_strided_slice %329 {offsets = [0, 6], sizes = [48, 1], strides = [1, 1]} : vector<48x9xf32> to vector<48x1xf32>
    %388 = vector.broadcast %387 : vector<48x1xf32> to vector<48x256xf32>
    %389 = arith.mulf %386, %388 : vector<48x256xf32>
    %c6_184 = arith.constant 6 : index
    %c0_185 = arith.constant 0 : index
    %c0_186 = arith.constant 0 : index
    %390 = vector.load %arg1[%c6_184, %c0_185, %c0_186] : memref<9x1x256xf32, #tpu.memory_space<vmem>>, vector<1x1x256xf32>
    %391 = vector.shape_cast %390 : vector<1x1x256xf32> to vector<1x256xf32>
    %392 = vector.broadcast %391 : vector<1x256xf32> to vector<48x256xf32>
    %393 = arith.mulf %389, %392 : vector<48x256xf32>
    %394 = arith.addf %385, %393 : vector<48x256xf32>
    %c240_i32_187 = arith.constant 240 : i32
    %395 = tpu.dynamic_rotate %337 by %c240_i32_187 dim 1 : vector<48x256xf32>, i32 -> vector<48x256xf32>
    %396 = vector.extract_strided_slice %329 {offsets = [0, 7], sizes = [48, 1], strides = [1, 1]} : vector<48x9xf32> to vector<48x1xf32>
    %397 = vector.broadcast %396 : vector<48x1xf32> to vector<48x256xf32>
    %398 = arith.mulf %395, %397 : vector<48x256xf32>
    %c7_188 = arith.constant 7 : index
    %c0_189 = arith.constant 0 : index
    %c0_190 = arith.constant 0 : index
    %399 = vector.load %arg1[%c7_188, %c0_189, %c0_190] : memref<9x1x256xf32, #tpu.memory_space<vmem>>, vector<1x1x256xf32>
    %400 = vector.shape_cast %399 : vector<1x1x256xf32> to vector<1x256xf32>
    %401 = vector.broadcast %400 : vector<1x256xf32> to vector<48x256xf32>
    %402 = arith.mulf %398, %401 : vector<48x256xf32>
    %403 = arith.addf %394, %402 : vector<48x256xf32>
    %c239_i32_191 = arith.constant 239 : i32
    %404 = tpu.dynamic_rotate %337 by %c239_i32_191 dim 1 : vector<48x256xf32>, i32 -> vector<48x256xf32>
    %405 = vector.extract_strided_slice %329 {offsets = [0, 8], sizes = [48, 1], strides = [1, 1]} : vector<48x9xf32> to vector<48x1xf32>
    %406 = vector.broadcast %405 : vector<48x1xf32> to vector<48x256xf32>
    %407 = arith.mulf %404, %406 : vector<48x256xf32>
    %c8_192 = arith.constant 8 : index
    %c0_193 = arith.constant 0 : index
    %c0_194 = arith.constant 0 : index
    %408 = vector.load %arg1[%c8_192, %c0_193, %c0_194] : memref<9x1x256xf32, #tpu.memory_space<vmem>>, vector<1x1x256xf32>
    %409 = vector.shape_cast %408 : vector<1x1x256xf32> to vector<1x256xf32>
    %410 = vector.broadcast %409 : vector<1x256xf32> to vector<48x256xf32>
    %411 = arith.mulf %407, %410 : vector<48x256xf32>
    %412 = arith.addf %403, %411 : vector<48x256xf32>
    %cst_195 = arith.constant 0.000000e+00 : f32
    %cst_196 = arith.constant 6.000000e+00 : f32
    %413 = vector.broadcast %cst_195 : f32 to vector<48x256xf32>
    %414 = arith.maximumf %413, %412 : vector<48x256xf32>
    %415 = vector.broadcast %cst_196 : f32 to vector<48x256xf32>
    %416 = arith.minimumf %415, %414 : vector<48x256xf32>
    %417 = arith.truncf %416 : vector<48x256xf32> to vector<48x256xbf16>
    %cst_197 = arith.constant dense<0.000000e+00> : vector<8x256xf32>
    %418 = tpu.matmul %331, %417, %cst_197 {dimension_numbers = #tpu.dot_dimension_numbers<[1], [0], [0], [1], [0, 0, 1, 1], [], []>} : vector<8x48xbf16>, vector<48x256xbf16>, vector<8x256xf32> -> vector<8x256xf32>
    %419 = arith.addf %325, %418 : vector<8x256xf32>
    %c3_198 = arith.constant 3 : index
    %c0_199 = arith.constant 0 : index
    %c0_200 = arith.constant 0 : index
    %420 = vector.load %arg6[%c3_198, %c0_199, %c0_200] : memref<4x8x40xbf16, #tpu.memory_space<vmem>>, vector<1x8x40xbf16>
    %421 = vector.shape_cast %420 : vector<1x8x40xbf16> to vector<8x40xbf16>
    %c3_201 = arith.constant 3 : index
    %c0_202 = arith.constant 0 : index
    %c0_203 = arith.constant 0 : index
    %422 = vector.load %arg7[%c3_201, %c0_202, %c0_203] : memref<4x8x1xf32, #tpu.memory_space<vmem>>, vector<1x8x1xf32>
    %423 = vector.shape_cast %422 : vector<1x8x1xf32> to vector<8x1xf32>
    %424 = arith.truncf %1 : vector<8x256xf32> to vector<8x256xbf16>
    %425 = arith.truncf %95 : vector<8x256xf32> to vector<8x256xbf16>
    %426 = arith.truncf %202 : vector<8x256xf32> to vector<8x256xbf16>
    %427 = arith.truncf %310 : vector<8x256xf32> to vector<8x256xbf16>
    %428 = arith.truncf %419 : vector<8x256xf32> to vector<8x256xbf16>
    %429 = tpu.concatenate %424, %425, %426, %427, %428 in 0 : vector<8x256xbf16>, vector<8x256xbf16>, vector<8x256xbf16>, vector<8x256xbf16>, vector<8x256xbf16> -> vector<40x256xbf16>
    %cst_204 = arith.constant dense<0.000000e+00> : vector<8x256xf32>
    %430 = tpu.matmul %421, %429, %cst_204 {dimension_numbers = #tpu.dot_dimension_numbers<[1], [0], [0], [1], [0, 0, 1, 1], [], []>} : vector<8x40xbf16>, vector<40x256xbf16>, vector<8x256xf32> -> vector<8x256xf32>
    %431 = vector.broadcast %423 : vector<8x1xf32> to vector<8x256xf32>
    %432 = arith.addf %430, %431 : vector<8x256xf32>
    %cst_205 = arith.constant 0.000000e+00 : f32
    %433 = vector.broadcast %cst_205 : f32 to vector<8x256xf32>
    %434 = arith.maximumf %432, %433 : vector<8x256xf32>
    %c0_206 = arith.constant 0 : index
    %c0_207 = arith.constant 0 : index
    %c0_208 = arith.constant 0 : index
    %435 = vector.load %arg8[%c0_206, %c0_207, %c0_208] : memref<2x8x256xf32, #tpu.memory_space<vmem>>, vector<1x8x256xf32>
    %436 = vector.shape_cast %435 : vector<1x8x256xf32> to vector<8x256xf32>
    %437 = vector.shape_cast %108 : vector<8x256xf32> to vector<1x8x256xf32>
    tpu.vector_store %arg8[%c0_206, %c0_207, %c0_208], %437 {strides = array<i32>} : memref<2x8x256xf32, #tpu.memory_space<vmem>>, vector<1x8x256xf32>,
    %c0_209 = arith.constant 0 : index
    %c0_210 = arith.constant 0 : index
    %c0_211 = arith.constant 0 : index
    %438 = vector.load %arg9[%c0_209, %c0_210, %c0_211] : memref<2x8x256xf32, #tpu.memory_space<vmem>>, vector<1x8x256xf32>
    %439 = vector.shape_cast %438 : vector<1x8x256xf32> to vector<8x256xf32>
    %440 = vector.shape_cast %216 : vector<8x256xf32> to vector<1x8x256xf32>
    tpu.vector_store %arg9[%c0_209, %c0_210, %c0_211], %440 {strides = array<i32>} : memref<2x8x256xf32, #tpu.memory_space<vmem>>, vector<1x8x256xf32>,
    %c0_212 = arith.constant 0 : index
    %c0_213 = arith.constant 0 : index
    %c0_214 = arith.constant 0 : index
    %441 = vector.load %arg10[%c0_212, %c0_213, %c0_214] : memref<2x8x256xf32, #tpu.memory_space<vmem>>, vector<1x8x256xf32>
    %442 = vector.shape_cast %441 : vector<1x8x256xf32> to vector<8x256xf32>
    %443 = vector.shape_cast %325 : vector<8x256xf32> to vector<1x8x256xf32>
    tpu.vector_store %arg10[%c0_212, %c0_213, %c0_214], %443 {strides = array<i32>} : memref<2x8x256xf32, #tpu.memory_space<vmem>>, vector<1x8x256xf32>,
    %c0_215 = arith.constant 0 : index
    %c0_216 = arith.constant 0 : index
    %c0_217 = arith.constant 0 : index
    %444 = vector.load %arg11[%c0_215, %c0_216, %c0_217] : memref<2x8x256xf32, #tpu.memory_space<vmem>>, vector<1x8x256xf32>
    %445 = vector.shape_cast %444 : vector<1x8x256xf32> to vector<8x256xf32>
    %446 = vector.shape_cast %434 : vector<8x256xf32> to vector<1x8x256xf32>
    tpu.vector_store %arg11[%c0_215, %c0_216, %c0_217], %446 {strides = array<i32>} : memref<2x8x256xf32, #tpu.memory_space<vmem>>, vector<1x8x256xf32>,
    %c1_218 = arith.constant 1 : index
    %c0_219 = arith.constant 0 : index
    %c0_220 = arith.constant 0 : index
    %447 = vector.load %arg2[%c1_218, %c0_219, %c0_220] : memref<2x8x256xf32, #tpu.memory_space<vmem>>, vector<1x8x256xf32>
    %448 = vector.shape_cast %447 : vector<1x8x256xf32> to vector<8x256xf32>
    %c0_221 = arith.constant 0 : index
    %c0_222 = arith.constant 0 : index
    %c0_223 = arith.constant 0 : index
    %449 = vector.load %arg3[%c0_221, %c0_222, %c0_223] : memref<4x48x8xbf16, #tpu.memory_space<vmem>>, vector<1x48x8xbf16>
    %450 = vector.shape_cast %449 : vector<1x48x8xbf16> to vector<48x8xbf16>
    %c0_224 = arith.constant 0 : index
    %c0_225 = arith.constant 0 : index
    %c0_226 = arith.constant 0 : index
    %451 = vector.load %arg4[%c0_224, %c0_225, %c0_226] : memref<4x48x9xf32, #tpu.memory_space<vmem>>, vector<1x48x9xf32>
    %452 = vector.shape_cast %451 : vector<1x48x9xf32> to vector<48x9xf32>
    %c0_227 = arith.constant 0 : index
    %c0_228 = arith.constant 0 : index
    %c0_229 = arith.constant 0 : index
    %453 = vector.load %arg5[%c0_227, %c0_228, %c0_229] : memref<4x8x48xbf16, #tpu.memory_space<vmem>>, vector<1x8x48xbf16>
    %454 = vector.shape_cast %453 : vector<1x8x48xbf16> to vector<8x48xbf16>
    %455 = arith.truncf %448 : vector<8x256xf32> to vector<8x256xbf16>
    %cst_230 = arith.constant dense<0.000000e+00> : vector<48x256xf32>
    %456 = tpu.matmul %450, %455, %cst_230 {dimension_numbers = #tpu.dot_dimension_numbers<[1], [0], [0], [1], [0, 0, 1, 1], [], []>} : vector<48x8xbf16>, vector<8x256xbf16>, vector<48x256xf32> -> vector<48x256xf32>
    %cst_231 = arith.constant 0.000000e+00 : f32
    %cst_232 = arith.constant 6.000000e+00 : f32
    %457 = vector.broadcast %cst_231 : f32 to vector<48x256xf32>
    %458 = arith.maximumf %457, %456 : vector<48x256xf32>
    %459 = vector.broadcast %cst_232 : f32 to vector<48x256xf32>
    %460 = arith.minimumf %459, %458 : vector<48x256xf32>
    %461 = vector.extract_strided_slice %452 {offsets = [0, 4], sizes = [48, 1], strides = [1, 1]} : vector<48x9xf32> to vector<48x1xf32>
    %462 = vector.broadcast %461 : vector<48x1xf32> to vector<48x256xf32>
    %463 = arith.mulf %460, %462 : vector<48x256xf32>
    %c17_i32_233 = arith.constant 17 : i32
    %464 = tpu.dynamic_rotate %460 by %c17_i32_233 dim 1 : vector<48x256xf32>, i32 -> vector<48x256xf32>
    %465 = vector.extract_strided_slice %452 {offsets = [0, 0], sizes = [48, 1], strides = [1, 1]} : vector<48x9xf32> to vector<48x1xf32>
    %466 = vector.broadcast %465 : vector<48x1xf32> to vector<48x256xf32>
    %467 = arith.mulf %464, %466 : vector<48x256xf32>
    %c0_234 = arith.constant 0 : index
    %c0_235 = arith.constant 0 : index
    %c0_236 = arith.constant 0 : index
    %468 = vector.load %arg1[%c0_234, %c0_235, %c0_236] : memref<9x1x256xf32, #tpu.memory_space<vmem>>, vector<1x1x256xf32>
    %469 = vector.shape_cast %468 : vector<1x1x256xf32> to vector<1x256xf32>
    %470 = vector.broadcast %469 : vector<1x256xf32> to vector<48x256xf32>
    %471 = arith.mulf %467, %470 : vector<48x256xf32>
    %472 = arith.addf %463, %471 : vector<48x256xf32>
    %c16_i32_237 = arith.constant 16 : i32
    %473 = tpu.dynamic_rotate %460 by %c16_i32_237 dim 1 : vector<48x256xf32>, i32 -> vector<48x256xf32>
    %474 = vector.extract_strided_slice %452 {offsets = [0, 1], sizes = [48, 1], strides = [1, 1]} : vector<48x9xf32> to vector<48x1xf32>
    %475 = vector.broadcast %474 : vector<48x1xf32> to vector<48x256xf32>
    %476 = arith.mulf %473, %475 : vector<48x256xf32>
    %c1_238 = arith.constant 1 : index
    %c0_239 = arith.constant 0 : index
    %c0_240 = arith.constant 0 : index
    %477 = vector.load %arg1[%c1_238, %c0_239, %c0_240] : memref<9x1x256xf32, #tpu.memory_space<vmem>>, vector<1x1x256xf32>
    %478 = vector.shape_cast %477 : vector<1x1x256xf32> to vector<1x256xf32>
    %479 = vector.broadcast %478 : vector<1x256xf32> to vector<48x256xf32>
    %480 = arith.mulf %476, %479 : vector<48x256xf32>
    %481 = arith.addf %472, %480 : vector<48x256xf32>
    %c15_i32_241 = arith.constant 15 : i32
    %482 = tpu.dynamic_rotate %460 by %c15_i32_241 dim 1 : vector<48x256xf32>, i32 -> vector<48x256xf32>
    %483 = vector.extract_strided_slice %452 {offsets = [0, 2], sizes = [48, 1], strides = [1, 1]} : vector<48x9xf32> to vector<48x1xf32>
    %484 = vector.broadcast %483 : vector<48x1xf32> to vector<48x256xf32>
    %485 = arith.mulf %482, %484 : vector<48x256xf32>
    %c2_242 = arith.constant 2 : index
    %c0_243 = arith.constant 0 : index
    %c0_244 = arith.constant 0 : index
    %486 = vector.load %arg1[%c2_242, %c0_243, %c0_244] : memref<9x1x256xf32, #tpu.memory_space<vmem>>, vector<1x1x256xf32>
    %487 = vector.shape_cast %486 : vector<1x1x256xf32> to vector<1x256xf32>
    %488 = vector.broadcast %487 : vector<1x256xf32> to vector<48x256xf32>
    %489 = arith.mulf %485, %488 : vector<48x256xf32>
    %490 = arith.addf %481, %489 : vector<48x256xf32>
    %c1_i32_245 = arith.constant 1 : i32
    %491 = tpu.dynamic_rotate %460 by %c1_i32_245 dim 1 : vector<48x256xf32>, i32 -> vector<48x256xf32>
    %492 = vector.extract_strided_slice %452 {offsets = [0, 3], sizes = [48, 1], strides = [1, 1]} : vector<48x9xf32> to vector<48x1xf32>
    %493 = vector.broadcast %492 : vector<48x1xf32> to vector<48x256xf32>
    %494 = arith.mulf %491, %493 : vector<48x256xf32>
    %c3_246 = arith.constant 3 : index
    %c0_247 = arith.constant 0 : index
    %c0_248 = arith.constant 0 : index
    %495 = vector.load %arg1[%c3_246, %c0_247, %c0_248] : memref<9x1x256xf32, #tpu.memory_space<vmem>>, vector<1x1x256xf32>
    %496 = vector.shape_cast %495 : vector<1x1x256xf32> to vector<1x256xf32>
    %497 = vector.broadcast %496 : vector<1x256xf32> to vector<48x256xf32>
    %498 = arith.mulf %494, %497 : vector<48x256xf32>
    %499 = arith.addf %490, %498 : vector<48x256xf32>
    %c255_i32_249 = arith.constant 255 : i32
    %500 = tpu.dynamic_rotate %460 by %c255_i32_249 dim 1 : vector<48x256xf32>, i32 -> vector<48x256xf32>
    %501 = vector.extract_strided_slice %452 {offsets = [0, 5], sizes = [48, 1], strides = [1, 1]} : vector<48x9xf32> to vector<48x1xf32>
    %502 = vector.broadcast %501 : vector<48x1xf32> to vector<48x256xf32>
    %503 = arith.mulf %500, %502 : vector<48x256xf32>
    %c5_250 = arith.constant 5 : index
    %c0_251 = arith.constant 0 : index
    %c0_252 = arith.constant 0 : index
    %504 = vector.load %arg1[%c5_250, %c0_251, %c0_252] : memref<9x1x256xf32, #tpu.memory_space<vmem>>, vector<1x1x256xf32>
    %505 = vector.shape_cast %504 : vector<1x1x256xf32> to vector<1x256xf32>
    %506 = vector.broadcast %505 : vector<1x256xf32> to vector<48x256xf32>
    %507 = arith.mulf %503, %506 : vector<48x256xf32>
    %508 = arith.addf %499, %507 : vector<48x256xf32>
    %c241_i32_253 = arith.constant 241 : i32
    %509 = tpu.dynamic_rotate %460 by %c241_i32_253 dim 1 : vector<48x256xf32>, i32 -> vector<48x256xf32>
    %510 = vector.extract_strided_slice %452 {offsets = [0, 6], sizes = [48, 1], strides = [1, 1]} : vector<48x9xf32> to vector<48x1xf32>
    %511 = vector.broadcast %510 : vector<48x1xf32> to vector<48x256xf32>
    %512 = arith.mulf %509, %511 : vector<48x256xf32>
    %c6_254 = arith.constant 6 : index
    %c0_255 = arith.constant 0 : index
    %c0_256 = arith.constant 0 : index
    %513 = vector.load %arg1[%c6_254, %c0_255, %c0_256] : memref<9x1x256xf32, #tpu.memory_space<vmem>>, vector<1x1x256xf32>
    %514 = vector.shape_cast %513 : vector<1x1x256xf32> to vector<1x256xf32>
    %515 = vector.broadcast %514 : vector<1x256xf32> to vector<48x256xf32>
    %516 = arith.mulf %512, %515 : vector<48x256xf32>
    %517 = arith.addf %508, %516 : vector<48x256xf32>
    %c240_i32_257 = arith.constant 240 : i32
    %518 = tpu.dynamic_rotate %460 by %c240_i32_257 dim 1 : vector<48x256xf32>, i32 -> vector<48x256xf32>
    %519 = vector.extract_strided_slice %452 {offsets = [0, 7], sizes = [48, 1], strides = [1, 1]} : vector<48x9xf32> to vector<48x1xf32>
    %520 = vector.broadcast %519 : vector<48x1xf32> to vector<48x256xf32>
    %521 = arith.mulf %518, %520 : vector<48x256xf32>
    %c7_258 = arith.constant 7 : index
    %c0_259 = arith.constant 0 : index
    %c0_260 = arith.constant 0 : index
    %522 = vector.load %arg1[%c7_258, %c0_259, %c0_260] : memref<9x1x256xf32, #tpu.memory_space<vmem>>, vector<1x1x256xf32>
    %523 = vector.shape_cast %522 : vector<1x1x256xf32> to vector<1x256xf32>
    %524 = vector.broadcast %523 : vector<1x256xf32> to vector<48x256xf32>
    %525 = arith.mulf %521, %524 : vector<48x256xf32>
    %526 = arith.addf %517, %525 : vector<48x256xf32>
    %c239_i32_261 = arith.constant 239 : i32
    %527 = tpu.dynamic_rotate %460 by %c239_i32_261 dim 1 : vector<48x256xf32>, i32 -> vector<48x256xf32>
    %528 = vector.extract_strided_slice %452 {offsets = [0, 8], sizes = [48, 1], strides = [1, 1]} : vector<48x9xf32> to vector<48x1xf32>
    %529 = vector.broadcast %528 : vector<48x1xf32> to vector<48x256xf32>
    %530 = arith.mulf %527, %529 : vector<48x256xf32>
    %c8_262 = arith.constant 8 : index
    %c0_263 = arith.constant 0 : index
    %c0_264 = arith.constant 0 : index
    %531 = vector.load %arg1[%c8_262, %c0_263, %c0_264] : memref<9x1x256xf32, #tpu.memory_space<vmem>>, vector<1x1x256xf32>
    %532 = vector.shape_cast %531 : vector<1x1x256xf32> to vector<1x256xf32>
    %533 = vector.broadcast %532 : vector<1x256xf32> to vector<48x256xf32>
    %534 = arith.mulf %530, %533 : vector<48x256xf32>
    %535 = arith.addf %526, %534 : vector<48x256xf32>
    %cst_265 = arith.constant 0.000000e+00 : f32
    %cst_266 = arith.constant 6.000000e+00 : f32
    %536 = vector.broadcast %cst_265 : f32 to vector<48x256xf32>
    %537 = arith.maximumf %536, %535 : vector<48x256xf32>
    %538 = vector.broadcast %cst_266 : f32 to vector<48x256xf32>
    %539 = arith.minimumf %538, %537 : vector<48x256xf32>
    %540 = arith.truncf %539 : vector<48x256xf32> to vector<48x256xbf16>
    %cst_267 = arith.constant dense<0.000000e+00> : vector<8x256xf32>
    %541 = tpu.matmul %454, %540, %cst_267 {dimension_numbers = #tpu.dot_dimension_numbers<[1], [0], [0], [1], [0, 0, 1, 1], [], []>} : vector<8x48xbf16>, vector<48x256xbf16>, vector<8x256xf32> -> vector<8x256xf32>
    %542 = arith.addf %448, %541 : vector<8x256xf32>
    %c0_268 = arith.constant 0 : index
    %c0_269 = arith.constant 0 : index
    %c0_270 = arith.constant 0 : index
    %543 = vector.load %arg6[%c0_268, %c0_269, %c0_270] : memref<4x8x40xbf16, #tpu.memory_space<vmem>>, vector<1x8x40xbf16>
    %544 = vector.shape_cast %543 : vector<1x8x40xbf16> to vector<8x40xbf16>
    %545 = vector.extract_strided_slice %544 {offsets = [0, 0], sizes = [8, 16], strides = [1, 1]} : vector<8x40xbf16> to vector<8x16xbf16>
    %c0_271 = arith.constant 0 : index
    %c0_272 = arith.constant 0 : index
    %c0_273 = arith.constant 0 : index
    %546 = vector.load %arg7[%c0_271, %c0_272, %c0_273] : memref<4x8x1xf32, #tpu.memory_space<vmem>>, vector<1x8x1xf32>
    %547 = vector.shape_cast %546 : vector<1x8x1xf32> to vector<8x1xf32>
    %548 = arith.truncf %448 : vector<8x256xf32> to vector<8x256xbf16>
    %549 = arith.truncf %542 : vector<8x256xf32> to vector<8x256xbf16>
    %550 = tpu.concatenate %548, %549 in 0 : vector<8x256xbf16>, vector<8x256xbf16> -> vector<16x256xbf16>
    %cst_274 = arith.constant dense<0.000000e+00> : vector<8x256xf32>
    %551 = tpu.matmul %545, %550, %cst_274 {dimension_numbers = #tpu.dot_dimension_numbers<[1], [0], [0], [1], [0, 0, 1, 1], [], []>} : vector<8x16xbf16>, vector<16x256xbf16>, vector<8x256xf32> -> vector<8x256xf32>
    %552 = vector.broadcast %547 : vector<8x1xf32> to vector<8x256xf32>
    %553 = arith.addf %551, %552 : vector<8x256xf32>
    %cst_275 = arith.constant 0.000000e+00 : f32
    %554 = vector.broadcast %cst_275 : f32 to vector<8x256xf32>
    %555 = arith.maximumf %553, %554 : vector<8x256xf32>
    %c1_276 = arith.constant 1 : index
    %c0_277 = arith.constant 0 : index
    %c0_278 = arith.constant 0 : index
    %556 = vector.load %arg3[%c1_276, %c0_277, %c0_278] : memref<4x48x8xbf16, #tpu.memory_space<vmem>>, vector<1x48x8xbf16>
    %557 = vector.shape_cast %556 : vector<1x48x8xbf16> to vector<48x8xbf16>
    %c1_279 = arith.constant 1 : index
    %c0_280 = arith.constant 0 : index
    %c0_281 = arith.constant 0 : index
    %558 = vector.load %arg4[%c1_279, %c0_280, %c0_281] : memref<4x48x9xf32, #tpu.memory_space<vmem>>, vector<1x48x9xf32>
    %559 = vector.shape_cast %558 : vector<1x48x9xf32> to vector<48x9xf32>
    %c1_282 = arith.constant 1 : index
    %c0_283 = arith.constant 0 : index
    %c0_284 = arith.constant 0 : index
    %560 = vector.load %arg5[%c1_282, %c0_283, %c0_284] : memref<4x8x48xbf16, #tpu.memory_space<vmem>>, vector<1x8x48xbf16>
    %561 = vector.shape_cast %560 : vector<1x8x48xbf16> to vector<8x48xbf16>
    %562 = arith.truncf %555 : vector<8x256xf32> to vector<8x256xbf16>
    %cst_285 = arith.constant dense<0.000000e+00> : vector<48x256xf32>
    %563 = tpu.matmul %557, %562, %cst_285 {dimension_numbers = #tpu.dot_dimension_numbers<[1], [0], [0], [1], [0, 0, 1, 1], [], []>} : vector<48x8xbf16>, vector<8x256xbf16>, vector<48x256xf32> -> vector<48x256xf32>
    %cst_286 = arith.constant 0.000000e+00 : f32
    %cst_287 = arith.constant 6.000000e+00 : f32
    %564 = vector.broadcast %cst_286 : f32 to vector<48x256xf32>
    %565 = arith.maximumf %564, %563 : vector<48x256xf32>
    %566 = vector.broadcast %cst_287 : f32 to vector<48x256xf32>
    %567 = arith.minimumf %566, %565 : vector<48x256xf32>
    %568 = vector.extract_strided_slice %559 {offsets = [0, 4], sizes = [48, 1], strides = [1, 1]} : vector<48x9xf32> to vector<48x1xf32>
    %569 = vector.broadcast %568 : vector<48x1xf32> to vector<48x256xf32>
    %570 = arith.mulf %567, %569 : vector<48x256xf32>
    %c17_i32_288 = arith.constant 17 : i32
    %571 = tpu.dynamic_rotate %567 by %c17_i32_288 dim 1 : vector<48x256xf32>, i32 -> vector<48x256xf32>
    %572 = vector.extract_strided_slice %559 {offsets = [0, 0], sizes = [48, 1], strides = [1, 1]} : vector<48x9xf32> to vector<48x1xf32>
    %573 = vector.broadcast %572 : vector<48x1xf32> to vector<48x256xf32>
    %574 = arith.mulf %571, %573 : vector<48x256xf32>
    %c0_289 = arith.constant 0 : index
    %c0_290 = arith.constant 0 : index
    %c0_291 = arith.constant 0 : index
    %575 = vector.load %arg1[%c0_289, %c0_290, %c0_291] : memref<9x1x256xf32, #tpu.memory_space<vmem>>, vector<1x1x256xf32>
    %576 = vector.shape_cast %575 : vector<1x1x256xf32> to vector<1x256xf32>
    %577 = vector.broadcast %576 : vector<1x256xf32> to vector<48x256xf32>
    %578 = arith.mulf %574, %577 : vector<48x256xf32>
    %579 = arith.addf %570, %578 : vector<48x256xf32>
    %c16_i32_292 = arith.constant 16 : i32
    %580 = tpu.dynamic_rotate %567 by %c16_i32_292 dim 1 : vector<48x256xf32>, i32 -> vector<48x256xf32>
    %581 = vector.extract_strided_slice %559 {offsets = [0, 1], sizes = [48, 1], strides = [1, 1]} : vector<48x9xf32> to vector<48x1xf32>
    %582 = vector.broadcast %581 : vector<48x1xf32> to vector<48x256xf32>
    %583 = arith.mulf %580, %582 : vector<48x256xf32>
    %c1_293 = arith.constant 1 : index
    %c0_294 = arith.constant 0 : index
    %c0_295 = arith.constant 0 : index
    %584 = vector.load %arg1[%c1_293, %c0_294, %c0_295] : memref<9x1x256xf32, #tpu.memory_space<vmem>>, vector<1x1x256xf32>
    %585 = vector.shape_cast %584 : vector<1x1x256xf32> to vector<1x256xf32>
    %586 = vector.broadcast %585 : vector<1x256xf32> to vector<48x256xf32>
    %587 = arith.mulf %583, %586 : vector<48x256xf32>
    %588 = arith.addf %579, %587 : vector<48x256xf32>
    %c15_i32_296 = arith.constant 15 : i32
    %589 = tpu.dynamic_rotate %567 by %c15_i32_296 dim 1 : vector<48x256xf32>, i32 -> vector<48x256xf32>
    %590 = vector.extract_strided_slice %559 {offsets = [0, 2], sizes = [48, 1], strides = [1, 1]} : vector<48x9xf32> to vector<48x1xf32>
    %591 = vector.broadcast %590 : vector<48x1xf32> to vector<48x256xf32>
    %592 = arith.mulf %589, %591 : vector<48x256xf32>
    %c2_297 = arith.constant 2 : index
    %c0_298 = arith.constant 0 : index
    %c0_299 = arith.constant 0 : index
    %593 = vector.load %arg1[%c2_297, %c0_298, %c0_299] : memref<9x1x256xf32, #tpu.memory_space<vmem>>, vector<1x1x256xf32>
    %594 = vector.shape_cast %593 : vector<1x1x256xf32> to vector<1x256xf32>
    %595 = vector.broadcast %594 : vector<1x256xf32> to vector<48x256xf32>
    %596 = arith.mulf %592, %595 : vector<48x256xf32>
    %597 = arith.addf %588, %596 : vector<48x256xf32>
    %c1_i32_300 = arith.constant 1 : i32
    %598 = tpu.dynamic_rotate %567 by %c1_i32_300 dim 1 : vector<48x256xf32>, i32 -> vector<48x256xf32>
    %599 = vector.extract_strided_slice %559 {offsets = [0, 3], sizes = [48, 1], strides = [1, 1]} : vector<48x9xf32> to vector<48x1xf32>
    %600 = vector.broadcast %599 : vector<48x1xf32> to vector<48x256xf32>
    %601 = arith.mulf %598, %600 : vector<48x256xf32>
    %c3_301 = arith.constant 3 : index
    %c0_302 = arith.constant 0 : index
    %c0_303 = arith.constant 0 : index
    %602 = vector.load %arg1[%c3_301, %c0_302, %c0_303] : memref<9x1x256xf32, #tpu.memory_space<vmem>>, vector<1x1x256xf32>
    %603 = vector.shape_cast %602 : vector<1x1x256xf32> to vector<1x256xf32>
    %604 = vector.broadcast %603 : vector<1x256xf32> to vector<48x256xf32>
    %605 = arith.mulf %601, %604 : vector<48x256xf32>
    %606 = arith.addf %597, %605 : vector<48x256xf32>
    %c255_i32_304 = arith.constant 255 : i32
    %607 = tpu.dynamic_rotate %567 by %c255_i32_304 dim 1 : vector<48x256xf32>, i32 -> vector<48x256xf32>
    %608 = vector.extract_strided_slice %559 {offsets = [0, 5], sizes = [48, 1], strides = [1, 1]} : vector<48x9xf32> to vector<48x1xf32>
    %609 = vector.broadcast %608 : vector<48x1xf32> to vector<48x256xf32>
    %610 = arith.mulf %607, %609 : vector<48x256xf32>
    %c5_305 = arith.constant 5 : index
    %c0_306 = arith.constant 0 : index
    %c0_307 = arith.constant 0 : index
    %611 = vector.load %arg1[%c5_305, %c0_306, %c0_307] : memref<9x1x256xf32, #tpu.memory_space<vmem>>, vector<1x1x256xf32>
    %612 = vector.shape_cast %611 : vector<1x1x256xf32> to vector<1x256xf32>
    %613 = vector.broadcast %612 : vector<1x256xf32> to vector<48x256xf32>
    %614 = arith.mulf %610, %613 : vector<48x256xf32>
    %615 = arith.addf %606, %614 : vector<48x256xf32>
    %c241_i32_308 = arith.constant 241 : i32
    %616 = tpu.dynamic_rotate %567 by %c241_i32_308 dim 1 : vector<48x256xf32>, i32 -> vector<48x256xf32>
    %617 = vector.extract_strided_slice %559 {offsets = [0, 6], sizes = [48, 1], strides = [1, 1]} : vector<48x9xf32> to vector<48x1xf32>
    %618 = vector.broadcast %617 : vector<48x1xf32> to vector<48x256xf32>
    %619 = arith.mulf %616, %618 : vector<48x256xf32>
    %c6_309 = arith.constant 6 : index
    %c0_310 = arith.constant 0 : index
    %c0_311 = arith.constant 0 : index
    %620 = vector.load %arg1[%c6_309, %c0_310, %c0_311] : memref<9x1x256xf32, #tpu.memory_space<vmem>>, vector<1x1x256xf32>
    %621 = vector.shape_cast %620 : vector<1x1x256xf32> to vector<1x256xf32>
    %622 = vector.broadcast %621 : vector<1x256xf32> to vector<48x256xf32>
    %623 = arith.mulf %619, %622 : vector<48x256xf32>
    %624 = arith.addf %615, %623 : vector<48x256xf32>
    %c240_i32_312 = arith.constant 240 : i32
    %625 = tpu.dynamic_rotate %567 by %c240_i32_312 dim 1 : vector<48x256xf32>, i32 -> vector<48x256xf32>
    %626 = vector.extract_strided_slice %559 {offsets = [0, 7], sizes = [48, 1], strides = [1, 1]} : vector<48x9xf32> to vector<48x1xf32>
    %627 = vector.broadcast %626 : vector<48x1xf32> to vector<48x256xf32>
    %628 = arith.mulf %625, %627 : vector<48x256xf32>
    %c7_313 = arith.constant 7 : index
    %c0_314 = arith.constant 0 : index
    %c0_315 = arith.constant 0 : index
    %629 = vector.load %arg1[%c7_313, %c0_314, %c0_315] : memref<9x1x256xf32, #tpu.memory_space<vmem>>, vector<1x1x256xf32>
    %630 = vector.shape_cast %629 : vector<1x1x256xf32> to vector<1x256xf32>
    %631 = vector.broadcast %630 : vector<1x256xf32> to vector<48x256xf32>
    %632 = arith.mulf %628, %631 : vector<48x256xf32>
    %633 = arith.addf %624, %632 : vector<48x256xf32>
    %c239_i32_316 = arith.constant 239 : i32
    %634 = tpu.dynamic_rotate %567 by %c239_i32_316 dim 1 : vector<48x256xf32>, i32 -> vector<48x256xf32>
    %635 = vector.extract_strided_slice %559 {offsets = [0, 8], sizes = [48, 1], strides = [1, 1]} : vector<48x9xf32> to vector<48x1xf32>
    %636 = vector.broadcast %635 : vector<48x1xf32> to vector<48x256xf32>
    %637 = arith.mulf %634, %636 : vector<48x256xf32>
    %c8_317 = arith.constant 8 : index
    %c0_318 = arith.constant 0 : index
    %c0_319 = arith.constant 0 : index
    %638 = vector.load %arg1[%c8_317, %c0_318, %c0_319] : memref<9x1x256xf32, #tpu.memory_space<vmem>>, vector<1x1x256xf32>
    %639 = vector.shape_cast %638 : vector<1x1x256xf32> to vector<1x256xf32>
    %640 = vector.broadcast %639 : vector<1x256xf32> to vector<48x256xf32>
    %641 = arith.mulf %637, %640 : vector<48x256xf32>
    %642 = arith.addf %633, %641 : vector<48x256xf32>
    %cst_320 = arith.constant 0.000000e+00 : f32
    %cst_321 = arith.constant 6.000000e+00 : f32
    %643 = vector.broadcast %cst_320 : f32 to vector<48x256xf32>
    %644 = arith.maximumf %643, %642 : vector<48x256xf32>
    %645 = vector.broadcast %cst_321 : f32 to vector<48x256xf32>
    %646 = arith.minimumf %645, %644 : vector<48x256xf32>
    %647 = arith.truncf %646 : vector<48x256xf32> to vector<48x256xbf16>
    %cst_322 = arith.constant dense<0.000000e+00> : vector<8x256xf32>
    %648 = tpu.matmul %561, %647, %cst_322 {dimension_numbers = #tpu.dot_dimension_numbers<[1], [0], [0], [1], [0, 0, 1, 1], [], []>} : vector<8x48xbf16>, vector<48x256xbf16>, vector<8x256xf32> -> vector<8x256xf32>
    %649 = arith.addf %555, %648 : vector<8x256xf32>
    %c1_323 = arith.constant 1 : index
    %c0_324 = arith.constant 0 : index
    %c0_325 = arith.constant 0 : index
    %650 = vector.load %arg6[%c1_323, %c0_324, %c0_325] : memref<4x8x40xbf16, #tpu.memory_space<vmem>>, vector<1x8x40xbf16>
    %651 = vector.shape_cast %650 : vector<1x8x40xbf16> to vector<8x40xbf16>
    %652 = vector.extract_strided_slice %651 {offsets = [0, 0], sizes = [8, 24], strides = [1, 1]} : vector<8x40xbf16> to vector<8x24xbf16>
    %c1_326 = arith.constant 1 : index
    %c0_327 = arith.constant 0 : index
    %c0_328 = arith.constant 0 : index
    %653 = vector.load %arg7[%c1_326, %c0_327, %c0_328] : memref<4x8x1xf32, #tpu.memory_space<vmem>>, vector<1x8x1xf32>
    %654 = vector.shape_cast %653 : vector<1x8x1xf32> to vector<8x1xf32>
    %655 = arith.truncf %448 : vector<8x256xf32> to vector<8x256xbf16>
    %656 = arith.truncf %542 : vector<8x256xf32> to vector<8x256xbf16>
    %657 = arith.truncf %649 : vector<8x256xf32> to vector<8x256xbf16>
    %658 = tpu.concatenate %655, %656, %657 in 0 : vector<8x256xbf16>, vector<8x256xbf16>, vector<8x256xbf16> -> vector<24x256xbf16>
    %cst_329 = arith.constant dense<0.000000e+00> : vector<8x256xf32>
    %659 = tpu.matmul %652, %658, %cst_329 {dimension_numbers = #tpu.dot_dimension_numbers<[1], [0], [0], [1], [0, 0, 1, 1], [], []>} : vector<8x24xbf16>, vector<24x256xbf16>, vector<8x256xf32> -> vector<8x256xf32>
    %660 = vector.broadcast %654 : vector<8x1xf32> to vector<8x256xf32>
    %661 = arith.addf %659, %660 : vector<8x256xf32>
    %cst_330 = arith.constant 0.000000e+00 : f32
    %662 = vector.broadcast %cst_330 : f32 to vector<8x256xf32>
    %663 = arith.maximumf %661, %662 : vector<8x256xf32>
    %c2_331 = arith.constant 2 : index
    %c0_332 = arith.constant 0 : index
    %c0_333 = arith.constant 0 : index
    %664 = vector.load %arg3[%c2_331, %c0_332, %c0_333] : memref<4x48x8xbf16, #tpu.memory_space<vmem>>, vector<1x48x8xbf16>
    %665 = vector.shape_cast %664 : vector<1x48x8xbf16> to vector<48x8xbf16>
    %c2_334 = arith.constant 2 : index
    %c0_335 = arith.constant 0 : index
    %c0_336 = arith.constant 0 : index
    %666 = vector.load %arg4[%c2_334, %c0_335, %c0_336] : memref<4x48x9xf32, #tpu.memory_space<vmem>>, vector<1x48x9xf32>
    %667 = vector.shape_cast %666 : vector<1x48x9xf32> to vector<48x9xf32>
    %c2_337 = arith.constant 2 : index
    %c0_338 = arith.constant 0 : index
    %c0_339 = arith.constant 0 : index
    %668 = vector.load %arg5[%c2_337, %c0_338, %c0_339] : memref<4x8x48xbf16, #tpu.memory_space<vmem>>, vector<1x8x48xbf16>
    %669 = vector.shape_cast %668 : vector<1x8x48xbf16> to vector<8x48xbf16>
    %670 = arith.truncf %663 : vector<8x256xf32> to vector<8x256xbf16>
    %cst_340 = arith.constant dense<0.000000e+00> : vector<48x256xf32>
    %671 = tpu.matmul %665, %670, %cst_340 {dimension_numbers = #tpu.dot_dimension_numbers<[1], [0], [0], [1], [0, 0, 1, 1], [], []>} : vector<48x8xbf16>, vector<8x256xbf16>, vector<48x256xf32> -> vector<48x256xf32>
    %cst_341 = arith.constant 0.000000e+00 : f32
    %cst_342 = arith.constant 6.000000e+00 : f32
    %672 = vector.broadcast %cst_341 : f32 to vector<48x256xf32>
    %673 = arith.maximumf %672, %671 : vector<48x256xf32>
    %674 = vector.broadcast %cst_342 : f32 to vector<48x256xf32>
    %675 = arith.minimumf %674, %673 : vector<48x256xf32>
    %676 = vector.extract_strided_slice %667 {offsets = [0, 4], sizes = [48, 1], strides = [1, 1]} : vector<48x9xf32> to vector<48x1xf32>
    %677 = vector.broadcast %676 : vector<48x1xf32> to vector<48x256xf32>
    %678 = arith.mulf %675, %677 : vector<48x256xf32>
    %c17_i32_343 = arith.constant 17 : i32
    %679 = tpu.dynamic_rotate %675 by %c17_i32_343 dim 1 : vector<48x256xf32>, i32 -> vector<48x256xf32>
    %680 = vector.extract_strided_slice %667 {offsets = [0, 0], sizes = [48, 1], strides = [1, 1]} : vector<48x9xf32> to vector<48x1xf32>
    %681 = vector.broadcast %680 : vector<48x1xf32> to vector<48x256xf32>
    %682 = arith.mulf %679, %681 : vector<48x256xf32>
    %c0_344 = arith.constant 0 : index
    %c0_345 = arith.constant 0 : index
    %c0_346 = arith.constant 0 : index
    %683 = vector.load %arg1[%c0_344, %c0_345, %c0_346] : memref<9x1x256xf32, #tpu.memory_space<vmem>>, vector<1x1x256xf32>
    %684 = vector.shape_cast %683 : vector<1x1x256xf32> to vector<1x256xf32>
    %685 = vector.broadcast %684 : vector<1x256xf32> to vector<48x256xf32>
    %686 = arith.mulf %682, %685 : vector<48x256xf32>
    %687 = arith.addf %678, %686 : vector<48x256xf32>
    %c16_i32_347 = arith.constant 16 : i32
    %688 = tpu.dynamic_rotate %675 by %c16_i32_347 dim 1 : vector<48x256xf32>, i32 -> vector<48x256xf32>
    %689 = vector.extract_strided_slice %667 {offsets = [0, 1], sizes = [48, 1], strides = [1, 1]} : vector<48x9xf32> to vector<48x1xf32>
    %690 = vector.broadcast %689 : vector<48x1xf32> to vector<48x256xf32>
    %691 = arith.mulf %688, %690 : vector<48x256xf32>
    %c1_348 = arith.constant 1 : index
    %c0_349 = arith.constant 0 : index
    %c0_350 = arith.constant 0 : index
    %692 = vector.load %arg1[%c1_348, %c0_349, %c0_350] : memref<9x1x256xf32, #tpu.memory_space<vmem>>, vector<1x1x256xf32>
    %693 = vector.shape_cast %692 : vector<1x1x256xf32> to vector<1x256xf32>
    %694 = vector.broadcast %693 : vector<1x256xf32> to vector<48x256xf32>
    %695 = arith.mulf %691, %694 : vector<48x256xf32>
    %696 = arith.addf %687, %695 : vector<48x256xf32>
    %c15_i32_351 = arith.constant 15 : i32
    %697 = tpu.dynamic_rotate %675 by %c15_i32_351 dim 1 : vector<48x256xf32>, i32 -> vector<48x256xf32>
    %698 = vector.extract_strided_slice %667 {offsets = [0, 2], sizes = [48, 1], strides = [1, 1]} : vector<48x9xf32> to vector<48x1xf32>
    %699 = vector.broadcast %698 : vector<48x1xf32> to vector<48x256xf32>
    %700 = arith.mulf %697, %699 : vector<48x256xf32>
    %c2_352 = arith.constant 2 : index
    %c0_353 = arith.constant 0 : index
    %c0_354 = arith.constant 0 : index
    %701 = vector.load %arg1[%c2_352, %c0_353, %c0_354] : memref<9x1x256xf32, #tpu.memory_space<vmem>>, vector<1x1x256xf32>
    %702 = vector.shape_cast %701 : vector<1x1x256xf32> to vector<1x256xf32>
    %703 = vector.broadcast %702 : vector<1x256xf32> to vector<48x256xf32>
    %704 = arith.mulf %700, %703 : vector<48x256xf32>
    %705 = arith.addf %696, %704 : vector<48x256xf32>
    %c1_i32_355 = arith.constant 1 : i32
    %706 = tpu.dynamic_rotate %675 by %c1_i32_355 dim 1 : vector<48x256xf32>, i32 -> vector<48x256xf32>
    %707 = vector.extract_strided_slice %667 {offsets = [0, 3], sizes = [48, 1], strides = [1, 1]} : vector<48x9xf32> to vector<48x1xf32>
    %708 = vector.broadcast %707 : vector<48x1xf32> to vector<48x256xf32>
    %709 = arith.mulf %706, %708 : vector<48x256xf32>
    %c3_356 = arith.constant 3 : index
    %c0_357 = arith.constant 0 : index
    %c0_358 = arith.constant 0 : index
    %710 = vector.load %arg1[%c3_356, %c0_357, %c0_358] : memref<9x1x256xf32, #tpu.memory_space<vmem>>, vector<1x1x256xf32>
    %711 = vector.shape_cast %710 : vector<1x1x256xf32> to vector<1x256xf32>
    %712 = vector.broadcast %711 : vector<1x256xf32> to vector<48x256xf32>
    %713 = arith.mulf %709, %712 : vector<48x256xf32>
    %714 = arith.addf %705, %713 : vector<48x256xf32>
    %c255_i32_359 = arith.constant 255 : i32
    %715 = tpu.dynamic_rotate %675 by %c255_i32_359 dim 1 : vector<48x256xf32>, i32 -> vector<48x256xf32>
    %716 = vector.extract_strided_slice %667 {offsets = [0, 5], sizes = [48, 1], strides = [1, 1]} : vector<48x9xf32> to vector<48x1xf32>
    %717 = vector.broadcast %716 : vector<48x1xf32> to vector<48x256xf32>
    %718 = arith.mulf %715, %717 : vector<48x256xf32>
    %c5_360 = arith.constant 5 : index
    %c0_361 = arith.constant 0 : index
    %c0_362 = arith.constant 0 : index
    %719 = vector.load %arg1[%c5_360, %c0_361, %c0_362] : memref<9x1x256xf32, #tpu.memory_space<vmem>>, vector<1x1x256xf32>
    %720 = vector.shape_cast %719 : vector<1x1x256xf32> to vector<1x256xf32>
    %721 = vector.broadcast %720 : vector<1x256xf32> to vector<48x256xf32>
    %722 = arith.mulf %718, %721 : vector<48x256xf32>
    %723 = arith.addf %714, %722 : vector<48x256xf32>
    %c241_i32_363 = arith.constant 241 : i32
    %724 = tpu.dynamic_rotate %675 by %c241_i32_363 dim 1 : vector<48x256xf32>, i32 -> vector<48x256xf32>
    %725 = vector.extract_strided_slice %667 {offsets = [0, 6], sizes = [48, 1], strides = [1, 1]} : vector<48x9xf32> to vector<48x1xf32>
    %726 = vector.broadcast %725 : vector<48x1xf32> to vector<48x256xf32>
    %727 = arith.mulf %724, %726 : vector<48x256xf32>
    %c6_364 = arith.constant 6 : index
    %c0_365 = arith.constant 0 : index
    %c0_366 = arith.constant 0 : index
    %728 = vector.load %arg1[%c6_364, %c0_365, %c0_366] : memref<9x1x256xf32, #tpu.memory_space<vmem>>, vector<1x1x256xf32>
    %729 = vector.shape_cast %728 : vector<1x1x256xf32> to vector<1x256xf32>
    %730 = vector.broadcast %729 : vector<1x256xf32> to vector<48x256xf32>
    %731 = arith.mulf %727, %730 : vector<48x256xf32>
    %732 = arith.addf %723, %731 : vector<48x256xf32>
    %c240_i32_367 = arith.constant 240 : i32
    %733 = tpu.dynamic_rotate %675 by %c240_i32_367 dim 1 : vector<48x256xf32>, i32 -> vector<48x256xf32>
    %734 = vector.extract_strided_slice %667 {offsets = [0, 7], sizes = [48, 1], strides = [1, 1]} : vector<48x9xf32> to vector<48x1xf32>
    %735 = vector.broadcast %734 : vector<48x1xf32> to vector<48x256xf32>
    %736 = arith.mulf %733, %735 : vector<48x256xf32>
    %c7_368 = arith.constant 7 : index
    %c0_369 = arith.constant 0 : index
    %c0_370 = arith.constant 0 : index
    %737 = vector.load %arg1[%c7_368, %c0_369, %c0_370] : memref<9x1x256xf32, #tpu.memory_space<vmem>>, vector<1x1x256xf32>
    %738 = vector.shape_cast %737 : vector<1x1x256xf32> to vector<1x256xf32>
    %739 = vector.broadcast %738 : vector<1x256xf32> to vector<48x256xf32>
    %740 = arith.mulf %736, %739 : vector<48x256xf32>
    %741 = arith.addf %732, %740 : vector<48x256xf32>
    %c239_i32_371 = arith.constant 239 : i32
    %742 = tpu.dynamic_rotate %675 by %c239_i32_371 dim 1 : vector<48x256xf32>, i32 -> vector<48x256xf32>
    %743 = vector.extract_strided_slice %667 {offsets = [0, 8], sizes = [48, 1], strides = [1, 1]} : vector<48x9xf32> to vector<48x1xf32>
    %744 = vector.broadcast %743 : vector<48x1xf32> to vector<48x256xf32>
    %745 = arith.mulf %742, %744 : vector<48x256xf32>
    %c8_372 = arith.constant 8 : index
    %c0_373 = arith.constant 0 : index
    %c0_374 = arith.constant 0 : index
    %746 = vector.load %arg1[%c8_372, %c0_373, %c0_374] : memref<9x1x256xf32, #tpu.memory_space<vmem>>, vector<1x1x256xf32>
    %747 = vector.shape_cast %746 : vector<1x1x256xf32> to vector<1x256xf32>
    %748 = vector.broadcast %747 : vector<1x256xf32> to vector<48x256xf32>
    %749 = arith.mulf %745, %748 : vector<48x256xf32>
    %750 = arith.addf %741, %749 : vector<48x256xf32>
    %cst_375 = arith.constant 0.000000e+00 : f32
    %cst_376 = arith.constant 6.000000e+00 : f32
    %751 = vector.broadcast %cst_375 : f32 to vector<48x256xf32>
    %752 = arith.maximumf %751, %750 : vector<48x256xf32>
    %753 = vector.broadcast %cst_376 : f32 to vector<48x256xf32>
    %754 = arith.minimumf %753, %752 : vector<48x256xf32>
    %755 = arith.truncf %754 : vector<48x256xf32> to vector<48x256xbf16>
    %cst_377 = arith.constant dense<0.000000e+00> : vector<8x256xf32>
    %756 = tpu.matmul %669, %755, %cst_377 {dimension_numbers = #tpu.dot_dimension_numbers<[1], [0], [0], [1], [0, 0, 1, 1], [], []>} : vector<8x48xbf16>, vector<48x256xbf16>, vector<8x256xf32> -> vector<8x256xf32>
    %757 = arith.addf %663, %756 : vector<8x256xf32>
    %c2_378 = arith.constant 2 : index
    %c0_379 = arith.constant 0 : index
    %c0_380 = arith.constant 0 : index
    %758 = vector.load %arg6[%c2_378, %c0_379, %c0_380] : memref<4x8x40xbf16, #tpu.memory_space<vmem>>, vector<1x8x40xbf16>
    %759 = vector.shape_cast %758 : vector<1x8x40xbf16> to vector<8x40xbf16>
    %760 = vector.extract_strided_slice %759 {offsets = [0, 0], sizes = [8, 32], strides = [1, 1]} : vector<8x40xbf16> to vector<8x32xbf16>
    %c2_381 = arith.constant 2 : index
    %c0_382 = arith.constant 0 : index
    %c0_383 = arith.constant 0 : index
    %761 = vector.load %arg7[%c2_381, %c0_382, %c0_383] : memref<4x8x1xf32, #tpu.memory_space<vmem>>, vector<1x8x1xf32>
    %762 = vector.shape_cast %761 : vector<1x8x1xf32> to vector<8x1xf32>
    %763 = arith.truncf %448 : vector<8x256xf32> to vector<8x256xbf16>
    %764 = arith.truncf %542 : vector<8x256xf32> to vector<8x256xbf16>
    %765 = arith.truncf %649 : vector<8x256xf32> to vector<8x256xbf16>
    %766 = arith.truncf %757 : vector<8x256xf32> to vector<8x256xbf16>
    %767 = tpu.concatenate %763, %764, %765, %766 in 0 : vector<8x256xbf16>, vector<8x256xbf16>, vector<8x256xbf16>, vector<8x256xbf16> -> vector<32x256xbf16>
    %cst_384 = arith.constant dense<0.000000e+00> : vector<8x256xf32>
    %768 = tpu.matmul %760, %767, %cst_384 {dimension_numbers = #tpu.dot_dimension_numbers<[1], [0], [0], [1], [0, 0, 1, 1], [], []>} : vector<8x32xbf16>, vector<32x256xbf16>, vector<8x256xf32> -> vector<8x256xf32>
    %769 = vector.broadcast %762 : vector<8x1xf32> to vector<8x256xf32>
    %770 = arith.addf %768, %769 : vector<8x256xf32>
    %cst_385 = arith.constant 0.000000e+00 : f32
    %771 = vector.broadcast %cst_385 : f32 to vector<8x256xf32>
    %772 = arith.maximumf %770, %771 : vector<8x256xf32>
    %c3_386 = arith.constant 3 : index
    %c0_387 = arith.constant 0 : index
    %c0_388 = arith.constant 0 : index
    %773 = vector.load %arg3[%c3_386, %c0_387, %c0_388] : memref<4x48x8xbf16, #tpu.memory_space<vmem>>, vector<1x48x8xbf16>
    %774 = vector.shape_cast %773 : vector<1x48x8xbf16> to vector<48x8xbf16>
    %c3_389 = arith.constant 3 : index
    %c0_390 = arith.constant 0 : index
    %c0_391 = arith.constant 0 : index
    %775 = vector.load %arg4[%c3_389, %c0_390, %c0_391] : memref<4x48x9xf32, #tpu.memory_space<vmem>>, vector<1x48x9xf32>
    %776 = vector.shape_cast %775 : vector<1x48x9xf32> to vector<48x9xf32>
    %c3_392 = arith.constant 3 : index
    %c0_393 = arith.constant 0 : index
    %c0_394 = arith.constant 0 : index
    %777 = vector.load %arg5[%c3_392, %c0_393, %c0_394] : memref<4x8x48xbf16, #tpu.memory_space<vmem>>, vector<1x8x48xbf16>
    %778 = vector.shape_cast %777 : vector<1x8x48xbf16> to vector<8x48xbf16>
    %779 = arith.truncf %772 : vector<8x256xf32> to vector<8x256xbf16>
    %cst_395 = arith.constant dense<0.000000e+00> : vector<48x256xf32>
    %780 = tpu.matmul %774, %779, %cst_395 {dimension_numbers = #tpu.dot_dimension_numbers<[1], [0], [0], [1], [0, 0, 1, 1], [], []>} : vector<48x8xbf16>, vector<8x256xbf16>, vector<48x256xf32> -> vector<48x256xf32>
    %cst_396 = arith.constant 0.000000e+00 : f32
    %cst_397 = arith.constant 6.000000e+00 : f32
    %781 = vector.broadcast %cst_396 : f32 to vector<48x256xf32>
    %782 = arith.maximumf %781, %780 : vector<48x256xf32>
    %783 = vector.broadcast %cst_397 : f32 to vector<48x256xf32>
    %784 = arith.minimumf %783, %782 : vector<48x256xf32>
    %785 = vector.extract_strided_slice %776 {offsets = [0, 4], sizes = [48, 1], strides = [1, 1]} : vector<48x9xf32> to vector<48x1xf32>
    %786 = vector.broadcast %785 : vector<48x1xf32> to vector<48x256xf32>
    %787 = arith.mulf %784, %786 : vector<48x256xf32>
    %c17_i32_398 = arith.constant 17 : i32
    %788 = tpu.dynamic_rotate %784 by %c17_i32_398 dim 1 : vector<48x256xf32>, i32 -> vector<48x256xf32>
    %789 = vector.extract_strided_slice %776 {offsets = [0, 0], sizes = [48, 1], strides = [1, 1]} : vector<48x9xf32> to vector<48x1xf32>
    %790 = vector.broadcast %789 : vector<48x1xf32> to vector<48x256xf32>
    %791 = arith.mulf %788, %790 : vector<48x256xf32>
    %c0_399 = arith.constant 0 : index
    %c0_400 = arith.constant 0 : index
    %c0_401 = arith.constant 0 : index
    %792 = vector.load %arg1[%c0_399, %c0_400, %c0_401] : memref<9x1x256xf32, #tpu.memory_space<vmem>>, vector<1x1x256xf32>
    %793 = vector.shape_cast %792 : vector<1x1x256xf32> to vector<1x256xf32>
    %794 = vector.broadcast %793 : vector<1x256xf32> to vector<48x256xf32>
    %795 = arith.mulf %791, %794 : vector<48x256xf32>
    %796 = arith.addf %787, %795 : vector<48x256xf32>
    %c16_i32_402 = arith.constant 16 : i32
    %797 = tpu.dynamic_rotate %784 by %c16_i32_402 dim 1 : vector<48x256xf32>, i32 -> vector<48x256xf32>
    %798 = vector.extract_strided_slice %776 {offsets = [0, 1], sizes = [48, 1], strides = [1, 1]} : vector<48x9xf32> to vector<48x1xf32>
    %799 = vector.broadcast %798 : vector<48x1xf32> to vector<48x256xf32>
    %800 = arith.mulf %797, %799 : vector<48x256xf32>
    %c1_403 = arith.constant 1 : index
    %c0_404 = arith.constant 0 : index
    %c0_405 = arith.constant 0 : index
    %801 = vector.load %arg1[%c1_403, %c0_404, %c0_405] : memref<9x1x256xf32, #tpu.memory_space<vmem>>, vector<1x1x256xf32>
    %802 = vector.shape_cast %801 : vector<1x1x256xf32> to vector<1x256xf32>
    %803 = vector.broadcast %802 : vector<1x256xf32> to vector<48x256xf32>
    %804 = arith.mulf %800, %803 : vector<48x256xf32>
    %805 = arith.addf %796, %804 : vector<48x256xf32>
    %c15_i32_406 = arith.constant 15 : i32
    %806 = tpu.dynamic_rotate %784 by %c15_i32_406 dim 1 : vector<48x256xf32>, i32 -> vector<48x256xf32>
    %807 = vector.extract_strided_slice %776 {offsets = [0, 2], sizes = [48, 1], strides = [1, 1]} : vector<48x9xf32> to vector<48x1xf32>
    %808 = vector.broadcast %807 : vector<48x1xf32> to vector<48x256xf32>
    %809 = arith.mulf %806, %808 : vector<48x256xf32>
    %c2_407 = arith.constant 2 : index
    %c0_408 = arith.constant 0 : index
    %c0_409 = arith.constant 0 : index
    %810 = vector.load %arg1[%c2_407, %c0_408, %c0_409] : memref<9x1x256xf32, #tpu.memory_space<vmem>>, vector<1x1x256xf32>
    %811 = vector.shape_cast %810 : vector<1x1x256xf32> to vector<1x256xf32>
    %812 = vector.broadcast %811 : vector<1x256xf32> to vector<48x256xf32>
    %813 = arith.mulf %809, %812 : vector<48x256xf32>
    %814 = arith.addf %805, %813 : vector<48x256xf32>
    %c1_i32_410 = arith.constant 1 : i32
    %815 = tpu.dynamic_rotate %784 by %c1_i32_410 dim 1 : vector<48x256xf32>, i32 -> vector<48x256xf32>
    %816 = vector.extract_strided_slice %776 {offsets = [0, 3], sizes = [48, 1], strides = [1, 1]} : vector<48x9xf32> to vector<48x1xf32>
    %817 = vector.broadcast %816 : vector<48x1xf32> to vector<48x256xf32>
    %818 = arith.mulf %815, %817 : vector<48x256xf32>
    %c3_411 = arith.constant 3 : index
    %c0_412 = arith.constant 0 : index
    %c0_413 = arith.constant 0 : index
    %819 = vector.load %arg1[%c3_411, %c0_412, %c0_413] : memref<9x1x256xf32, #tpu.memory_space<vmem>>, vector<1x1x256xf32>
    %820 = vector.shape_cast %819 : vector<1x1x256xf32> to vector<1x256xf32>
    %821 = vector.broadcast %820 : vector<1x256xf32> to vector<48x256xf32>
    %822 = arith.mulf %818, %821 : vector<48x256xf32>
    %823 = arith.addf %814, %822 : vector<48x256xf32>
    %c255_i32_414 = arith.constant 255 : i32
    %824 = tpu.dynamic_rotate %784 by %c255_i32_414 dim 1 : vector<48x256xf32>, i32 -> vector<48x256xf32>
    %825 = vector.extract_strided_slice %776 {offsets = [0, 5], sizes = [48, 1], strides = [1, 1]} : vector<48x9xf32> to vector<48x1xf32>
    %826 = vector.broadcast %825 : vector<48x1xf32> to vector<48x256xf32>
    %827 = arith.mulf %824, %826 : vector<48x256xf32>
    %c5_415 = arith.constant 5 : index
    %c0_416 = arith.constant 0 : index
    %c0_417 = arith.constant 0 : index
    %828 = vector.load %arg1[%c5_415, %c0_416, %c0_417] : memref<9x1x256xf32, #tpu.memory_space<vmem>>, vector<1x1x256xf32>
    %829 = vector.shape_cast %828 : vector<1x1x256xf32> to vector<1x256xf32>
    %830 = vector.broadcast %829 : vector<1x256xf32> to vector<48x256xf32>
    %831 = arith.mulf %827, %830 : vector<48x256xf32>
    %832 = arith.addf %823, %831 : vector<48x256xf32>
    %c241_i32_418 = arith.constant 241 : i32
    %833 = tpu.dynamic_rotate %784 by %c241_i32_418 dim 1 : vector<48x256xf32>, i32 -> vector<48x256xf32>
    %834 = vector.extract_strided_slice %776 {offsets = [0, 6], sizes = [48, 1], strides = [1, 1]} : vector<48x9xf32> to vector<48x1xf32>
    %835 = vector.broadcast %834 : vector<48x1xf32> to vector<48x256xf32>
    %836 = arith.mulf %833, %835 : vector<48x256xf32>
    %c6_419 = arith.constant 6 : index
    %c0_420 = arith.constant 0 : index
    %c0_421 = arith.constant 0 : index
    %837 = vector.load %arg1[%c6_419, %c0_420, %c0_421] : memref<9x1x256xf32, #tpu.memory_space<vmem>>, vector<1x1x256xf32>
    %838 = vector.shape_cast %837 : vector<1x1x256xf32> to vector<1x256xf32>
    %839 = vector.broadcast %838 : vector<1x256xf32> to vector<48x256xf32>
    %840 = arith.mulf %836, %839 : vector<48x256xf32>
    %841 = arith.addf %832, %840 : vector<48x256xf32>
    %c240_i32_422 = arith.constant 240 : i32
    %842 = tpu.dynamic_rotate %784 by %c240_i32_422 dim 1 : vector<48x256xf32>, i32 -> vector<48x256xf32>
    %843 = vector.extract_strided_slice %776 {offsets = [0, 7], sizes = [48, 1], strides = [1, 1]} : vector<48x9xf32> to vector<48x1xf32>
    %844 = vector.broadcast %843 : vector<48x1xf32> to vector<48x256xf32>
    %845 = arith.mulf %842, %844 : vector<48x256xf32>
    %c7_423 = arith.constant 7 : index
    %c0_424 = arith.constant 0 : index
    %c0_425 = arith.constant 0 : index
    %846 = vector.load %arg1[%c7_423, %c0_424, %c0_425] : memref<9x1x256xf32, #tpu.memory_space<vmem>>, vector<1x1x256xf32>
    %847 = vector.shape_cast %846 : vector<1x1x256xf32> to vector<1x256xf32>
    %848 = vector.broadcast %847 : vector<1x256xf32> to vector<48x256xf32>
    %849 = arith.mulf %845, %848 : vector<48x256xf32>
    %850 = arith.addf %841, %849 : vector<48x256xf32>
    %c239_i32_426 = arith.constant 239 : i32
    %851 = tpu.dynamic_rotate %784 by %c239_i32_426 dim 1 : vector<48x256xf32>, i32 -> vector<48x256xf32>
    %852 = vector.extract_strided_slice %776 {offsets = [0, 8], sizes = [48, 1], strides = [1, 1]} : vector<48x9xf32> to vector<48x1xf32>
    %853 = vector.broadcast %852 : vector<48x1xf32> to vector<48x256xf32>
    %854 = arith.mulf %851, %853 : vector<48x256xf32>
    %c8_427 = arith.constant 8 : index
    %c0_428 = arith.constant 0 : index
    %c0_429 = arith.constant 0 : index
    %855 = vector.load %arg1[%c8_427, %c0_428, %c0_429] : memref<9x1x256xf32, #tpu.memory_space<vmem>>, vector<1x1x256xf32>
    %856 = vector.shape_cast %855 : vector<1x1x256xf32> to vector<1x256xf32>
    %857 = vector.broadcast %856 : vector<1x256xf32> to vector<48x256xf32>
    %858 = arith.mulf %854, %857 : vector<48x256xf32>
    %859 = arith.addf %850, %858 : vector<48x256xf32>
    %cst_430 = arith.constant 0.000000e+00 : f32
    %cst_431 = arith.constant 6.000000e+00 : f32
    %860 = vector.broadcast %cst_430 : f32 to vector<48x256xf32>
    %861 = arith.maximumf %860, %859 : vector<48x256xf32>
    %862 = vector.broadcast %cst_431 : f32 to vector<48x256xf32>
    %863 = arith.minimumf %862, %861 : vector<48x256xf32>
    %864 = arith.truncf %863 : vector<48x256xf32> to vector<48x256xbf16>
    %cst_432 = arith.constant dense<0.000000e+00> : vector<8x256xf32>
    %865 = tpu.matmul %778, %864, %cst_432 {dimension_numbers = #tpu.dot_dimension_numbers<[1], [0], [0], [1], [0, 0, 1, 1], [], []>} : vector<8x48xbf16>, vector<48x256xbf16>, vector<8x256xf32> -> vector<8x256xf32>
    %866 = arith.addf %772, %865 : vector<8x256xf32>
    %c3_433 = arith.constant 3 : index
    %c0_434 = arith.constant 0 : index
    %c0_435 = arith.constant 0 : index
    %867 = vector.load %arg6[%c3_433, %c0_434, %c0_435] : memref<4x8x40xbf16, #tpu.memory_space<vmem>>, vector<1x8x40xbf16>
    %868 = vector.shape_cast %867 : vector<1x8x40xbf16> to vector<8x40xbf16>
    %c3_436 = arith.constant 3 : index
    %c0_437 = arith.constant 0 : index
    %c0_438 = arith.constant 0 : index
    %869 = vector.load %arg7[%c3_436, %c0_437, %c0_438] : memref<4x8x1xf32, #tpu.memory_space<vmem>>, vector<1x8x1xf32>
    %870 = vector.shape_cast %869 : vector<1x8x1xf32> to vector<8x1xf32>
    %871 = arith.truncf %448 : vector<8x256xf32> to vector<8x256xbf16>
    %872 = arith.truncf %542 : vector<8x256xf32> to vector<8x256xbf16>
    %873 = arith.truncf %649 : vector<8x256xf32> to vector<8x256xbf16>
    %874 = arith.truncf %757 : vector<8x256xf32> to vector<8x256xbf16>
    %875 = arith.truncf %866 : vector<8x256xf32> to vector<8x256xbf16>
    %876 = tpu.concatenate %871, %872, %873, %874, %875 in 0 : vector<8x256xbf16>, vector<8x256xbf16>, vector<8x256xbf16>, vector<8x256xbf16>, vector<8x256xbf16> -> vector<40x256xbf16>
    %cst_439 = arith.constant dense<0.000000e+00> : vector<8x256xf32>
    %877 = tpu.matmul %868, %876, %cst_439 {dimension_numbers = #tpu.dot_dimension_numbers<[1], [0], [0], [1], [0, 0, 1, 1], [], []>} : vector<8x40xbf16>, vector<40x256xbf16>, vector<8x256xf32> -> vector<8x256xf32>
    %878 = vector.broadcast %870 : vector<8x1xf32> to vector<8x256xf32>
    %879 = arith.addf %877, %878 : vector<8x256xf32>
    %cst_440 = arith.constant 0.000000e+00 : f32
    %880 = vector.broadcast %cst_440 : f32 to vector<8x256xf32>
    %881 = arith.maximumf %879, %880 : vector<8x256xf32>
    %c1_441 = arith.constant 1 : index
    %c0_442 = arith.constant 0 : index
    %c0_443 = arith.constant 0 : index
    %882 = vector.load %arg8[%c1_441, %c0_442, %c0_443] : memref<2x8x256xf32, #tpu.memory_space<vmem>>, vector<1x8x256xf32>
    %883 = vector.shape_cast %882 : vector<1x8x256xf32> to vector<8x256xf32>
    %884 = vector.shape_cast %555 : vector<8x256xf32> to vector<1x8x256xf32>
    tpu.vector_store %arg8[%c1_441, %c0_442, %c0_443], %884 {strides = array<i32>} : memref<2x8x256xf32, #tpu.memory_space<vmem>>, vector<1x8x256xf32>,
    %c1_444 = arith.constant 1 : index
    %c0_445 = arith.constant 0 : index
    %c0_446 = arith.constant 0 : index
    %885 = vector.load %arg9[%c1_444, %c0_445, %c0_446] : memref<2x8x256xf32, #tpu.memory_space<vmem>>, vector<1x8x256xf32>
    %886 = vector.shape_cast %885 : vector<1x8x256xf32> to vector<8x256xf32>
    %887 = vector.shape_cast %663 : vector<8x256xf32> to vector<1x8x256xf32>
    tpu.vector_store %arg9[%c1_444, %c0_445, %c0_446], %887 {strides = array<i32>} : memref<2x8x256xf32, #tpu.memory_space<vmem>>, vector<1x8x256xf32>,
    %c1_447 = arith.constant 1 : index
    %c0_448 = arith.constant 0 : index
    %c0_449 = arith.constant 0 : index
    %888 = vector.load %arg10[%c1_447, %c0_448, %c0_449] : memref<2x8x256xf32, #tpu.memory_space<vmem>>, vector<1x8x256xf32>
    %889 = vector.shape_cast %888 : vector<1x8x256xf32> to vector<8x256xf32>
    %890 = vector.shape_cast %772 : vector<8x256xf32> to vector<1x8x256xf32>
    tpu.vector_store %arg10[%c1_447, %c0_448, %c0_449], %890 {strides = array<i32>} : memref<2x8x256xf32, #tpu.memory_space<vmem>>, vector<1x8x256xf32>,
    %c1_450 = arith.constant 1 : index
    %c0_451 = arith.constant 0 : index
    %c0_452 = arith.constant 0 : index
    %891 = vector.load %arg11[%c1_450, %c0_451, %c0_452] : memref<2x8x256xf32, #tpu.memory_space<vmem>>, vector<1x8x256xf32>
    %892 = vector.shape_cast %891 : vector<1x8x256xf32> to vector<8x256xf32>
    %893 = vector.shape_cast %881 : vector<8x256xf32> to vector<1x8x256xf32>
    tpu.vector_store %arg11[%c1_450, %c0_451, %c0_452], %893 {strides = array<i32>} : memref<2x8x256xf32, #tpu.memory_space<vmem>>, vector<1x8x256xf32>,
    return
  }
  func.func @transform_0(%arg0: i32) -> (i32, i32, i32) {
    %c0_i32 = arith.constant 0 : i32
    %c0_i32_0 = arith.constant 0 : i32
    %c0_i32_1 = arith.constant 0 : i32
    %c0_i32_2 = arith.constant 0 : i32
    return %c0_i32, %c0_i32_0, %c0_i32_1 : i32, i32, i32
  }
  func.func @transform_1(%arg0: i32) -> (i32, i32, i32) {
    %c0_i32 = arith.constant 0 : i32
    %c0_i32_0 = arith.constant 0 : i32
    %c0_i32_1 = arith.constant 0 : i32
    return %arg0, %c0_i32, %c0_i32_0 : i32, i32, i32
  }
  func.func @transform_2(%arg0: i32) -> (i32, i32, i32) {
    %c0_i32 = arith.constant 0 : i32
    %c0_i32_0 = arith.constant 0 : i32
    %c0_i32_1 = arith.constant 0 : i32
    %c0_i32_2 = arith.constant 0 : i32
    return %c0_i32, %c0_i32_0, %c0_i32_1 : i32, i32, i32
  }
  func.func @transform_3(%arg0: i32) -> (i32, i32, i32) {
    %c0_i32 = arith.constant 0 : i32
    %c0_i32_0 = arith.constant 0 : i32
    %c0_i32_1 = arith.constant 0 : i32
    %c0_i32_2 = arith.constant 0 : i32
    return %c0_i32, %c0_i32_0, %c0_i32_1 : i32, i32, i32
  }
  func.func @transform_4(%arg0: i32) -> (i32, i32, i32) {
    %c0_i32 = arith.constant 0 : i32
    %c0_i32_0 = arith.constant 0 : i32
    %c0_i32_1 = arith.constant 0 : i32
    %c0_i32_2 = arith.constant 0 : i32
    return %c0_i32, %c0_i32_0, %c0_i32_1 : i32, i32, i32
  }
  func.func @transform_5(%arg0: i32) -> (i32, i32, i32) {
    %c0_i32 = arith.constant 0 : i32
    %c0_i32_0 = arith.constant 0 : i32
    %c0_i32_1 = arith.constant 0 : i32
    %c0_i32_2 = arith.constant 0 : i32
    return %c0_i32, %c0_i32_0, %c0_i32_1 : i32, i32, i32
  }
  func.func @transform_6(%arg0: i32) -> (i32, i32, i32) {
    %c0_i32 = arith.constant 0 : i32
    %c0_i32_0 = arith.constant 0 : i32
    %c0_i32_1 = arith.constant 0 : i32
    %c0_i32_2 = arith.constant 0 : i32
    return %c0_i32, %c0_i32_0, %c0_i32_1 : i32, i32, i32
  }
  func.func @transform_7(%arg0: i32) -> (i32, i32, i32) {
    %c0_i32 = arith.constant 0 : i32
    %c0_i32_0 = arith.constant 0 : i32
    %c0_i32_1 = arith.constant 0 : i32
    return %arg0, %c0_i32, %c0_i32_0 : i32, i32, i32
  }
  func.func @transform_8(%arg0: i32) -> (i32, i32, i32) {
    %c0_i32 = arith.constant 0 : i32
    %c0_i32_0 = arith.constant 0 : i32
    %c0_i32_1 = arith.constant 0 : i32
    return %arg0, %c0_i32, %c0_i32_0 : i32, i32, i32
  }
  func.func @transform_9(%arg0: i32) -> (i32, i32, i32) {
    %c0_i32 = arith.constant 0 : i32
    %c0_i32_0 = arith.constant 0 : i32
    %c0_i32_1 = arith.constant 0 : i32
    return %arg0, %c0_i32, %c0_i32_0 : i32, i32, i32
  }
  func.func @transform_10(%arg0: i32) -> (i32, i32, i32) {
    %c0_i32 = arith.constant 0 : i32
    %c0_i32_0 = arith.constant 0 : i32
    %c0_i32_1 = arith.constant 0 : i32
    return %arg0, %c0_i32, %c0_i32_0 : i32, i32, i32
  }
}

</mosaic_0001>

<llo_original>
// kernel: first_block_forward.1
$region0: #{first_block_forward.1}
  #allocation0 [shape = 'u32[]', space=smem, size = 0x4, offset = 0x4, fixed_abs, tag = 'smem constant byte address 0x4 - core index']
  #allocation1 [shape = 'u32[144,128]{1,0:T(1,128)}', space=vmem, size = 0x12000, scoped, tag = 'internal scratch']
  %s0 = inlined_call_operand.hbm [shape: f32[9,1,256], index: 0, kind: input, shape index: {}]
  %s1 = inlined_call_operand.vmem [shape: f32[2,8,256], index: 1, kind: input, shape index: {}]
  %s2 = inlined_call_operand.vmem [shape: bf16[4,48,8], index: 2, kind: input, shape index: {}]
  %s3 = inlined_call_operand.vmem [shape: f32[4,48,9], index: 3, kind: input, shape index: {}]
  %s4 = inlined_call_operand.hbm [shape: bf16[4,8,48], index: 4, kind: input, shape index: {}]
  %s5 = inlined_call_operand.hbm [shape: bf16[4,8,40], index: 5, kind: input, shape index: {}]
  %s6 = inlined_call_operand.hbm [shape: f32[4,8,1], index: 6, kind: input, shape index: {}]
  %s7 = inlined_call_operand.vmem [shape: f32[2,8,256], index: 7, kind: output, shape index: {0}]
  %s8 = inlined_call_operand.vmem [shape: f32[2,8,256], index: 8, kind: output, shape index: {1}]
  %s9 = inlined_call_operand.vmem [shape: f32[2,8,256], index: 9, kind: output, shape index: {2}]
  %s10 = inlined_call_operand.vmem [shape: f32[2,8,256], index: 10, kind: output, shape index: {3}]
  %11 = xla_tuple %s7, %s8, %s9, %s10
  %s12 = sld [smem:[#allocation0]]
  $region78: #{first_block_forward.1} parent=0
    _
  %s14 = ssub.s32 1, %s12
  %s15 = scalar_select 0, %s14, %s12
  $region1: #{first_block_forward.1} parent=0
    #allocation2 [shape = 'u8[9216]{0}', space=vmem, size = 0x2400, scoped, tag = 'input window, operand 0, single buffered']
    #allocation3 [shape = 's32[1]{0}', space=sflag, size = 0x4, scoped, tag = 'scoped memory for first_block_forward.1']
    #allocation4 [shape = 'u8[8192]{0}', space=vmem, size = 0x2000, scoped, tag = 'input window, operand 4, single buffered']
    #allocation5 [shape = 's32[1]{0}', space=sflag, size = 0x4, scoped, tag = 'scoped memory for first_block_forward.1']
    #allocation6 [shape = 'u8[8192]{0}', space=vmem, size = 0x2000, scoped, tag = 'input window, operand 5, single buffered']
    #allocation7 [shape = 'u8[16384]{0}', space=vmem, size = 0x4000, scoped, tag = 'input window, operand 6, single buffered']
    #allocation8 [shape = 's32[1]{0}', space=sflag, size = 0x4, scoped, tag = 'scoped memory for first_block_forward.1']
    %16 = vsyncpa [#allocation3], 0
    %17 = vsyncpa [#allocation5], 0
    %18 = vsyncpa [#allocation8], 0
    // Predicated region
    $region2: #{first_block_forward.1} parent=1 // pred_check
      _
    $region3: #{first_block_forward.1} parent=1 // pred_check_branch
      %20 = sbr.rel (0) target = $region5
    $region4: #{first_block_forward.1} parent=1 // pred_region
      %s22 = ssub.s32 288, 288
      %23 = vsyncadd [#allocation3], %s22
      %s24 = sshll.u32 [#allocation2], 4
      %s25 = int_to_ptr.vmem [resolvable:$true] %s24
      %30 = dma.hbm_to_vmem [thread:$0]  %s0, 288, %s25, [#allocation3], 32, 32, 2
    $region5: #{first_block_forward.1} parent=1 // pred_fallthru
      _
    // Predicated region
    $region6: #{first_block_forward.1} parent=1 // pred_check
      _
    $region7: #{first_block_forward.1} parent=1 // pred_check_branch
      %32 = sbr.rel (0) target = $region9
    $region8: #{first_block_forward.1} parent=1 // pred_region
      _
    $region9: #{first_block_forward.1} parent=1 // pred_fallthru
      _
    // Predicated region
    $region10: #{first_block_forward.1} parent=1 // pred_check
      _
    $region11: #{first_block_forward.1} parent=1 // pred_check_branch
      %34 = sbr.rel (0) target = $region13
    $region12: #{first_block_forward.1} parent=1 // pred_region
      _
    $region13: #{first_block_forward.1} parent=1 // pred_fallthru
      _
    // Predicated region
    $region14: #{first_block_forward.1} parent=1 // pred_check
      _
    $region15: #{first_block_forward.1} parent=1 // pred_check_branch
      %36 = sbr.rel (0) target = $region17
    $region16: #{first_block_forward.1} parent=1 // pred_region
      _
    $region17: #{first_block_forward.1} parent=1 // pred_fallthru
      _
    // Predicated region
    $region18: #{first_block_forward.1} parent=1 // pred_check
      _
    $region19: #{first_block_forward.1} parent=1 // pred_check_branch
      %38 = sbr.rel (0) target = $region21
    $region20: #{first_block_forward.1} parent=1 // pred_region
      %s40 = ssub.s32 256, 256
      %41 = vsyncadd [#allocation5], %s40
      %s42 = sshll.u32 [#allocation4], 4
      %s43 = int_to_ptr.vmem [resolvable:$true] %s42
      %48 = dma.hbm_to_vmem [thread:$0]  %s4, 256, %s43, [#allocation5], 64, 64, 4
    $region21: #{first_block_forward.1} parent=1 // pred_fallthru
      _
    // Predicated region
    $region22: #{first_block_forward.1} parent=1 // pred_check
      _
    $region23: #{first_block_forward.1} parent=1 // pred_check_branch
      %50 = sbr.rel (0) target = $region25
    $region24: #{first_block_forward.1} parent=1 // pred_region
      %s52 = ssub.s32 256, 256
      %53 = vsyncadd [#allocation5], %s52
      %s54 = sshll.u32 [#allocation6], 4
      %s55 = int_to_ptr.vmem [resolvable:$true] %s54
      %60 = dma.hbm_to_vmem [thread:$0]  %s5, 256, %s55, [#allocation5], 64, 64, 4
    $region25: #{first_block_forward.1} parent=1 // pred_fallthru
      _
    // Predicated region
    $region26: #{first_block_forward.1} parent=1 // pred_check
      _
    $region27: #{first_block_forward.1} parent=1 // pred_check_branch
      %62 = sbr.rel (0) target = $region29
    $region28: #{first_block_forward.1} parent=1 // pred_region
      %s64 = ssub.s32 512, 512
      %65 = vsyncadd [#allocation8], %s64
      %s66 = sshll.u32 [#allocation7], 4
      %s67 = int_to_ptr.vmem [resolvable:$true] %s66
      %72 = dma.hbm_to_vmem [thread:$0]  %s6, 512, %s67, [#allocation8], 128, 128, 8
    $region29: #{first_block_forward.1} parent=1 // pred_fallthru
      _
    // Predicated region
    $region30: #{first_block_forward.1} parent=1 // pred_check
      _
    $region31: #{first_block_forward.1} parent=1 // pred_check_branch
      %74 = sbr.rel (0) target = $region33
    $region32: #{first_block_forward.1} parent=1 // pred_region
      %75 = dma.done [#allocation3], 288
    $region33: #{first_block_forward.1} parent=1 // pred_fallthru
      _
    // Predicated region
    $region34: #{first_block_forward.1} parent=1 // pred_check
      _
    $region35: #{first_block_forward.1} parent=1 // pred_check_branch
      %77 = sbr.rel (0) target = $region37
    $region36: #{first_block_forward.1} parent=1 // pred_region
      %78 = dma.done [#allocation5], 256
    $region37: #{first_block_forward.1} parent=1 // pred_fallthru
      _
    // Predicated region
    $region38: #{first_block_forward.1} parent=1 // pred_check
      _
    $region39: #{first_block_forward.1} parent=1 // pred_check_branch
      %80 = sbr.rel (0) target = $region41
    $region40: #{first_block_forward.1} parent=1 // pred_region
      %81 = dma.done [#allocation5], 256
    $region41: #{first_block_forward.1} parent=1 // pred_fallthru
      _
    // Predicated region
    $region42: #{first_block_forward.1} parent=1 // pred_check
      _
    $region43: #{first_block_forward.1} parent=1 // pred_check_branch
      %83 = sbr.rel (0) target = $region45
    $region44: #{first_block_forward.1} parent=1 // pred_region
      %84 = dma.done [#allocation8], 512
    $region45: #{first_block_forward.1} parent=1 // pred_fallthru
      _
    %v86 = vld [vmem:[%s1] sm:$0xff]
    %v87 = vld [vmem:[%s1 + $0x8] sm:$0xff]
    %v88 = vld [vmem:[%s2] sm:$0xf]
    %v89 = vld [vmem:[%s2 + $0x4] sm:$0xf]
    %v90 = vld [vmem:[%s2 + $0x8] sm:$0xf]
    %v91 = vld [vmem:[%s2 + $0xc] sm:$0xf]
    %v92 = vld [vmem:[%s2 + $0x10] sm:$0xf]
    %v93 = vld [vmem:[%s2 + $0x14] sm:$0xf]
    %v94 = vld [vmem:[%s3] sm:$0xff]
    %v95 = vld [vmem:[%s3 + $0x8] sm:$0xff]
    %v96 = vld [vmem:[%s3 + $0x10] sm:$0xff]
    %v97 = vld [vmem:[%s3 + $0x18] sm:$0xff]
    %v98 = vld [vmem:[%s3 + $0x20] sm:$0xff]
    %v99 = vld [vmem:[%s3 + $0x28] sm:$0xff]
    %v100 = vld [vmem:[#allocation4] sm:$0xf]
    %v101 = vpack.c.bf16 %v86, %v86
    %v102 = vpack.c.bf16 %v87, %v87
    %v109 = vunpack.c.l.b16 %v88
    %v110 = vunpack.c.l.b16 %v89
    %v111 = vunpack.c.l.b16 %v90
    %v112 = vunpack.c.l.b16 %v91
    %v113 = vunpack.c.l.b16 %v92
    %v114 = vunpack.c.l.b16 %v93
    %v115 = vpack.c.b16 %v110, %v109
    %v116 = vpack.c.b16 %v112, %v111
    %v117 = vpack.c.b16 %v114, %v113
    %vm118 = vcmask 64512
    %v120 = vsel %vm118, %v115, 0
    %v123 = vsel %vm118, %v116, 0
    %v126 = vsel %vm118, %v117, 0
    %vm128 = vcmask 1043456
    %v130 = vsel %vm128, %v101, 0
    %v133 = vsel %vm128, %v102, 0
    %135 = vmatprep.subr.bf16.mxu0 0
    %136 = vmatpush1.bf16.msra.mxu0 0
    %137 = vmatprep.subr.bf16.mxu0 0
    %138 = vmatpush1.bf16.msra.mxu0 0
    %139 = vmatprep.subr.bf16.mxu0 0
    %140 = vmatpush1.bf16.msra.mxu0 0
    %141 = vmatprep.subr.bf16.mxu0 0
    %142 = vmatpush1.bf16.msra.mxu0 0
    %143 = vmatprep.subr.bf16.mxu0 0
    %144 = vmatpush1.bf16.msra.mxu0 0
    %145 = vmatprep.subr.bf16.mxu0 0
    %146 = vmatpush1.bf16.msra.mxu0 0
    %147 = vmatprep.subr.bf16.mxu0 0
    %148 = vmatpush1.bf16.msra.mxu0 0
    %149 = vmatprep.subr.bf16.mxu0 %v133
    %150 = vmatpush1.bf16.msra.mxu0 %v130
    %151 = vmatprep.subr.bf16.mxu0 0
    %152 = vmatpush2.bf16.msra.mxu0 0
    %153 = vmatprep.subr.bf16.mxu0 0
    %154 = vmatpush2.bf16.msra.mxu0 0
    %155 = vmatprep.subr.bf16.mxu0 0
    %156 = vmatpush2.bf16.msra.mxu0 0
    %157 = vmatprep.subr.bf16.mxu0 0
    %158 = vmatpush2.bf16.msra.mxu0 0
    %159 = vmatprep.subr.bf16.mxu0 0
    %160 = vmatpush2.bf16.msra.mxu0 0
    %161 = vmatprep.subr.bf16.mxu0 0
    %162 = vmatpush2.bf16.msra.mxu0 0
    %163 = vmatprep.subr.bf16.mxu0 0
    %164 = vmatpush2.bf16.msra.mxu0 0
    %165 = vmatprep.subr.bf16.mxu0 0
    %166 = vmatpush2.bf16.msra.mxu0 0
    %167 = vmatprep.mubr.bf16.mxu0 0
    %168 = vmatmul.mubr.bf16.gmra.mxu0 %v120
    %v169 = vpop.f32.mrf.mxu0
    %v170 = vadd.f32 0.0, %v169
    %v171 = vpop.f32.mrf.mxu0
    %v172 = vadd.f32 0.0, %v171
    %v173 = vpop.f32.mrf.mxu0
    %v174 = vadd.f32 0.0, %v173
    %v175 = vpop.f32.mrf.mxu0
    %v176 = vadd.f32 0.0, %v175
    %177 = vmatprep.mubr.bf16.mxu0 0
    %178 = vmatmul.mubr.bf16.gmra.mxu0 %v123
    %v179 = vpop.f32.mrf.mxu0
    %v180 = vadd.f32 0.0, %v179
    %v181 = vpop.f32.mrf.mxu0
    %v182 = vadd.f32 0.0, %v181
    %v183 = vpop.f32.mrf.mxu0
    %v184 = vadd.f32 0.0, %v183
    %v185 = vpop.f32.mrf.mxu0
    %v186 = vadd.f32 0.0, %v185
    %187 = vmatprep.mubr.bf16.mxu0 0
    %188 = vmatmul.mubr.bf16.gmra.mxu0 %v126
    %v189 = vpop.f32.mrf.mxu0
    %v190 = vadd.f32 0.0, %v189
    %v191 = vpop.f32.mrf.mxu0
    %v192 = vadd.f32 0.0, %v191
    %v193 = vpop.f32.mrf.mxu0
    %v194 = vadd.f32 0.0, %v193
    %v195 = vpop.f32.mrf.mxu0
    %v196 = vadd.f32 0.0, %v195
    %197 = vdwg.mxu0
    %v198 = vmax.f32 %v170, 0.0
    %v199 = vmax.f32 %v172, 0.0
    %v200 = vmax.f32 %v174, 0.0
    %v201 = vmax.f32 %v176, 0.0
    %v202 = vmax.f32 %v180, 0.0
    %v203 = vmax.f32 %v182, 0.0
    %v204 = vmax.f32 %v184, 0.0
    %v205 = vmax.f32 %v186, 0.0
    %v206 = vmax.f32 %v190, 0.0
    %v207 = vmax.f32 %v192, 0.0
    %v208 = vmax.f32 %v194, 0.0
    %v209 = vmax.f32 %v196, 0.0
    %v210 = vmin.f32 %v198, 6.0
    %v211 = vmin.f32 %v199, 6.0
    %v212 = vmin.f32 %v200, 6.0
    %v213 = vmin.f32 %v201, 6.0
    %v214 = vmin.f32 %v202, 6.0
    %v215 = vmin.f32 %v203, 6.0
    %v216 = vmin.f32 %v204, 6.0
    %v217 = vmin.f32 %v205, 6.0
    %v218 = vmin.f32 %v206, 6.0
    %v219 = vmin.f32 %v207, 6.0
    %v220 = vmin.f32 %v208, 6.0
    %v221 = vmin.f32 %v209, 6.0
    %223 = vset.pattern.permute.xlu0 4
    %224 = vperm.xlu0 %223, %v94
    %v225 = vpop.permute.xlu0 %224
    %228 = vset.pattern.permute.xlu0 4
    %229 = vperm.xlu0 %228, %v95
    %v230 = vpop.permute.xlu0 %229
    %233 = vset.pattern.permute.xlu0 4
    %234 = vperm.xlu0 %233, %v96
    %v235 = vpop.permute.xlu0 %234
    %238 = vset.pattern.permute.xlu0 4
    %239 = vperm.xlu0 %238, %v97
    %v240 = vpop.permute.xlu0 %239
    %243 = vset.pattern.permute.xlu0 4
    %244 = vperm.xlu0 %243, %v98
    %v245 = vpop.permute.xlu0 %244
    %248 = vset.pattern.permute.xlu0 4
    %249 = vperm.xlu0 %248, %v99
    %v250 = vpop.permute.xlu0 %249
    %v252 = vmul.f32 %v210, %v225
    %v253 = vmul.f32 %v211, %v225
    %v254 = vmul.f32 %v212, %v230
    %v255 = vmul.f32 %v213, %v230
    %v256 = vmul.f32 %v214, %v235
    %v257 = vmul.f32 %v215, %v235
    %v258 = vmul.f32 %v216, %v240
    %v259 = vmul.f32 %v217, %v240
    %v260 = vmul.f32 %v218, %v245
    %v261 = vmul.f32 %v219, %v245
    %v262 = vmul.f32 %v220, %v250
    %v263 = vmul.f32 %v221, %v250
    %264 = vrot.lane.b32.xlu0 %v210, 17
    %v265 = vpop.permute.xlu0 %264
    %266 = vrot.lane.b32.xlu0 %v212, 17
    %v267 = vpop.permute.xlu0 %266
    %268 = vrot.lane.b32.xlu0 %v214, 17
    %v269 = vpop.permute.xlu0 %268
    %270 = vrot.lane.b32.xlu0 %v216, 17
    %v271 = vpop.permute.xlu0 %270
    %272 = vrot.lane.b32.xlu0 %v218, 17
    %v273 = vpop.permute.xlu0 %272
    %274 = vrot.lane.b32.xlu0 %v220, 17
    %v275 = vpop.permute.xlu0 %274
    %276 = vrot.lane.b32.xlu0 %v211, 17
    %v277 = vpop.permute.xlu0 %276
    %278 = vrot.lane.b32.xlu0 %v213, 17
    %v279 = vpop.permute.xlu0 %278
    %280 = vrot.lane.b32.xlu0 %v215, 17
    %v281 = vpop.permute.xlu0 %280
    %282 = vrot.lane.b32.xlu0 %v217, 17
    %v283 = vpop.permute.xlu0 %282
    %284 = vrot.lane.b32.xlu0 %v219, 17
    %v285 = vpop.permute.xlu0 %284
    %286 = vrot.lane.b32.xlu0 %v221, 17
    %v287 = vpop.permute.xlu0 %286
    %v288 = vlaneseq
    %v289 = vand.u32 %v288, 127
    %vm290 = vcmp.lt.s32.totalorder %v289, 17
    %v291 = vsel %vm290, %v265, %v277
    %v292 = vsel %vm290, %v267, %v279
    %v293 = vsel %vm290, %v269, %v281
    %v294 = vsel %vm290, %v271, %v283
    %v295 = vsel %vm290, %v273, %v285
    %v296 = vsel %vm290, %v275, %v287
    %v297 = vsel %vm290, %v277, %v265
    %v298 = vsel %vm290, %v279, %v267
    %v299 = vsel %vm290, %v281, %v269
    %v300 = vsel %vm290, %v283, %v271
    %v301 = vsel %vm290, %v285, %v273
    %v302 = vsel %vm290, %v287, %v275
    %303 = vset.pattern.permute.xlu0 0
    %304 = vperm.xlu0 %303, %v94
    %v305 = vpop.permute.xlu0 %304
    %307 = vset.pattern.permute.xlu0 0
    %308 = vperm.xlu0 %307, %v95
    %v309 = vpop.permute.xlu0 %308
    %311 = vset.pattern.permute.xlu0 0
    %312 = vperm.xlu0 %311, %v96
    %v313 = vpop.permute.xlu0 %312
    %315 = vset.pattern.permute.xlu0 0
    %316 = vperm.xlu0 %315, %v97
    %v317 = vpop.permute.xlu0 %316
    %319 = vset.pattern.permute.xlu0 0
    %320 = vperm.xlu0 %319, %v98
    %v321 = vpop.permute.xlu0 %320
    %323 = vset.pattern.permute.xlu0 0
    %324 = vperm.xlu0 %323, %v99
    %v325 = vpop.permute.xlu0 %324
    %v327 = vmul.f32 %v297, %v305
    %v328 = vmul.f32 %v291, %v305
    %v329 = vmul.f32 %v298, %v309
    %v330 = vmul.f32 %v292, %v309
    %v331 = vmul.f32 %v299, %v313
    %v332 = vmul.f32 %v293, %v313
    %v333 = vmul.f32 %v300, %v317
    %v334 = vmul.f32 %v294, %v317
    %v335 = vmul.f32 %v301, %v321
    %v336 = vmul.f32 %v295, %v321
    %v337 = vmul.f32 %v302, %v325
    %v338 = vmul.f32 %v296, %v325
    %v339 = vld [vmem:[#allocation2] sm:$0x3]
    %v341 = vlaneseq
    %v342 = vshrl.u32 %v341, 7
    %v343 = vsub.s32 0, %v342
    %v344 = vrot.slane %v339, %v343
    %v345 = vlaneseq
    %v346 = vshrl.u32 %v345, 7
    %v347 = vsub.s32 1, %v346
    %v348 = vrot.slane %v339, %v347
    %v351 = vmul.f32 %v327, %v344
    %v352 = vmul.f32 %v328, %v348
    %v353 = vmul.f32 %v329, %v344
    %v354 = vmul.f32 %v330, %v348
    %v355 = vmul.f32 %v331, %v344
    %v356 = vmul.f32 %v332, %v348
    %v357 = vmul.f32 %v333, %v344
    %v358 = vmul.f32 %v334, %v348
    %v359 = vmul.f32 %v335, %v344
    %v360 = vmul.f32 %v336, %v348
    %v361 = vmul.f32 %v337, %v344
    %v362 = vmul.f32 %v338, %v348
    %v363 = vadd.f32 %v252, %v351
    %v364 = vadd.f32 %v253, %v352
    %v365 = vadd.f32 %v254, %v353
    %v366 = vadd.f32 %v255, %v354
    %v367 = vadd.f32 %v256, %v355
    %v368 = vadd.f32 %v257, %v356
    %v369 = vadd.f32 %v258, %v357
    %v370 = vadd.f32 %v259, %v358
    %v371 = vadd.f32 %v260, %v359
    %v372 = vadd.f32 %v261, %v360
    %v373 = vadd.f32 %v262, %v361
    %v374 = vadd.f32 %v263, %v362
    %375 = vrot.lane.b32.xlu0 %v210, 16
    %v376 = vpop.permute.xlu0 %375
    %377 = vrot.lane.b32.xlu0 %v212, 16
    %v378 = vpop.permute.xlu0 %377
    %379 = vrot.lane.b32.xlu0 %v214, 16
    %v380 = vpop.permute.xlu0 %379
    %381 = vrot.lane.b32.xlu0 %v216, 16
    %v382 = vpop.permute.xlu0 %381
    %383 = vrot.lane.b32.xlu0 %v218, 16
    %v384 = vpop.permute.xlu0 %383
    %385 = vrot.lane.b32.xlu0 %v220, 16
    %v386 = vpop.permute.xlu0 %385
    %387 = vrot.lane.b32.xlu0 %v211, 16
    %v388 = vpop.permute.xlu0 %387
    %389 = vrot.lane.b32.xlu0 %v213, 16
    %v390 = vpop.permute.xlu0 %389
    %391 = vrot.lane.b32.xlu0 %v215, 16
    %v392 = vpop.permute.xlu0 %391
    %393 = vrot.lane.b32.xlu0 %v217, 16
    %v394 = vpop.permute.xlu0 %393
    %395 = vrot.lane.b32.xlu0 %v219, 16
    %v396 = vpop.permute.xlu0 %395
    %397 = vrot.lane.b32.xlu0 %v221, 16
    %v398 = vpop.permute.xlu0 %397
    %vm399 = vcmp.lt.s32.totalorder %v289, 16
    %v400 = vsel %vm399, %v376, %v388
    %v401 = vsel %vm399, %v378, %v390
    %v402 = vsel %vm399, %v380, %v392
    %v403 = vsel %vm399, %v382, %v394
    %v404 = vsel %vm399, %v384, %v396
    %v405 = vsel %vm399, %v386, %v398
    %v406 = vsel %vm399, %v388, %v376
    %v407 = vsel %vm399, %v390, %v378
    %v408 = vsel %vm399, %v392, %v380
    %v409 = vsel %vm399, %v394, %v382
    %v410 = vsel %vm399, %v396, %v384
    %v411 = vsel %vm399, %v398, %v386
    %412 = vset.pattern.permute.xlu0 1
    %413 = vperm.xlu0 %412, %v94
    %v414 = vpop.permute.xlu0 %413
    %416 = vset.pattern.permute.xlu0 1
    %417 = vperm.xlu0 %416, %v95
    %v418 = vpop.permute.xlu0 %417
    %420 = vset.pattern.permute.xlu0 1
    %421 = vperm.xlu0 %420, %v96
    %v422 = vpop.permute.xlu0 %421
    %424 = vset.pattern.permute.xlu0 1
    %425 = vperm.xlu0 %424, %v97
    %v426 = vpop.permute.xlu0 %425
    %428 = vset.pattern.permute.xlu0 1
    %429 = vperm.xlu0 %428, %v98
    %v430 = vpop.permute.xlu0 %429
    %432 = vset.pattern.permute.xlu0 1
    %433 = vperm.xlu0 %432, %v99
    %v434 = vpop.permute.xlu0 %433
    %v436 = vmul.f32 %v406, %v414
    %v437 = vmul.f32 %v400, %v414
    %v438 = vmul.f32 %v407, %v418
    %v439 = vmul.f32 %v401, %v418
    %v440 = vmul.f32 %v408, %v422
    %v441 = vmul.f32 %v402, %v422
    %v442 = vmul.f32 %v409, %v426
    %v443 = vmul.f32 %v403, %v426
    %v444 = vmul.f32 %v410, %v430
    %v445 = vmul.f32 %v404, %v430
    %v446 = vmul.f32 %v411, %v434
    %v447 = vmul.f32 %v405, %v434
    %s448 = scalar_lea.vmem [#allocation2], 2
    %v449 = vld [vmem:[%s448] sm:$0x3]
    %v451 = vlaneseq
    %v452 = vshrl.u32 %v451, 7
    %v453 = vsub.s32 0, %v452
    %v454 = vrot.slane %v449, %v453
    %v455 = vlaneseq
    %v456 = vshrl.u32 %v455, 7
    %v457 = vsub.s32 1, %v456
    %v458 = vrot.slane %v449, %v457
    %v461 = vmul.f32 %v436, %v454
    %v462 = vmul.f32 %v437, %v458
    %v463 = vmul.f32 %v438, %v454
    %v464 = vmul.f32 %v439, %v458
    %v465 = vmul.f32 %v440, %v454
    %v466 = vmul.f32 %v441, %v458
    %v467 = vmul.f32 %v442, %v454
    %v468 = vmul.f32 %v443, %v458
    %v469 = vmul.f32 %v444, %v454
    %v470 = vmul.f32 %v445, %v458
    %v471 = vmul.f32 %v446, %v454
    %v472 = vmul.f32 %v447, %v458
    %v473 = vadd.f32 %v363, %v461
    %v474 = vadd.f32 %v364, %v462
    %v475 = vadd.f32 %v365, %v463
    %v476 = vadd.f32 %v366, %v464
    %v477 = vadd.f32 %v367, %v465
    %v478 = vadd.f32 %v368, %v466
    %v479 = vadd.f32 %v369, %v467
    %v480 = vadd.f32 %v370, %v468
    %v481 = vadd.f32 %v371, %v469
    %v482 = vadd.f32 %v372, %v470
    %v483 = vadd.f32 %v373, %v471
    %v484 = vadd.f32 %v374, %v472
    %485 = vrot.lane.b32.xlu0 %v210, 15
    %v486 = vpop.permute.xlu0 %485
    %487 = vrot.lane.b32.xlu0 %v212, 15
    %v488 = vpop.permute.xlu0 %487
    %489 = vrot.lane.b32.xlu0 %v214, 15
    %v490 = vpop.permute.xlu0 %489
    %491 = vrot.lane.b32.xlu0 %v216, 15
    %v492 = vpop.permute.xlu0 %491
    %493 = vrot.lane.b32.xlu0 %v218, 15
    %v494 = vpop.permute.xlu0 %493
    %495 = vrot.lane.b32.xlu0 %v220, 15
    %v496 = vpop.permute.xlu0 %495
    %497 = vrot.lane.b32.xlu0 %v211, 15
    %v498 = vpop.permute.xlu0 %497
    %499 = vrot.lane.b32.xlu0 %v213, 15
    %v500 = vpop.permute.xlu0 %499
    %501 = vrot.lane.b32.xlu0 %v215, 15
    %v502 = vpop.permute.xlu0 %501
    %503 = vrot.lane.b32.xlu0 %v217, 15
    %v504 = vpop.permute.xlu0 %503
    %505 = vrot.lane.b32.xlu0 %v219, 15
    %v506 = vpop.permute.xlu0 %505
    %507 = vrot.lane.b32.xlu0 %v221, 15
    %v508 = vpop.permute.xlu0 %507
    %vm509 = vcmp.lt.s32.totalorder %v289, 15
    %v510 = vsel %vm509, %v486, %v498
    %v511 = vsel %vm509, %v488, %v500
    %v512 = vsel %vm509, %v490, %v502
    %v513 = vsel %vm509, %v492, %v504
    %v514 = vsel %vm509, %v494, %v506
    %v515 = vsel %vm509, %v496, %v508
    %v516 = vsel %vm509, %v498, %v486
    %v517 = vsel %vm509, %v500, %v488
    %v518 = vsel %vm509, %v502, %v490
    %v519 = vsel %vm509, %v504, %v492
    %v520 = vsel %vm509, %v506, %v494
    %v521 = vsel %vm509, %v508, %v496
    %522 = vset.pattern.permute.xlu0 2
    %523 = vperm.xlu0 %522, %v94
    %v524 = vpop.permute.xlu0 %523
    %526 = vset.pattern.permute.xlu0 2
    %527 = vperm.xlu0 %526, %v95
    %v528 = vpop.permute.xlu0 %527
    %530 = vset.pattern.permute.xlu0 2
    %531 = vperm.xlu0 %530, %v96
    %v532 = vpop.permute.xlu0 %531
    %534 = vset.pattern.permute.xlu0 2
    %535 = vperm.xlu0 %534, %v97
    %v536 = vpop.permute.xlu0 %535
    %538 = vset.pattern.permute.xlu0 2
    %539 = vperm.xlu0 %538, %v98
    %v540 = vpop.permute.xlu0 %539
    %542 = vset.pattern.permute.xlu0 2
    %543 = vperm.xlu0 %542, %v99
    %v544 = vpop.permute.xlu0 %543
    %v546 = vmul.f32 %v516, %v524
    %v547 = vmul.f32 %v510, %v524
    %v548 = vmul.f32 %v517, %v528
    %v549 = vmul.f32 %v511, %v528
    %v550 = vmul.f32 %v518, %v532
    %v551 = vmul.f32 %v512, %v532
    %v552 = vmul.f32 %v519, %v536
    %v553 = vmul.f32 %v513, %v536
    %v554 = vmul.f32 %v520, %v540
    %v555 = vmul.f32 %v514, %v540
    %v556 = vmul.f32 %v521, %v544
    %v557 = vmul.f32 %v515, %v544
    %s558 = scalar_lea.vmem [#allocation2], 4
    %v559 = vld [vmem:[%s558] sm:$0x3]
    %v561 = vlaneseq
    %v562 = vshrl.u32 %v561, 7
    %v563 = vsub.s32 0, %v562
    %v564 = vrot.slane %v559, %v563
    %v565 = vlaneseq
    %v566 = vshrl.u32 %v565, 7
    %v567 = vsub.s32 1, %v566
    %v568 = vrot.slane %v559, %v567
    %v571 = vmul.f32 %v546, %v564
    %v572 = vmul.f32 %v547, %v568
    %v573 = vmul.f32 %v548, %v564
    %v574 = vmul.f32 %v549, %v568
    %v575 = vmul.f32 %v550, %v564
    %v576 = vmul.f32 %v551, %v568
    %v577 = vmul.f32 %v552, %v564
    %v578 = vmul.f32 %v553, %v568
    %v579 = vmul.f32 %v554, %v564
    %v580 = vmul.f32 %v555, %v568
    %v581 = vmul.f32 %v556, %v564
    %v582 = vmul.f32 %v557, %v568
    %v583 = vadd.f32 %v473, %v571
    %v584 = vadd.f32 %v474, %v572
    %v585 = vadd.f32 %v475, %v573
    %v586 = vadd.f32 %v476, %v574
    %v587 = vadd.f32 %v477, %v575
    %v588 = vadd.f32 %v478, %v576
    %v589 = vadd.f32 %v479, %v577
    %v590 = vadd.f32 %v480, %v578
    %v591 = vadd.f32 %v481, %v579
    %v592 = vadd.f32 %v482, %v580
    %v593 = vadd.f32 %v483, %v581
    %v594 = vadd.f32 %v484, %v582
    %595 = vrot.lane.b32.xlu0 %v210, 1
    %v596 = vpop.permute.xlu0 %595
    %597 = vrot.lane.b32.xlu0 %v212, 1
    %v598 = vpop.permute.xlu0 %597
    %599 = vrot.lane.b32.xlu0 %v214, 1
    %v600 = vpop.permute.xlu0 %599
    %601 = vrot.lane.b32.xlu0 %v216, 1
    %v602 = vpop.permute.xlu0 %601
    %603 = vrot.lane.b32.xlu0 %v218, 1
    %v604 = vpop.permute.xlu0 %603
    %605 = vrot.lane.b32.xlu0 %v220, 1
    %v606 = vpop.permute.xlu0 %605
    %607 = vrot.lane.b32.xlu0 %v211, 1
    %v608 = vpop.permute.xlu0 %607
    %609 = vrot.lane.b32.xlu0 %v213, 1
    %v610 = vpop.permute.xlu0 %609
    %611 = vrot.lane.b32.xlu0 %v215, 1
    %v612 = vpop.permute.xlu0 %611
    %613 = vrot.lane.b32.xlu0 %v217, 1
    %v614 = vpop.permute.xlu0 %613
    %615 = vrot.lane.b32.xlu0 %v219, 1
    %v616 = vpop.permute.xlu0 %615
    %617 = vrot.lane.b32.xlu0 %v221, 1
    %v618 = vpop.permute.xlu0 %617
    %vm619 = vcmp.lt.s32.totalorder %v289, 1
    %v620 = vsel %vm619, %v596, %v608
    %v621 = vsel %vm619, %v598, %v610
    %v622 = vsel %vm619, %v600, %v612
    %v623 = vsel %vm619, %v602, %v614
    %v624 = vsel %vm619, %v604, %v616
    %v625 = vsel %vm619, %v606, %v618
    %v626 = vsel %vm619, %v608, %v596
    %v627 = vsel %vm619, %v610, %v598
    %v628 = vsel %vm619, %v612, %v600
    %v629 = vsel %vm619, %v614, %v602
    %v630 = vsel %vm619, %v616, %v604
    %v631 = vsel %vm619, %v618, %v606
    %632 = vset.pattern.permute.xlu0 3
    %633 = vperm.xlu0 %632, %v94
    %v634 = vpop.permute.xlu0 %633
    %636 = vset.pattern.permute.xlu0 3
    %637 = vperm.xlu0 %636, %v95
    %v638 = vpop.permute.xlu0 %637
    %640 = vset.pattern.permute.xlu0 3
    %641 = vperm.xlu0 %640, %v96
    %v642 = vpop.permute.xlu0 %641
    %644 = vset.pattern.permute.xlu0 3
    %645 = vperm.xlu0 %644, %v97
    %v646 = vpop.permute.xlu0 %645
    %648 = vset.pattern.permute.xlu0 3
    %649 = vperm.xlu0 %648, %v98
    %v650 = vpop.permute.xlu0 %649
    %652 = vset.pattern.permute.xlu0 3
    %653 = vperm.xlu0 %652, %v99
    %v654 = vpop.permute.xlu0 %653
    %v656 = vmul.f32 %v626, %v634
    %v657 = vmul.f32 %v620, %v634
    %v658 = vmul.f32 %v627, %v638
    %v659 = vmul.f32 %v621, %v638
    %v660 = vmul.f32 %v628, %v642
    %v661 = vmul.f32 %v622, %v642
    %v662 = vmul.f32 %v629, %v646
    %v663 = vmul.f32 %v623, %v646
    %v664 = vmul.f32 %v630, %v650
    %v665 = vmul.f32 %v624, %v650
    %v666 = vmul.f32 %v631, %v654
    %v667 = vmul.f32 %v625, %v654
    %s668 = scalar_lea.vmem [#allocation2], 6
    %v669 = vld [vmem:[%s668] sm:$0x3]
    %v671 = vlaneseq
    %v672 = vshrl.u32 %v671, 7
    %v673 = vsub.s32 0, %v672
    %v674 = vrot.slane %v669, %v673
    %v675 = vlaneseq
    %v676 = vshrl.u32 %v675, 7
    %v677 = vsub.s32 1, %v676
    %v678 = vrot.slane %v669, %v677
    %v681 = vmul.f32 %v656, %v674
    %v682 = vmul.f32 %v657, %v678
    %v683 = vmul.f32 %v658, %v674
    %v684 = vmul.f32 %v659, %v678
    %v685 = vmul.f32 %v660, %v674
    %v686 = vmul.f32 %v661, %v678
    %v687 = vmul.f32 %v662, %v674
    %v688 = vmul.f32 %v663, %v678
    %v689 = vmul.f32 %v664, %v674
    %v690 = vmul.f32 %v665, %v678
    %v691 = vmul.f32 %v666, %v674
    %v692 = vmul.f32 %v667, %v678
    %v693 = vadd.f32 %v583, %v681
    %v694 = vadd.f32 %v584, %v682
    %v695 = vadd.f32 %v585, %v683
    %v696 = vadd.f32 %v586, %v684
    %v697 = vadd.f32 %v587, %v685
    %v698 = vadd.f32 %v588, %v686
    %v699 = vadd.f32 %v589, %v687
    %v700 = vadd.f32 %v590, %v688
    %v701 = vadd.f32 %v591, %v689
    %v702 = vadd.f32 %v592, %v690
    %v703 = vadd.f32 %v593, %v691
    %v704 = vadd.f32 %v594, %v692
    %705 = vrot.lane.b32.xlu0 %v210, 127
    %v706 = vpop.permute.xlu0 %705
    %707 = vrot.lane.b32.xlu0 %v212, 127
    %v708 = vpop.permute.xlu0 %707
    %709 = vrot.lane.b32.xlu0 %v214, 127
    %v710 = vpop.permute.xlu0 %709
    %711 = vrot.lane.b32.xlu0 %v216, 127
    %v712 = vpop.permute.xlu0 %711
    %713 = vrot.lane.b32.xlu0 %v218, 127
    %v714 = vpop.permute.xlu0 %713
    %715 = vrot.lane.b32.xlu0 %v220, 127
    %v716 = vpop.permute.xlu0 %715
    %717 = vrot.lane.b32.xlu0 %v211, 127
    %v718 = vpop.permute.xlu0 %717
    %719 = vrot.lane.b32.xlu0 %v213, 127
    %v720 = vpop.permute.xlu0 %719
    %721 = vrot.lane.b32.xlu0 %v215, 127
    %v722 = vpop.permute.xlu0 %721
    %723 = vrot.lane.b32.xlu0 %v217, 127
    %v724 = vpop.permute.xlu0 %723
    %725 = vrot.lane.b32.xlu0 %v219, 127
    %v726 = vpop.permute.xlu0 %725
    %727 = vrot.lane.b32.xlu0 %v221, 127
    %v728 = vpop.permute.xlu0 %727
    %vm729 = vcmp.lt.s32.totalorder %v289, 127
    %v730 = vsel %vm729, %v706, %v718
    %v731 = vsel %vm729, %v708, %v720
    %v732 = vsel %vm729, %v710, %v722
    %v733 = vsel %vm729, %v712, %v724
    %v734 = vsel %vm729, %v714, %v726
    %v735 = vsel %vm729, %v716, %v728
    %v736 = vsel %vm729, %v718, %v706
    %v737 = vsel %vm729, %v720, %v708
    %v738 = vsel %vm729, %v722, %v710
    %v739 = vsel %vm729, %v724, %v712
    %v740 = vsel %vm729, %v726, %v714
    %v741 = vsel %vm729, %v728, %v716
    %742 = vset.pattern.permute.xlu0 5
    %743 = vperm.xlu0 %742, %v94
    %v744 = vpop.permute.xlu0 %743
    %746 = vset.pattern.permute.xlu0 5
    %747 = vperm.xlu0 %746, %v95
    %v748 = vpop.permute.xlu0 %747
    %750 = vset.pattern.permute.xlu0 5
    %751 = vperm.xlu0 %750, %v96
    %v752 = vpop.permute.xlu0 %751
    %754 = vset.pattern.permute.xlu0 5
    %755 = vperm.xlu0 %754, %v97
    %v756 = vpop.permute.xlu0 %755
    %758 = vset.pattern.permute.xlu0 5
    %759 = vperm.xlu0 %758, %v98
    %v760 = vpop.permute.xlu0 %759
    %762 = vset.pattern.permute.xlu0 5
    %763 = vperm.xlu0 %762, %v99
    %v764 = vpop.permute.xlu0 %763
    %v766 = vmul.f32 %v730, %v744
    %v767 = vmul.f32 %v736, %v744
    %v768 = vmul.f32 %v731, %v748
    %v769 = vmul.f32 %v737, %v748
    %v770 = vmul.f32 %v732, %v752
    %v771 = vmul.f32 %v738, %v752
    %v772 = vmul.f32 %v733, %v756
    %v773 = vmul.f32 %v739, %v756
    %v774 = vmul.f32 %v734, %v760
    %v775 = vmul.f32 %v740, %v760
    %v776 = vmul.f32 %v735, %v764
    %v777 = vmul.f32 %v741, %v764
    %s778 = scalar_lea.vmem [#allocation2], 10
    %v779 = vld [vmem:[%s778] sm:$0x3]
    %v781 = vlaneseq
    %v782 = vshrl.u32 %v781, 7
    %v783 = vsub.s32 0, %v782
    %v784 = vrot.slane %v779, %v783
    %v785 = vlaneseq
    %v786 = vshrl.u32 %v785, 7
    %v787 = vsub.s32 1, %v786
    %v788 = vrot.slane %v779, %v787
    %v791 = vmul.f32 %v766, %v784
    %v792 = vmul.f32 %v767, %v788
    %v793 = vmul.f32 %v768, %v784
    %v794 = vmul.f32 %v769, %v788
    %v795 = vmul.f32 %v770, %v784
    %v796 = vmul.f32 %v771, %v788
    %v797 = vmul.f32 %v772, %v784
    %v798 = vmul.f32 %v773, %v788
    %v799 = vmul.f32 %v774, %v784
    %v800 = vmul.f32 %v775, %v788
    %v801 = vmul.f32 %v776, %v784
    %v802 = vmul.f32 %v777, %v788
    %v803 = vadd.f32 %v693, %v791
    %v804 = vadd.f32 %v694, %v792
    %v805 = vadd.f32 %v695, %v793
    %v806 = vadd.f32 %v696, %v794
    %v807 = vadd.f32 %v697, %v795
    %v808 = vadd.f32 %v698, %v796
    %v809 = vadd.f32 %v699, %v797
    %v810 = vadd.f32 %v700, %v798
    %v811 = vadd.f32 %v701, %v799
    %v812 = vadd.f32 %v702, %v800
    %v813 = vadd.f32 %v703, %v801
    %v814 = vadd.f32 %v704, %v802
    %815 = vrot.lane.b32.xlu0 %v210, 113
    %v816 = vpop.permute.xlu0 %815
    %817 = vrot.lane.b32.xlu0 %v212, 113
    %v818 = vpop.permute.xlu0 %817
    %819 = vrot.lane.b32.xlu0 %v214, 113
    %v820 = vpop.permute.xlu0 %819
    %821 = vrot.lane.b32.xlu0 %v216, 113
    %v822 = vpop.permute.xlu0 %821
    %823 = vrot.lane.b32.xlu0 %v218, 113
    %v824 = vpop.permute.xlu0 %823
    %825 = vrot.lane.b32.xlu0 %v220, 113
    %v826 = vpop.permute.xlu0 %825
    %827 = vrot.lane.b32.xlu0 %v211, 113
    %v828 = vpop.permute.xlu0 %827
    %829 = vrot.lane.b32.xlu0 %v213, 113
    %v830 = vpop.permute.xlu0 %829
    %831 = vrot.lane.b32.xlu0 %v215, 113
    %v832 = vpop.permute.xlu0 %831
    %833 = vrot.lane.b32.xlu0 %v217, 113
    %v834 = vpop.permute.xlu0 %833
    %835 = vrot.lane.b32.xlu0 %v219, 113
    %v836 = vpop.permute.xlu0 %835
    %837 = vrot.lane.b32.xlu0 %v221, 113
    %v838 = vpop.permute.xlu0 %837
    %vm839 = vcmp.lt.s32.totalorder %v289, 113
    %v840 = vsel %vm839, %v816, %v828
    %v841 = vsel %vm839, %v818, %v830
    %v842 = vsel %vm839, %v820, %v832
    %v843 = vsel %vm839, %v822, %v834
    %v844 = vsel %vm839, %v824, %v836
    %v845 = vsel %vm839, %v826, %v838
    %v846 = vsel %vm839, %v828, %v816
    %v847 = vsel %vm839, %v830, %v818
    %v848 = vsel %vm839, %v832, %v820
    %v849 = vsel %vm839, %v834, %v822
    %v850 = vsel %vm839, %v836, %v824
    %v851 = vsel %vm839, %v838, %v826
    %852 = vset.pattern.permute.xlu0 6
    %853 = vperm.xlu0 %852, %v94
    %v854 = vpop.permute.xlu0 %853
    %856 = vset.pattern.permute.xlu0 6
    %857 = vperm.xlu0 %856, %v95
    %v858 = vpop.permute.xlu0 %857
    %860 = vset.pattern.permute.xlu0 6
    %861 = vperm.xlu0 %860, %v96
    %v862 = vpop.permute.xlu0 %861
    %864 = vset.pattern.permute.xlu0 6
    %865 = vperm.xlu0 %864, %v97
    %v866 = vpop.permute.xlu0 %865
    %868 = vset.pattern.permute.xlu0 6
    %869 = vperm.xlu0 %868, %v98
    %v870 = vpop.permute.xlu0 %869
    %872 = vset.pattern.permute.xlu0 6
    %873 = vperm.xlu0 %872, %v99
    %v874 = vpop.permute.xlu0 %873
    %v876 = vmul.f32 %v840, %v854
    %v877 = vmul.f32 %v846, %v854
    %v878 = vmul.f32 %v841, %v858
    %v879 = vmul.f32 %v847, %v858
    %v880 = vmul.f32 %v842, %v862
    %v881 = vmul.f32 %v848, %v862
    %v882 = vmul.f32 %v843, %v866
    %v883 = vmul.f32 %v849, %v866
    %v884 = vmul.f32 %v844, %v870
    %v885 = vmul.f32 %v850, %v870
    %v886 = vmul.f32 %v845, %v874
    %v887 = vmul.f32 %v851, %v874
    %s888 = scalar_lea.vmem [#allocation2], 12
    %v889 = vld [vmem:[%s888] sm:$0x3]
    %v891 = vlaneseq
    %v892 = vshrl.u32 %v891, 7
    %v893 = vsub.s32 0, %v892
    %v894 = vrot.slane %v889, %v893
    %v895 = vlaneseq
    %v896 = vshrl.u32 %v895, 7
    %v897 = vsub.s32 1, %v896
    %v898 = vrot.slane %v889, %v897
    %v901 = vmul.f32 %v876, %v894
    %v902 = vmul.f32 %v877, %v898
    %v903 = vmul.f32 %v878, %v894
    %v904 = vmul.f32 %v879, %v898
    %v905 = vmul.f32 %v880, %v894
    %v906 = vmul.f32 %v881, %v898
    %v907 = vmul.f32 %v882, %v894
    %v908 = vmul.f32 %v883, %v898
    %v909 = vmul.f32 %v884, %v894
    %v910 = vmul.f32 %v885, %v898
    %v911 = vmul.f32 %v886, %v894
    %v912 = vmul.f32 %v887, %v898
    %v913 = vadd.f32 %v803, %v901
    %v914 = vadd.f32 %v804, %v902
    %v915 = vadd.f32 %v805, %v903
    %v916 = vadd.f32 %v806, %v904
    %v917 = vadd.f32 %v807, %v905
    %v918 = vadd.f32 %v808, %v906
    %v919 = vadd.f32 %v809, %v907
    %v920 = vadd.f32 %v810, %v908
    %v921 = vadd.f32 %v811, %v909
    %v922 = vadd.f32 %v812, %v910
    %v923 = vadd.f32 %v813, %v911
    %v924 = vadd.f32 %v814, %v912
    %925 = vrot.lane.b32.xlu0 %v210, 112
    %v926 = vpop.permute.xlu0 %925
    %927 = vrot.lane.b32.xlu0 %v212, 112
    %v928 = vpop.permute.xlu0 %927
    %929 = vrot.lane.b32.xlu0 %v214, 112
    %v930 = vpop.permute.xlu0 %929
    %931 = vrot.lane.b32.xlu0 %v216, 112
    %v932 = vpop.permute.xlu0 %931
    %933 = vrot.lane.b32.xlu0 %v218, 112
    %v934 = vpop.permute.xlu0 %933
    %935 = vrot.lane.b32.xlu0 %v220, 112
    %v936 = vpop.permute.xlu0 %935
    %937 = vrot.lane.b32.xlu0 %v211, 112
    %v938 = vpop.permute.xlu0 %937
    %939 = vrot.lane.b32.xlu0 %v213, 112
    %v940 = vpop.permute.xlu0 %939
    %941 = vrot.lane.b32.xlu0 %v215, 112
    %v942 = vpop.permute.xlu0 %941
    %943 = vrot.lane.b32.xlu0 %v217, 112
    %v944 = vpop.permute.xlu0 %943
    %945 = vrot.lane.b32.xlu0 %v219, 112
    %v946 = vpop.permute.xlu0 %945
    %947 = vrot.lane.b32.xlu0 %v221, 112
    %v948 = vpop.permute.xlu0 %947
    %vm949 = vcmp.lt.s32.totalorder %v289, 112
    %v950 = vsel %vm949, %v926, %v938
    %v951 = vsel %vm949, %v928, %v940
    %v952 = vsel %vm949, %v930, %v942
    %v953 = vsel %vm949, %v932, %v944
    %v954 = vsel %vm949, %v934, %v946
    %v955 = vsel %vm949, %v936, %v948
    %v956 = vsel %vm949, %v938, %v926
    %v957 = vsel %vm949, %v940, %v928
    %v958 = vsel %vm949, %v942, %v930
    %v959 = vsel %vm949, %v944, %v932
    %v960 = vsel %vm949, %v946, %v934
    %v961 = vsel %vm949, %v948, %v936
    %962 = vset.pattern.permute.xlu0 7
    %963 = vperm.xlu0 %962, %v94
    %v964 = vpop.permute.xlu0 %963
    %966 = vset.pattern.permute.xlu0 7
    %967 = vperm.xlu0 %966, %v95
    %v968 = vpop.permute.xlu0 %967
    %970 = vset.pattern.permute.xlu0 7
    %971 = vperm.xlu0 %970, %v96
    %v972 = vpop.permute.xlu0 %971
    %974 = vset.pattern.permute.xlu0 7
    %975 = vperm.xlu0 %974, %v97
    %v976 = vpop.permute.xlu0 %975
    %978 = vset.pattern.permute.xlu0 7
    %979 = vperm.xlu0 %978, %v98
    %v980 = vpop.permute.xlu0 %979
    %982 = vset.pattern.permute.xlu0 7
    %983 = vperm.xlu0 %982, %v99
    %v984 = vpop.permute.xlu0 %983
    %v986 = vmul.f32 %v950, %v964
    %v987 = vmul.f32 %v956, %v964
    %v988 = vmul.f32 %v951, %v968
    %v989 = vmul.f32 %v957, %v968
    %v990 = vmul.f32 %v952, %v972
    %v991 = vmul.f32 %v958, %v972
    %v992 = vmul.f32 %v953, %v976
    %v993 = vmul.f32 %v959, %v976
    %v994 = vmul.f32 %v954, %v980
    %v995 = vmul.f32 %v960, %v980
    %v996 = vmul.f32 %v955, %v984
    %v997 = vmul.f32 %v961, %v984
    %s998 = scalar_lea.vmem [#allocation2], 14
    %v999 = vld [vmem:[%s998] sm:$0x3]
    %v1001 = vlaneseq
    %v1002 = vshrl.u32 %v1001, 7
    %v1003 = vsub.s32 0, %v1002
    %v1004 = vrot.slane %v999, %v1003
    %v1005 = vlaneseq
    %v1006 = vshrl.u32 %v1005, 7
    %v1007 = vsub.s32 1, %v1006
    %v1008 = vrot.slane %v999, %v1007
    %v1011 = vmul.f32 %v986, %v1004
    %v1012 = vmul.f32 %v987, %v1008
    %v1013 = vmul.f32 %v988, %v1004
    %v1014 = vmul.f32 %v989, %v1008
    %v1015 = vmul.f32 %v990, %v1004
    %v1016 = vmul.f32 %v991, %v1008
    %v1017 = vmul.f32 %v992, %v1004
    %v1018 = vmul.f32 %v993, %v1008
    %v1019 = vmul.f32 %v994, %v1004
    %v1020 = vmul.f32 %v995, %v1008
    %v1021 = vmul.f32 %v996, %v1004
    %v1022 = vmul.f32 %v997, %v1008
    %v1023 = vadd.f32 %v913, %v1011
    %v1024 = vadd.f32 %v914, %v1012
    %v1025 = vadd.f32 %v915, %v1013
    %v1026 = vadd.f32 %v916, %v1014
    %v1027 = vadd.f32 %v917, %v1015
    %v1028 = vadd.f32 %v918, %v1016
    %v1029 = vadd.f32 %v919, %v1017
    %v1030 = vadd.f32 %v920, %v1018
    %v1031 = vadd.f32 %v921, %v1019
    %v1032 = vadd.f32 %v922, %v1020
    %v1033 = vadd.f32 %v923, %v1021
    %v1034 = vadd.f32 %v924, %v1022
    %1035 = vrot.lane.b32.xlu0 %v210, 111
    %v1036 = vpop.permute.xlu0 %1035
    %1037 = vrot.lane.b32.xlu0 %v212, 111
    %v1038 = vpop.permute.xlu0 %1037
    %1039 = vrot.lane.b32.xlu0 %v214, 111
    %v1040 = vpop.permute.xlu0 %1039
    %1041 = vrot.lane.b32.xlu0 %v216, 111
    %v1042 = vpop.permute.xlu0 %1041
    %1043 = vrot.lane.b32.xlu0 %v218, 111
    %v1044 = vpop.permute.xlu0 %1043
    %1045 = vrot.lane.b32.xlu0 %v220, 111
    %v1046 = vpop.permute.xlu0 %1045
    %1047 = vrot.lane.b32.xlu0 %v211, 111
    %v1048 = vpop.permute.xlu0 %1047
    %1049 = vrot.lane.b32.xlu0 %v213, 111
    %v1050 = vpop.permute.xlu0 %1049
    %1051 = vrot.lane.b32.xlu0 %v215, 111
    %v1052 = vpop.permute.xlu0 %1051
    %1053 = vrot.lane.b32.xlu0 %v217, 111
    %v1054 = vpop.permute.xlu0 %1053
    %1055 = vrot.lane.b32.xlu0 %v219, 111
    %v1056 = vpop.permute.xlu0 %1055
    %1057 = vrot.lane.b32.xlu0 %v221, 111
    %v1058 = vpop.permute.xlu0 %1057
    %vm1059 = vcmp.lt.s32.totalorder %v289, 111
    %v1060 = vsel %vm1059, %v1036, %v1048
    %v1061 = vsel %vm1059, %v1038, %v1050
    %v1062 = vsel %vm1059, %v1040, %v1052
    %v1063 = vsel %vm1059, %v1042, %v1054
    %v1064 = vsel %vm1059, %v1044, %v1056
    %v1065 = vsel %vm1059, %v1046, %v1058
    %v1066 = vsel %vm1059, %v1048, %v1036
    %v1067 = vsel %vm1059, %v1050, %v1038
    %v1068 = vsel %vm1059, %v1052, %v1040
    %v1069 = vsel %vm1059, %v1054, %v1042
    %v1070 = vsel %vm1059, %v1056, %v1044
    %v1071 = vsel %vm1059, %v1058, %v1046
    %1072 = vset.pattern.permute.xlu0 8
    %1073 = vperm.xlu0 %1072, %v94
    %v1074 = vpop.permute.xlu0 %1073
    %1076 = vset.pattern.permute.xlu0 8
    %1077 = vperm.xlu0 %1076, %v95
    %v1078 = vpop.permute.xlu0 %1077
    %1080 = vset.pattern.permute.xlu0 8
    %1081 = vperm.xlu0 %1080, %v96
    %v1082 = vpop.permute.xlu0 %1081
    %1084 = vset.pattern.permute.xlu0 8
    %1085 = vperm.xlu0 %1084, %v97
    %v1086 = vpop.permute.xlu0 %1085
    %1088 = vset.pattern.permute.xlu0 8
    %1089 = vperm.xlu0 %1088, %v98
    %v1090 = vpop.permute.xlu0 %1089
    %1092 = vset.pattern.permute.xlu0 8
    %1093 = vperm.xlu0 %1092, %v99
    %v1094 = vpop.permute.xlu0 %1093
    %v1096 = vmul.f32 %v1060, %v1074
    %v1097 = vmul.f32 %v1066, %v1074
    %v1098 = vmul.f32 %v1061, %v1078
    %v1099 = vmul.f32 %v1067, %v1078
    %v1100 = vmul.f32 %v1062, %v1082
    %v1101 = vmul.f32 %v1068, %v1082
    %v1102 = vmul.f32 %v1063, %v1086
    %v1103 = vmul.f32 %v1069, %v1086
    %v1104 = vmul.f32 %v1064, %v1090
    %v1105 = vmul.f32 %v1070, %v1090
    %v1106 = vmul.f32 %v1065, %v1094
    %v1107 = vmul.f32 %v1071, %v1094
    %s1108 = scalar_lea.vmem [#allocation2], 16
    %v1109 = vld [vmem:[%s1108] sm:$0x3]
    %v1111 = vlaneseq
    %v1112 = vshrl.u32 %v1111, 7
    %v1113 = vsub.s32 0, %v1112
    %v1114 = vrot.slane %v1109, %v1113
    %v1115 = vlaneseq
    %v1116 = vshrl.u32 %v1115, 7
    %v1117 = vsub.s32 1, %v1116
    %v1118 = vrot.slane %v1109, %v1117
    %v1121 = vmul.f32 %v1096, %v1114
    %v1122 = vmul.f32 %v1097, %v1118
    %v1123 = vmul.f32 %v1098, %v1114
    %v1124 = vmul.f32 %v1099, %v1118
    %v1125 = vmul.f32 %v1100, %v1114
    %v1126 = vmul.f32 %v1101, %v1118
    %v1127 = vmul.f32 %v1102, %v1114
    %v1128 = vmul.f32 %v1103, %v1118
    %v1129 = vmul.f32 %v1104, %v1114
    %v1130 = vmul.f32 %v1105, %v1118
    %v1131 = vmul.f32 %v1106, %v1114
    %v1132 = vmul.f32 %v1107, %v1118
    %v1133 = vadd.f32 %v1023, %v1121
    %v1134 = vadd.f32 %v1024, %v1122
    %v1135 = vadd.f32 %v1025, %v1123
    %v1136 = vadd.f32 %v1026, %v1124
    %v1137 = vadd.f32 %v1027, %v1125
    %v1138 = vadd.f32 %v1028, %v1126
    %v1139 = vadd.f32 %v1029, %v1127
    %v1140 = vadd.f32 %v1030, %v1128
    %v1141 = vadd.f32 %v1031, %v1129
    %v1142 = vadd.f32 %v1032, %v1130
    %v1143 = vadd.f32 %v1033, %v1131
    %v1144 = vadd.f32 %v1034, %v1132
    %v1145 = vmax.f32 %v1133, 0.0
    %v1146 = vmax.f32 %v1134, 0.0
    %v1147 = vmax.f32 %v1135, 0.0
    %v1148 = vmax.f32 %v1136, 0.0
    %v1149 = vmax.f32 %v1137, 0.0
    %v1150 = vmax.f32 %v1138, 0.0
    %v1151 = vmax.f32 %v1139, 0.0
    %v1152 = vmax.f32 %v1140, 0.0
    %v1153 = vmax.f32 %v1141, 0.0
    %v1154 = vmax.f32 %v1142, 0.0
    %v1155 = vmax.f32 %v1143, 0.0
    %v1156 = vmax.f32 %v1144, 0.0
    %v1157 = vmin.f32 %v1145, 6.0
    %v1158 = vmin.f32 %v1146, 6.0
    %v1159 = vmin.f32 %v1147, 6.0
    %v1160 = vmin.f32 %v1148, 6.0
    %v1161 = vmin.f32 %v1149, 6.0
    %v1162 = vmin.f32 %v1150, 6.0
    %v1163 = vmin.f32 %v1151, 6.0
    %v1164 = vmin.f32 %v1152, 6.0
    %v1165 = vmin.f32 %v1153, 6.0
    %v1166 = vmin.f32 %v1154, 6.0
    %v1167 = vmin.f32 %v1155, 6.0
    %v1168 = vmin.f32 %v1156, 6.0
    %v1169 = vpack.c.bf16 %v1159, %v1157
    %v1170 = vpack.c.bf16 %v1160, %v1158
    %v1171 = vpack.c.bf16 %v1163, %v1161
    %v1172 = vpack.c.bf16 %v1164, %v1162
    %v1173 = vpack.c.bf16 %v1167, %v1165
    %v1174 = vpack.c.bf16 %v1168, %v1166
    %vm1175 = vcmask 392192
    %v1177 = vsel %vm1175, %v100, 0
    %1179 = vmatprep.subr.bf16.mxu0 0
    %1180 = vmatpush1.bf16.msra.mxu0 0
    %1181 = vmatprep.subr.bf16.mxu0 0
    %1182 = vmatpush1.bf16.msra.mxu0 0
    %1183 = vmatprep.subr.bf16.mxu0 0
    %1184 = vmatpush1.bf16.msra.mxu0 0
    %1185 = vmatprep.subr.bf16.mxu0 0
    %1186 = vmatpush1.bf16.msra.mxu0 0
    %1187 = vmatprep.subr.bf16.mxu0 0
    %1188 = vmatpush1.bf16.msra.mxu0 0
    %1189 = vmatprep.subr.bf16.mxu0 %v1174
    %1190 = vmatpush1.bf16.msra.mxu0 %v1173
    %1191 = vmatprep.subr.bf16.mxu0 %v1172
    %1192 = vmatpush1.bf16.msra.mxu0 %v1171
    %1193 = vmatprep.subr.bf16.mxu0 %v1170
    %1194 = vmatpush1.bf16.msra.mxu0 %v1169
    %1195 = vmatprep.subr.bf16.mxu0 0
    %1196 = vmatpush2.bf16.msra.mxu0 0
    %1197 = vmatprep.subr.bf16.mxu0 0
    %1198 = vmatpush2.bf16.msra.mxu0 0
    %1199 = vmatprep.subr.bf16.mxu0 0
    %1200 = vmatpush2.bf16.msra.mxu0 0
    %1201 = vmatprep.subr.bf16.mxu0 0
    %1202 = vmatpush2.bf16.msra.mxu0 0
    %1203 = vmatprep.subr.bf16.mxu0 0
    %1204 = vmatpush2.bf16.msra.mxu0 0
    %1205 = vmatprep.subr.bf16.mxu0 0
    %1206 = vmatpush2.bf16.msra.mxu0 0
    %1207 = vmatprep.subr.bf16.mxu0 0
    %1208 = vmatpush2.bf16.msra.mxu0 0
    %1209 = vmatprep.subr.bf16.mxu0 0
    %1210 = vmatpush2.bf16.msra.mxu0 0
    %1211 = vmatprep.mubr.bf16.mxu0 0
    %1212 = vmatmul.mubr.bf16.gmra.mxu0 %v1177
    %v1213 = vpop.f32.mrf.mxu0
    %v1214 = vadd.f32 0.0, %v1213
    %v1215 = vpop.f32.mrf.mxu0
    %v1216 = vadd.f32 0.0, %v1215
    %v1217 = vpop.f32.mrf.mxu0
    %v1218 = vpop.f32.mrf.mxu0
    %1219 = vdwg.mxu0
    %v1220 = vadd.f32 %v86, %v1214
    %v1221 = vadd.f32 %v87, %v1216
    %v1222 = vld [vmem:[#allocation6] sm:$0xf]
    %v1223 = vld [vmem:[#allocation7] sm:$0xff]
    %v1224 = vpack.c.bf16 %v1220, %v1220
    %v1225 = vpack.c.bf16 %v1221, %v1221
    %v1228 = vrot.slane %v1224, 4
    %v1229 = vrot.slane %v1225, 4
    %v1231 = vsel %vm128, %v101, %v1228
    %v1234 = vsel %vm128, %v102, %v1229
    %1237 = vset.pattern.permute.xlu0 0
    %1238 = vperm.xlu0 %1237, %v1223
    %v1239 = vpop.permute.xlu0 %1238
    %vm1241 = vcmask 130048
    %v1243 = vsel %vm1241, %v1222, 0
    %1245 = vmatprep.subr.bf16.mxu0 0
    %1246 = vmatpush1.bf16.msra.mxu0 0
    %1247 = vmatprep.subr.bf16.mxu0 0
    %1248 = vmatpush1.bf16.msra.mxu0 0
    %1249 = vmatprep.subr.bf16.mxu0 0
    %1250 = vmatpush1.bf16.msra.mxu0 0
    %1251 = vmatprep.subr.bf16.mxu0 0
    %1252 = vmatpush1.bf16.msra.mxu0 0
    %1253 = vmatprep.subr.bf16.mxu0 0
    %1254 = vmatpush1.bf16.msra.mxu0 0
    %1255 = vmatprep.subr.bf16.mxu0 0
    %1256 = vmatpush1.bf16.msra.mxu0 0
    %1257 = vmatprep.subr.bf16.mxu0 0
    %1258 = vmatpush1.bf16.msra.mxu0 0
    %1259 = vmatprep.subr.bf16.mxu0 %v1234
    %1260 = vmatpush1.bf16.msra.mxu0 %v1231
    %1261 = vmatprep.subr.bf16.mxu0 0
    %1262 = vmatpush2.bf16.msra.mxu0 0
    %1263 = vmatprep.subr.bf16.mxu0 0
    %1264 = vmatpush2.bf16.msra.mxu0 0
    %1265 = vmatprep.subr.bf16.mxu0 0
    %1266 = vmatpush2.bf16.msra.mxu0 0
    %1267 = vmatprep.subr.bf16.mxu0 0
    %1268 = vmatpush2.bf16.msra.mxu0 0
    %1269 = vmatprep.subr.bf16.mxu0 0
    %1270 = vmatpush2.bf16.msra.mxu0 0
    %1271 = vmatprep.subr.bf16.mxu0 0
    %1272 = vmatpush2.bf16.msra.mxu0 0
    %1273 = vmatprep.subr.bf16.mxu0 0
    %1274 = vmatpush2.bf16.msra.mxu0 0
    %1275 = vmatprep.subr.bf16.mxu0 0
    %1276 = vmatpush2.bf16.msra.mxu0 0
    %1277 = vmatprep.mubr.bf16.mxu0 0
    %1278 = vmatmul.mubr.bf16.gmra.mxu0 %v1243
    %v1279 = vpop.f32.mrf.mxu0
    %v1280 = vadd.f32 %v1239, %v1279
    %v1281 = vpop.f32.mrf.mxu0
    %v1282 = vadd.f32 %v1239, %v1281
    %v1283 = vpop.f32.mrf.mxu0
    %v1284 = vpop.f32.mrf.mxu0
    %1285 = vdwg.mxu0
    %v1286 = vmax.f32 %v1280, 0.0
    %v1287 = vmax.f32 %v1282, 0.0
    %s1288 = scalar_lea.vmem %s2, 24
    %v1289 = vld [vmem:[%s1288] sm:$0xf]
    %v1290 = vld [vmem:[%s1288 + $0x4] sm:$0xf]
    %v1291 = vld [vmem:[%s1288 + $0x8] sm:$0xf]
    %v1292 = vld [vmem:[%s1288 + $0xc] sm:$0xf]
    %v1293 = vld [vmem:[%s1288 + $0x10] sm:$0xf]
    %v1294 = vld [vmem:[%s1288 + $0x14] sm:$0xf]
    %s1295 = scalar_lea.vmem %s3, 48
    %v1296 = vld [vmem:[%s1295] sm:$0xff]
    %v1297 = vld [vmem:[%s1295 + $0x8] sm:$0xff]
    %v1298 = vld [vmem:[%s1295 + $0x10] sm:$0xff]
    %v1299 = vld [vmem:[%s1295 + $0x18] sm:$0xff]
    %v1300 = vld [vmem:[%s1295 + $0x20] sm:$0xff]
    %v1301 = vld [vmem:[%s1295 + $0x28] sm:$0xff]
    %s1302 = scalar_lea.vmem [#allocation4], 4
    %v1303 = vld [vmem:[%s1302] sm:$0xf]
    %v1304 = vpack.c.bf16 %v1286, %v1286
    %v1305 = vpack.c.bf16 %v1287, %v1287
    %v1312 = vunpack.c.l.b16 %v1289
    %v1313 = vunpack.c.l.b16 %v1290
    %v1314 = vunpack.c.l.b16 %v1291
    %v1315 = vunpack.c.l.b16 %v1292
    %v1316 = vunpack.c.l.b16 %v1293
    %v1317 = vunpack.c.l.b16 %v1294
    %v1318 = vpack.c.b16 %v1313, %v1312
    %v1319 = vpack.c.b16 %v1315, %v1314
    %v1320 = vpack.c.b16 %v1317, %v1316
    %v1322 = vsel %vm118, %v1318, 0
    %v1325 = vsel %vm118, %v1319, 0
    %v1328 = vsel %vm118, %v1320, 0
    %v1331 = vsel %vm128, %v1304, 0
    %v1334 = vsel %vm128, %v1305, 0
    %1336 = vmatprep.subr.bf16.mxu0 0
    %1337 = vmatpush1.bf16.msra.mxu0 0
    %1338 = vmatprep.subr.bf16.mxu0 0
    %1339 = vmatpush1.bf16.msra.mxu0 0
    %1340 = vmatprep.subr.bf16.mxu0 0
    %1341 = vmatpush1.bf16.msra.mxu0 0
    %1342 = vmatprep.subr.bf16.mxu0 0
    %1343 = vmatpush1.bf16.msra.mxu0 0
    %1344 = vmatprep.subr.bf16.mxu0 0
    %1345 = vmatpush1.bf16.msra.mxu0 0
    %1346 = vmatprep.subr.bf16.mxu0 0
    %1347 = vmatpush1.bf16.msra.mxu0 0
    %1348 = vmatprep.subr.bf16.mxu0 0
    %1349 = vmatpush1.bf16.msra.mxu0 0
    %1350 = vmatprep.subr.bf16.mxu0 %v1334
    %1351 = vmatpush1.bf16.msra.mxu0 %v1331
    %1352 = vmatprep.subr.bf16.mxu0 0
    %1353 = vmatpush2.bf16.msra.mxu0 0
    %1354 = vmatprep.subr.bf16.mxu0 0
    %1355 = vmatpush2.bf16.msra.mxu0 0
    %1356 = vmatprep.subr.bf16.mxu0 0
    %1357 = vmatpush2.bf16.msra.mxu0 0
    %1358 = vmatprep.subr.bf16.mxu0 0
    %1359 = vmatpush2.bf16.msra.mxu0 0
    %1360 = vmatprep.subr.bf16.mxu0 0
    %1361 = vmatpush2.bf16.msra.mxu0 0
    %1362 = vmatprep.subr.bf16.mxu0 0
    %1363 = vmatpush2.bf16.msra.mxu0 0
    %1364 = vmatprep.subr.bf16.mxu0 0
    %1365 = vmatpush2.bf16.msra.mxu0 0
    %1366 = vmatprep.subr.bf16.mxu0 0
    %1367 = vmatpush2.bf16.msra.mxu0 0
    %1368 = vmatprep.mubr.bf16.mxu0 0
    %1369 = vmatmul.mubr.bf16.gmra.mxu0 %v1322
    %v1370 = vpop.f32.mrf.mxu0
    %v1371 = vadd.f32 0.0, %v1370
    %v1372 = vpop.f32.mrf.mxu0
    %v1373 = vadd.f32 0.0, %v1372
    %v1374 = vpop.f32.mrf.mxu0
    %v1375 = vadd.f32 0.0, %v1374
    %v1376 = vpop.f32.mrf.mxu0
    %v1377 = vadd.f32 0.0, %v1376
    %1378 = vmatprep.mubr.bf16.mxu0 0
    %1379 = vmatmul.mubr.bf16.gmra.mxu0 %v1325
    %v1380 = vpop.f32.mrf.mxu0
    %v1381 = vadd.f32 0.0, %v1380
    %v1382 = vpop.f32.mrf.mxu0
    %v1383 = vadd.f32 0.0, %v1382
    %v1384 = vpop.f32.mrf.mxu0
    %v1385 = vadd.f32 0.0, %v1384
    %v1386 = vpop.f32.mrf.mxu0
    %v1387 = vadd.f32 0.0, %v1386
    %1388 = vmatprep.mubr.bf16.mxu0 0
    %1389 = vmatmul.mubr.bf16.gmra.mxu0 %v1328
    %v1390 = vpop.f32.mrf.mxu0
    %v1391 = vadd.f32 0.0, %v1390
    %v1392 = vpop.f32.mrf.mxu0
    %v1393 = vadd.f32 0.0, %v1392
    %v1394 = vpop.f32.mrf.mxu0
    %v1395 = vadd.f32 0.0, %v1394
    %v1396 = vpop.f32.mrf.mxu0
    %v1397 = vadd.f32 0.0, %v1396
    %1398 = vdwg.mxu0
    %v1399 = vmax.f32 %v1371, 0.0
    %v1400 = vmax.f32 %v1373, 0.0
    %v1401 = vmax.f32 %v1375, 0.0
    %v1402 = vmax.f32 %v1377, 0.0
    %v1403 = vmax.f32 %v1381, 0.0
    %v1404 = vmax.f32 %v1383, 0.0
    %v1405 = vmax.f32 %v1385, 0.0
    %v1406 = vmax.f32 %v1387, 0.0
    %v1407 = vmax.f32 %v1391, 0.0
    %v1408 = vmax.f32 %v1393, 0.0
    %v1409 = vmax.f32 %v1395, 0.0
    %v1410 = vmax.f32 %v1397, 0.0
    %v1411 = vmin.f32 %v1399, 6.0
    %v1412 = vmin.f32 %v1400, 6.0
    %v1413 = vmin.f32 %v1401, 6.0
    %v1414 = vmin.f32 %v1402, 6.0
    %v1415 = vmin.f32 %v1403, 6.0
    %v1416 = vmin.f32 %v1404, 6.0
    %v1417 = vmin.f32 %v1405, 6.0
    %v1418 = vmin.f32 %v1406, 6.0
    %v1419 = vmin.f32 %v1407, 6.0
    %v1420 = vmin.f32 %v1408, 6.0
    %v1421 = vmin.f32 %v1409, 6.0
    %v1422 = vmin.f32 %v1410, 6.0
    %1424 = vset.pattern.permute.xlu0 4
    %1425 = vperm.xlu0 %1424, %v1296
    %v1426 = vpop.permute.xlu0 %1425
    %1429 = vset.pattern.permute.xlu0 4
    %1430 = vperm.xlu0 %1429, %v1297
    %v1431 = vpop.permute.xlu0 %1430
    %1434 = vset.pattern.permute.xlu0 4
    %1435 = vperm.xlu0 %1434, %v1298
    %v1436 = vpop.permute.xlu0 %1435
    %1439 = vset.pattern.permute.xlu0 4
    %1440 = vperm.xlu0 %1439, %v1299
    %v1441 = vpop.permute.xlu0 %1440
    %1444 = vset.pattern.permute.xlu0 4
    %1445 = vperm.xlu0 %1444, %v1300
    %v1446 = vpop.permute.xlu0 %1445
    %1449 = vset.pattern.permute.xlu0 4
    %1450 = vperm.xlu0 %1449, %v1301
    %v1451 = vpop.permute.xlu0 %1450
    %v1453 = vmul.f32 %v1411, %v1426
    %v1454 = vmul.f32 %v1412, %v1426
    %v1455 = vmul.f32 %v1413, %v1431
    %v1456 = vmul.f32 %v1414, %v1431
    %v1457 = vmul.f32 %v1415, %v1436
    %v1458 = vmul.f32 %v1416, %v1436
    %v1459 = vmul.f32 %v1417, %v1441
    %v1460 = vmul.f32 %v1418, %v1441
    %v1461 = vmul.f32 %v1419, %v1446
    %v1462 = vmul.f32 %v1420, %v1446
    %v1463 = vmul.f32 %v1421, %v1451
    %v1464 = vmul.f32 %v1422, %v1451
    %1465 = vrot.lane.b32.xlu0 %v1411, 17
    %v1466 = vpop.permute.xlu0 %1465
    %1467 = vrot.lane.b32.xlu0 %v1413, 17
    %v1468 = vpop.permute.xlu0 %1467
    %1469 = vrot.lane.b32.xlu0 %v1415, 17
    %v1470 = vpop.permute.xlu0 %1469
    %1471 = vrot.lane.b32.xlu0 %v1417, 17
    %v1472 = vpop.permute.xlu0 %1471
    %1473 = vrot.lane.b32.xlu0 %v1419, 17
    %v1474 = vpop.permute.xlu0 %1473
    %1475 = vrot.lane.b32.xlu0 %v1421, 17
    %v1476 = vpop.permute.xlu0 %1475
    %1477 = vrot.lane.b32.xlu0 %v1412, 17
    %v1478 = vpop.permute.xlu0 %1477
    %1479 = vrot.lane.b32.xlu0 %v1414, 17
    %v1480 = vpop.permute.xlu0 %1479
    %1481 = vrot.lane.b32.xlu0 %v1416, 17
    %v1482 = vpop.permute.xlu0 %1481
    %1483 = vrot.lane.b32.xlu0 %v1418, 17
    %v1484 = vpop.permute.xlu0 %1483
    %1485 = vrot.lane.b32.xlu0 %v1420, 17
    %v1486 = vpop.permute.xlu0 %1485
    %1487 = vrot.lane.b32.xlu0 %v1422, 17
    %v1488 = vpop.permute.xlu0 %1487
    %v1489 = vsel %vm290, %v1466, %v1478
    %v1490 = vsel %vm290, %v1468, %v1480
    %v1491 = vsel %vm290, %v1470, %v1482
    %v1492 = vsel %vm290, %v1472, %v1484
    %v1493 = vsel %vm290, %v1474, %v1486
    %v1494 = vsel %vm290, %v1476, %v1488
    %v1495 = vsel %vm290, %v1478, %v1466
    %v1496 = vsel %vm290, %v1480, %v1468
    %v1497 = vsel %vm290, %v1482, %v1470
    %v1498 = vsel %vm290, %v1484, %v1472
    %v1499 = vsel %vm290, %v1486, %v1474
    %v1500 = vsel %vm290, %v1488, %v1476
    %1501 = vset.pattern.permute.xlu0 0
    %1502 = vperm.xlu0 %1501, %v1296
    %v1503 = vpop.permute.xlu0 %1502
    %1505 = vset.pattern.permute.xlu0 0
    %1506 = vperm.xlu0 %1505, %v1297
    %v1507 = vpop.permute.xlu0 %1506
    %1509 = vset.pattern.permute.xlu0 0
    %1510 = vperm.xlu0 %1509, %v1298
    %v1511 = vpop.permute.xlu0 %1510
    %1513 = vset.pattern.permute.xlu0 0
    %1514 = vperm.xlu0 %1513, %v1299
    %v1515 = vpop.permute.xlu0 %1514
    %1517 = vset.pattern.permute.xlu0 0
    %1518 = vperm.xlu0 %1517, %v1300
    %v1519 = vpop.permute.xlu0 %1518
    %1521 = vset.pattern.permute.xlu0 0
    %1522 = vperm.xlu0 %1521, %v1301
    %v1523 = vpop.permute.xlu0 %1522
    %v1525 = vmul.f32 %v1495, %v1503
    %v1526 = vmul.f32 %v1489, %v1503
    %v1527 = vmul.f32 %v1496, %v1507
    %v1528 = vmul.f32 %v1490, %v1507
    %v1529 = vmul.f32 %v1497, %v1511
    %v1530 = vmul.f32 %v1491, %v1511
    %v1531 = vmul.f32 %v1498, %v1515
    %v1532 = vmul.f32 %v1492, %v1515
    %v1533 = vmul.f32 %v1499, %v1519
    %v1534 = vmul.f32 %v1493, %v1519
    %v1535 = vmul.f32 %v1500, %v1523
    %v1536 = vmul.f32 %v1494, %v1523
    %v1537 = vmul.f32 %v1525, %v344
    %v1538 = vmul.f32 %v1526, %v348
    %v1539 = vmul.f32 %v1527, %v344
    %v1540 = vmul.f32 %v1528, %v348
    %v1541 = vmul.f32 %v1529, %v344
    %v1542 = vmul.f32 %v1530, %v348
    %v1543 = vmul.f32 %v1531, %v344
    %v1544 = vmul.f32 %v1532, %v348
    %v1545 = vmul.f32 %v1533, %v344
    %v1546 = vmul.f32 %v1534, %v348
    %v1547 = vmul.f32 %v1535, %v344
    %v1548 = vmul.f32 %v1536, %v348
    %v1549 = vadd.f32 %v1453, %v1537
    %v1550 = vadd.f32 %v1454, %v1538
    %v1551 = vadd.f32 %v1455, %v1539
    %v1552 = vadd.f32 %v1456, %v1540
    %v1553 = vadd.f32 %v1457, %v1541
    %v1554 = vadd.f32 %v1458, %v1542
    %v1555 = vadd.f32 %v1459, %v1543
    %v1556 = vadd.f32 %v1460, %v1544
    %v1557 = vadd.f32 %v1461, %v1545
    %v1558 = vadd.f32 %v1462, %v1546
    %v1559 = vadd.f32 %v1463, %v1547
    %v1560 = vadd.f32 %v1464, %v1548
    %1561 = vrot.lane.b32.xlu0 %v1411, 16
    %v1562 = vpop.permute.xlu0 %1561
    %1563 = vrot.lane.b32.xlu0 %v1413, 16
    %v1564 = vpop.permute.xlu0 %1563
    %1565 = vrot.lane.b32.xlu0 %v1415, 16
    %v1566 = vpop.permute.xlu0 %1565
    %1567 = vrot.lane.b32.xlu0 %v1417, 16
    %v1568 = vpop.permute.xlu0 %1567
    %1569 = vrot.lane.b32.xlu0 %v1419, 16
    %v1570 = vpop.permute.xlu0 %1569
    %1571 = vrot.lane.b32.xlu0 %v1421, 16
    %v1572 = vpop.permute.xlu0 %1571
    %1573 = vrot.lane.b32.xlu0 %v1412, 16
    %v1574 = vpop.permute.xlu0 %1573
    %1575 = vrot.lane.b32.xlu0 %v1414, 16
    %v1576 = vpop.permute.xlu0 %1575
    %1577 = vrot.lane.b32.xlu0 %v1416, 16
    %v1578 = vpop.permute.xlu0 %1577
    %1579 = vrot.lane.b32.xlu0 %v1418, 16
    %v1580 = vpop.permute.xlu0 %1579
    %1581 = vrot.lane.b32.xlu0 %v1420, 16
    %v1582 = vpop.permute.xlu0 %1581
    %1583 = vrot.lane.b32.xlu0 %v1422, 16
    %v1584 = vpop.permute.xlu0 %1583
    %v1585 = vsel %vm399, %v1562, %v1574
    %v1586 = vsel %vm399, %v1564, %v1576
    %v1587 = vsel %vm399, %v1566, %v1578
    %v1588 = vsel %vm399, %v1568, %v1580
    %v1589 = vsel %vm399, %v1570, %v1582
    %v1590 = vsel %vm399, %v1572, %v1584
    %v1591 = vsel %vm399, %v1574, %v1562
    %v1592 = vsel %vm399, %v1576, %v1564
    %v1593 = vsel %vm399, %v1578, %v1566
    %v1594 = vsel %vm399, %v1580, %v1568
    %v1595 = vsel %vm399, %v1582, %v1570
    %v1596 = vsel %vm399, %v1584, %v1572
    %1597 = vset.pattern.permute.xlu0 1
    %1598 = vperm.xlu0 %1597, %v1296
    %v1599 = vpop.permute.xlu0 %1598
    %1601 = vset.pattern.permute.xlu0 1
    %1602 = vperm.xlu0 %1601, %v1297
    %v1603 = vpop.permute.xlu0 %1602
    %1605 = vset.pattern.permute.xlu0 1
    %1606 = vperm.xlu0 %1605, %v1298
    %v1607 = vpop.permute.xlu0 %1606
    %1609 = vset.pattern.permute.xlu0 1
    %1610 = vperm.xlu0 %1609, %v1299
    %v1611 = vpop.permute.xlu0 %1610
    %1613 = vset.pattern.permute.xlu0 1
    %1614 = vperm.xlu0 %1613, %v1300
    %v1615 = vpop.permute.xlu0 %1614
    %1617 = vset.pattern.permute.xlu0 1
    %1618 = vperm.xlu0 %1617, %v1301
    %v1619 = vpop.permute.xlu0 %1618
    %v1621 = vmul.f32 %v1591, %v1599
    %v1622 = vmul.f32 %v1585, %v1599
    %v1623 = vmul.f32 %v1592, %v1603
    %v1624 = vmul.f32 %v1586, %v1603
    %v1625 = vmul.f32 %v1593, %v1607
    %v1626 = vmul.f32 %v1587, %v1607
    %v1627 = vmul.f32 %v1594, %v1611
    %v1628 = vmul.f32 %v1588, %v1611
    %v1629 = vmul.f32 %v1595, %v1615
    %v1630 = vmul.f32 %v1589, %v1615
    %v1631 = vmul.f32 %v1596, %v1619
    %v1632 = vmul.f32 %v1590, %v1619
    %v1633 = vmul.f32 %v1621, %v454
    %v1634 = vmul.f32 %v1622, %v458
    %v1635 = vmul.f32 %v1623, %v454
    %v1636 = vmul.f32 %v1624, %v458
    %v1637 = vmul.f32 %v1625, %v454
    %v1638 = vmul.f32 %v1626, %v458
    %v1639 = vmul.f32 %v1627, %v454
    %v1640 = vmul.f32 %v1628, %v458
    %v1641 = vmul.f32 %v1629, %v454
    %v1642 = vmul.f32 %v1630, %v458
    %v1643 = vmul.f32 %v1631, %v454
    %v1644 = vmul.f32 %v1632, %v458
    %v1645 = vadd.f32 %v1549, %v1633
    %v1646 = vadd.f32 %v1550, %v1634
    %v1647 = vadd.f32 %v1551, %v1635
    %v1648 = vadd.f32 %v1552, %v1636
    %v1649 = vadd.f32 %v1553, %v1637
    %v1650 = vadd.f32 %v1554, %v1638
    %v1651 = vadd.f32 %v1555, %v1639
    %v1652 = vadd.f32 %v1556, %v1640
    %v1653 = vadd.f32 %v1557, %v1641
    %v1654 = vadd.f32 %v1558, %v1642
    %v1655 = vadd.f32 %v1559, %v1643
    %v1656 = vadd.f32 %v1560, %v1644
    %1657 = vrot.lane.b32.xlu0 %v1411, 15
    %v1658 = vpop.permute.xlu0 %1657
    %1659 = vrot.lane.b32.xlu0 %v1413, 15
    %v1660 = vpop.permute.xlu0 %1659
    %1661 = vrot.lane.b32.xlu0 %v1415, 15
    %v1662 = vpop.permute.xlu0 %1661
    %1663 = vrot.lane.b32.xlu0 %v1417, 15
    %v1664 = vpop.permute.xlu0 %1663
    %1665 = vrot.lane.b32.xlu0 %v1419, 15
    %v1666 = vpop.permute.xlu0 %1665
    %1667 = vrot.lane.b32.xlu0 %v1421, 15
    %v1668 = vpop.permute.xlu0 %1667
    %1669 = vrot.lane.b32.xlu0 %v1412, 15
    %v1670 = vpop.permute.xlu0 %1669
    %1671 = vrot.lane.b32.xlu0 %v1414, 15
    %v1672 = vpop.permute.xlu0 %1671
    %1673 = vrot.lane.b32.xlu0 %v1416, 15
    %v1674 = vpop.permute.xlu0 %1673
    %1675 = vrot.lane.b32.xlu0 %v1418, 15
    %v1676 = vpop.permute.xlu0 %1675
    %1677 = vrot.lane.b32.xlu0 %v1420, 15
    %v1678 = vpop.permute.xlu0 %1677
    %1679 = vrot.lane.b32.xlu0 %v1422, 15
    %v1680 = vpop.permute.xlu0 %1679
    %v1681 = vsel %vm509, %v1658, %v1670
    %v1682 = vsel %vm509, %v1660, %v1672
    %v1683 = vsel %vm509, %v1662, %v1674
    %v1684 = vsel %vm509, %v1664, %v1676
    %v1685 = vsel %vm509, %v1666, %v1678
    %v1686 = vsel %vm509, %v1668, %v1680
    %v1687 = vsel %vm509, %v1670, %v1658
    %v1688 = vsel %vm509, %v1672, %v1660
    %v1689 = vsel %vm509, %v1674, %v1662
    %v1690 = vsel %vm509, %v1676, %v1664
    %v1691 = vsel %vm509, %v1678, %v1666
    %v1692 = vsel %vm509, %v1680, %v1668
    %1693 = vset.pattern.permute.xlu0 2
    %1694 = vperm.xlu0 %1693, %v1296
    %v1695 = vpop.permute.xlu0 %1694
    %1697 = vset.pattern.permute.xlu0 2
    %1698 = vperm.xlu0 %1697, %v1297
    %v1699 = vpop.permute.xlu0 %1698
    %1701 = vset.pattern.permute.xlu0 2
    %1702 = vperm.xlu0 %1701, %v1298
    %v1703 = vpop.permute.xlu0 %1702
    %1705 = vset.pattern.permute.xlu0 2
    %1706 = vperm.xlu0 %1705, %v1299
    %v1707 = vpop.permute.xlu0 %1706
    %1709 = vset.pattern.permute.xlu0 2
    %1710 = vperm.xlu0 %1709, %v1300
    %v1711 = vpop.permute.xlu0 %1710
    %1713 = vset.pattern.permute.xlu0 2
    %1714 = vperm.xlu0 %1713, %v1301
    %v1715 = vpop.permute.xlu0 %1714
    %v1717 = vmul.f32 %v1687, %v1695
    %v1718 = vmul.f32 %v1681, %v1695
    %v1719 = vmul.f32 %v1688, %v1699
    %v1720 = vmul.f32 %v1682, %v1699
    %v1721 = vmul.f32 %v1689, %v1703
    %v1722 = vmul.f32 %v1683, %v1703
    %v1723 = vmul.f32 %v1690, %v1707
    %v1724 = vmul.f32 %v1684, %v1707
    %v1725 = vmul.f32 %v1691, %v1711
    %v1726 = vmul.f32 %v1685, %v1711
    %v1727 = vmul.f32 %v1692, %v1715
    %v1728 = vmul.f32 %v1686, %v1715
    %v1729 = vmul.f32 %v1717, %v564
    %v1730 = vmul.f32 %v1718, %v568
    %v1731 = vmul.f32 %v1719, %v564
    %v1732 = vmul.f32 %v1720, %v568
    %v1733 = vmul.f32 %v1721, %v564
    %v1734 = vmul.f32 %v1722, %v568
    %v1735 = vmul.f32 %v1723, %v564
    %v1736 = vmul.f32 %v1724, %v568
    %v1737 = vmul.f32 %v1725, %v564
    %v1738 = vmul.f32 %v1726, %v568
    %v1739 = vmul.f32 %v1727, %v564
    %v1740 = vmul.f32 %v1728, %v568
    %v1741 = vadd.f32 %v1645, %v1729
    %v1742 = vadd.f32 %v1646, %v1730
    %v1743 = vadd.f32 %v1647, %v1731
    %v1744 = vadd.f32 %v1648, %v1732
    %v1745 = vadd.f32 %v1649, %v1733
    %v1746 = vadd.f32 %v1650, %v1734
    %v1747 = vadd.f32 %v1651, %v1735
    %v1748 = vadd.f32 %v1652, %v1736
    %v1749 = vadd.f32 %v1653, %v1737
    %v1750 = vadd.f32 %v1654, %v1738
    %v1751 = vadd.f32 %v1655, %v1739
    %v1752 = vadd.f32 %v1656, %v1740
    %1753 = vrot.lane.b32.xlu0 %v1411, 1
    %v1754 = vpop.permute.xlu0 %1753
    %1755 = vrot.lane.b32.xlu0 %v1413, 1
    %v1756 = vpop.permute.xlu0 %1755
    %1757 = vrot.lane.b32.xlu0 %v1415, 1
    %v1758 = vpop.permute.xlu0 %1757
    %1759 = vrot.lane.b32.xlu0 %v1417, 1
    %v1760 = vpop.permute.xlu0 %1759
    %1761 = vrot.lane.b32.xlu0 %v1419, 1
    %v1762 = vpop.permute.xlu0 %1761
    %1763 = vrot.lane.b32.xlu0 %v1421, 1
    %v1764 = vpop.permute.xlu0 %1763
    %1765 = vrot.lane.b32.xlu0 %v1412, 1
    %v1766 = vpop.permute.xlu0 %1765
    %1767 = vrot.lane.b32.xlu0 %v1414, 1
    %v1768 = vpop.permute.xlu0 %1767
    %1769 = vrot.lane.b32.xlu0 %v1416, 1
    %v1770 = vpop.permute.xlu0 %1769
    %1771 = vrot.lane.b32.xlu0 %v1418, 1
    %v1772 = vpop.permute.xlu0 %1771
    %1773 = vrot.lane.b32.xlu0 %v1420, 1
    %v1774 = vpop.permute.xlu0 %1773
    %1775 = vrot.lane.b32.xlu0 %v1422, 1
    %v1776 = vpop.permute.xlu0 %1775
    %v1777 = vsel %vm619, %v1754, %v1766
    %v1778 = vsel %vm619, %v1756, %v1768
    %v1779 = vsel %vm619, %v1758, %v1770
    %v1780 = vsel %vm619, %v1760, %v1772
    %v1781 = vsel %vm619, %v1762, %v1774
    %v1782 = vsel %vm619, %v1764, %v1776
    %v1783 = vsel %vm619, %v1766, %v1754
    %v1784 = vsel %vm619, %v1768, %v1756
    %v1785 = vsel %vm619, %v1770, %v1758
    %v1786 = vsel %vm619, %v1772, %v1760
    %v1787 = vsel %vm619, %v1774, %v1762
    %v1788 = vsel %vm619, %v1776, %v1764
    %1789 = vset.pattern.permute.xlu0 3
    %1790 = vperm.xlu0 %1789, %v1296
    %v1791 = vpop.permute.xlu0 %1790
    %1793 = vset.pattern.permute.xlu0 3
    %1794 = vperm.xlu0 %1793, %v1297
    %v1795 = vpop.permute.xlu0 %1794
    %1797 = vset.pattern.permute.xlu0 3
    %1798 = vperm.xlu0 %1797, %v1298
    %v1799 = vpop.permute.xlu0 %1798
    %1801 = vset.pattern.permute.xlu0 3
    %1802 = vperm.xlu0 %1801, %v1299
    %v1803 = vpop.permute.xlu0 %1802
    %1805 = vset.pattern.permute.xlu0 3
    %1806 = vperm.xlu0 %1805, %v1300
    %v1807 = vpop.permute.xlu0 %1806
    %1809 = vset.pattern.permute.xlu0 3
    %1810 = vperm.xlu0 %1809, %v1301
    %v1811 = vpop.permute.xlu0 %1810
    %v1813 = vmul.f32 %v1783, %v1791
    %v1814 = vmul.f32 %v1777, %v1791
    %v1815 = vmul.f32 %v1784, %v1795
    %v1816 = vmul.f32 %v1778, %v1795
    %v1817 = vmul.f32 %v1785, %v1799
    %v1818 = vmul.f32 %v1779, %v1799
    %v1819 = vmul.f32 %v1786, %v1803
    %v1820 = vmul.f32 %v1780, %v1803
    %v1821 = vmul.f32 %v1787, %v1807
    %v1822 = vmul.f32 %v1781, %v1807
    %v1823 = vmul.f32 %v1788, %v1811
    %v1824 = vmul.f32 %v1782, %v1811
    %v1825 = vmul.f32 %v1813, %v674
    %v1826 = vmul.f32 %v1814, %v678
    %v1827 = vmul.f32 %v1815, %v674
    %v1828 = vmul.f32 %v1816, %v678
    %v1829 = vmul.f32 %v1817, %v674
    %v1830 = vmul.f32 %v1818, %v678
    %v1831 = vmul.f32 %v1819, %v674
    %v1832 = vmul.f32 %v1820, %v678
    %v1833 = vmul.f32 %v1821, %v674
    %v1834 = vmul.f32 %v1822, %v678
    %v1835 = vmul.f32 %v1823, %v674
    %v1836 = vmul.f32 %v1824, %v678
    %v1837 = vadd.f32 %v1741, %v1825
    %v1838 = vadd.f32 %v1742, %v1826
    %v1839 = vadd.f32 %v1743, %v1827
    %v1840 = vadd.f32 %v1744, %v1828
    %v1841 = vadd.f32 %v1745, %v1829
    %v1842 = vadd.f32 %v1746, %v1830
    %v1843 = vadd.f32 %v1747, %v1831
    %v1844 = vadd.f32 %v1748, %v1832
    %v1845 = vadd.f32 %v1749, %v1833
    %v1846 = vadd.f32 %v1750, %v1834
    %v1847 = vadd.f32 %v1751, %v1835
    %v1848 = vadd.f32 %v1752, %v1836
    %1849 = vrot.lane.b32.xlu0 %v1411, 127
    %v1850 = vpop.permute.xlu0 %1849
    %1851 = vrot.lane.b32.xlu0 %v1413, 127
    %v1852 = vpop.permute.xlu0 %1851
    %1853 = vrot.lane.b32.xlu0 %v1415, 127
    %v1854 = vpop.permute.xlu0 %1853
    %1855 = vrot.lane.b32.xlu0 %v1417, 127
    %v1856 = vpop.permute.xlu0 %1855
    %1857 = vrot.lane.b32.xlu0 %v1419, 127
    %v1858 = vpop.permute.xlu0 %1857
    %1859 = vrot.lane.b32.xlu0 %v1421, 127
    %v1860 = vpop.permute.xlu0 %1859
    %1861 = vrot.lane.b32.xlu0 %v1412, 127
    %v1862 = vpop.permute.xlu0 %1861
    %1863 = vrot.lane.b32.xlu0 %v1414, 127
    %v1864 = vpop.permute.xlu0 %1863
    %1865 = vrot.lane.b32.xlu0 %v1416, 127
    %v1866 = vpop.permute.xlu0 %1865
    %1867 = vrot.lane.b32.xlu0 %v1418, 127
    %v1868 = vpop.permute.xlu0 %1867
    %1869 = vrot.lane.b32.xlu0 %v1420, 127
    %v1870 = vpop.permute.xlu0 %1869
    %1871 = vrot.lane.b32.xlu0 %v1422, 127
    %v1872 = vpop.permute.xlu0 %1871
    %v1873 = vsel %vm729, %v1850, %v1862
    %v1874 = vsel %vm729, %v1852, %v1864
    %v1875 = vsel %vm729, %v1854, %v1866
    %v1876 = vsel %vm729, %v1856, %v1868
    %v1877 = vsel %vm729, %v1858, %v1870
    %v1878 = vsel %vm729, %v1860, %v1872
    %v1879 = vsel %vm729, %v1862, %v1850
    %v1880 = vsel %vm729, %v1864, %v1852
    %v1881 = vsel %vm729, %v1866, %v1854
    %v1882 = vsel %vm729, %v1868, %v1856
    %v1883 = vsel %vm729, %v1870, %v1858
    %v1884 = vsel %vm729, %v1872, %v1860
    %1885 = vset.pattern.permute.xlu0 5
    %1886 = vperm.xlu0 %1885, %v1296
    %v1887 = vpop.permute.xlu0 %1886
    %1889 = vset.pattern.permute.xlu0 5
    %1890 = vperm.xlu0 %1889, %v1297
    %v1891 = vpop.permute.xlu0 %1890
    %1893 = vset.pattern.permute.xlu0 5
    %1894 = vperm.xlu0 %1893, %v1298
    %v1895 = vpop.permute.xlu0 %1894
    %1897 = vset.pattern.permute.xlu0 5
    %1898 = vperm.xlu0 %1897, %v1299
    %v1899 = vpop.permute.xlu0 %1898
    %1901 = vset.pattern.permute.xlu0 5
    %1902 = vperm.xlu0 %1901, %v1300
    %v1903 = vpop.permute.xlu0 %1902
    %1905 = vset.pattern.permute.xlu0 5
    %1906 = vperm.xlu0 %1905, %v1301
    %v1907 = vpop.permute.xlu0 %1906
    %v1909 = vmul.f32 %v1873, %v1887
    %v1910 = vmul.f32 %v1879, %v1887
    %v1911 = vmul.f32 %v1874, %v1891
    %v1912 = vmul.f32 %v1880, %v1891
    %v1913 = vmul.f32 %v1875, %v1895
    %v1914 = vmul.f32 %v1881, %v1895
    %v1915 = vmul.f32 %v1876, %v1899
    %v1916 = vmul.f32 %v1882, %v1899
    %v1917 = vmul.f32 %v1877, %v1903
    %v1918 = vmul.f32 %v1883, %v1903
    %v1919 = vmul.f32 %v1878, %v1907
    %v1920 = vmul.f32 %v1884, %v1907
    %v1921 = vmul.f32 %v1909, %v784
    %v1922 = vmul.f32 %v1910, %v788
    %v1923 = vmul.f32 %v1911, %v784
    %v1924 = vmul.f32 %v1912, %v788
    %v1925 = vmul.f32 %v1913, %v784
    %v1926 = vmul.f32 %v1914, %v788
    %v1927 = vmul.f32 %v1915, %v784
    %v1928 = vmul.f32 %v1916, %v788
    %v1929 = vmul.f32 %v1917, %v784
    %v1930 = vmul.f32 %v1918, %v788
    %v1931 = vmul.f32 %v1919, %v784
    %v1932 = vmul.f32 %v1920, %v788
    %v1933 = vadd.f32 %v1837, %v1921
    %v1934 = vadd.f32 %v1838, %v1922
    %v1935 = vadd.f32 %v1839, %v1923
    %v1936 = vadd.f32 %v1840, %v1924
    %v1937 = vadd.f32 %v1841, %v1925
    %v1938 = vadd.f32 %v1842, %v1926
    %v1939 = vadd.f32 %v1843, %v1927
    %v1940 = vadd.f32 %v1844, %v1928
    %v1941 = vadd.f32 %v1845, %v1929
    %v1942 = vadd.f32 %v1846, %v1930
    %v1943 = vadd.f32 %v1847, %v1931
    %v1944 = vadd.f32 %v1848, %v1932
    %1945 = vrot.lane.b32.xlu0 %v1411, 113
    %v1946 = vpop.permute.xlu0 %1945
    %1947 = vrot.lane.b32.xlu0 %v1413, 113
    %v1948 = vpop.permute.xlu0 %1947
    %1949 = vrot.lane.b32.xlu0 %v1415, 113
    %v1950 = vpop.permute.xlu0 %1949
    %1951 = vrot.lane.b32.xlu0 %v1417, 113
    %v1952 = vpop.permute.xlu0 %1951
    %1953 = vrot.lane.b32.xlu0 %v1419, 113
    %v1954 = vpop.permute.xlu0 %1953
    %1955 = vrot.lane.b32.xlu0 %v1421, 113
    %v1956 = vpop.permute.xlu0 %1955
    %1957 = vrot.lane.b32.xlu0 %v1412, 113
    %v1958 = vpop.permute.xlu0 %1957
    %1959 = vrot.lane.b32.xlu0 %v1414, 113
    %v1960 = vpop.permute.xlu0 %1959
    %1961 = vrot.lane.b32.xlu0 %v1416, 113
    %v1962 = vpop.permute.xlu0 %1961
    %1963 = vrot.lane.b32.xlu0 %v1418, 113
    %v1964 = vpop.permute.xlu0 %1963
    %1965 = vrot.lane.b32.xlu0 %v1420, 113
    %v1966 = vpop.permute.xlu0 %1965
    %1967 = vrot.lane.b32.xlu0 %v1422, 113
    %v1968 = vpop.permute.xlu0 %1967
    %v1969 = vsel %vm839, %v1946, %v1958
    %v1970 = vsel %vm839, %v1948, %v1960
    %v1971 = vsel %vm839, %v1950, %v1962
    %v1972 = vsel %vm839, %v1952, %v1964
    %v1973 = vsel %vm839, %v1954, %v1966
    %v1974 = vsel %vm839, %v1956, %v1968
    %v1975 = vsel %vm839, %v1958, %v1946
    %v1976 = vsel %vm839, %v1960, %v1948
    %v1977 = vsel %vm839, %v1962, %v1950
    %v1978 = vsel %vm839, %v1964, %v1952
    %v1979 = vsel %vm839, %v1966, %v1954
    %v1980 = vsel %vm839, %v1968, %v1956
    %1981 = vset.pattern.permute.xlu0 6
    %1982 = vperm.xlu0 %1981, %v1296
    %v1983 = vpop.permute.xlu0 %1982
    %1985 = vset.pattern.permute.xlu0 6
    %1986 = vperm.xlu0 %1985, %v1297
    %v1987 = vpop.permute.xlu0 %1986
    %1989 = vset.pattern.permute.xlu0 6
    %1990 = vperm.xlu0 %1989, %v1298
    %v1991 = vpop.permute.xlu0 %1990
    %1993 = vset.pattern.permute.xlu0 6
    %1994 = vperm.xlu0 %1993, %v1299
    %v1995 = vpop.permute.xlu0 %1994
    %1997 = vset.pattern.permute.xlu0 6
    %1998 = vperm.xlu0 %1997, %v1300
    %v1999 = vpop.permute.xlu0 %1998
    %2001 = vset.pattern.permute.xlu0 6
    %2002 = vperm.xlu0 %2001, %v1301
    %v2003 = vpop.permute.xlu0 %2002
    %v2005 = vmul.f32 %v1969, %v1983
    %v2006 = vmul.f32 %v1975, %v1983
    %v2007 = vmul.f32 %v1970, %v1987
    %v2008 = vmul.f32 %v1976, %v1987
    %v2009 = vmul.f32 %v1971, %v1991
    %v2010 = vmul.f32 %v1977, %v1991
    %v2011 = vmul.f32 %v1972, %v1995
    %v2012 = vmul.f32 %v1978, %v1995
    %v2013 = vmul.f32 %v1973, %v1999
    %v2014 = vmul.f32 %v1979, %v1999
    %v2015 = vmul.f32 %v1974, %v2003
    %v2016 = vmul.f32 %v1980, %v2003
    %v2017 = vmul.f32 %v2005, %v894
    %v2018 = vmul.f32 %v2006, %v898
    %v2019 = vmul.f32 %v2007, %v894
    %v2020 = vmul.f32 %v2008, %v898
    %v2021 = vmul.f32 %v2009, %v894
    %v2022 = vmul.f32 %v2010, %v898
    %v2023 = vmul.f32 %v2011, %v894
    %v2024 = vmul.f32 %v2012, %v898
    %v2025 = vmul.f32 %v2013, %v894
    %v2026 = vmul.f32 %v2014, %v898
    %v2027 = vmul.f32 %v2015, %v894
    %v2028 = vmul.f32 %v2016, %v898
    %v2029 = vadd.f32 %v1933, %v2017
    %v2030 = vadd.f32 %v1934, %v2018
    %v2031 = vadd.f32 %v1935, %v2019
    %v2032 = vadd.f32 %v1936, %v2020
    %v2033 = vadd.f32 %v1937, %v2021
    %v2034 = vadd.f32 %v1938, %v2022
    %v2035 = vadd.f32 %v1939, %v2023
    %v2036 = vadd.f32 %v1940, %v2024
    %v2037 = vadd.f32 %v1941, %v2025
    %v2038 = vadd.f32 %v1942, %v2026
    %v2039 = vadd.f32 %v1943, %v2027
    %v2040 = vadd.f32 %v1944, %v2028
    %2041 = vrot.lane.b32.xlu0 %v1411, 112
    %v2042 = vpop.permute.xlu0 %2041
    %2043 = vrot.lane.b32.xlu0 %v1413, 112
    %v2044 = vpop.permute.xlu0 %2043
    %2045 = vrot.lane.b32.xlu0 %v1415, 112
    %v2046 = vpop.permute.xlu0 %2045
    %2047 = vrot.lane.b32.xlu0 %v1417, 112
    %v2048 = vpop.permute.xlu0 %2047
    %2049 = vrot.lane.b32.xlu0 %v1419, 112
    %v2050 = vpop.permute.xlu0 %2049
    %2051 = vrot.lane.b32.xlu0 %v1421, 112
    %v2052 = vpop.permute.xlu0 %2051
    %2053 = vrot.lane.b32.xlu0 %v1412, 112
    %v2054 = vpop.permute.xlu0 %2053
    %2055 = vrot.lane.b32.xlu0 %v1414, 112
    %v2056 = vpop.permute.xlu0 %2055
    %2057 = vrot.lane.b32.xlu0 %v1416, 112
    %v2058 = vpop.permute.xlu0 %2057
    %2059 = vrot.lane.b32.xlu0 %v1418, 112
    %v2060 = vpop.permute.xlu0 %2059
    %2061 = vrot.lane.b32.xlu0 %v1420, 112
    %v2062 = vpop.permute.xlu0 %2061
    %2063 = vrot.lane.b32.xlu0 %v1422, 112
    %v2064 = vpop.permute.xlu0 %2063
    %v2065 = vsel %vm949, %v2042, %v2054
    %v2066 = vsel %vm949, %v2044, %v2056
    %v2067 = vsel %vm949, %v2046, %v2058
    %v2068 = vsel %vm949, %v2048, %v2060
    %v2069 = vsel %vm949, %v2050, %v2062
    %v2070 = vsel %vm949, %v2052, %v2064
    %v2071 = vsel %vm949, %v2054, %v2042
    %v2072 = vsel %vm949, %v2056, %v2044
    %v2073 = vsel %vm949, %v2058, %v2046
    %v2074 = vsel %vm949, %v2060, %v2048
    %v2075 = vsel %vm949, %v2062, %v2050
    %v2076 = vsel %vm949, %v2064, %v2052
    %2077 = vset.pattern.permute.xlu0 7
    %2078 = vperm.xlu0 %2077, %v1296
    %v2079 = vpop.permute.xlu0 %2078
    %2081 = vset.pattern.permute.xlu0 7
    %2082 = vperm.xlu0 %2081, %v1297
    %v2083 = vpop.permute.xlu0 %2082
    %2085 = vset.pattern.permute.xlu0 7
    %2086 = vperm.xlu0 %2085, %v1298
    %v2087 = vpop.permute.xlu0 %2086
    %2089 = vset.pattern.permute.xlu0 7
    %2090 = vperm.xlu0 %2089, %v1299
    %v2091 = vpop.permute.xlu0 %2090
    %2093 = vset.pattern.permute.xlu0 7
    %2094 = vperm.xlu0 %2093, %v1300
    %v2095 = vpop.permute.xlu0 %2094
    %2097 = vset.pattern.permute.xlu0 7
    %2098 = vperm.xlu0 %2097, %v1301
    %v2099 = vpop.permute.xlu0 %2098
    %v2101 = vmul.f32 %v2065, %v2079
    %v2102 = vmul.f32 %v2071, %v2079
    %v2103 = vmul.f32 %v2066, %v2083
    %v2104 = vmul.f32 %v2072, %v2083
    %v2105 = vmul.f32 %v2067, %v2087
    %v2106 = vmul.f32 %v2073, %v2087
    %v2107 = vmul.f32 %v2068, %v2091
    %v2108 = vmul.f32 %v2074, %v2091
    %v2109 = vmul.f32 %v2069, %v2095
    %v2110 = vmul.f32 %v2075, %v2095
    %v2111 = vmul.f32 %v2070, %v2099
    %v2112 = vmul.f32 %v2076, %v2099
    %v2113 = vmul.f32 %v2101, %v1004
    %v2114 = vmul.f32 %v2102, %v1008
    %v2115 = vmul.f32 %v2103, %v1004
    %v2116 = vmul.f32 %v2104, %v1008
    %v2117 = vmul.f32 %v2105, %v1004
    %v2118 = vmul.f32 %v2106, %v1008
    %v2119 = vmul.f32 %v2107, %v1004
    %v2120 = vmul.f32 %v2108, %v1008
    %v2121 = vmul.f32 %v2109, %v1004
    %v2122 = vmul.f32 %v2110, %v1008
    %v2123 = vmul.f32 %v2111, %v1004
    %v2124 = vmul.f32 %v2112, %v1008
    %v2125 = vadd.f32 %v2029, %v2113
    %v2126 = vadd.f32 %v2030, %v2114
    %v2127 = vadd.f32 %v2031, %v2115
    %v2128 = vadd.f32 %v2032, %v2116
    %v2129 = vadd.f32 %v2033, %v2117
    %v2130 = vadd.f32 %v2034, %v2118
    %v2131 = vadd.f32 %v2035, %v2119
    %v2132 = vadd.f32 %v2036, %v2120
    %v2133 = vadd.f32 %v2037, %v2121
    %v2134 = vadd.f32 %v2038, %v2122
    %v2135 = vadd.f32 %v2039, %v2123
    %v2136 = vadd.f32 %v2040, %v2124
    %2137 = vrot.lane.b32.xlu0 %v1411, 111
    %v2138 = vpop.permute.xlu0 %2137
    %2139 = vrot.lane.b32.xlu0 %v1413, 111
    %v2140 = vpop.permute.xlu0 %2139
    %2141 = vrot.lane.b32.xlu0 %v1415, 111
    %v2142 = vpop.permute.xlu0 %2141
    %2143 = vrot.lane.b32.xlu0 %v1417, 111
    %v2144 = vpop.permute.xlu0 %2143
    %2145 = vrot.lane.b32.xlu0 %v1419, 111
    %v2146 = vpop.permute.xlu0 %2145
    %2147 = vrot.lane.b32.xlu0 %v1421, 111
    %v2148 = vpop.permute.xlu0 %2147
    %2149 = vrot.lane.b32.xlu0 %v1412, 111
    %v2150 = vpop.permute.xlu0 %2149
    %2151 = vrot.lane.b32.xlu0 %v1414, 111
    %v2152 = vpop.permute.xlu0 %2151
    %2153 = vrot.lane.b32.xlu0 %v1416, 111
    %v2154 = vpop.permute.xlu0 %2153
    %2155 = vrot.lane.b32.xlu0 %v1418, 111
    %v2156 = vpop.permute.xlu0 %2155
    %2157 = vrot.lane.b32.xlu0 %v1420, 111
    %v2158 = vpop.permute.xlu0 %2157
    %2159 = vrot.lane.b32.xlu0 %v1422, 111
    %v2160 = vpop.permute.xlu0 %2159
    %v2161 = vsel %vm1059, %v2138, %v2150
    %v2162 = vsel %vm1059, %v2140, %v2152
    %v2163 = vsel %vm1059, %v2142, %v2154
    %v2164 = vsel %vm1059, %v2144, %v2156
    %v2165 = vsel %vm1059, %v2146, %v2158
    %v2166 = vsel %vm1059, %v2148, %v2160
    %v2167 = vsel %vm1059, %v2150, %v2138
    %v2168 = vsel %vm1059, %v2152, %v2140
    %v2169 = vsel %vm1059, %v2154, %v2142
    %v2170 = vsel %vm1059, %v2156, %v2144
    %v2171 = vsel %vm1059, %v2158, %v2146
    %v2172 = vsel %vm1059, %v2160, %v2148
    %2173 = vset.pattern.permute.xlu0 8
    %2174 = vperm.xlu0 %2173, %v1296
    %v2175 = vpop.permute.xlu0 %2174
    %2177 = vset.pattern.permute.xlu0 8
    %2178 = vperm.xlu0 %2177, %v1297
    %v2179 = vpop.permute.xlu0 %2178
    %2181 = vset.pattern.permute.xlu0 8
    %2182 = vperm.xlu0 %2181, %v1298
    %v2183 = vpop.permute.xlu0 %2182
    %2185 = vset.pattern.permute.xlu0 8
    %2186 = vperm.xlu0 %2185, %v1299
    %v2187 = vpop.permute.xlu0 %2186
    %2189 = vset.pattern.permute.xlu0 8
    %2190 = vperm.xlu0 %2189, %v1300
    %v2191 = vpop.permute.xlu0 %2190
    %2193 = vset.pattern.permute.xlu0 8
    %2194 = vperm.xlu0 %2193, %v1301
    %v2195 = vpop.permute.xlu0 %2194
    %v2197 = vmul.f32 %v2161, %v2175
    %v2198 = vmul.f32 %v2167, %v2175
    %v2199 = vmul.f32 %v2162, %v2179
    %v2200 = vmul.f32 %v2168, %v2179
    %v2201 = vmul.f32 %v2163, %v2183
    %v2202 = vmul.f32 %v2169, %v2183
    %v2203 = vmul.f32 %v2164, %v2187
    %v2204 = vmul.f32 %v2170, %v2187
    %v2205 = vmul.f32 %v2165, %v2191
    %v2206 = vmul.f32 %v2171, %v2191
    %v2207 = vmul.f32 %v2166, %v2195
    %v2208 = vmul.f32 %v2172, %v2195
    %v2209 = vmul.f32 %v2197, %v1114
    %v2210 = vmul.f32 %v2198, %v1118
    %v2211 = vmul.f32 %v2199, %v1114
    %v2212 = vmul.f32 %v2200, %v1118
    %v2213 = vmul.f32 %v2201, %v1114
    %v2214 = vmul.f32 %v2202, %v1118
    %v2215 = vmul.f32 %v2203, %v1114
    %v2216 = vmul.f32 %v2204, %v1118
    %v2217 = vmul.f32 %v2205, %v1114
    %v2218 = vmul.f32 %v2206, %v1118
    %v2219 = vmul.f32 %v2207, %v1114
    %v2220 = vmul.f32 %v2208, %v1118
    %v2221 = vadd.f32 %v2125, %v2209
    %v2222 = vadd.f32 %v2126, %v2210
    %v2223 = vadd.f32 %v2127, %v2211
    %v2224 = vadd.f32 %v2128, %v2212
    %v2225 = vadd.f32 %v2129, %v2213
    %v2226 = vadd.f32 %v2130, %v2214
    %v2227 = vadd.f32 %v2131, %v2215
    %v2228 = vadd.f32 %v2132, %v2216
    %v2229 = vadd.f32 %v2133, %v2217
    %v2230 = vadd.f32 %v2134, %v2218
    %v2231 = vadd.f32 %v2135, %v2219
    %v2232 = vadd.f32 %v2136, %v2220
    %v2233 = vmax.f32 %v2221, 0.0
    %v2234 = vmax.f32 %v2222, 0.0
    %v2235 = vmax.f32 %v2223, 0.0
    %v2236 = vmax.f32 %v2224, 0.0
    %v2237 = vmax.f32 %v2225, 0.0
    %v2238 = vmax.f32 %v2226, 0.0
    %v2239 = vmax.f32 %v2227, 0.0
    %v2240 = vmax.f32 %v2228, 0.0
    %v2241 = vmax.f32 %v2229, 0.0
    %v2242 = vmax.f32 %v2230, 0.0
    %v2243 = vmax.f32 %v2231, 0.0
    %v2244 = vmax.f32 %v2232, 0.0
    %v2245 = vmin.f32 %v2233, 6.0
    %v2246 = vmin.f32 %v2234, 6.0
    %v2247 = vmin.f32 %v2235, 6.0
    %v2248 = vmin.f32 %v2236, 6.0
    %v2249 = vmin.f32 %v2237, 6.0
    %v2250 = vmin.f32 %v2238, 6.0
    %v2251 = vmin.f32 %v2239, 6.0
    %v2252 = vmin.f32 %v2240, 6.0
    %v2253 = vmin.f32 %v2241, 6.0
    %v2254 = vmin.f32 %v2242, 6.0
    %v2255 = vmin.f32 %v2243, 6.0
    %v2256 = vmin.f32 %v2244, 6.0
    %v2257 = vpack.c.bf16 %v2247, %v2245
    %v2258 = vpack.c.bf16 %v2248, %v2246
    %v2259 = vpack.c.bf16 %v2251, %v2249
    %v2260 = vpack.c.bf16 %v2252, %v2250
    %v2261 = vpack.c.bf16 %v2255, %v2253
    %v2262 = vpack.c.bf16 %v2256, %v2254
    %v2264 = vsel %vm1175, %v1303, 0
    %2266 = vmatprep.subr.bf16.mxu0 0
    %2267 = vmatpush1.bf16.msra.mxu0 0
    %2268 = vmatprep.subr.bf16.mxu0 0
    %2269 = vmatpush1.bf16.msra.mxu0 0
    %2270 = vmatprep.subr.bf16.mxu0 0
    %2271 = vmatpush1.bf16.msra.mxu0 0
    %2272 = vmatprep.subr.bf16.mxu0 0
    %2273 = vmatpush1.bf16.msra.mxu0 0
    %2274 = vmatprep.subr.bf16.mxu0 0
    %2275 = vmatpush1.bf16.msra.mxu0 0
    %2276 = vmatprep.subr.bf16.mxu0 %v2262
    %2277 = vmatpush1.bf16.msra.mxu0 %v2261
    %2278 = vmatprep.subr.bf16.mxu0 %v2260
    %2279 = vmatpush1.bf16.msra.mxu0 %v2259
    %2280 = vmatprep.subr.bf16.mxu0 %v2258
    %2281 = vmatpush1.bf16.msra.mxu0 %v2257
    %2282 = vmatprep.subr.bf16.mxu0 0
    %2283 = vmatpush2.bf16.msra.mxu0 0
    %2284 = vmatprep.subr.bf16.mxu0 0
    %2285 = vmatpush2.bf16.msra.mxu0 0
    %2286 = vmatprep.subr.bf16.mxu0 0
    %2287 = vmatpush2.bf16.msra.mxu0 0
    %2288 = vmatprep.subr.bf16.mxu0 0
    %2289 = vmatpush2.bf16.msra.mxu0 0
    %2290 = vmatprep.subr.bf16.mxu0 0
    %2291 = vmatpush2.bf16.msra.mxu0 0
    %2292 = vmatprep.subr.bf16.mxu0 0
    %2293 = vmatpush2.bf16.msra.mxu0 0
    %2294 = vmatprep.subr.bf16.mxu0 0
    %2295 = vmatpush2.bf16.msra.mxu0 0
    %2296 = vmatprep.subr.bf16.mxu0 0
    %2297 = vmatpush2.bf16.msra.mxu0 0
    %2298 = vmatprep.mubr.bf16.mxu0 0
    %2299 = vmatmul.mubr.bf16.gmra.mxu0 %v2264
    %v2300 = vpop.f32.mrf.mxu0
    %v2301 = vadd.f32 0.0, %v2300
    %v2302 = vpop.f32.mrf.mxu0
    %v2303 = vadd.f32 0.0, %v2302
    %v2304 = vpop.f32.mrf.mxu0
    %v2305 = vpop.f32.mrf.mxu0
    %2306 = vdwg.mxu0
    %v2307 = vadd.f32 %v1286, %v2301
    %v2308 = vadd.f32 %v1287, %v2303
    %s2309 = scalar_lea.vmem [#allocation6], 4
    %v2310 = vld [vmem:[%s2309] sm:$0xf]
    %s2311 = scalar_lea.vmem [#allocation7], 8
    %v2312 = vld [vmem:[%s2311] sm:$0xff]
    %v2313 = vpack.c.bf16 %v2307, %v2307
    %v2314 = vpack.c.bf16 %v2308, %v2308
    %2316 = vset.pattern.permute.xlu0 0
    %2317 = vperm.xlu0 %2316, %v2312
    %v2318 = vpop.permute.xlu0 %2317
    %vm2320 = vcmask 195584
    %v2322 = vsel %vm2320, %v2310, 0
    %v2325 = vsel %vm128, %v2313, 0
    %v2328 = vsel %vm128, %v2314, 0
    %2330 = vmatprep.subr.bf16.mxu0 0
    %2331 = vmatpush1.bf16.msra.mxu0 0
    %2332 = vmatprep.subr.bf16.mxu0 0
    %2333 = vmatpush1.bf16.msra.mxu0 0
    %2334 = vmatprep.subr.bf16.mxu0 0
    %2335 = vmatpush1.bf16.msra.mxu0 0
    %2336 = vmatprep.subr.bf16.mxu0 0
    %2337 = vmatpush1.bf16.msra.mxu0 0
    %2338 = vmatprep.subr.bf16.mxu0 0
    %2339 = vmatpush1.bf16.msra.mxu0 0
    %2340 = vmatprep.subr.bf16.mxu0 0
    %2341 = vmatpush1.bf16.msra.mxu0 0
    %2342 = vmatprep.subr.bf16.mxu0 %v2328
    %2343 = vmatpush1.bf16.msra.mxu0 %v2325
    %2344 = vmatprep.subr.bf16.mxu0 %v1234
    %2345 = vmatpush1.bf16.msra.mxu0 %v1231
    %2346 = vmatprep.subr.bf16.mxu0 0
    %2347 = vmatpush2.bf16.msra.mxu0 0
    %2348 = vmatprep.subr.bf16.mxu0 0
    %2349 = vmatpush2.bf16.msra.mxu0 0
    %2350 = vmatprep.subr.bf16.mxu0 0
    %2351 = vmatpush2.bf16.msra.mxu0 0
    %2352 = vmatprep.subr.bf16.mxu0 0
    %2353 = vmatpush2.bf16.msra.mxu0 0
    %2354 = vmatprep.subr.bf16.mxu0 0
    %2355 = vmatpush2.bf16.msra.mxu0 0
    %2356 = vmatprep.subr.bf16.mxu0 0
    %2357 = vmatpush2.bf16.msra.mxu0 0
    %2358 = vmatprep.subr.bf16.mxu0 0
    %2359 = vmatpush2.bf16.msra.mxu0 0
    %2360 = vmatprep.subr.bf16.mxu0 0
    %2361 = vmatpush2.bf16.msra.mxu0 0
    %2362 = vmatprep.mubr.bf16.mxu0 0
    %2363 = vmatmul.mubr.bf16.gmra.mxu0 %v2322
    %v2364 = vpop.f32.mrf.mxu0
    %v2365 = vadd.f32 %v2318, %v2364
    %v2366 = vpop.f32.mrf.mxu0
    %v2367 = vadd.f32 %v2318, %v2366
    %v2368 = vpop.f32.mrf.mxu0
    %v2369 = vpop.f32.mrf.mxu0
    %2370 = vdwg.mxu0
    %v2371 = vmax.f32 %v2365, 0.0
    %v2372 = vmax.f32 %v2367, 0.0
    %s2373 = scalar_lea.vmem %s2, 48
    %v2374 = vld [vmem:[%s2373] sm:$0xf]
    %v2375 = vld [vmem:[%s2373 + $0x4] sm:$0xf]
    %v2376 = vld [vmem:[%s2373 + $0x8] sm:$0xf]
    %v2377 = vld [vmem:[%s2373 + $0xc] sm:$0xf]
    %v2378 = vld [vmem:[%s2373 + $0x10] sm:$0xf]
    %v2379 = vld [vmem:[%s2373 + $0x14] sm:$0xf]
    %s2380 = scalar_lea.vmem %s3, 96
    %v2381 = vld [vmem:[%s2380] sm:$0xff]
    %v2382 = vld [vmem:[%s2380 + $0x8] sm:$0xff]
    %v2383 = vld [vmem:[%s2380 + $0x10] sm:$0xff]
    %v2384 = vld [vmem:[%s2380 + $0x18] sm:$0xff]
    %v2385 = vld [vmem:[%s2380 + $0x20] sm:$0xff]
    %v2386 = vld [vmem:[%s2380 + $0x28] sm:$0xff]
    %s2387 = scalar_lea.vmem [#allocation4], 8
    %v2388 = vld [vmem:[%s2387] sm:$0xf]
    %v2389 = vpack.c.bf16 %v2371, %v2371
    %v2390 = vpack.c.bf16 %v2372, %v2372
    %v2397 = vunpack.c.l.b16 %v2374
    %v2398 = vunpack.c.l.b16 %v2375
    %v2399 = vunpack.c.l.b16 %v2376
    %v2400 = vunpack.c.l.b16 %v2377
    %v2401 = vunpack.c.l.b16 %v2378
    %v2402 = vunpack.c.l.b16 %v2379
    %v2403 = vpack.c.b16 %v2398, %v2397
    %v2404 = vpack.c.b16 %v2400, %v2399
    %v2405 = vpack.c.b16 %v2402, %v2401
    %v2407 = vsel %vm118, %v2403, 0
    %v2410 = vsel %vm118, %v2404, 0
    %v2413 = vsel %vm118, %v2405, 0
    %v2416 = vsel %vm128, %v2389, 0
    %v2419 = vsel %vm128, %v2390, 0
    %2421 = vmatprep.subr.bf16.mxu0 0
    %2422 = vmatpush1.bf16.msra.mxu0 0
    %2423 = vmatprep.subr.bf16.mxu0 0
    %2424 = vmatpush1.bf16.msra.mxu0 0
    %2425 = vmatprep.subr.bf16.mxu0 0
    %2426 = vmatpush1.bf16.msra.mxu0 0
    %2427 = vmatprep.subr.bf16.mxu0 0
    %2428 = vmatpush1.bf16.msra.mxu0 0
    %2429 = vmatprep.subr.bf16.mxu0 0
    %2430 = vmatpush1.bf16.msra.mxu0 0
    %2431 = vmatprep.subr.bf16.mxu0 0
    %2432 = vmatpush1.bf16.msra.mxu0 0
    %2433 = vmatprep.subr.bf16.mxu0 0
    %2434 = vmatpush1.bf16.msra.mxu0 0
    %2435 = vmatprep.subr.bf16.mxu0 %v2419
    %2436 = vmatpush1.bf16.msra.mxu0 %v2416
    %2437 = vmatprep.subr.bf16.mxu0 0
    %2438 = vmatpush2.bf16.msra.mxu0 0
    %2439 = vmatprep.subr.bf16.mxu0 0
    %2440 = vmatpush2.bf16.msra.mxu0 0
    %2441 = vmatprep.subr.bf16.mxu0 0
    %2442 = vmatpush2.bf16.msra.mxu0 0
    %2443 = vmatprep.subr.bf16.mxu0 0
    %2444 = vmatpush2.bf16.msra.mxu0 0
    %2445 = vmatprep.subr.bf16.mxu0 0
    %2446 = vmatpush2.bf16.msra.mxu0 0
    %2447 = vmatprep.subr.bf16.mxu0 0
    %2448 = vmatpush2.bf16.msra.mxu0 0
    %2449 = vmatprep.subr.bf16.mxu0 0
    %2450 = vmatpush2.bf16.msra.mxu0 0
    %2451 = vmatprep.subr.bf16.mxu0 0
    %2452 = vmatpush2.bf16.msra.mxu0 0
    %2453 = vmatprep.mubr.bf16.mxu0 0
    %2454 = vmatmul.mubr.bf16.gmra.mxu0 %v2407
    %v2455 = vpop.f32.mrf.mxu0
    %v2456 = vadd.f32 0.0, %v2455
    %v2457 = vpop.f32.mrf.mxu0
    %v2458 = vadd.f32 0.0, %v2457
    %v2459 = vpop.f32.mrf.mxu0
    %v2460 = vadd.f32 0.0, %v2459
    %v2461 = vpop.f32.mrf.mxu0
    %v2462 = vadd.f32 0.0, %v2461
    %2463 = vmatprep.mubr.bf16.mxu0 0
    %2464 = vmatmul.mubr.bf16.gmra.mxu0 %v2410
    %v2465 = vpop.f32.mrf.mxu0
    %v2466 = vadd.f32 0.0, %v2465
    %v2467 = vpop.f32.mrf.mxu0
    %v2468 = vadd.f32 0.0, %v2467
    %v2469 = vpop.f32.mrf.mxu0
    %v2470 = vadd.f32 0.0, %v2469
    %v2471 = vpop.f32.mrf.mxu0
    %v2472 = vadd.f32 0.0, %v2471
    %2473 = vmatprep.mubr.bf16.mxu0 0
    %2474 = vmatmul.mubr.bf16.gmra.mxu0 %v2413
    %v2475 = vpop.f32.mrf.mxu0
    %v2476 = vadd.f32 0.0, %v2475
    %v2477 = vpop.f32.mrf.mxu0
    %v2478 = vadd.f32 0.0, %v2477
    %v2479 = vpop.f32.mrf.mxu0
    %v2480 = vadd.f32 0.0, %v2479
    %v2481 = vpop.f32.mrf.mxu0
    %v2482 = vadd.f32 0.0, %v2481
    %2483 = vdwg.mxu0
    %v2484 = vmax.f32 %v2456, 0.0
    %v2485 = vmax.f32 %v2458, 0.0
    %v2486 = vmax.f32 %v2460, 0.0
    %v2487 = vmax.f32 %v2462, 0.0
    %v2488 = vmax.f32 %v2466, 0.0
    %v2489 = vmax.f32 %v2468, 0.0
    %v2490 = vmax.f32 %v2470, 0.0
    %v2491 = vmax.f32 %v2472, 0.0
    %v2492 = vmax.f32 %v2476, 0.0
    %v2493 = vmax.f32 %v2478, 0.0
    %v2494 = vmax.f32 %v2480, 0.0
    %v2495 = vmax.f32 %v2482, 0.0
    %v2496 = vmin.f32 %v2484, 6.0
    %v2497 = vmin.f32 %v2485, 6.0
    %v2498 = vmin.f32 %v2486, 6.0
    %v2499 = vmin.f32 %v2487, 6.0
    %v2500 = vmin.f32 %v2488, 6.0
    %v2501 = vmin.f32 %v2489, 6.0
    %v2502 = vmin.f32 %v2490, 6.0
    %v2503 = vmin.f32 %v2491, 6.0
    %v2504 = vmin.f32 %v2492, 6.0
    %v2505 = vmin.f32 %v2493, 6.0
    %v2506 = vmin.f32 %v2494, 6.0
    %v2507 = vmin.f32 %v2495, 6.0
    %2509 = vset.pattern.permute.xlu0 4
    %2510 = vperm.xlu0 %2509, %v2381
    %v2511 = vpop.permute.xlu0 %2510
    %2514 = vset.pattern.permute.xlu0 4
    %2515 = vperm.xlu0 %2514, %v2382
    %v2516 = vpop.permute.xlu0 %2515
    %2519 = vset.pattern.permute.xlu0 4
    %2520 = vperm.xlu0 %2519, %v2383
    %v2521 = vpop.permute.xlu0 %2520
    %2524 = vset.pattern.permute.xlu0 4
    %2525 = vperm.xlu0 %2524, %v2384
    %v2526 = vpop.permute.xlu0 %2525
    %2529 = vset.pattern.permute.xlu0 4
    %2530 = vperm.xlu0 %2529, %v2385
    %v2531 = vpop.permute.xlu0 %2530
    %2534 = vset.pattern.permute.xlu0 4
    %2535 = vperm.xlu0 %2534, %v2386
    %v2536 = vpop.permute.xlu0 %2535
    %v2538 = vmul.f32 %v2496, %v2511
    %v2539 = vmul.f32 %v2497, %v2511
    %v2540 = vmul.f32 %v2498, %v2516
    %v2541 = vmul.f32 %v2499, %v2516
    %v2542 = vmul.f32 %v2500, %v2521
    %v2543 = vmul.f32 %v2501, %v2521
    %v2544 = vmul.f32 %v2502, %v2526
    %v2545 = vmul.f32 %v2503, %v2526
    %v2546 = vmul.f32 %v2504, %v2531
    %v2547 = vmul.f32 %v2505, %v2531
    %v2548 = vmul.f32 %v2506, %v2536
    %v2549 = vmul.f32 %v2507, %v2536
    %2550 = vrot.lane.b32.xlu0 %v2496, 17
    %v2551 = vpop.permute.xlu0 %2550
    %2552 = vrot.lane.b32.xlu0 %v2498, 17
    %v2553 = vpop.permute.xlu0 %2552
    %2554 = vrot.lane.b32.xlu0 %v2500, 17
    %v2555 = vpop.permute.xlu0 %2554
    %2556 = vrot.lane.b32.xlu0 %v2502, 17
    %v2557 = vpop.permute.xlu0 %2556
    %2558 = vrot.lane.b32.xlu0 %v2504, 17
    %v2559 = vpop.permute.xlu0 %2558
    %2560 = vrot.lane.b32.xlu0 %v2506, 17
    %v2561 = vpop.permute.xlu0 %2560
    %2562 = vrot.lane.b32.xlu0 %v2497, 17
    %v2563 = vpop.permute.xlu0 %2562
    %2564 = vrot.lane.b32.xlu0 %v2499, 17
    %v2565 = vpop.permute.xlu0 %2564
    %2566 = vrot.lane.b32.xlu0 %v2501, 17
    %v2567 = vpop.permute.xlu0 %2566
    %2568 = vrot.lane.b32.xlu0 %v2503, 17
    %v2569 = vpop.permute.xlu0 %2568
    %2570 = vrot.lane.b32.xlu0 %v2505, 17
    %v2571 = vpop.permute.xlu0 %2570
    %2572 = vrot.lane.b32.xlu0 %v2507, 17
    %v2573 = vpop.permute.xlu0 %2572
    %v2574 = vsel %vm290, %v2551, %v2563
    %v2575 = vsel %vm290, %v2553, %v2565
    %v2576 = vsel %vm290, %v2555, %v2567
    %v2577 = vsel %vm290, %v2557, %v2569
    %v2578 = vsel %vm290, %v2559, %v2571
    %v2579 = vsel %vm290, %v2561, %v2573
    %v2580 = vsel %vm290, %v2563, %v2551
    %v2581 = vsel %vm290, %v2565, %v2553
    %v2582 = vsel %vm290, %v2567, %v2555
    %v2583 = vsel %vm290, %v2569, %v2557
    %v2584 = vsel %vm290, %v2571, %v2559
    %v2585 = vsel %vm290, %v2573, %v2561
    %2586 = vset.pattern.permute.xlu0 0
    %2587 = vperm.xlu0 %2586, %v2381
    %v2588 = vpop.permute.xlu0 %2587
    %2590 = vset.pattern.permute.xlu0 0
    %2591 = vperm.xlu0 %2590, %v2382
    %v2592 = vpop.permute.xlu0 %2591
    %2594 = vset.pattern.permute.xlu0 0
    %2595 = vperm.xlu0 %2594, %v2383
    %v2596 = vpop.permute.xlu0 %2595
    %2598 = vset.pattern.permute.xlu0 0
    %2599 = vperm.xlu0 %2598, %v2384
    %v2600 = vpop.permute.xlu0 %2599
    %2602 = vset.pattern.permute.xlu0 0
    %2603 = vperm.xlu0 %2602, %v2385
    %v2604 = vpop.permute.xlu0 %2603
    %2606 = vset.pattern.permute.xlu0 0
    %2607 = vperm.xlu0 %2606, %v2386
    %v2608 = vpop.permute.xlu0 %2607
    %v2610 = vmul.f32 %v2580, %v2588
    %v2611 = vmul.f32 %v2574, %v2588
    %v2612 = vmul.f32 %v2581, %v2592
    %v2613 = vmul.f32 %v2575, %v2592
    %v2614 = vmul.f32 %v2582, %v2596
    %v2615 = vmul.f32 %v2576, %v2596
    %v2616 = vmul.f32 %v2583, %v2600
    %v2617 = vmul.f32 %v2577, %v2600
    %v2618 = vmul.f32 %v2584, %v2604
    %v2619 = vmul.f32 %v2578, %v2604
    %v2620 = vmul.f32 %v2585, %v2608
    %v2621 = vmul.f32 %v2579, %v2608
    %v2622 = vmul.f32 %v2610, %v344
    %v2623 = vmul.f32 %v2611, %v348
    %v2624 = vmul.f32 %v2612, %v344
    %v2625 = vmul.f32 %v2613, %v348
    %v2626 = vmul.f32 %v2614, %v344
    %v2627 = vmul.f32 %v2615, %v348
    %v2628 = vmul.f32 %v2616, %v344
    %v2629 = vmul.f32 %v2617, %v348
    %v2630 = vmul.f32 %v2618, %v344
    %v2631 = vmul.f32 %v2619, %v348
    %v2632 = vmul.f32 %v2620, %v344
    %v2633 = vmul.f32 %v2621, %v348
    %v2634 = vadd.f32 %v2538, %v2622
    %v2635 = vadd.f32 %v2539, %v2623
    %v2636 = vadd.f32 %v2540, %v2624
    %v2637 = vadd.f32 %v2541, %v2625
    %v2638 = vadd.f32 %v2542, %v2626
    %v2639 = vadd.f32 %v2543, %v2627
    %v2640 = vadd.f32 %v2544, %v2628
    %v2641 = vadd.f32 %v2545, %v2629
    %v2642 = vadd.f32 %v2546, %v2630
    %v2643 = vadd.f32 %v2547, %v2631
    %v2644 = vadd.f32 %v2548, %v2632
    %v2645 = vadd.f32 %v2549, %v2633
    %2646 = vrot.lane.b32.xlu0 %v2496, 16
    %v2647 = vpop.permute.xlu0 %2646
    %2648 = vrot.lane.b32.xlu0 %v2498, 16
    %v2649 = vpop.permute.xlu0 %2648
    %2650 = vrot.lane.b32.xlu0 %v2500, 16
    %v2651 = vpop.permute.xlu0 %2650
    %2652 = vrot.lane.b32.xlu0 %v2502, 16
    %v2653 = vpop.permute.xlu0 %2652
    %2654 = vrot.lane.b32.xlu0 %v2504, 16
    %v2655 = vpop.permute.xlu0 %2654
    %2656 = vrot.lane.b32.xlu0 %v2506, 16
    %v2657 = vpop.permute.xlu0 %2656
    %2658 = vrot.lane.b32.xlu0 %v2497, 16
    %v2659 = vpop.permute.xlu0 %2658
    %2660 = vrot.lane.b32.xlu0 %v2499, 16
    %v2661 = vpop.permute.xlu0 %2660
    %2662 = vrot.lane.b32.xlu0 %v2501, 16
    %v2663 = vpop.permute.xlu0 %2662
    %2664 = vrot.lane.b32.xlu0 %v2503, 16
    %v2665 = vpop.permute.xlu0 %2664
    %2666 = vrot.lane.b32.xlu0 %v2505, 16
    %v2667 = vpop.permute.xlu0 %2666
    %2668 = vrot.lane.b32.xlu0 %v2507, 16
    %v2669 = vpop.permute.xlu0 %2668
    %v2670 = vsel %vm399, %v2647, %v2659
    %v2671 = vsel %vm399, %v2649, %v2661
    %v2672 = vsel %vm399, %v2651, %v2663
    %v2673 = vsel %vm399, %v2653, %v2665
    %v2674 = vsel %vm399, %v2655, %v2667
    %v2675 = vsel %vm399, %v2657, %v2669
    %v2676 = vsel %vm399, %v2659, %v2647
    %v2677 = vsel %vm399, %v2661, %v2649
    %v2678 = vsel %vm399, %v2663, %v2651
    %v2679 = vsel %vm399, %v2665, %v2653
    %v2680 = vsel %vm399, %v2667, %v2655
    %v2681 = vsel %vm399, %v2669, %v2657
    %2682 = vset.pattern.permute.xlu0 1
    %2683 = vperm.xlu0 %2682, %v2381
    %v2684 = vpop.permute.xlu0 %2683
    %2686 = vset.pattern.permute.xlu0 1
    %2687 = vperm.xlu0 %2686, %v2382
    %v2688 = vpop.permute.xlu0 %2687
    %2690 = vset.pattern.permute.xlu0 1
    %2691 = vperm.xlu0 %2690, %v2383
    %v2692 = vpop.permute.xlu0 %2691
    %2694 = vset.pattern.permute.xlu0 1
    %2695 = vperm.xlu0 %2694, %v2384
    %v2696 = vpop.permute.xlu0 %2695
    %2698 = vset.pattern.permute.xlu0 1
    %2699 = vperm.xlu0 %2698, %v2385
    %v2700 = vpop.permute.xlu0 %2699
    %2702 = vset.pattern.permute.xlu0 1
    %2703 = vperm.xlu0 %2702, %v2386
    %v2704 = vpop.permute.xlu0 %2703
    %v2706 = vmul.f32 %v2676, %v2684
    %v2707 = vmul.f32 %v2670, %v2684
    %v2708 = vmul.f32 %v2677, %v2688
    %v2709 = vmul.f32 %v2671, %v2688
    %v2710 = vmul.f32 %v2678, %v2692
    %v2711 = vmul.f32 %v2672, %v2692
    %v2712 = vmul.f32 %v2679, %v2696
    %v2713 = vmul.f32 %v2673, %v2696
    %v2714 = vmul.f32 %v2680, %v2700
    %v2715 = vmul.f32 %v2674, %v2700
    %v2716 = vmul.f32 %v2681, %v2704
    %v2717 = vmul.f32 %v2675, %v2704
    %v2718 = vmul.f32 %v2706, %v454
    %v2719 = vmul.f32 %v2707, %v458
    %v2720 = vmul.f32 %v2708, %v454
    %v2721 = vmul.f32 %v2709, %v458
    %v2722 = vmul.f32 %v2710, %v454
    %v2723 = vmul.f32 %v2711, %v458
    %v2724 = vmul.f32 %v2712, %v454
    %v2725 = vmul.f32 %v2713, %v458
    %v2726 = vmul.f32 %v2714, %v454
    %v2727 = vmul.f32 %v2715, %v458
    %v2728 = vmul.f32 %v2716, %v454
    %v2729 = vmul.f32 %v2717, %v458
    %v2730 = vadd.f32 %v2634, %v2718
    %v2731 = vadd.f32 %v2635, %v2719
    %v2732 = vadd.f32 %v2636, %v2720
    %v2733 = vadd.f32 %v2637, %v2721
    %v2734 = vadd.f32 %v2638, %v2722
    %v2735 = vadd.f32 %v2639, %v2723
    %v2736 = vadd.f32 %v2640, %v2724
    %v2737 = vadd.f32 %v2641, %v2725
    %v2738 = vadd.f32 %v2642, %v2726
    %v2739 = vadd.f32 %v2643, %v2727
    %v2740 = vadd.f32 %v2644, %v2728
    %v2741 = vadd.f32 %v2645, %v2729
    %2742 = vrot.lane.b32.xlu0 %v2496, 15
    %v2743 = vpop.permute.xlu0 %2742
    %2744 = vrot.lane.b32.xlu0 %v2498, 15
    %v2745 = vpop.permute.xlu0 %2744
    %2746 = vrot.lane.b32.xlu0 %v2500, 15
    %v2747 = vpop.permute.xlu0 %2746
    %2748 = vrot.lane.b32.xlu0 %v2502, 15
    %v2749 = vpop.permute.xlu0 %2748
    %2750 = vrot.lane.b32.xlu0 %v2504, 15
    %v2751 = vpop.permute.xlu0 %2750
    %2752 = vrot.lane.b32.xlu0 %v2506, 15
    %v2753 = vpop.permute.xlu0 %2752
    %2754 = vrot.lane.b32.xlu0 %v2497, 15
    %v2755 = vpop.permute.xlu0 %2754
    %2756 = vrot.lane.b32.xlu0 %v2499, 15
    %v2757 = vpop.permute.xlu0 %2756
    %2758 = vrot.lane.b32.xlu0 %v2501, 15
    %v2759 = vpop.permute.xlu0 %2758
    %2760 = vrot.lane.b32.xlu0 %v2503, 15
    %v2761 = vpop.permute.xlu0 %2760
    %2762 = vrot.lane.b32.xlu0 %v2505, 15
    %v2763 = vpop.permute.xlu0 %2762
    %2764 = vrot.lane.b32.xlu0 %v2507, 15
    %v2765 = vpop.permute.xlu0 %2764
    %v2766 = vsel %vm509, %v2743, %v2755
    %v2767 = vsel %vm509, %v2745, %v2757
    %v2768 = vsel %vm509, %v2747, %v2759
    %v2769 = vsel %vm509, %v2749, %v2761
    %v2770 = vsel %vm509, %v2751, %v2763
    %v2771 = vsel %vm509, %v2753, %v2765
    %v2772 = vsel %vm509, %v2755, %v2743
    %v2773 = vsel %vm509, %v2757, %v2745
    %v2774 = vsel %vm509, %v2759, %v2747
    %v2775 = vsel %vm509, %v2761, %v2749
    %v2776 = vsel %vm509, %v2763, %v2751
    %v2777 = vsel %vm509, %v2765, %v2753
    %2778 = vset.pattern.permute.xlu0 2
    %2779 = vperm.xlu0 %2778, %v2381
    %v2780 = vpop.permute.xlu0 %2779
    %2782 = vset.pattern.permute.xlu0 2
    %2783 = vperm.xlu0 %2782, %v2382
    %v2784 = vpop.permute.xlu0 %2783
    %2786 = vset.pattern.permute.xlu0 2
    %2787 = vperm.xlu0 %2786, %v2383
    %v2788 = vpop.permute.xlu0 %2787
    %2790 = vset.pattern.permute.xlu0 2
    %2791 = vperm.xlu0 %2790, %v2384
    %v2792 = vpop.permute.xlu0 %2791
    %2794 = vset.pattern.permute.xlu0 2
    %2795 = vperm.xlu0 %2794, %v2385
    %v2796 = vpop.permute.xlu0 %2795
    %2798 = vset.pattern.permute.xlu0 2
    %2799 = vperm.xlu0 %2798, %v2386
    %v2800 = vpop.permute.xlu0 %2799
    %v2802 = vmul.f32 %v2772, %v2780
    %v2803 = vmul.f32 %v2766, %v2780
    %v2804 = vmul.f32 %v2773, %v2784
    %v2805 = vmul.f32 %v2767, %v2784
    %v2806 = vmul.f32 %v2774, %v2788
    %v2807 = vmul.f32 %v2768, %v2788
    %v2808 = vmul.f32 %v2775, %v2792
    %v2809 = vmul.f32 %v2769, %v2792
    %v2810 = vmul.f32 %v2776, %v2796
    %v2811 = vmul.f32 %v2770, %v2796
    %v2812 = vmul.f32 %v2777, %v2800
    %v2813 = vmul.f32 %v2771, %v2800
    %v2814 = vmul.f32 %v2802, %v564
    %v2815 = vmul.f32 %v2803, %v568
    %v2816 = vmul.f32 %v2804, %v564
    %v2817 = vmul.f32 %v2805, %v568
    %v2818 = vmul.f32 %v2806, %v564
    %v2819 = vmul.f32 %v2807, %v568
    %v2820 = vmul.f32 %v2808, %v564
    %v2821 = vmul.f32 %v2809, %v568
    %v2822 = vmul.f32 %v2810, %v564
    %v2823 = vmul.f32 %v2811, %v568
    %v2824 = vmul.f32 %v2812, %v564
    %v2825 = vmul.f32 %v2813, %v568
    %v2826 = vadd.f32 %v2730, %v2814
    %v2827 = vadd.f32 %v2731, %v2815
    %v2828 = vadd.f32 %v2732, %v2816
    %v2829 = vadd.f32 %v2733, %v2817
    %v2830 = vadd.f32 %v2734, %v2818
    %v2831 = vadd.f32 %v2735, %v2819
    %v2832 = vadd.f32 %v2736, %v2820
    %v2833 = vadd.f32 %v2737, %v2821
    %v2834 = vadd.f32 %v2738, %v2822
    %v2835 = vadd.f32 %v2739, %v2823
    %v2836 = vadd.f32 %v2740, %v2824
    %v2837 = vadd.f32 %v2741, %v2825
    %2838 = vrot.lane.b32.xlu0 %v2496, 1
    %v2839 = vpop.permute.xlu0 %2838
    %2840 = vrot.lane.b32.xlu0 %v2498, 1
    %v2841 = vpop.permute.xlu0 %2840
    %2842 = vrot.lane.b32.xlu0 %v2500, 1
    %v2843 = vpop.permute.xlu0 %2842
    %2844 = vrot.lane.b32.xlu0 %v2502, 1
    %v2845 = vpop.permute.xlu0 %2844
    %2846 = vrot.lane.b32.xlu0 %v2504, 1
    %v2847 = vpop.permute.xlu0 %2846
    %2848 = vrot.lane.b32.xlu0 %v2506, 1
    %v2849 = vpop.permute.xlu0 %2848
    %2850 = vrot.lane.b32.xlu0 %v2497, 1
    %v2851 = vpop.permute.xlu0 %2850
    %2852 = vrot.lane.b32.xlu0 %v2499, 1
    %v2853 = vpop.permute.xlu0 %2852
    %2854 = vrot.lane.b32.xlu0 %v2501, 1
    %v2855 = vpop.permute.xlu0 %2854
    %2856 = vrot.lane.b32.xlu0 %v2503, 1
    %v2857 = vpop.permute.xlu0 %2856
    %2858 = vrot.lane.b32.xlu0 %v2505, 1
    %v2859 = vpop.permute.xlu0 %2858
    %2860 = vrot.lane.b32.xlu0 %v2507, 1
    %v2861 = vpop.permute.xlu0 %2860
    %v2862 = vsel %vm619, %v2839, %v2851
    %v2863 = vsel %vm619, %v2841, %v2853
    %v2864 = vsel %vm619, %v2843, %v2855
    %v2865 = vsel %vm619, %v2845, %v2857
    %v2866 = vsel %vm619, %v2847, %v2859
    %v2867 = vsel %vm619, %v2849, %v2861
    %v2868 = vsel %vm619, %v2851, %v2839
    %v2869 = vsel %vm619, %v2853, %v2841
    %v2870 = vsel %vm619, %v2855, %v2843
    %v2871 = vsel %vm619, %v2857, %v2845
    %v2872 = vsel %vm619, %v2859, %v2847
    %v2873 = vsel %vm619, %v2861, %v2849
    %2874 = vset.pattern.permute.xlu0 3
    %2875 = vperm.xlu0 %2874, %v2381
    %v2876 = vpop.permute.xlu0 %2875
    %2878 = vset.pattern.permute.xlu0 3
    %2879 = vperm.xlu0 %2878, %v2382
    %v2880 = vpop.permute.xlu0 %2879
    %2882 = vset.pattern.permute.xlu0 3
    %2883 = vperm.xlu0 %2882, %v2383
    %v2884 = vpop.permute.xlu0 %2883
    %2886 = vset.pattern.permute.xlu0 3
    %2887 = vperm.xlu0 %2886, %v2384
    %v2888 = vpop.permute.xlu0 %2887
    %2890 = vset.pattern.permute.xlu0 3
    %2891 = vperm.xlu0 %2890, %v2385
    %v2892 = vpop.permute.xlu0 %2891
    %2894 = vset.pattern.permute.xlu0 3
    %2895 = vperm.xlu0 %2894, %v2386
    %v2896 = vpop.permute.xlu0 %2895
    %v2898 = vmul.f32 %v2868, %v2876
    %v2899 = vmul.f32 %v2862, %v2876
    %v2900 = vmul.f32 %v2869, %v2880
    %v2901 = vmul.f32 %v2863, %v2880
    %v2902 = vmul.f32 %v2870, %v2884
    %v2903 = vmul.f32 %v2864, %v2884
    %v2904 = vmul.f32 %v2871, %v2888
    %v2905 = vmul.f32 %v2865, %v2888
    %v2906 = vmul.f32 %v2872, %v2892
    %v2907 = vmul.f32 %v2866, %v2892
    %v2908 = vmul.f32 %v2873, %v2896
    %v2909 = vmul.f32 %v2867, %v2896
    %v2910 = vmul.f32 %v2898, %v674
    %v2911 = vmul.f32 %v2899, %v678
    %v2912 = vmul.f32 %v2900, %v674
    %v2913 = vmul.f32 %v2901, %v678
    %v2914 = vmul.f32 %v2902, %v674
    %v2915 = vmul.f32 %v2903, %v678
    %v2916 = vmul.f32 %v2904, %v674
    %v2917 = vmul.f32 %v2905, %v678
    %v2918 = vmul.f32 %v2906, %v674
    %v2919 = vmul.f32 %v2907, %v678
    %v2920 = vmul.f32 %v2908, %v674
    %v2921 = vmul.f32 %v2909, %v678
    %v2922 = vadd.f32 %v2826, %v2910
    %v2923 = vadd.f32 %v2827, %v2911
    %v2924 = vadd.f32 %v2828, %v2912
    %v2925 = vadd.f32 %v2829, %v2913
    %v2926 = vadd.f32 %v2830, %v2914
    %v2927 = vadd.f32 %v2831, %v2915
    %v2928 = vadd.f32 %v2832, %v2916
    %v2929 = vadd.f32 %v2833, %v2917
    %v2930 = vadd.f32 %v2834, %v2918
    %v2931 = vadd.f32 %v2835, %v2919
    %v2932 = vadd.f32 %v2836, %v2920
    %v2933 = vadd.f32 %v2837, %v2921
    %2934 = vrot.lane.b32.xlu0 %v2496, 127
    %v2935 = vpop.permute.xlu0 %2934
    %2936 = vrot.lane.b32.xlu0 %v2498, 127
    %v2937 = vpop.permute.xlu0 %2936
    %2938 = vrot.lane.b32.xlu0 %v2500, 127
    %v2939 = vpop.permute.xlu0 %2938
    %2940 = vrot.lane.b32.xlu0 %v2502, 127
    %v2941 = vpop.permute.xlu0 %2940
    %2942 = vrot.lane.b32.xlu0 %v2504, 127
    %v2943 = vpop.permute.xlu0 %2942
    %2944 = vrot.lane.b32.xlu0 %v2506, 127
    %v2945 = vpop.permute.xlu0 %2944
    %2946 = vrot.lane.b32.xlu0 %v2497, 127
    %v2947 = vpop.permute.xlu0 %2946
    %2948 = vrot.lane.b32.xlu0 %v2499, 127
    %v2949 = vpop.permute.xlu0 %2948
    %2950 = vrot.lane.b32.xlu0 %v2501, 127
    %v2951 = vpop.permute.xlu0 %2950
    %2952 = vrot.lane.b32.xlu0 %v2503, 127
    %v2953 = vpop.permute.xlu0 %2952
    %2954 = vrot.lane.b32.xlu0 %v2505, 127
    %v2955 = vpop.permute.xlu0 %2954
    %2956 = vrot.lane.b32.xlu0 %v2507, 127
    %v2957 = vpop.permute.xlu0 %2956
    %v2958 = vsel %vm729, %v2935, %v2947
    %v2959 = vsel %vm729, %v2937, %v2949
    %v2960 = vsel %vm729, %v2939, %v2951
    %v2961 = vsel %vm729, %v2941, %v2953
    %v2962 = vsel %vm729, %v2943, %v2955
    %v2963 = vsel %vm729, %v2945, %v2957
    %v2964 = vsel %vm729, %v2947, %v2935
    %v2965 = vsel %vm729, %v2949, %v2937
    %v2966 = vsel %vm729, %v2951, %v2939
    %v2967 = vsel %vm729, %v2953, %v2941
    %v2968 = vsel %vm729, %v2955, %v2943
    %v2969 = vsel %vm729, %v2957, %v2945
    %2970 = vset.pattern.permute.xlu0 5
    %2971 = vperm.xlu0 %2970, %v2381
    %v2972 = vpop.permute.xlu0 %2971
    %2974 = vset.pattern.permute.xlu0 5
    %2975 = vperm.xlu0 %2974, %v2382
    %v2976 = vpop.permute.xlu0 %2975
    %2978 = vset.pattern.permute.xlu0 5
    %2979 = vperm.xlu0 %2978, %v2383
    %v2980 = vpop.permute.xlu0 %2979
    %2982 = vset.pattern.permute.xlu0 5
    %2983 = vperm.xlu0 %2982, %v2384
    %v2984 = vpop.permute.xlu0 %2983
    %2986 = vset.pattern.permute.xlu0 5
    %2987 = vperm.xlu0 %2986, %v2385
    %v2988 = vpop.permute.xlu0 %2987
    %2990 = vset.pattern.permute.xlu0 5
    %2991 = vperm.xlu0 %2990, %v2386
    %v2992 = vpop.permute.xlu0 %2991
    %v2994 = vmul.f32 %v2958, %v2972
    %v2995 = vmul.f32 %v2964, %v2972
    %v2996 = vmul.f32 %v2959, %v2976
    %v2997 = vmul.f32 %v2965, %v2976
    %v2998 = vmul.f32 %v2960, %v2980
    %v2999 = vmul.f32 %v2966, %v2980
    %v3000 = vmul.f32 %v2961, %v2984
    %v3001 = vmul.f32 %v2967, %v2984
    %v3002 = vmul.f32 %v2962, %v2988
    %v3003 = vmul.f32 %v2968, %v2988
    %v3004 = vmul.f32 %v2963, %v2992
    %v3005 = vmul.f32 %v2969, %v2992
    %v3006 = vmul.f32 %v2994, %v784
    %v3007 = vmul.f32 %v2995, %v788
    %v3008 = vmul.f32 %v2996, %v784
    %v3009 = vmul.f32 %v2997, %v788
    %v3010 = vmul.f32 %v2998, %v784
    %v3011 = vmul.f32 %v2999, %v788
    %v3012 = vmul.f32 %v3000, %v784
    %v3013 = vmul.f32 %v3001, %v788
    %v3014 = vmul.f32 %v3002, %v784
    %v3015 = vmul.f32 %v3003, %v788
    %v3016 = vmul.f32 %v3004, %v784
    %v3017 = vmul.f32 %v3005, %v788
    %v3018 = vadd.f32 %v2922, %v3006
    %v3019 = vadd.f32 %v2923, %v3007
    %v3020 = vadd.f32 %v2924, %v3008
    %v3021 = vadd.f32 %v2925, %v3009
    %v3022 = vadd.f32 %v2926, %v3010
    %v3023 = vadd.f32 %v2927, %v3011
    %v3024 = vadd.f32 %v2928, %v3012
    %v3025 = vadd.f32 %v2929, %v3013
    %v3026 = vadd.f32 %v2930, %v3014
    %v3027 = vadd.f32 %v2931, %v3015
    %v3028 = vadd.f32 %v2932, %v3016
    %v3029 = vadd.f32 %v2933, %v3017
    %3030 = vrot.lane.b32.xlu0 %v2496, 113
    %v3031 = vpop.permute.xlu0 %3030
    %3032 = vrot.lane.b32.xlu0 %v2498, 113
    %v3033 = vpop.permute.xlu0 %3032
    %3034 = vrot.lane.b32.xlu0 %v2500, 113
    %v3035 = vpop.permute.xlu0 %3034
    %3036 = vrot.lane.b32.xlu0 %v2502, 113
    %v3037 = vpop.permute.xlu0 %3036
    %3038 = vrot.lane.b32.xlu0 %v2504, 113
    %v3039 = vpop.permute.xlu0 %3038
    %3040 = vrot.lane.b32.xlu0 %v2506, 113
    %v3041 = vpop.permute.xlu0 %3040
    %3042 = vrot.lane.b32.xlu0 %v2497, 113
    %v3043 = vpop.permute.xlu0 %3042
    %3044 = vrot.lane.b32.xlu0 %v2499, 113
    %v3045 = vpop.permute.xlu0 %3044
    %3046 = vrot.lane.b32.xlu0 %v2501, 113
    %v3047 = vpop.permute.xlu0 %3046
    %3048 = vrot.lane.b32.xlu0 %v2503, 113
    %v3049 = vpop.permute.xlu0 %3048
    %3050 = vrot.lane.b32.xlu0 %v2505, 113
    %v3051 = vpop.permute.xlu0 %3050
    %3052 = vrot.lane.b32.xlu0 %v2507, 113
    %v3053 = vpop.permute.xlu0 %3052
    %v3054 = vsel %vm839, %v3031, %v3043
    %v3055 = vsel %vm839, %v3033, %v3045
    %v3056 = vsel %vm839, %v3035, %v3047
    %v3057 = vsel %vm839, %v3037, %v3049
    %v3058 = vsel %vm839, %v3039, %v3051
    %v3059 = vsel %vm839, %v3041, %v3053
    %v3060 = vsel %vm839, %v3043, %v3031
    %v3061 = vsel %vm839, %v3045, %v3033
    %v3062 = vsel %vm839, %v3047, %v3035
    %v3063 = vsel %vm839, %v3049, %v3037
    %v3064 = vsel %vm839, %v3051, %v3039
    %v3065 = vsel %vm839, %v3053, %v3041
    %3066 = vset.pattern.permute.xlu0 6
    %3067 = vperm.xlu0 %3066, %v2381
    %v3068 = vpop.permute.xlu0 %3067
    %3070 = vset.pattern.permute.xlu0 6
    %3071 = vperm.xlu0 %3070, %v2382
    %v3072 = vpop.permute.xlu0 %3071
    %3074 = vset.pattern.permute.xlu0 6
    %3075 = vperm.xlu0 %3074, %v2383
    %v3076 = vpop.permute.xlu0 %3075
    %3078 = vset.pattern.permute.xlu0 6
    %3079 = vperm.xlu0 %3078, %v2384
    %v3080 = vpop.permute.xlu0 %3079
    %3082 = vset.pattern.permute.xlu0 6
    %3083 = vperm.xlu0 %3082, %v2385
    %v3084 = vpop.permute.xlu0 %3083
    %3086 = vset.pattern.permute.xlu0 6
    %3087 = vperm.xlu0 %3086, %v2386
    %v3088 = vpop.permute.xlu0 %3087
    %v3090 = vmul.f32 %v3054, %v3068
    %v3091 = vmul.f32 %v3060, %v3068
    %v3092 = vmul.f32 %v3055, %v3072
    %v3093 = vmul.f32 %v3061, %v3072
    %v3094 = vmul.f32 %v3056, %v3076
    %v3095 = vmul.f32 %v3062, %v3076
    %v3096 = vmul.f32 %v3057, %v3080
    %v3097 = vmul.f32 %v3063, %v3080
    %v3098 = vmul.f32 %v3058, %v3084
    %v3099 = vmul.f32 %v3064, %v3084
    %v3100 = vmul.f32 %v3059, %v3088
    %v3101 = vmul.f32 %v3065, %v3088
    %v3102 = vmul.f32 %v3090, %v894
    %v3103 = vmul.f32 %v3091, %v898
    %v3104 = vmul.f32 %v3092, %v894
    %v3105 = vmul.f32 %v3093, %v898
    %v3106 = vmul.f32 %v3094, %v894
    %v3107 = vmul.f32 %v3095, %v898
    %v3108 = vmul.f32 %v3096, %v894
    %v3109 = vmul.f32 %v3097, %v898
    %v3110 = vmul.f32 %v3098, %v894
    %v3111 = vmul.f32 %v3099, %v898
    %v3112 = vmul.f32 %v3100, %v894
    %v3113 = vmul.f32 %v3101, %v898
    %v3114 = vadd.f32 %v3018, %v3102
    %v3115 = vadd.f32 %v3019, %v3103
    %v3116 = vadd.f32 %v3020, %v3104
    %v3117 = vadd.f32 %v3021, %v3105
    %v3118 = vadd.f32 %v3022, %v3106
    %v3119 = vadd.f32 %v3023, %v3107
    %v3120 = vadd.f32 %v3024, %v3108
    %v3121 = vadd.f32 %v3025, %v3109
    %v3122 = vadd.f32 %v3026, %v3110
    %v3123 = vadd.f32 %v3027, %v3111
    %v3124 = vadd.f32 %v3028, %v3112
    %v3125 = vadd.f32 %v3029, %v3113
    %3126 = vrot.lane.b32.xlu0 %v2496, 112
    %v3127 = vpop.permute.xlu0 %3126
    %3128 = vrot.lane.b32.xlu0 %v2498, 112
    %v3129 = vpop.permute.xlu0 %3128
    %3130 = vrot.lane.b32.xlu0 %v2500, 112
    %v3131 = vpop.permute.xlu0 %3130
    %3132 = vrot.lane.b32.xlu0 %v2502, 112
    %v3133 = vpop.permute.xlu0 %3132
    %3134 = vrot.lane.b32.xlu0 %v2504, 112
    %v3135 = vpop.permute.xlu0 %3134
    %3136 = vrot.lane.b32.xlu0 %v2506, 112
    %v3137 = vpop.permute.xlu0 %3136
    %3138 = vrot.lane.b32.xlu0 %v2497, 112
    %v3139 = vpop.permute.xlu0 %3138
    %3140 = vrot.lane.b32.xlu0 %v2499, 112
    %v3141 = vpop.permute.xlu0 %3140
    %3142 = vrot.lane.b32.xlu0 %v2501, 112
    %v3143 = vpop.permute.xlu0 %3142
    %3144 = vrot.lane.b32.xlu0 %v2503, 112
    %v3145 = vpop.permute.xlu0 %3144
    %3146 = vrot.lane.b32.xlu0 %v2505, 112
    %v3147 = vpop.permute.xlu0 %3146
    %3148 = vrot.lane.b32.xlu0 %v2507, 112
    %v3149 = vpop.permute.xlu0 %3148
    %v3150 = vsel %vm949, %v3127, %v3139
    %v3151 = vsel %vm949, %v3129, %v3141
    %v3152 = vsel %vm949, %v3131, %v3143
    %v3153 = vsel %vm949, %v3133, %v3145
    %v3154 = vsel %vm949, %v3135, %v3147
    %v3155 = vsel %vm949, %v3137, %v3149
    %v3156 = vsel %vm949, %v3139, %v3127
    %v3157 = vsel %vm949, %v3141, %v3129
    %v3158 = vsel %vm949, %v3143, %v3131
    %v3159 = vsel %vm949, %v3145, %v3133
    %v3160 = vsel %vm949, %v3147, %v3135
    %v3161 = vsel %vm949, %v3149, %v3137
    %3162 = vset.pattern.permute.xlu0 7
    %3163 = vperm.xlu0 %3162, %v2381
    %v3164 = vpop.permute.xlu0 %3163
    %3166 = vset.pattern.permute.xlu0 7
    %3167 = vperm.xlu0 %3166, %v2382
    %v3168 = vpop.permute.xlu0 %3167
    %3170 = vset.pattern.permute.xlu0 7
    %3171 = vperm.xlu0 %3170, %v2383
    %v3172 = vpop.permute.xlu0 %3171
    %3174 = vset.pattern.permute.xlu0 7
    %3175 = vperm.xlu0 %3174, %v2384
    %v3176 = vpop.permute.xlu0 %3175
    %3178 = vset.pattern.permute.xlu0 7
    %3179 = vperm.xlu0 %3178, %v2385
    %v3180 = vpop.permute.xlu0 %3179
    %3182 = vset.pattern.permute.xlu0 7
    %3183 = vperm.xlu0 %3182, %v2386
    %v3184 = vpop.permute.xlu0 %3183
    %v3186 = vmul.f32 %v3150, %v3164
    %v3187 = vmul.f32 %v3156, %v3164
    %v3188 = vmul.f32 %v3151, %v3168
    %v3189 = vmul.f32 %v3157, %v3168
    %v3190 = vmul.f32 %v3152, %v3172
    %v3191 = vmul.f32 %v3158, %v3172
    %v3192 = vmul.f32 %v3153, %v3176
    %v3193 = vmul.f32 %v3159, %v3176
    %v3194 = vmul.f32 %v3154, %v3180
    %v3195 = vmul.f32 %v3160, %v3180
    %v3196 = vmul.f32 %v3155, %v3184
    %v3197 = vmul.f32 %v3161, %v3184
    %v3198 = vmul.f32 %v3186, %v1004
    %v3199 = vmul.f32 %v3187, %v1008
    %v3200 = vmul.f32 %v3188, %v1004
    %v3201 = vmul.f32 %v3189, %v1008
    %v3202 = vmul.f32 %v3190, %v1004
    %v3203 = vmul.f32 %v3191, %v1008
    %v3204 = vmul.f32 %v3192, %v1004
    %v3205 = vmul.f32 %v3193, %v1008
    %v3206 = vmul.f32 %v3194, %v1004
    %v3207 = vmul.f32 %v3195, %v1008
    %v3208 = vmul.f32 %v3196, %v1004
    %v3209 = vmul.f32 %v3197, %v1008
    %v3210 = vadd.f32 %v3114, %v3198
    %v3211 = vadd.f32 %v3115, %v3199
    %v3212 = vadd.f32 %v3116, %v3200
    %v3213 = vadd.f32 %v3117, %v3201
    %v3214 = vadd.f32 %v3118, %v3202
    %v3215 = vadd.f32 %v3119, %v3203
    %v3216 = vadd.f32 %v3120, %v3204
    %v3217 = vadd.f32 %v3121, %v3205
    %v3218 = vadd.f32 %v3122, %v3206
    %v3219 = vadd.f32 %v3123, %v3207
    %v3220 = vadd.f32 %v3124, %v3208
    %v3221 = vadd.f32 %v3125, %v3209
    %3222 = vrot.lane.b32.xlu0 %v2496, 111
    %v3223 = vpop.permute.xlu0 %3222
    %3224 = vrot.lane.b32.xlu0 %v2498, 111
    %v3225 = vpop.permute.xlu0 %3224
    %3226 = vrot.lane.b32.xlu0 %v2500, 111
    %v3227 = vpop.permute.xlu0 %3226
    %3228 = vrot.lane.b32.xlu0 %v2502, 111
    %v3229 = vpop.permute.xlu0 %3228
    %3230 = vrot.lane.b32.xlu0 %v2504, 111
    %v3231 = vpop.permute.xlu0 %3230
    %3232 = vrot.lane.b32.xlu0 %v2506, 111
    %v3233 = vpop.permute.xlu0 %3232
    %3234 = vrot.lane.b32.xlu0 %v2497, 111
    %v3235 = vpop.permute.xlu0 %3234
    %3236 = vrot.lane.b32.xlu0 %v2499, 111
    %v3237 = vpop.permute.xlu0 %3236
    %3238 = vrot.lane.b32.xlu0 %v2501, 111
    %v3239 = vpop.permute.xlu0 %3238
    %3240 = vrot.lane.b32.xlu0 %v2503, 111
    %v3241 = vpop.permute.xlu0 %3240
    %3242 = vrot.lane.b32.xlu0 %v2505, 111
    %v3243 = vpop.permute.xlu0 %3242
    %3244 = vrot.lane.b32.xlu0 %v2507, 111
    %v3245 = vpop.permute.xlu0 %3244
    %v3246 = vsel %vm1059, %v3223, %v3235
    %v3247 = vsel %vm1059, %v3225, %v3237
    %v3248 = vsel %vm1059, %v3227, %v3239
    %v3249 = vsel %vm1059, %v3229, %v3241
    %v3250 = vsel %vm1059, %v3231, %v3243
    %v3251 = vsel %vm1059, %v3233, %v3245
    %v3252 = vsel %vm1059, %v3235, %v3223
    %v3253 = vsel %vm1059, %v3237, %v3225
    %v3254 = vsel %vm1059, %v3239, %v3227
    %v3255 = vsel %vm1059, %v3241, %v3229
    %v3256 = vsel %vm1059, %v3243, %v3231
    %v3257 = vsel %vm1059, %v3245, %v3233
    %3258 = vset.pattern.permute.xlu0 8
    %3259 = vperm.xlu0 %3258, %v2381
    %v3260 = vpop.permute.xlu0 %3259
    %3262 = vset.pattern.permute.xlu0 8
    %3263 = vperm.xlu0 %3262, %v2382
    %v3264 = vpop.permute.xlu0 %3263
    %3266 = vset.pattern.permute.xlu0 8
    %3267 = vperm.xlu0 %3266, %v2383
    %v3268 = vpop.permute.xlu0 %3267
    %3270 = vset.pattern.permute.xlu0 8
    %3271 = vperm.xlu0 %3270, %v2384
    %v3272 = vpop.permute.xlu0 %3271
    %3274 = vset.pattern.permute.xlu0 8
    %3275 = vperm.xlu0 %3274, %v2385
    %v3276 = vpop.permute.xlu0 %3275
    %3278 = vset.pattern.permute.xlu0 8
    %3279 = vperm.xlu0 %3278, %v2386
    %v3280 = vpop.permute.xlu0 %3279
    %v3282 = vmul.f32 %v3246, %v3260
    %v3283 = vmul.f32 %v3252, %v3260
    %v3284 = vmul.f32 %v3247, %v3264
    %v3285 = vmul.f32 %v3253, %v3264
    %v3286 = vmul.f32 %v3248, %v3268
    %v3287 = vmul.f32 %v3254, %v3268
    %v3288 = vmul.f32 %v3249, %v3272
    %v3289 = vmul.f32 %v3255, %v3272
    %v3290 = vmul.f32 %v3250, %v3276
    %v3291 = vmul.f32 %v3256, %v3276
    %v3292 = vmul.f32 %v3251, %v3280
    %v3293 = vmul.f32 %v3257, %v3280
    %v3294 = vmul.f32 %v3282, %v1114
    %v3295 = vmul.f32 %v3283, %v1118
    %v3296 = vmul.f32 %v3284, %v1114
    %v3297 = vmul.f32 %v3285, %v1118
    %v3298 = vmul.f32 %v3286, %v1114
    %v3299 = vmul.f32 %v3287, %v1118
    %v3300 = vmul.f32 %v3288, %v1114
    %v3301 = vmul.f32 %v3289, %v1118
    %v3302 = vmul.f32 %v3290, %v1114
    %v3303 = vmul.f32 %v3291, %v1118
    %v3304 = vmul.f32 %v3292, %v1114
    %v3305 = vmul.f32 %v3293, %v1118
    %v3306 = vadd.f32 %v3210, %v3294
    %v3307 = vadd.f32 %v3211, %v3295
    %v3308 = vadd.f32 %v3212, %v3296
    %v3309 = vadd.f32 %v3213, %v3297
    %v3310 = vadd.f32 %v3214, %v3298
    %v3311 = vadd.f32 %v3215, %v3299
    %v3312 = vadd.f32 %v3216, %v3300
    %v3313 = vadd.f32 %v3217, %v3301
    %v3314 = vadd.f32 %v3218, %v3302
    %v3315 = vadd.f32 %v3219, %v3303
    %v3316 = vadd.f32 %v3220, %v3304
    %v3317 = vadd.f32 %v3221, %v3305
    %v3318 = vmax.f32 %v3306, 0.0
    %v3319 = vmax.f32 %v3307, 0.0
    %v3320 = vmax.f32 %v3308, 0.0
    %v3321 = vmax.f32 %v3309, 0.0
    %v3322 = vmax.f32 %v3310, 0.0
    %v3323 = vmax.f32 %v3311, 0.0
    %v3324 = vmax.f32 %v3312, 0.0
    %v3325 = vmax.f32 %v3313, 0.0
    %v3326 = vmax.f32 %v3314, 0.0
    %v3327 = vmax.f32 %v3315, 0.0
    %v3328 = vmax.f32 %v3316, 0.0
    %v3329 = vmax.f32 %v3317, 0.0
    %v3330 = vmin.f32 %v3318, 6.0
    %v3331 = vmin.f32 %v3319, 6.0
    %v3332 = vmin.f32 %v3320, 6.0
    %v3333 = vmin.f32 %v3321, 6.0
    %v3334 = vmin.f32 %v3322, 6.0
    %v3335 = vmin.f32 %v3323, 6.0
    %v3336 = vmin.f32 %v3324, 6.0
    %v3337 = vmin.f32 %v3325, 6.0
    %v3338 = vmin.f32 %v3326, 6.0
    %v3339 = vmin.f32 %v3327, 6.0
    %v3340 = vmin.f32 %v3328, 6.0
    %v3341 = vmin.f32 %v3329, 6.0
    %v3342 = vpack.c.bf16 %v3332, %v3330
    %v3343 = vpack.c.bf16 %v3333, %v3331
    %v3344 = vpack.c.bf16 %v3336, %v3334
    %v3345 = vpack.c.bf16 %v3337, %v3335
    %v3346 = vpack.c.bf16 %v3340, %v3338
    %v3347 = vpack.c.bf16 %v3341, %v3339
    %v3349 = vsel %vm1175, %v2388, 0
    %3351 = vmatprep.subr.bf16.mxu0 0
    %3352 = vmatpush1.bf16.msra.mxu0 0
    %3353 = vmatprep.subr.bf16.mxu0 0
    %3354 = vmatpush1.bf16.msra.mxu0 0
    %3355 = vmatprep.subr.bf16.mxu0 0
    %3356 = vmatpush1.bf16.msra.mxu0 0
    %3357 = vmatprep.subr.bf16.mxu0 0
    %3358 = vmatpush1.bf16.msra.mxu0 0
    %3359 = vmatprep.subr.bf16.mxu0 0
    %3360 = vmatpush1.bf16.msra.mxu0 0
    %3361 = vmatprep.subr.bf16.mxu0 %v3347
    %3362 = vmatpush1.bf16.msra.mxu0 %v3346
    %3363 = vmatprep.subr.bf16.mxu0 %v3345
    %3364 = vmatpush1.bf16.msra.mxu0 %v3344
    %3365 = vmatprep.subr.bf16.mxu0 %v3343
    %3366 = vmatpush1.bf16.msra.mxu0 %v3342
    %3367 = vmatprep.subr.bf16.mxu0 0
    %3368 = vmatpush2.bf16.msra.mxu0 0
    %3369 = vmatprep.subr.bf16.mxu0 0
    %3370 = vmatpush2.bf16.msra.mxu0 0
    %3371 = vmatprep.subr.bf16.mxu0 0
    %3372 = vmatpush2.bf16.msra.mxu0 0
    %3373 = vmatprep.subr.bf16.mxu0 0
    %3374 = vmatpush2.bf16.msra.mxu0 0
    %3375 = vmatprep.subr.bf16.mxu0 0
    %3376 = vmatpush2.bf16.msra.mxu0 0
    %3377 = vmatprep.subr.bf16.mxu0 0
    %3378 = vmatpush2.bf16.msra.mxu0 0
    %3379 = vmatprep.subr.bf16.mxu0 0
    %3380 = vmatpush2.bf16.msra.mxu0 0
    %3381 = vmatprep.subr.bf16.mxu0 0
    %3382 = vmatpush2.bf16.msra.mxu0 0
    %3383 = vmatprep.mubr.bf16.mxu0 0
    %3384 = vmatmul.mubr.bf16.gmra.mxu0 %v3349
    %v3385 = vpop.f32.mrf.mxu0
    %v3386 = vadd.f32 0.0, %v3385
    %v3387 = vpop.f32.mrf.mxu0
    %v3388 = vadd.f32 0.0, %v3387
    %v3389 = vpop.f32.mrf.mxu0
    %v3390 = vpop.f32.mrf.mxu0
    %3391 = vdwg.mxu0
    %v3392 = vadd.f32 %v2371, %v3386
    %v3393 = vadd.f32 %v2372, %v3388
    %s3394 = scalar_lea.vmem [#allocation6], 8
    %v3395 = vld [vmem:[%s3394] sm:$0xf]
    %s3396 = scalar_lea.vmem [#allocation7], 16
    %v3397 = vld [vmem:[%s3396] sm:$0xff]
    %v3398 = vpack.c.bf16 %v3392, %v3392
    %v3399 = vpack.c.bf16 %v3393, %v3393
    %v3402 = vrot.slane %v3398, 4
    %v3403 = vrot.slane %v3399, 4
    %v3405 = vsel %vm128, %v2313, %v3402
    %v3408 = vsel %vm128, %v2314, %v3403
    %3411 = vset.pattern.permute.xlu0 0
    %3412 = vperm.xlu0 %3411, %v3397
    %v3413 = vpop.permute.xlu0 %3412
    %vm3415 = vcmask 261120
    %v3417 = vsel %vm3415, %v3395, 0
    %3419 = vmatprep.subr.bf16.mxu0 0
    %3420 = vmatpush1.bf16.msra.mxu0 0
    %3421 = vmatprep.subr.bf16.mxu0 0
    %3422 = vmatpush1.bf16.msra.mxu0 0
    %3423 = vmatprep.subr.bf16.mxu0 0
    %3424 = vmatpush1.bf16.msra.mxu0 0
    %3425 = vmatprep.subr.bf16.mxu0 0
    %3426 = vmatpush1.bf16.msra.mxu0 0
    %3427 = vmatprep.subr.bf16.mxu0 0
    %3428 = vmatpush1.bf16.msra.mxu0 0
    %3429 = vmatprep.subr.bf16.mxu0 0
    %3430 = vmatpush1.bf16.msra.mxu0 0
    %3431 = vmatprep.subr.bf16.mxu0 %v3408
    %3432 = vmatpush1.bf16.msra.mxu0 %v3405
    %3433 = vmatprep.subr.bf16.mxu0 %v1234
    %3434 = vmatpush1.bf16.msra.mxu0 %v1231
    %3435 = vmatprep.subr.bf16.mxu0 0
    %3436 = vmatpush2.bf16.msra.mxu0 0
    %3437 = vmatprep.subr.bf16.mxu0 0
    %3438 = vmatpush2.bf16.msra.mxu0 0
    %3439 = vmatprep.subr.bf16.mxu0 0
    %3440 = vmatpush2.bf16.msra.mxu0 0
    %3441 = vmatprep.subr.bf16.mxu0 0
    %3442 = vmatpush2.bf16.msra.mxu0 0
    %3443 = vmatprep.subr.bf16.mxu0 0
    %3444 = vmatpush2.bf16.msra.mxu0 0
    %3445 = vmatprep.subr.bf16.mxu0 0
    %3446 = vmatpush2.bf16.msra.mxu0 0
    %3447 = vmatprep.subr.bf16.mxu0 0
    %3448 = vmatpush2.bf16.msra.mxu0 0
    %3449 = vmatprep.subr.bf16.mxu0 0
    %3450 = vmatpush2.bf16.msra.mxu0 0
    %3451 = vmatprep.mubr.bf16.mxu0 0
    %3452 = vmatmul.mubr.bf16.gmra.mxu0 %v3417
    %v3453 = vpop.f32.mrf.mxu0
    %v3454 = vadd.f32 %v3413, %v3453
    %v3455 = vpop.f32.mrf.mxu0
    %v3456 = vadd.f32 %v3413, %v3455
    %v3457 = vpop.f32.mrf.mxu0
    %v3458 = vpop.f32.mrf.mxu0
    %3459 = vdwg.mxu0
    %v3460 = vmax.f32 %v3454, 0.0
    %v3461 = vmax.f32 %v3456, 0.0
    %s3462 = scalar_lea.vmem %s2, 72
    %v3463 = vld [vmem:[%s3462] sm:$0xf]
    %v3464 = vld [vmem:[%s3462 + $0x4] sm:$0xf]
    %v3465 = vld [vmem:[%s3462 + $0x8] sm:$0xf]
    %v3466 = vld [vmem:[%s3462 + $0xc] sm:$0xf]
    %v3467 = vld [vmem:[%s3462 + $0x10] sm:$0xf]
    %v3468 = vld [vmem:[%s3462 + $0x14] sm:$0xf]
    %s3469 = scalar_lea.vmem %s3, 144
    %v3470 = vld [vmem:[%s3469] sm:$0xff]
    %v3471 = vld [vmem:[%s3469 + $0x8] sm:$0xff]
    %v3472 = vld [vmem:[%s3469 + $0x10] sm:$0xff]
    %v3473 = vld [vmem:[%s3469 + $0x18] sm:$0xff]
    %v3474 = vld [vmem:[%s3469 + $0x20] sm:$0xff]
    %v3475 = vld [vmem:[%s3469 + $0x28] sm:$0xff]
    %s3476 = scalar_lea.vmem [#allocation4], 12
    %v3477 = vld [vmem:[%s3476] sm:$0xf]
    %v3478 = vpack.c.bf16 %v3460, %v3460
    %v3479 = vpack.c.bf16 %v3461, %v3461
    %v3486 = vunpack.c.l.b16 %v3463
    %v3487 = vunpack.c.l.b16 %v3464
    %v3488 = vunpack.c.l.b16 %v3465
    %v3489 = vunpack.c.l.b16 %v3466
    %v3490 = vunpack.c.l.b16 %v3467
    %v3491 = vunpack.c.l.b16 %v3468
    %v3492 = vpack.c.b16 %v3487, %v3486
    %v3493 = vpack.c.b16 %v3489, %v3488
    %v3494 = vpack.c.b16 %v3491, %v3490
    %v3496 = vsel %vm118, %v3492, 0
    %v3499 = vsel %vm118, %v3493, 0
    %v3502 = vsel %vm118, %v3494, 0
    %v3505 = vsel %vm128, %v3478, 0
    %v3508 = vsel %vm128, %v3479, 0
    %3510 = vmatprep.subr.bf16.mxu0 0
    %3511 = vmatpush1.bf16.msra.mxu0 0
    %3512 = vmatprep.subr.bf16.mxu0 0
    %3513 = vmatpush1.bf16.msra.mxu0 0
    %3514 = vmatprep.subr.bf16.mxu0 0
    %3515 = vmatpush1.bf16.msra.mxu0 0
    %3516 = vmatprep.subr.bf16.mxu0 0
    %3517 = vmatpush1.bf16.msra.mxu0 0
    %3518 = vmatprep.subr.bf16.mxu0 0
    %3519 = vmatpush1.bf16.msra.mxu0 0
    %3520 = vmatprep.subr.bf16.mxu0 0
    %3521 = vmatpush1.bf16.msra.mxu0 0
    %3522 = vmatprep.subr.bf16.mxu0 0
    %3523 = vmatpush1.bf16.msra.mxu0 0
    %3524 = vmatprep.subr.bf16.mxu0 %v3508
    %3525 = vmatpush1.bf16.msra.mxu0 %v3505
    %3526 = vmatprep.subr.bf16.mxu0 0
    %3527 = vmatpush2.bf16.msra.mxu0 0
    %3528 = vmatprep.subr.bf16.mxu0 0
    %3529 = vmatpush2.bf16.msra.mxu0 0
    %3530 = vmatprep.subr.bf16.mxu0 0
    %3531 = vmatpush2.bf16.msra.mxu0 0
    %3532 = vmatprep.subr.bf16.mxu0 0
    %3533 = vmatpush2.bf16.msra.mxu0 0
    %3534 = vmatprep.subr.bf16.mxu0 0
    %3535 = vmatpush2.bf16.msra.mxu0 0
    %3536 = vmatprep.subr.bf16.mxu0 0
    %3537 = vmatpush2.bf16.msra.mxu0 0
    %3538 = vmatprep.subr.bf16.mxu0 0
    %3539 = vmatpush2.bf16.msra.mxu0 0
    %3540 = vmatprep.subr.bf16.mxu0 0
    %3541 = vmatpush2.bf16.msra.mxu0 0
    %3542 = vmatprep.mubr.bf16.mxu0 0
    %3543 = vmatmul.mubr.bf16.gmra.mxu0 %v3496
    %v3544 = vpop.f32.mrf.mxu0
    %v3545 = vadd.f32 0.0, %v3544
    %v3546 = vpop.f32.mrf.mxu0
    %v3547 = vadd.f32 0.0, %v3546
    %v3548 = vpop.f32.mrf.mxu0
    %v3549 = vadd.f32 0.0, %v3548
    %v3550 = vpop.f32.mrf.mxu0
    %v3551 = vadd.f32 0.0, %v3550
    %3552 = vmatprep.mubr.bf16.mxu0 0
    %3553 = vmatmul.mubr.bf16.gmra.mxu0 %v3499
    %v3554 = vpop.f32.mrf.mxu0
    %v3555 = vadd.f32 0.0, %v3554
    %v3556 = vpop.f32.mrf.mxu0
    %v3557 = vadd.f32 0.0, %v3556
    %v3558 = vpop.f32.mrf.mxu0
    %v3559 = vadd.f32 0.0, %v3558
    %v3560 = vpop.f32.mrf.mxu0
    %v3561 = vadd.f32 0.0, %v3560
    %3562 = vmatprep.mubr.bf16.mxu0 0
    %3563 = vmatmul.mubr.bf16.gmra.mxu0 %v3502
    %v3564 = vpop.f32.mrf.mxu0
    %v3565 = vadd.f32 0.0, %v3564
    %v3566 = vpop.f32.mrf.mxu0
    %v3567 = vadd.f32 0.0, %v3566
    %v3568 = vpop.f32.mrf.mxu0
    %v3569 = vadd.f32 0.0, %v3568
    %v3570 = vpop.f32.mrf.mxu0
    %v3571 = vadd.f32 0.0, %v3570
    %3572 = vdwg.mxu0
    %v3573 = vmax.f32 %v3545, 0.0
    %v3574 = vmax.f32 %v3547, 0.0
    %v3575 = vmax.f32 %v3549, 0.0
    %v3576 = vmax.f32 %v3551, 0.0
    %v3577 = vmax.f32 %v3555, 0.0
    %v3578 = vmax.f32 %v3557, 0.0
    %v3579 = vmax.f32 %v3559, 0.0
    %v3580 = vmax.f32 %v3561, 0.0
    %v3581 = vmax.f32 %v3565, 0.0
    %v3582 = vmax.f32 %v3567, 0.0
    %v3583 = vmax.f32 %v3569, 0.0
    %v3584 = vmax.f32 %v3571, 0.0
    %v3585 = vmin.f32 %v3573, 6.0
    %v3586 = vmin.f32 %v3574, 6.0
    %v3587 = vmin.f32 %v3575, 6.0
    %v3588 = vmin.f32 %v3576, 6.0
    %v3589 = vmin.f32 %v3577, 6.0
    %v3590 = vmin.f32 %v3578, 6.0
    %v3591 = vmin.f32 %v3579, 6.0
    %v3592 = vmin.f32 %v3580, 6.0
    %v3593 = vmin.f32 %v3581, 6.0
    %v3594 = vmin.f32 %v3582, 6.0
    %v3595 = vmin.f32 %v3583, 6.0
    %v3596 = vmin.f32 %v3584, 6.0
    %3598 = vset.pattern.permute.xlu0 4
    %3599 = vperm.xlu0 %3598, %v3470
    %v3600 = vpop.permute.xlu0 %3599
    %3603 = vset.pattern.permute.xlu0 4
    %3604 = vperm.xlu0 %3603, %v3471
    %v3605 = vpop.permute.xlu0 %3604
    %3608 = vset.pattern.permute.xlu0 4
    %3609 = vperm.xlu0 %3608, %v3472
    %v3610 = vpop.permute.xlu0 %3609
    %3613 = vset.pattern.permute.xlu0 4
    %3614 = vperm.xlu0 %3613, %v3473
    %v3615 = vpop.permute.xlu0 %3614
    %3618 = vset.pattern.permute.xlu0 4
    %3619 = vperm.xlu0 %3618, %v3474
    %v3620 = vpop.permute.xlu0 %3619
    %3623 = vset.pattern.permute.xlu0 4
    %3624 = vperm.xlu0 %3623, %v3475
    %v3625 = vpop.permute.xlu0 %3624
    %v3627 = vmul.f32 %v3585, %v3600
    %v3628 = vmul.f32 %v3586, %v3600
    %v3629 = vmul.f32 %v3587, %v3605
    %v3630 = vmul.f32 %v3588, %v3605
    %v3631 = vmul.f32 %v3589, %v3610
    %v3632 = vmul.f32 %v3590, %v3610
    %v3633 = vmul.f32 %v3591, %v3615
    %v3634 = vmul.f32 %v3592, %v3615
    %v3635 = vmul.f32 %v3593, %v3620
    %v3636 = vmul.f32 %v3594, %v3620
    %v3637 = vmul.f32 %v3595, %v3625
    %v3638 = vmul.f32 %v3596, %v3625
    %3639 = vrot.lane.b32.xlu0 %v3585, 17
    %v3640 = vpop.permute.xlu0 %3639
    %3641 = vrot.lane.b32.xlu0 %v3587, 17
    %v3642 = vpop.permute.xlu0 %3641
    %3643 = vrot.lane.b32.xlu0 %v3589, 17
    %v3644 = vpop.permute.xlu0 %3643
    %3645 = vrot.lane.b32.xlu0 %v3591, 17
    %v3646 = vpop.permute.xlu0 %3645
    %3647 = vrot.lane.b32.xlu0 %v3593, 17
    %v3648 = vpop.permute.xlu0 %3647
    %3649 = vrot.lane.b32.xlu0 %v3595, 17
    %v3650 = vpop.permute.xlu0 %3649
    %3651 = vrot.lane.b32.xlu0 %v3586, 17
    %v3652 = vpop.permute.xlu0 %3651
    %3653 = vrot.lane.b32.xlu0 %v3588, 17
    %v3654 = vpop.permute.xlu0 %3653
    %3655 = vrot.lane.b32.xlu0 %v3590, 17
    %v3656 = vpop.permute.xlu0 %3655
    %3657 = vrot.lane.b32.xlu0 %v3592, 17
    %v3658 = vpop.permute.xlu0 %3657
    %3659 = vrot.lane.b32.xlu0 %v3594, 17
    %v3660 = vpop.permute.xlu0 %3659
    %3661 = vrot.lane.b32.xlu0 %v3596, 17
    %v3662 = vpop.permute.xlu0 %3661
    %v3663 = vsel %vm290, %v3640, %v3652
    %v3664 = vsel %vm290, %v3642, %v3654
    %v3665 = vsel %vm290, %v3644, %v3656
    %v3666 = vsel %vm290, %v3646, %v3658
    %v3667 = vsel %vm290, %v3648, %v3660
    %v3668 = vsel %vm290, %v3650, %v3662
    %v3669 = vsel %vm290, %v3652, %v3640
    %v3670 = vsel %vm290, %v3654, %v3642
    %v3671 = vsel %vm290, %v3656, %v3644
    %v3672 = vsel %vm290, %v3658, %v3646
    %v3673 = vsel %vm290, %v3660, %v3648
    %v3674 = vsel %vm290, %v3662, %v3650
    %3675 = vset.pattern.permute.xlu0 0
    %3676 = vperm.xlu0 %3675, %v3470
    %v3677 = vpop.permute.xlu0 %3676
    %3679 = vset.pattern.permute.xlu0 0
    %3680 = vperm.xlu0 %3679, %v3471
    %v3681 = vpop.permute.xlu0 %3680
    %3683 = vset.pattern.permute.xlu0 0
    %3684 = vperm.xlu0 %3683, %v3472
    %v3685 = vpop.permute.xlu0 %3684
    %3687 = vset.pattern.permute.xlu0 0
    %3688 = vperm.xlu0 %3687, %v3473
    %v3689 = vpop.permute.xlu0 %3688
    %3691 = vset.pattern.permute.xlu0 0
    %3692 = vperm.xlu0 %3691, %v3474
    %v3693 = vpop.permute.xlu0 %3692
    %3695 = vset.pattern.permute.xlu0 0
    %3696 = vperm.xlu0 %3695, %v3475
    %v3697 = vpop.permute.xlu0 %3696
    %v3699 = vmul.f32 %v3669, %v3677
    %v3700 = vmul.f32 %v3663, %v3677
    %v3701 = vmul.f32 %v3670, %v3681
    %v3702 = vmul.f32 %v3664, %v3681
    %v3703 = vmul.f32 %v3671, %v3685
    %v3704 = vmul.f32 %v3665, %v3685
    %v3705 = vmul.f32 %v3672, %v3689
    %v3706 = vmul.f32 %v3666, %v3689
    %v3707 = vmul.f32 %v3673, %v3693
    %v3708 = vmul.f32 %v3667, %v3693
    %v3709 = vmul.f32 %v3674, %v3697
    %v3710 = vmul.f32 %v3668, %v3697
    %v3711 = vmul.f32 %v3699, %v344
    %v3712 = vmul.f32 %v3700, %v348
    %v3713 = vmul.f32 %v3701, %v344
    %v3714 = vmul.f32 %v3702, %v348
    %v3715 = vmul.f32 %v3703, %v344
    %v3716 = vmul.f32 %v3704, %v348
    %v3717 = vmul.f32 %v3705, %v344
    %v3718 = vmul.f32 %v3706, %v348
    %v3719 = vmul.f32 %v3707, %v344
    %v3720 = vmul.f32 %v3708, %v348
    %v3721 = vmul.f32 %v3709, %v344
    %v3722 = vmul.f32 %v3710, %v348
    %v3723 = vadd.f32 %v3627, %v3711
    %v3724 = vadd.f32 %v3628, %v3712
    %v3725 = vadd.f32 %v3629, %v3713
    %v3726 = vadd.f32 %v3630, %v3714
    %v3727 = vadd.f32 %v3631, %v3715
    %v3728 = vadd.f32 %v3632, %v3716
    %v3729 = vadd.f32 %v3633, %v3717
    %v3730 = vadd.f32 %v3634, %v3718
    %v3731 = vadd.f32 %v3635, %v3719
    %v3732 = vadd.f32 %v3636, %v3720
    %v3733 = vadd.f32 %v3637, %v3721
    %v3734 = vadd.f32 %v3638, %v3722
    %3735 = vrot.lane.b32.xlu0 %v3585, 16
    %v3736 = vpop.permute.xlu0 %3735
    %3737 = vrot.lane.b32.xlu0 %v3587, 16
    %v3738 = vpop.permute.xlu0 %3737
    %3739 = vrot.lane.b32.xlu0 %v3589, 16
    %v3740 = vpop.permute.xlu0 %3739
    %3741 = vrot.lane.b32.xlu0 %v3591, 16
    %v3742 = vpop.permute.xlu0 %3741
    %3743 = vrot.lane.b32.xlu0 %v3593, 16
    %v3744 = vpop.permute.xlu0 %3743
    %3745 = vrot.lane.b32.xlu0 %v3595, 16
    %v3746 = vpop.permute.xlu0 %3745
    %3747 = vrot.lane.b32.xlu0 %v3586, 16
    %v3748 = vpop.permute.xlu0 %3747
    %3749 = vrot.lane.b32.xlu0 %v3588, 16
    %v3750 = vpop.permute.xlu0 %3749
    %3751 = vrot.lane.b32.xlu0 %v3590, 16
    %v3752 = vpop.permute.xlu0 %3751
    %3753 = vrot.lane.b32.xlu0 %v3592, 16
    %v3754 = vpop.permute.xlu0 %3753
    %3755 = vrot.lane.b32.xlu0 %v3594, 16
    %v3756 = vpop.permute.xlu0 %3755
    %3757 = vrot.lane.b32.xlu0 %v3596, 16
    %v3758 = vpop.permute.xlu0 %3757
    %v3759 = vsel %vm399, %v3736, %v3748
    %v3760 = vsel %vm399, %v3738, %v3750
    %v3761 = vsel %vm399, %v3740, %v3752
    %v3762 = vsel %vm399, %v3742, %v3754
    %v3763 = vsel %vm399, %v3744, %v3756
    %v3764 = vsel %vm399, %v3746, %v3758
    %v3765 = vsel %vm399, %v3748, %v3736
    %v3766 = vsel %vm399, %v3750, %v3738
    %v3767 = vsel %vm399, %v3752, %v3740
    %v3768 = vsel %vm399, %v3754, %v3742
    %v3769 = vsel %vm399, %v3756, %v3744
    %v3770 = vsel %vm399, %v3758, %v3746
    %3771 = vset.pattern.permute.xlu0 1
    %3772 = vperm.xlu0 %3771, %v3470
    %v3773 = vpop.permute.xlu0 %3772
    %3775 = vset.pattern.permute.xlu0 1
    %3776 = vperm.xlu0 %3775, %v3471
    %v3777 = vpop.permute.xlu0 %3776
    %3779 = vset.pattern.permute.xlu0 1
    %3780 = vperm.xlu0 %3779, %v3472
    %v3781 = vpop.permute.xlu0 %3780
    %3783 = vset.pattern.permute.xlu0 1
    %3784 = vperm.xlu0 %3783, %v3473
    %v3785 = vpop.permute.xlu0 %3784
    %3787 = vset.pattern.permute.xlu0 1
    %3788 = vperm.xlu0 %3787, %v3474
    %v3789 = vpop.permute.xlu0 %3788
    %3791 = vset.pattern.permute.xlu0 1
    %3792 = vperm.xlu0 %3791, %v3475
    %v3793 = vpop.permute.xlu0 %3792
    %v3795 = vmul.f32 %v3765, %v3773
    %v3796 = vmul.f32 %v3759, %v3773
    %v3797 = vmul.f32 %v3766, %v3777
    %v3798 = vmul.f32 %v3760, %v3777
    %v3799 = vmul.f32 %v3767, %v3781
    %v3800 = vmul.f32 %v3761, %v3781
    %v3801 = vmul.f32 %v3768, %v3785
    %v3802 = vmul.f32 %v3762, %v3785
    %v3803 = vmul.f32 %v3769, %v3789
    %v3804 = vmul.f32 %v3763, %v3789
    %v3805 = vmul.f32 %v3770, %v3793
    %v3806 = vmul.f32 %v3764, %v3793
    %v3807 = vmul.f32 %v3795, %v454
    %v3808 = vmul.f32 %v3796, %v458
    %v3809 = vmul.f32 %v3797, %v454
    %v3810 = vmul.f32 %v3798, %v458
    %v3811 = vmul.f32 %v3799, %v454
    %v3812 = vmul.f32 %v3800, %v458
    %v3813 = vmul.f32 %v3801, %v454
    %v3814 = vmul.f32 %v3802, %v458
    %v3815 = vmul.f32 %v3803, %v454
    %v3816 = vmul.f32 %v3804, %v458
    %v3817 = vmul.f32 %v3805, %v454
    %v3818 = vmul.f32 %v3806, %v458
    %v3819 = vadd.f32 %v3723, %v3807
    %v3820 = vadd.f32 %v3724, %v3808
    %v3821 = vadd.f32 %v3725, %v3809
    %v3822 = vadd.f32 %v3726, %v3810
    %v3823 = vadd.f32 %v3727, %v3811
    %v3824 = vadd.f32 %v3728, %v3812
    %v3825 = vadd.f32 %v3729, %v3813
    %v3826 = vadd.f32 %v3730, %v3814
    %v3827 = vadd.f32 %v3731, %v3815
    %v3828 = vadd.f32 %v3732, %v3816
    %v3829 = vadd.f32 %v3733, %v3817
    %v3830 = vadd.f32 %v3734, %v3818
    %3831 = vrot.lane.b32.xlu0 %v3585, 15
    %v3832 = vpop.permute.xlu0 %3831
    %3833 = vrot.lane.b32.xlu0 %v3587, 15
    %v3834 = vpop.permute.xlu0 %3833
    %3835 = vrot.lane.b32.xlu0 %v3589, 15
    %v3836 = vpop.permute.xlu0 %3835
    %3837 = vrot.lane.b32.xlu0 %v3591, 15
    %v3838 = vpop.permute.xlu0 %3837
    %3839 = vrot.lane.b32.xlu0 %v3593, 15
    %v3840 = vpop.permute.xlu0 %3839
    %3841 = vrot.lane.b32.xlu0 %v3595, 15
    %v3842 = vpop.permute.xlu0 %3841
    %3843 = vrot.lane.b32.xlu0 %v3586, 15
    %v3844 = vpop.permute.xlu0 %3843
    %3845 = vrot.lane.b32.xlu0 %v3588, 15
    %v3846 = vpop.permute.xlu0 %3845
    %3847 = vrot.lane.b32.xlu0 %v3590, 15
    %v3848 = vpop.permute.xlu0 %3847
    %3849 = vrot.lane.b32.xlu0 %v3592, 15
    %v3850 = vpop.permute.xlu0 %3849
    %3851 = vrot.lane.b32.xlu0 %v3594, 15
    %v3852 = vpop.permute.xlu0 %3851
    %3853 = vrot.lane.b32.xlu0 %v3596, 15
    %v3854 = vpop.permute.xlu0 %3853
    %v3855 = vsel %vm509, %v3832, %v3844
    %v3856 = vsel %vm509, %v3834, %v3846
    %v3857 = vsel %vm509, %v3836, %v3848
    %v3858 = vsel %vm509, %v3838, %v3850
    %v3859 = vsel %vm509, %v3840, %v3852
    %v3860 = vsel %vm509, %v3842, %v3854
    %v3861 = vsel %vm509, %v3844, %v3832
    %v3862 = vsel %vm509, %v3846, %v3834
    %v3863 = vsel %vm509, %v3848, %v3836
    %v3864 = vsel %vm509, %v3850, %v3838
    %v3865 = vsel %vm509, %v3852, %v3840
    %v3866 = vsel %vm509, %v3854, %v3842
    %3867 = vset.pattern.permute.xlu0 2
    %3868 = vperm.xlu0 %3867, %v3470
    %v3869 = vpop.permute.xlu0 %3868
    %3871 = vset.pattern.permute.xlu0 2
    %3872 = vperm.xlu0 %3871, %v3471
    %v3873 = vpop.permute.xlu0 %3872
    %3875 = vset.pattern.permute.xlu0 2
    %3876 = vperm.xlu0 %3875, %v3472
    %v3877 = vpop.permute.xlu0 %3876
    %3879 = vset.pattern.permute.xlu0 2
    %3880 = vperm.xlu0 %3879, %v3473
    %v3881 = vpop.permute.xlu0 %3880
    %3883 = vset.pattern.permute.xlu0 2
    %3884 = vperm.xlu0 %3883, %v3474
    %v3885 = vpop.permute.xlu0 %3884
    %3887 = vset.pattern.permute.xlu0 2
    %3888 = vperm.xlu0 %3887, %v3475
    %v3889 = vpop.permute.xlu0 %3888
    %v3891 = vmul.f32 %v3861, %v3869
    %v3892 = vmul.f32 %v3855, %v3869
    %v3893 = vmul.f32 %v3862, %v3873
    %v3894 = vmul.f32 %v3856, %v3873
    %v3895 = vmul.f32 %v3863, %v3877
    %v3896 = vmul.f32 %v3857, %v3877
    %v3897 = vmul.f32 %v3864, %v3881
    %v3898 = vmul.f32 %v3858, %v3881
    %v3899 = vmul.f32 %v3865, %v3885
    %v3900 = vmul.f32 %v3859, %v3885
    %v3901 = vmul.f32 %v3866, %v3889
    %v3902 = vmul.f32 %v3860, %v3889
    %v3903 = vmul.f32 %v3891, %v564
    %v3904 = vmul.f32 %v3892, %v568
    %v3905 = vmul.f32 %v3893, %v564
    %v3906 = vmul.f32 %v3894, %v568
    %v3907 = vmul.f32 %v3895, %v564
    %v3908 = vmul.f32 %v3896, %v568
    %v3909 = vmul.f32 %v3897, %v564
    %v3910 = vmul.f32 %v3898, %v568
    %v3911 = vmul.f32 %v3899, %v564
    %v3912 = vmul.f32 %v3900, %v568
    %v3913 = vmul.f32 %v3901, %v564
    %v3914 = vmul.f32 %v3902, %v568
    %v3915 = vadd.f32 %v3819, %v3903
    %v3916 = vadd.f32 %v3820, %v3904
    %v3917 = vadd.f32 %v3821, %v3905
    %v3918 = vadd.f32 %v3822, %v3906
    %v3919 = vadd.f32 %v3823, %v3907
    %v3920 = vadd.f32 %v3824, %v3908
    %v3921 = vadd.f32 %v3825, %v3909
    %v3922 = vadd.f32 %v3826, %v3910
    %v3923 = vadd.f32 %v3827, %v3911
    %v3924 = vadd.f32 %v3828, %v3912
    %v3925 = vadd.f32 %v3829, %v3913
    %v3926 = vadd.f32 %v3830, %v3914
    %3927 = vrot.lane.b32.xlu0 %v3585, 1
    %v3928 = vpop.permute.xlu0 %3927
    %3929 = vrot.lane.b32.xlu0 %v3587, 1
    %v3930 = vpop.permute.xlu0 %3929
    %3931 = vrot.lane.b32.xlu0 %v3589, 1
    %v3932 = vpop.permute.xlu0 %3931
    %3933 = vrot.lane.b32.xlu0 %v3591, 1
    %v3934 = vpop.permute.xlu0 %3933
    %3935 = vrot.lane.b32.xlu0 %v3593, 1
    %v3936 = vpop.permute.xlu0 %3935
    %3937 = vrot.lane.b32.xlu0 %v3595, 1
    %v3938 = vpop.permute.xlu0 %3937
    %3939 = vrot.lane.b32.xlu0 %v3586, 1
    %v3940 = vpop.permute.xlu0 %3939
    %3941 = vrot.lane.b32.xlu0 %v3588, 1
    %v3942 = vpop.permute.xlu0 %3941
    %3943 = vrot.lane.b32.xlu0 %v3590, 1
    %v3944 = vpop.permute.xlu0 %3943
    %3945 = vrot.lane.b32.xlu0 %v3592, 1
    %v3946 = vpop.permute.xlu0 %3945
    %3947 = vrot.lane.b32.xlu0 %v3594, 1
    %v3948 = vpop.permute.xlu0 %3947
    %3949 = vrot.lane.b32.xlu0 %v3596, 1
    %v3950 = vpop.permute.xlu0 %3949
    %v3951 = vsel %vm619, %v3928, %v3940
    %v3952 = vsel %vm619, %v3930, %v3942
    %v3953 = vsel %vm619, %v3932, %v3944
    %v3954 = vsel %vm619, %v3934, %v3946
    %v3955 = vsel %vm619, %v3936, %v3948
    %v3956 = vsel %vm619, %v3938, %v3950
    %v3957 = vsel %vm619, %v3940, %v3928
    %v3958 = vsel %vm619, %v3942, %v3930
    %v3959 = vsel %vm619, %v3944, %v3932
    %v3960 = vsel %vm619, %v3946, %v3934
    %v3961 = vsel %vm619, %v3948, %v3936
    %v3962 = vsel %vm619, %v3950, %v3938
    %3963 = vset.pattern.permute.xlu0 3
    %3964 = vperm.xlu0 %3963, %v3470
    %v3965 = vpop.permute.xlu0 %3964
    %3967 = vset.pattern.permute.xlu0 3
    %3968 = vperm.xlu0 %3967, %v3471
    %v3969 = vpop.permute.xlu0 %3968
    %3971 = vset.pattern.permute.xlu0 3
    %3972 = vperm.xlu0 %3971, %v3472
    %v3973 = vpop.permute.xlu0 %3972
    %3975 = vset.pattern.permute.xlu0 3
    %3976 = vperm.xlu0 %3975, %v3473
    %v3977 = vpop.permute.xlu0 %3976
    %3979 = vset.pattern.permute.xlu0 3
    %3980 = vperm.xlu0 %3979, %v3474
    %v3981 = vpop.permute.xlu0 %3980
    %3983 = vset.pattern.permute.xlu0 3
    %3984 = vperm.xlu0 %3983, %v3475
    %v3985 = vpop.permute.xlu0 %3984
    %v3987 = vmul.f32 %v3957, %v3965
    %v3988 = vmul.f32 %v3951, %v3965
    %v3989 = vmul.f32 %v3958, %v3969
    %v3990 = vmul.f32 %v3952, %v3969
    %v3991 = vmul.f32 %v3959, %v3973
    %v3992 = vmul.f32 %v3953, %v3973
    %v3993 = vmul.f32 %v3960, %v3977
    %v3994 = vmul.f32 %v3954, %v3977
    %v3995 = vmul.f32 %v3961, %v3981
    %v3996 = vmul.f32 %v3955, %v3981
    %v3997 = vmul.f32 %v3962, %v3985
    %v3998 = vmul.f32 %v3956, %v3985
    %v3999 = vmul.f32 %v3987, %v674
    %v4000 = vmul.f32 %v3988, %v678
    %v4001 = vmul.f32 %v3989, %v674
    %v4002 = vmul.f32 %v3990, %v678
    %v4003 = vmul.f32 %v3991, %v674
    %v4004 = vmul.f32 %v3992, %v678
    %v4005 = vmul.f32 %v3993, %v674
    %v4006 = vmul.f32 %v3994, %v678
    %v4007 = vmul.f32 %v3995, %v674
    %v4008 = vmul.f32 %v3996, %v678
    %v4009 = vmul.f32 %v3997, %v674
    %v4010 = vmul.f32 %v3998, %v678
    %v4011 = vadd.f32 %v3915, %v3999
    %v4012 = vadd.f32 %v3916, %v4000
    %v4013 = vadd.f32 %v3917, %v4001
    %v4014 = vadd.f32 %v3918, %v4002
    %v4015 = vadd.f32 %v3919, %v4003
    %v4016 = vadd.f32 %v3920, %v4004
    %v4017 = vadd.f32 %v3921, %v4005
    %v4018 = vadd.f32 %v3922, %v4006
    %v4019 = vadd.f32 %v3923, %v4007
    %v4020 = vadd.f32 %v3924, %v4008
    %v4021 = vadd.f32 %v3925, %v4009
    %v4022 = vadd.f32 %v3926, %v4010
    %4023 = vrot.lane.b32.xlu0 %v3585, 127
    %v4024 = vpop.permute.xlu0 %4023
    %4025 = vrot.lane.b32.xlu0 %v3587, 127
    %v4026 = vpop.permute.xlu0 %4025
    %4027 = vrot.lane.b32.xlu0 %v3589, 127
    %v4028 = vpop.permute.xlu0 %4027
    %4029 = vrot.lane.b32.xlu0 %v3591, 127
    %v4030 = vpop.permute.xlu0 %4029
    %4031 = vrot.lane.b32.xlu0 %v3593, 127
    %v4032 = vpop.permute.xlu0 %4031
    %4033 = vrot.lane.b32.xlu0 %v3595, 127
    %v4034 = vpop.permute.xlu0 %4033
    %4035 = vrot.lane.b32.xlu0 %v3586, 127
    %v4036 = vpop.permute.xlu0 %4035
    %4037 = vrot.lane.b32.xlu0 %v3588, 127
    %v4038 = vpop.permute.xlu0 %4037
    %4039 = vrot.lane.b32.xlu0 %v3590, 127
    %v4040 = vpop.permute.xlu0 %4039
    %4041 = vrot.lane.b32.xlu0 %v3592, 127
    %v4042 = vpop.permute.xlu0 %4041
    %4043 = vrot.lane.b32.xlu0 %v3594, 127
    %v4044 = vpop.permute.xlu0 %4043
    %4045 = vrot.lane.b32.xlu0 %v3596, 127
    %v4046 = vpop.permute.xlu0 %4045
    %v4047 = vsel %vm729, %v4024, %v4036
    %v4048 = vsel %vm729, %v4026, %v4038
    %v4049 = vsel %vm729, %v4028, %v4040
    %v4050 = vsel %vm729, %v4030, %v4042
    %v4051 = vsel %vm729, %v4032, %v4044
    %v4052 = vsel %vm729, %v4034, %v4046
    %v4053 = vsel %vm729, %v4036, %v4024
    %v4054 = vsel %vm729, %v4038, %v4026
    %v4055 = vsel %vm729, %v4040, %v4028
    %v4056 = vsel %vm729, %v4042, %v4030
    %v4057 = vsel %vm729, %v4044, %v4032
    %v4058 = vsel %vm729, %v4046, %v4034
    %4059 = vset.pattern.permute.xlu0 5
    %4060 = vperm.xlu0 %4059, %v3470
    %v4061 = vpop.permute.xlu0 %4060
    %4063 = vset.pattern.permute.xlu0 5
    %4064 = vperm.xlu0 %4063, %v3471
    %v4065 = vpop.permute.xlu0 %4064
    %4067 = vset.pattern.permute.xlu0 5
    %4068 = vperm.xlu0 %4067, %v3472
    %v4069 = vpop.permute.xlu0 %4068
    %4071 = vset.pattern.permute.xlu0 5
    %4072 = vperm.xlu0 %4071, %v3473
    %v4073 = vpop.permute.xlu0 %4072
    %4075 = vset.pattern.permute.xlu0 5
    %4076 = vperm.xlu0 %4075, %v3474
    %v4077 = vpop.permute.xlu0 %4076
    %4079 = vset.pattern.permute.xlu0 5
    %4080 = vperm.xlu0 %4079, %v3475
    %v4081 = vpop.permute.xlu0 %4080
    %v4083 = vmul.f32 %v4047, %v4061
    %v4084 = vmul.f32 %v4053, %v4061
    %v4085 = vmul.f32 %v4048, %v4065
    %v4086 = vmul.f32 %v4054, %v4065
    %v4087 = vmul.f32 %v4049, %v4069
    %v4088 = vmul.f32 %v4055, %v4069
    %v4089 = vmul.f32 %v4050, %v4073
    %v4090 = vmul.f32 %v4056, %v4073
    %v4091 = vmul.f32 %v4051, %v4077
    %v4092 = vmul.f32 %v4057, %v4077
    %v4093 = vmul.f32 %v4052, %v4081
    %v4094 = vmul.f32 %v4058, %v4081
    %v4095 = vmul.f32 %v4083, %v784
    %v4096 = vmul.f32 %v4084, %v788
    %v4097 = vmul.f32 %v4085, %v784
    %v4098 = vmul.f32 %v4086, %v788
    %v4099 = vmul.f32 %v4087, %v784
    %v4100 = vmul.f32 %v4088, %v788
    %v4101 = vmul.f32 %v4089, %v784
    %v4102 = vmul.f32 %v4090, %v788
    %v4103 = vmul.f32 %v4091, %v784
    %v4104 = vmul.f32 %v4092, %v788
    %v4105 = vmul.f32 %v4093, %v784
    %v4106 = vmul.f32 %v4094, %v788
    %v4107 = vadd.f32 %v4011, %v4095
    %v4108 = vadd.f32 %v4012, %v4096
    %v4109 = vadd.f32 %v4013, %v4097
    %v4110 = vadd.f32 %v4014, %v4098
    %v4111 = vadd.f32 %v4015, %v4099
    %v4112 = vadd.f32 %v4016, %v4100
    %v4113 = vadd.f32 %v4017, %v4101
    %v4114 = vadd.f32 %v4018, %v4102
    %v4115 = vadd.f32 %v4019, %v4103
    %v4116 = vadd.f32 %v4020, %v4104
    %v4117 = vadd.f32 %v4021, %v4105
    %v4118 = vadd.f32 %v4022, %v4106
    %4119 = vrot.lane.b32.xlu0 %v3585, 113
    %v4120 = vpop.permute.xlu0 %4119
    %4121 = vrot.lane.b32.xlu0 %v3587, 113
    %v4122 = vpop.permute.xlu0 %4121
    %4123 = vrot.lane.b32.xlu0 %v3589, 113
    %v4124 = vpop.permute.xlu0 %4123
    %4125 = vrot.lane.b32.xlu0 %v3591, 113
    %v4126 = vpop.permute.xlu0 %4125
    %4127 = vrot.lane.b32.xlu0 %v3593, 113
    %v4128 = vpop.permute.xlu0 %4127
    %4129 = vrot.lane.b32.xlu0 %v3595, 113
    %v4130 = vpop.permute.xlu0 %4129
    %4131 = vrot.lane.b32.xlu0 %v3586, 113
    %v4132 = vpop.permute.xlu0 %4131
    %4133 = vrot.lane.b32.xlu0 %v3588, 113
    %v4134 = vpop.permute.xlu0 %4133
    %4135 = vrot.lane.b32.xlu0 %v3590, 113
    %v4136 = vpop.permute.xlu0 %4135
    %4137 = vrot.lane.b32.xlu0 %v3592, 113
    %v4138 = vpop.permute.xlu0 %4137
    %4139 = vrot.lane.b32.xlu0 %v3594, 113
    %v4140 = vpop.permute.xlu0 %4139
    %4141 = vrot.lane.b32.xlu0 %v3596, 113
    %v4142 = vpop.permute.xlu0 %4141
    %v4143 = vsel %vm839, %v4120, %v4132
    %v4144 = vsel %vm839, %v4122, %v4134
    %v4145 = vsel %vm839, %v4124, %v4136
    %v4146 = vsel %vm839, %v4126, %v4138
    %v4147 = vsel %vm839, %v4128, %v4140
    %v4148 = vsel %vm839, %v4130, %v4142
    %v4149 = vsel %vm839, %v4132, %v4120
    %v4150 = vsel %vm839, %v4134, %v4122
    %v4151 = vsel %vm839, %v4136, %v4124
    %v4152 = vsel %vm839, %v4138, %v4126
    %v4153 = vsel %vm839, %v4140, %v4128
    %v4154 = vsel %vm839, %v4142, %v4130
    %4155 = vset.pattern.permute.xlu0 6
    %4156 = vperm.xlu0 %4155, %v3470
    %v4157 = vpop.permute.xlu0 %4156
    %4159 = vset.pattern.permute.xlu0 6
    %4160 = vperm.xlu0 %4159, %v3471
    %v4161 = vpop.permute.xlu0 %4160
    %4163 = vset.pattern.permute.xlu0 6
    %4164 = vperm.xlu0 %4163, %v3472
    %v4165 = vpop.permute.xlu0 %4164
    %4167 = vset.pattern.permute.xlu0 6
    %4168 = vperm.xlu0 %4167, %v3473
    %v4169 = vpop.permute.xlu0 %4168
    %4171 = vset.pattern.permute.xlu0 6
    %4172 = vperm.xlu0 %4171, %v3474
    %v4173 = vpop.permute.xlu0 %4172
    %4175 = vset.pattern.permute.xlu0 6
    %4176 = vperm.xlu0 %4175, %v3475
    %v4177 = vpop.permute.xlu0 %4176
    %v4179 = vmul.f32 %v4143, %v4157
    %v4180 = vmul.f32 %v4149, %v4157
    %v4181 = vmul.f32 %v4144, %v4161
    %v4182 = vmul.f32 %v4150, %v4161
    %v4183 = vmul.f32 %v4145, %v4165
    %v4184 = vmul.f32 %v4151, %v4165
    %v4185 = vmul.f32 %v4146, %v4169
    %v4186 = vmul.f32 %v4152, %v4169
    %v4187 = vmul.f32 %v4147, %v4173
    %v4188 = vmul.f32 %v4153, %v4173
    %v4189 = vmul.f32 %v4148, %v4177
    %v4190 = vmul.f32 %v4154, %v4177
    %v4191 = vmul.f32 %v4179, %v894
    %v4192 = vmul.f32 %v4180, %v898
    %v4193 = vmul.f32 %v4181, %v894
    %v4194 = vmul.f32 %v4182, %v898
    %v4195 = vmul.f32 %v4183, %v894
    %v4196 = vmul.f32 %v4184, %v898
    %v4197 = vmul.f32 %v4185, %v894
    %v4198 = vmul.f32 %v4186, %v898
    %v4199 = vmul.f32 %v4187, %v894
    %v4200 = vmul.f32 %v4188, %v898
    %v4201 = vmul.f32 %v4189, %v894
    %v4202 = vmul.f32 %v4190, %v898
    %v4203 = vadd.f32 %v4107, %v4191
    %v4204 = vadd.f32 %v4108, %v4192
    %v4205 = vadd.f32 %v4109, %v4193
    %v4206 = vadd.f32 %v4110, %v4194
    %v4207 = vadd.f32 %v4111, %v4195
    %v4208 = vadd.f32 %v4112, %v4196
    %v4209 = vadd.f32 %v4113, %v4197
    %v4210 = vadd.f32 %v4114, %v4198
    %v4211 = vadd.f32 %v4115, %v4199
    %v4212 = vadd.f32 %v4116, %v4200
    %v4213 = vadd.f32 %v4117, %v4201
    %v4214 = vadd.f32 %v4118, %v4202
    %4215 = vrot.lane.b32.xlu0 %v3585, 112
    %v4216 = vpop.permute.xlu0 %4215
    %4217 = vrot.lane.b32.xlu0 %v3587, 112
    %v4218 = vpop.permute.xlu0 %4217
    %4219 = vrot.lane.b32.xlu0 %v3589, 112
    %v4220 = vpop.permute.xlu0 %4219
    %4221 = vrot.lane.b32.xlu0 %v3591, 112
    %v4222 = vpop.permute.xlu0 %4221
    %4223 = vrot.lane.b32.xlu0 %v3593, 112
    %v4224 = vpop.permute.xlu0 %4223
    %4225 = vrot.lane.b32.xlu0 %v3595, 112
    %v4226 = vpop.permute.xlu0 %4225
    %4227 = vrot.lane.b32.xlu0 %v3586, 112
    %v4228 = vpop.permute.xlu0 %4227
    %4229 = vrot.lane.b32.xlu0 %v3588, 112
    %v4230 = vpop.permute.xlu0 %4229
    %4231 = vrot.lane.b32.xlu0 %v3590, 112
    %v4232 = vpop.permute.xlu0 %4231
    %4233 = vrot.lane.b32.xlu0 %v3592, 112
    %v4234 = vpop.permute.xlu0 %4233
    %4235 = vrot.lane.b32.xlu0 %v3594, 112
    %v4236 = vpop.permute.xlu0 %4235
    %4237 = vrot.lane.b32.xlu0 %v3596, 112
    %v4238 = vpop.permute.xlu0 %4237
    %v4239 = vsel %vm949, %v4216, %v4228
    %v4240 = vsel %vm949, %v4218, %v4230
    %v4241 = vsel %vm949, %v4220, %v4232
    %v4242 = vsel %vm949, %v4222, %v4234
    %v4243 = vsel %vm949, %v4224, %v4236
    %v4244 = vsel %vm949, %v4226, %v4238
    %v4245 = vsel %vm949, %v4228, %v4216
    %v4246 = vsel %vm949, %v4230, %v4218
    %v4247 = vsel %vm949, %v4232, %v4220
    %v4248 = vsel %vm949, %v4234, %v4222
    %v4249 = vsel %vm949, %v4236, %v4224
    %v4250 = vsel %vm949, %v4238, %v4226
    %4251 = vset.pattern.permute.xlu0 7
    %4252 = vperm.xlu0 %4251, %v3470
    %v4253 = vpop.permute.xlu0 %4252
    %4255 = vset.pattern.permute.xlu0 7
    %4256 = vperm.xlu0 %4255, %v3471
    %v4257 = vpop.permute.xlu0 %4256
    %4259 = vset.pattern.permute.xlu0 7
    %4260 = vperm.xlu0 %4259, %v3472
    %v4261 = vpop.permute.xlu0 %4260
    %4263 = vset.pattern.permute.xlu0 7
    %4264 = vperm.xlu0 %4263, %v3473
    %v4265 = vpop.permute.xlu0 %4264
    %4267 = vset.pattern.permute.xlu0 7
    %4268 = vperm.xlu0 %4267, %v3474
    %v4269 = vpop.permute.xlu0 %4268
    %4271 = vset.pattern.permute.xlu0 7
    %4272 = vperm.xlu0 %4271, %v3475
    %v4273 = vpop.permute.xlu0 %4272
    %v4275 = vmul.f32 %v4239, %v4253
    %v4276 = vmul.f32 %v4245, %v4253
    %v4277 = vmul.f32 %v4240, %v4257
    %v4278 = vmul.f32 %v4246, %v4257
    %v4279 = vmul.f32 %v4241, %v4261
    %v4280 = vmul.f32 %v4247, %v4261
    %v4281 = vmul.f32 %v4242, %v4265
    %v4282 = vmul.f32 %v4248, %v4265
    %v4283 = vmul.f32 %v4243, %v4269
    %v4284 = vmul.f32 %v4249, %v4269
    %v4285 = vmul.f32 %v4244, %v4273
    %v4286 = vmul.f32 %v4250, %v4273
    %v4287 = vmul.f32 %v4275, %v1004
    %v4288 = vmul.f32 %v4276, %v1008
    %v4289 = vmul.f32 %v4277, %v1004
    %v4290 = vmul.f32 %v4278, %v1008
    %v4291 = vmul.f32 %v4279, %v1004
    %v4292 = vmul.f32 %v4280, %v1008
    %v4293 = vmul.f32 %v4281, %v1004
    %v4294 = vmul.f32 %v4282, %v1008
    %v4295 = vmul.f32 %v4283, %v1004
    %v4296 = vmul.f32 %v4284, %v1008
    %v4297 = vmul.f32 %v4285, %v1004
    %v4298 = vmul.f32 %v4286, %v1008
    %v4299 = vadd.f32 %v4203, %v4287
    %v4300 = vadd.f32 %v4204, %v4288
    %v4301 = vadd.f32 %v4205, %v4289
    %v4302 = vadd.f32 %v4206, %v4290
    %v4303 = vadd.f32 %v4207, %v4291
    %v4304 = vadd.f32 %v4208, %v4292
    %v4305 = vadd.f32 %v4209, %v4293
    %v4306 = vadd.f32 %v4210, %v4294
    %v4307 = vadd.f32 %v4211, %v4295
    %v4308 = vadd.f32 %v4212, %v4296
    %v4309 = vadd.f32 %v4213, %v4297
    %v4310 = vadd.f32 %v4214, %v4298
    %4311 = vrot.lane.b32.xlu0 %v3585, 111
    %v4312 = vpop.permute.xlu0 %4311
    %4313 = vrot.lane.b32.xlu0 %v3587, 111
    %v4314 = vpop.permute.xlu0 %4313
    %4315 = vrot.lane.b32.xlu0 %v3589, 111
    %v4316 = vpop.permute.xlu0 %4315
    %4317 = vrot.lane.b32.xlu0 %v3591, 111
    %v4318 = vpop.permute.xlu0 %4317
    %4319 = vrot.lane.b32.xlu0 %v3593, 111
    %v4320 = vpop.permute.xlu0 %4319
    %4321 = vrot.lane.b32.xlu0 %v3595, 111
    %v4322 = vpop.permute.xlu0 %4321
    %4323 = vrot.lane.b32.xlu0 %v3586, 111
    %v4324 = vpop.permute.xlu0 %4323
    %4325 = vrot.lane.b32.xlu0 %v3588, 111
    %v4326 = vpop.permute.xlu0 %4325
    %4327 = vrot.lane.b32.xlu0 %v3590, 111
    %v4328 = vpop.permute.xlu0 %4327
    %4329 = vrot.lane.b32.xlu0 %v3592, 111
    %v4330 = vpop.permute.xlu0 %4329
    %4331 = vrot.lane.b32.xlu0 %v3594, 111
    %v4332 = vpop.permute.xlu0 %4331
    %4333 = vrot.lane.b32.xlu0 %v3596, 111
    %v4334 = vpop.permute.xlu0 %4333
    %v4335 = vsel %vm1059, %v4312, %v4324
    %v4336 = vsel %vm1059, %v4314, %v4326
    %v4337 = vsel %vm1059, %v4316, %v4328
    %v4338 = vsel %vm1059, %v4318, %v4330
    %v4339 = vsel %vm1059, %v4320, %v4332
    %v4340 = vsel %vm1059, %v4322, %v4334
    %v4341 = vsel %vm1059, %v4324, %v4312
    %v4342 = vsel %vm1059, %v4326, %v4314
    %v4343 = vsel %vm1059, %v4328, %v4316
    %v4344 = vsel %vm1059, %v4330, %v4318
    %v4345 = vsel %vm1059, %v4332, %v4320
    %v4346 = vsel %vm1059, %v4334, %v4322
    %4347 = vset.pattern.permute.xlu0 8
    %4348 = vperm.xlu0 %4347, %v3470
    %v4349 = vpop.permute.xlu0 %4348
    %4351 = vset.pattern.permute.xlu0 8
    %4352 = vperm.xlu0 %4351, %v3471
    %v4353 = vpop.permute.xlu0 %4352
    %4355 = vset.pattern.permute.xlu0 8
    %4356 = vperm.xlu0 %4355, %v3472
    %v4357 = vpop.permute.xlu0 %4356
    %4359 = vset.pattern.permute.xlu0 8
    %4360 = vperm.xlu0 %4359, %v3473
    %v4361 = vpop.permute.xlu0 %4360
    %4363 = vset.pattern.permute.xlu0 8
    %4364 = vperm.xlu0 %4363, %v3474
    %v4365 = vpop.permute.xlu0 %4364
    %4367 = vset.pattern.permute.xlu0 8
    %4368 = vperm.xlu0 %4367, %v3475
    %v4369 = vpop.permute.xlu0 %4368
    %v4371 = vmul.f32 %v4335, %v4349
    %v4372 = vmul.f32 %v4341, %v4349
    %v4373 = vmul.f32 %v4336, %v4353
    %v4374 = vmul.f32 %v4342, %v4353
    %v4375 = vmul.f32 %v4337, %v4357
    %v4376 = vmul.f32 %v4343, %v4357
    %v4377 = vmul.f32 %v4338, %v4361
    %v4378 = vmul.f32 %v4344, %v4361
    %v4379 = vmul.f32 %v4339, %v4365
    %v4380 = vmul.f32 %v4345, %v4365
    %v4381 = vmul.f32 %v4340, %v4369
    %v4382 = vmul.f32 %v4346, %v4369
    %v4383 = vmul.f32 %v4371, %v1114
    %v4384 = vmul.f32 %v4372, %v1118
    %v4385 = vmul.f32 %v4373, %v1114
    %v4386 = vmul.f32 %v4374, %v1118
    %v4387 = vmul.f32 %v4375, %v1114
    %v4388 = vmul.f32 %v4376, %v1118
    %v4389 = vmul.f32 %v4377, %v1114
    %v4390 = vmul.f32 %v4378, %v1118
    %v4391 = vmul.f32 %v4379, %v1114
    %v4392 = vmul.f32 %v4380, %v1118
    %v4393 = vmul.f32 %v4381, %v1114
    %v4394 = vmul.f32 %v4382, %v1118
    %v4395 = vadd.f32 %v4299, %v4383
    %v4396 = vadd.f32 %v4300, %v4384
    %v4397 = vadd.f32 %v4301, %v4385
    %v4398 = vadd.f32 %v4302, %v4386
    %v4399 = vadd.f32 %v4303, %v4387
    %v4400 = vadd.f32 %v4304, %v4388
    %v4401 = vadd.f32 %v4305, %v4389
    %v4402 = vadd.f32 %v4306, %v4390
    %v4403 = vadd.f32 %v4307, %v4391
    %v4404 = vadd.f32 %v4308, %v4392
    %v4405 = vadd.f32 %v4309, %v4393
    %v4406 = vadd.f32 %v4310, %v4394
    %v4407 = vmax.f32 %v4395, 0.0
    %v4408 = vmax.f32 %v4396, 0.0
    %v4409 = vmax.f32 %v4397, 0.0
    %v4410 = vmax.f32 %v4398, 0.0
    %v4411 = vmax.f32 %v4399, 0.0
    %v4412 = vmax.f32 %v4400, 0.0
    %v4413 = vmax.f32 %v4401, 0.0
    %v4414 = vmax.f32 %v4402, 0.0
    %v4415 = vmax.f32 %v4403, 0.0
    %v4416 = vmax.f32 %v4404, 0.0
    %v4417 = vmax.f32 %v4405, 0.0
    %v4418 = vmax.f32 %v4406, 0.0
    %v4419 = vmin.f32 %v4407, 6.0
    %v4420 = vmin.f32 %v4408, 6.0
    %v4421 = vmin.f32 %v4409, 6.0
    %v4422 = vmin.f32 %v4410, 6.0
    %v4423 = vmin.f32 %v4411, 6.0
    %v4424 = vmin.f32 %v4412, 6.0
    %v4425 = vmin.f32 %v4413, 6.0
    %v4426 = vmin.f32 %v4414, 6.0
    %v4427 = vmin.f32 %v4415, 6.0
    %v4428 = vmin.f32 %v4416, 6.0
    %v4429 = vmin.f32 %v4417, 6.0
    %v4430 = vmin.f32 %v4418, 6.0
    %v4431 = vpack.c.bf16 %v4421, %v4419
    %v4432 = vpack.c.bf16 %v4422, %v4420
    %v4433 = vpack.c.bf16 %v4425, %v4423
    %v4434 = vpack.c.bf16 %v4426, %v4424
    %v4435 = vpack.c.bf16 %v4429, %v4427
    %v4436 = vpack.c.bf16 %v4430, %v4428
    %v4438 = vsel %vm1175, %v3477, 0
    %4440 = vmatprep.subr.bf16.mxu0 0
    %4441 = vmatpush1.bf16.msra.mxu0 0
    %4442 = vmatprep.subr.bf16.mxu0 0
    %4443 = vmatpush1.bf16.msra.mxu0 0
    %4444 = vmatprep.subr.bf16.mxu0 0
    %4445 = vmatpush1.bf16.msra.mxu0 0
    %4446 = vmatprep.subr.bf16.mxu0 0
    %4447 = vmatpush1.bf16.msra.mxu0 0
    %4448 = vmatprep.subr.bf16.mxu0 0
    %4449 = vmatpush1.bf16.msra.mxu0 0
    %4450 = vmatprep.subr.bf16.mxu0 %v4436
    %4451 = vmatpush1.bf16.msra.mxu0 %v4435
    %4452 = vmatprep.subr.bf16.mxu0 %v4434
    %4453 = vmatpush1.bf16.msra.mxu0 %v4433
    %4454 = vmatprep.subr.bf16.mxu0 %v4432
    %4455 = vmatpush1.bf16.msra.mxu0 %v4431
    %4456 = vmatprep.subr.bf16.mxu0 0
    %4457 = vmatpush2.bf16.msra.mxu0 0
    %4458 = vmatprep.subr.bf16.mxu0 0
    %4459 = vmatpush2.bf16.msra.mxu0 0
    %4460 = vmatprep.subr.bf16.mxu0 0
    %4461 = vmatpush2.bf16.msra.mxu0 0
    %4462 = vmatprep.subr.bf16.mxu0 0
    %4463 = vmatpush2.bf16.msra.mxu0 0
    %4464 = vmatprep.subr.bf16.mxu0 0
    %4465 = vmatpush2.bf16.msra.mxu0 0
    %4466 = vmatprep.subr.bf16.mxu0 0
    %4467 = vmatpush2.bf16.msra.mxu0 0
    %4468 = vmatprep.subr.bf16.mxu0 0
    %4469 = vmatpush2.bf16.msra.mxu0 0
    %4470 = vmatprep.subr.bf16.mxu0 0
    %4471 = vmatpush2.bf16.msra.mxu0 0
    %4472 = vmatprep.mubr.bf16.mxu0 0
    %4473 = vmatmul.mubr.bf16.gmra.mxu0 %v4438
    %v4474 = vpop.f32.mrf.mxu0
    %v4475 = vadd.f32 0.0, %v4474
    %v4476 = vpop.f32.mrf.mxu0
    %v4477 = vadd.f32 0.0, %v4476
    %v4478 = vpop.f32.mrf.mxu0
    %v4479 = vpop.f32.mrf.mxu0
    %4480 = vdwg.mxu0
    %v4481 = vadd.f32 %v3460, %v4475
    %v4482 = vadd.f32 %v3461, %v4477
    %s4483 = scalar_lea.vmem [#allocation6], 12
    %v4484 = vld [vmem:[%s4483] sm:$0xf]
    %s4485 = scalar_lea.vmem [#allocation7], 24
    %v4486 = vld [vmem:[%s4485] sm:$0xff]
    %v4487 = vpack.c.bf16 %v4481, %v4481
    %v4488 = vpack.c.bf16 %v4482, %v4482
    %4490 = vset.pattern.permute.xlu0 0
    %4491 = vperm.xlu0 %4490, %v4486
    %v4492 = vpop.permute.xlu0 %4491
    %vm4494 = vcmask 326656
    %v4496 = vsel %vm4494, %v4484, 0
    %v4499 = vsel %vm128, %v4487, 0
    %v4502 = vsel %vm128, %v4488, 0
    %4504 = vmatprep.subr.bf16.mxu0 0
    %4505 = vmatpush1.bf16.msra.mxu0 0
    %4506 = vmatprep.subr.bf16.mxu0 0
    %4507 = vmatpush1.bf16.msra.mxu0 0
    %4508 = vmatprep.subr.bf16.mxu0 0
    %4509 = vmatpush1.bf16.msra.mxu0 0
    %4510 = vmatprep.subr.bf16.mxu0 0
    %4511 = vmatpush1.bf16.msra.mxu0 0
    %4512 = vmatprep.subr.bf16.mxu0 0
    %4513 = vmatpush1.bf16.msra.mxu0 0
    %4514 = vmatprep.subr.bf16.mxu0 %v4502
    %4515 = vmatpush1.bf16.msra.mxu0 %v4499
    %4516 = vmatprep.subr.bf16.mxu0 %v3408
    %4517 = vmatpush1.bf16.msra.mxu0 %v3405
    %4518 = vmatprep.subr.bf16.mxu0 %v1234
    %4519 = vmatpush1.bf16.msra.mxu0 %v1231
    %4520 = vmatprep.subr.bf16.mxu0 0
    %4521 = vmatpush2.bf16.msra.mxu0 0
    %4522 = vmatprep.subr.bf16.mxu0 0
    %4523 = vmatpush2.bf16.msra.mxu0 0
    %4524 = vmatprep.subr.bf16.mxu0 0
    %4525 = vmatpush2.bf16.msra.mxu0 0
    %4526 = vmatprep.subr.bf16.mxu0 0
    %4527 = vmatpush2.bf16.msra.mxu0 0
    %4528 = vmatprep.subr.bf16.mxu0 0
    %4529 = vmatpush2.bf16.msra.mxu0 0
    %4530 = vmatprep.subr.bf16.mxu0 0
    %4531 = vmatpush2.bf16.msra.mxu0 0
    %4532 = vmatprep.subr.bf16.mxu0 0
    %4533 = vmatpush2.bf16.msra.mxu0 0
    %4534 = vmatprep.subr.bf16.mxu0 0
    %4535 = vmatpush2.bf16.msra.mxu0 0
    %4536 = vmatprep.mubr.bf16.mxu0 0
    %4537 = vmatmul.mubr.bf16.gmra.mxu0 %v4496
    %v4538 = vpop.f32.mrf.mxu0
    %v4539 = vadd.f32 %v4492, %v4538
    %v4540 = vpop.f32.mrf.mxu0
    %v4541 = vadd.f32 %v4492, %v4540
    %v4542 = vpop.f32.mrf.mxu0
    %v4543 = vpop.f32.mrf.mxu0
    %4544 = vdwg.mxu0
    %v4545 = vmax.f32 %v4539, 0.0
    %v4546 = vmax.f32 %v4541, 0.0
    %4547 = vst [vmem:[%s7] sm:$0xff] %v1286
    %4548 = vst [vmem:[%s7 + $0x8] sm:$0xff] %v1287
    %4549 = vst [vmem:[%s8] sm:$0xff] %v2371
    %4550 = vst [vmem:[%s8 + $0x8] sm:$0xff] %v2372
    %4551 = vst [vmem:[%s9] sm:$0xff] %v3460
    %4552 = vst [vmem:[%s9 + $0x8] sm:$0xff] %v3461
    %4553 = vst [vmem:[%s10] sm:$0xff] %v4545
    %4554 = vst [vmem:[%s10 + $0x8] sm:$0xff] %v4546
    %s4555 = scalar_lea.vmem %s1, 16
    %v4556 = vld [vmem:[%s4555] sm:$0xff]
    %v4557 = vld [vmem:[%s4555 + $0x8] sm:$0xff]
    %v4558 = vld [vmem:[%s2] sm:$0xf]
    %v4559 = vld [vmem:[%s2 + $0x4] sm:$0xf]
    %v4560 = vld [vmem:[%s2 + $0x8] sm:$0xf]
    %v4561 = vld [vmem:[%s2 + $0xc] sm:$0xf]
    %v4562 = vld [vmem:[%s2 + $0x10] sm:$0xf]
    %v4563 = vld [vmem:[%s2 + $0x14] sm:$0xf]
    %v4564 = vld [vmem:[%s3] sm:$0xff]
    %v4565 = vld [vmem:[%s3 + $0x8] sm:$0xff]
    %v4566 = vld [vmem:[%s3 + $0x10] sm:$0xff]
    %v4567 = vld [vmem:[%s3 + $0x18] sm:$0xff]
    %v4568 = vld [vmem:[%s3 + $0x20] sm:$0xff]
    %v4569 = vld [vmem:[%s3 + $0x28] sm:$0xff]
    %v4570 = vld [vmem:[#allocation4] sm:$0xf]
    %v4571 = vpack.c.bf16 %v4556, %v4556
    %v4572 = vpack.c.bf16 %v4557, %v4557
    %v4579 = vunpack.c.l.b16 %v4558
    %v4580 = vunpack.c.l.b16 %v4559
    %v4581 = vunpack.c.l.b16 %v4560
    %v4582 = vunpack.c.l.b16 %v4561
    %v4583 = vunpack.c.l.b16 %v4562
    %v4584 = vunpack.c.l.b16 %v4563
    %v4585 = vpack.c.b16 %v4580, %v4579
    %v4586 = vpack.c.b16 %v4582, %v4581
    %v4587 = vpack.c.b16 %v4584, %v4583
    %v4589 = vsel %vm118, %v4585, 0
    %v4592 = vsel %vm118, %v4586, 0
    %v4595 = vsel %vm118, %v4587, 0
    %v4598 = vsel %vm128, %v4571, 0
    %v4601 = vsel %vm128, %v4572, 0
    %4603 = vmatprep.subr.bf16.mxu0 0
    %4604 = vmatpush1.bf16.msra.mxu0 0
    %4605 = vmatprep.subr.bf16.mxu0 0
    %4606 = vmatpush1.bf16.msra.mxu0 0
    %4607 = vmatprep.subr.bf16.mxu0 0
    %4608 = vmatpush1.bf16.msra.mxu0 0
    %4609 = vmatprep.subr.bf16.mxu0 0
    %4610 = vmatpush1.bf16.msra.mxu0 0
    %4611 = vmatprep.subr.bf16.mxu0 0
    %4612 = vmatpush1.bf16.msra.mxu0 0
    %4613 = vmatprep.subr.bf16.mxu0 0
    %4614 = vmatpush1.bf16.msra.mxu0 0
    %4615 = vmatprep.subr.bf16.mxu0 0
    %4616 = vmatpush1.bf16.msra.mxu0 0
    %4617 = vmatprep.subr.bf16.mxu0 %v4601
    %4618 = vmatpush1.bf16.msra.mxu0 %v4598
    %4619 = vmatprep.subr.bf16.mxu0 0
    %4620 = vmatpush2.bf16.msra.mxu0 0
    %4621 = vmatprep.subr.bf16.mxu0 0
    %4622 = vmatpush2.bf16.msra.mxu0 0
    %4623 = vmatprep.subr.bf16.mxu0 0
    %4624 = vmatpush2.bf16.msra.mxu0 0
    %4625 = vmatprep.subr.bf16.mxu0 0
    %4626 = vmatpush2.bf16.msra.mxu0 0
    %4627 = vmatprep.subr.bf16.mxu0 0
    %4628 = vmatpush2.bf16.msra.mxu0 0
    %4629 = vmatprep.subr.bf16.mxu0 0
    %4630 = vmatpush2.bf16.msra.mxu0 0
    %4631 = vmatprep.subr.bf16.mxu0 0
    %4632 = vmatpush2.bf16.msra.mxu0 0
    %4633 = vmatprep.subr.bf16.mxu0 0
    %4634 = vmatpush2.bf16.msra.mxu0 0
    %4635 = vmatprep.mubr.bf16.mxu0 0
    %4636 = vmatmul.mubr.bf16.gmra.mxu0 %v4589
    %v4637 = vpop.f32.mrf.mxu0
    %v4638 = vadd.f32 0.0, %v4637
    %v4639 = vpop.f32.mrf.mxu0
    %v4640 = vadd.f32 0.0, %v4639
    %v4641 = vpop.f32.mrf.mxu0
    %v4642 = vadd.f32 0.0, %v4641
    %v4643 = vpop.f32.mrf.mxu0
    %v4644 = vadd.f32 0.0, %v4643
    %4645 = vmatprep.mubr.bf16.mxu0 0
    %4646 = vmatmul.mubr.bf16.gmra.mxu0 %v4592
    %v4647 = vpop.f32.mrf.mxu0
    %v4648 = vadd.f32 0.0, %v4647
    %v4649 = vpop.f32.mrf.mxu0
    %v4650 = vadd.f32 0.0, %v4649
    %v4651 = vpop.f32.mrf.mxu0
    %v4652 = vadd.f32 0.0, %v4651
    %v4653 = vpop.f32.mrf.mxu0
    %v4654 = vadd.f32 0.0, %v4653
    %4655 = vmatprep.mubr.bf16.mxu0 0
    %4656 = vmatmul.mubr.bf16.gmra.mxu0 %v4595
    %v4657 = vpop.f32.mrf.mxu0
    %v4658 = vadd.f32 0.0, %v4657
    %v4659 = vpop.f32.mrf.mxu0
    %v4660 = vadd.f32 0.0, %v4659
    %v4661 = vpop.f32.mrf.mxu0
    %v4662 = vadd.f32 0.0, %v4661
    %v4663 = vpop.f32.mrf.mxu0
    %v4664 = vadd.f32 0.0, %v4663
    %4665 = vdwg.mxu0
    %v4666 = vmax.f32 %v4638, 0.0
    %v4667 = vmax.f32 %v4640, 0.0
    %v4668 = vmax.f32 %v4642, 0.0
    %v4669 = vmax.f32 %v4644, 0.0
    %v4670 = vmax.f32 %v4648, 0.0
    %v4671 = vmax.f32 %v4650, 0.0
    %v4672 = vmax.f32 %v4652, 0.0
    %v4673 = vmax.f32 %v4654, 0.0
    %v4674 = vmax.f32 %v4658, 0.0
    %v4675 = vmax.f32 %v4660, 0.0
    %v4676 = vmax.f32 %v4662, 0.0
    %v4677 = vmax.f32 %v4664, 0.0
    %v4678 = vmin.f32 %v4666, 6.0
    %v4679 = vmin.f32 %v4667, 6.0
    %v4680 = vmin.f32 %v4668, 6.0
    %v4681 = vmin.f32 %v4669, 6.0
    %v4682 = vmin.f32 %v4670, 6.0
    %v4683 = vmin.f32 %v4671, 6.0
    %v4684 = vmin.f32 %v4672, 6.0
    %v4685 = vmin.f32 %v4673, 6.0
    %v4686 = vmin.f32 %v4674, 6.0
    %v4687 = vmin.f32 %v4675, 6.0
    %v4688 = vmin.f32 %v4676, 6.0
    %v4689 = vmin.f32 %v4677, 6.0
    %4691 = vset.pattern.permute.xlu0 4
    %4692 = vperm.xlu0 %4691, %v4564
    %v4693 = vpop.permute.xlu0 %4692
    %4696 = vset.pattern.permute.xlu0 4
    %4697 = vperm.xlu0 %4696, %v4565
    %v4698 = vpop.permute.xlu0 %4697
    %4701 = vset.pattern.permute.xlu0 4
    %4702 = vperm.xlu0 %4701, %v4566
    %v4703 = vpop.permute.xlu0 %4702
    %4706 = vset.pattern.permute.xlu0 4
    %4707 = vperm.xlu0 %4706, %v4567
    %v4708 = vpop.permute.xlu0 %4707
    %4711 = vset.pattern.permute.xlu0 4
    %4712 = vperm.xlu0 %4711, %v4568
    %v4713 = vpop.permute.xlu0 %4712
    %4716 = vset.pattern.permute.xlu0 4
    %4717 = vperm.xlu0 %4716, %v4569
    %v4718 = vpop.permute.xlu0 %4717
    %v4720 = vmul.f32 %v4678, %v4693
    %v4721 = vmul.f32 %v4679, %v4693
    %v4722 = vmul.f32 %v4680, %v4698
    %v4723 = vmul.f32 %v4681, %v4698
    %v4724 = vmul.f32 %v4682, %v4703
    %v4725 = vmul.f32 %v4683, %v4703
    %v4726 = vmul.f32 %v4684, %v4708
    %v4727 = vmul.f32 %v4685, %v4708
    %v4728 = vmul.f32 %v4686, %v4713
    %v4729 = vmul.f32 %v4687, %v4713
    %v4730 = vmul.f32 %v4688, %v4718
    %v4731 = vmul.f32 %v4689, %v4718
    %4732 = vrot.lane.b32.xlu0 %v4678, 17
    %v4733 = vpop.permute.xlu0 %4732
    %4734 = vrot.lane.b32.xlu0 %v4680, 17
    %v4735 = vpop.permute.xlu0 %4734
    %4736 = vrot.lane.b32.xlu0 %v4682, 17
    %v4737 = vpop.permute.xlu0 %4736
    %4738 = vrot.lane.b32.xlu0 %v4684, 17
    %v4739 = vpop.permute.xlu0 %4738
    %4740 = vrot.lane.b32.xlu0 %v4686, 17
    %v4741 = vpop.permute.xlu0 %4740
    %4742 = vrot.lane.b32.xlu0 %v4688, 17
    %v4743 = vpop.permute.xlu0 %4742
    %4744 = vrot.lane.b32.xlu0 %v4679, 17
    %v4745 = vpop.permute.xlu0 %4744
    %4746 = vrot.lane.b32.xlu0 %v4681, 17
    %v4747 = vpop.permute.xlu0 %4746
    %4748 = vrot.lane.b32.xlu0 %v4683, 17
    %v4749 = vpop.permute.xlu0 %4748
    %4750 = vrot.lane.b32.xlu0 %v4685, 17
    %v4751 = vpop.permute.xlu0 %4750
    %4752 = vrot.lane.b32.xlu0 %v4687, 17
    %v4753 = vpop.permute.xlu0 %4752
    %4754 = vrot.lane.b32.xlu0 %v4689, 17
    %v4755 = vpop.permute.xlu0 %4754
    %v4756 = vsel %vm290, %v4733, %v4745
    %v4757 = vsel %vm290, %v4735, %v4747
    %v4758 = vsel %vm290, %v4737, %v4749
    %v4759 = vsel %vm290, %v4739, %v4751
    %v4760 = vsel %vm290, %v4741, %v4753
    %v4761 = vsel %vm290, %v4743, %v4755
    %v4762 = vsel %vm290, %v4745, %v4733
    %v4763 = vsel %vm290, %v4747, %v4735
    %v4764 = vsel %vm290, %v4749, %v4737
    %v4765 = vsel %vm290, %v4751, %v4739
    %v4766 = vsel %vm290, %v4753, %v4741
    %v4767 = vsel %vm290, %v4755, %v4743
    %4768 = vset.pattern.permute.xlu0 0
    %4769 = vperm.xlu0 %4768, %v4564
    %v4770 = vpop.permute.xlu0 %4769
    %4772 = vset.pattern.permute.xlu0 0
    %4773 = vperm.xlu0 %4772, %v4565
    %v4774 = vpop.permute.xlu0 %4773
    %4776 = vset.pattern.permute.xlu0 0
    %4777 = vperm.xlu0 %4776, %v4566
    %v4778 = vpop.permute.xlu0 %4777
    %4780 = vset.pattern.permute.xlu0 0
    %4781 = vperm.xlu0 %4780, %v4567
    %v4782 = vpop.permute.xlu0 %4781
    %4784 = vset.pattern.permute.xlu0 0
    %4785 = vperm.xlu0 %4784, %v4568
    %v4786 = vpop.permute.xlu0 %4785
    %4788 = vset.pattern.permute.xlu0 0
    %4789 = vperm.xlu0 %4788, %v4569
    %v4790 = vpop.permute.xlu0 %4789
    %v4792 = vmul.f32 %v4762, %v4770
    %v4793 = vmul.f32 %v4756, %v4770
    %v4794 = vmul.f32 %v4763, %v4774
    %v4795 = vmul.f32 %v4757, %v4774
    %v4796 = vmul.f32 %v4764, %v4778
    %v4797 = vmul.f32 %v4758, %v4778
    %v4798 = vmul.f32 %v4765, %v4782
    %v4799 = vmul.f32 %v4759, %v4782
    %v4800 = vmul.f32 %v4766, %v4786
    %v4801 = vmul.f32 %v4760, %v4786
    %v4802 = vmul.f32 %v4767, %v4790
    %v4803 = vmul.f32 %v4761, %v4790
    %v4804 = vld [vmem:[#allocation2] sm:$0x3]
    %v4806 = vlaneseq
    %v4807 = vshrl.u32 %v4806, 7
    %v4808 = vsub.s32 0, %v4807
    %v4809 = vrot.slane %v4804, %v4808
    %v4810 = vlaneseq
    %v4811 = vshrl.u32 %v4810, 7
    %v4812 = vsub.s32 1, %v4811
    %v4813 = vrot.slane %v4804, %v4812
    %v4816 = vmul.f32 %v4792, %v4809
    %v4817 = vmul.f32 %v4793, %v4813
    %v4818 = vmul.f32 %v4794, %v4809
    %v4819 = vmul.f32 %v4795, %v4813
    %v4820 = vmul.f32 %v4796, %v4809
    %v4821 = vmul.f32 %v4797, %v4813
    %v4822 = vmul.f32 %v4798, %v4809
    %v4823 = vmul.f32 %v4799, %v4813
    %v4824 = vmul.f32 %v4800, %v4809
    %v4825 = vmul.f32 %v4801, %v4813
    %v4826 = vmul.f32 %v4802, %v4809
    %v4827 = vmul.f32 %v4803, %v4813
    %v4828 = vadd.f32 %v4720, %v4816
    %v4829 = vadd.f32 %v4721, %v4817
    %v4830 = vadd.f32 %v4722, %v4818
    %v4831 = vadd.f32 %v4723, %v4819
    %v4832 = vadd.f32 %v4724, %v4820
    %v4833 = vadd.f32 %v4725, %v4821
    %v4834 = vadd.f32 %v4726, %v4822
    %v4835 = vadd.f32 %v4727, %v4823
    %v4836 = vadd.f32 %v4728, %v4824
    %v4837 = vadd.f32 %v4729, %v4825
    %v4838 = vadd.f32 %v4730, %v4826
    %v4839 = vadd.f32 %v4731, %v4827
    %4840 = vrot.lane.b32.xlu0 %v4678, 16
    %v4841 = vpop.permute.xlu0 %4840
    %4842 = vrot.lane.b32.xlu0 %v4680, 16
    %v4843 = vpop.permute.xlu0 %4842
    %4844 = vrot.lane.b32.xlu0 %v4682, 16
    %v4845 = vpop.permute.xlu0 %4844
    %4846 = vrot.lane.b32.xlu0 %v4684, 16
    %v4847 = vpop.permute.xlu0 %4846
    %4848 = vrot.lane.b32.xlu0 %v4686, 16
    %v4849 = vpop.permute.xlu0 %4848
    %4850 = vrot.lane.b32.xlu0 %v4688, 16
    %v4851 = vpop.permute.xlu0 %4850
    %4852 = vrot.lane.b32.xlu0 %v4679, 16
    %v4853 = vpop.permute.xlu0 %4852
    %4854 = vrot.lane.b32.xlu0 %v4681, 16
    %v4855 = vpop.permute.xlu0 %4854
    %4856 = vrot.lane.b32.xlu0 %v4683, 16
    %v4857 = vpop.permute.xlu0 %4856
    %4858 = vrot.lane.b32.xlu0 %v4685, 16
    %v4859 = vpop.permute.xlu0 %4858
    %4860 = vrot.lane.b32.xlu0 %v4687, 16
    %v4861 = vpop.permute.xlu0 %4860
    %4862 = vrot.lane.b32.xlu0 %v4689, 16
    %v4863 = vpop.permute.xlu0 %4862
    %v4864 = vsel %vm399, %v4841, %v4853
    %v4865 = vsel %vm399, %v4843, %v4855
    %v4866 = vsel %vm399, %v4845, %v4857
    %v4867 = vsel %vm399, %v4847, %v4859
    %v4868 = vsel %vm399, %v4849, %v4861
    %v4869 = vsel %vm399, %v4851, %v4863
    %v4870 = vsel %vm399, %v4853, %v4841
    %v4871 = vsel %vm399, %v4855, %v4843
    %v4872 = vsel %vm399, %v4857, %v4845
    %v4873 = vsel %vm399, %v4859, %v4847
    %v4874 = vsel %vm399, %v4861, %v4849
    %v4875 = vsel %vm399, %v4863, %v4851
    %4876 = vset.pattern.permute.xlu0 1
    %4877 = vperm.xlu0 %4876, %v4564
    %v4878 = vpop.permute.xlu0 %4877
    %4880 = vset.pattern.permute.xlu0 1
    %4881 = vperm.xlu0 %4880, %v4565
    %v4882 = vpop.permute.xlu0 %4881
    %4884 = vset.pattern.permute.xlu0 1
    %4885 = vperm.xlu0 %4884, %v4566
    %v4886 = vpop.permute.xlu0 %4885
    %4888 = vset.pattern.permute.xlu0 1
    %4889 = vperm.xlu0 %4888, %v4567
    %v4890 = vpop.permute.xlu0 %4889
    %4892 = vset.pattern.permute.xlu0 1
    %4893 = vperm.xlu0 %4892, %v4568
    %v4894 = vpop.permute.xlu0 %4893
    %4896 = vset.pattern.permute.xlu0 1
    %4897 = vperm.xlu0 %4896, %v4569
    %v4898 = vpop.permute.xlu0 %4897
    %v4900 = vmul.f32 %v4870, %v4878
    %v4901 = vmul.f32 %v4864, %v4878
    %v4902 = vmul.f32 %v4871, %v4882
    %v4903 = vmul.f32 %v4865, %v4882
    %v4904 = vmul.f32 %v4872, %v4886
    %v4905 = vmul.f32 %v4866, %v4886
    %v4906 = vmul.f32 %v4873, %v4890
    %v4907 = vmul.f32 %v4867, %v4890
    %v4908 = vmul.f32 %v4874, %v4894
    %v4909 = vmul.f32 %v4868, %v4894
    %v4910 = vmul.f32 %v4875, %v4898
    %v4911 = vmul.f32 %v4869, %v4898
    %v4912 = vld [vmem:[%s448] sm:$0x3]
    %v4914 = vlaneseq
    %v4915 = vshrl.u32 %v4914, 7
    %v4916 = vsub.s32 0, %v4915
    %v4917 = vrot.slane %v4912, %v4916
    %v4918 = vlaneseq
    %v4919 = vshrl.u32 %v4918, 7
    %v4920 = vsub.s32 1, %v4919
    %v4921 = vrot.slane %v4912, %v4920
    %v4924 = vmul.f32 %v4900, %v4917
    %v4925 = vmul.f32 %v4901, %v4921
    %v4926 = vmul.f32 %v4902, %v4917
    %v4927 = vmul.f32 %v4903, %v4921
    %v4928 = vmul.f32 %v4904, %v4917
    %v4929 = vmul.f32 %v4905, %v4921
    %v4930 = vmul.f32 %v4906, %v4917
    %v4931 = vmul.f32 %v4907, %v4921
    %v4932 = vmul.f32 %v4908, %v4917
    %v4933 = vmul.f32 %v4909, %v4921
    %v4934 = vmul.f32 %v4910, %v4917
    %v4935 = vmul.f32 %v4911, %v4921
    %v4936 = vadd.f32 %v4828, %v4924
    %v4937 = vadd.f32 %v4829, %v4925
    %v4938 = vadd.f32 %v4830, %v4926
    %v4939 = vadd.f32 %v4831, %v4927
    %v4940 = vadd.f32 %v4832, %v4928
    %v4941 = vadd.f32 %v4833, %v4929
    %v4942 = vadd.f32 %v4834, %v4930
    %v4943 = vadd.f32 %v4835, %v4931
    %v4944 = vadd.f32 %v4836, %v4932
    %v4945 = vadd.f32 %v4837, %v4933
    %v4946 = vadd.f32 %v4838, %v4934
    %v4947 = vadd.f32 %v4839, %v4935
    %4948 = vrot.lane.b32.xlu0 %v4678, 15
    %v4949 = vpop.permute.xlu0 %4948
    %4950 = vrot.lane.b32.xlu0 %v4680, 15
    %v4951 = vpop.permute.xlu0 %4950
    %4952 = vrot.lane.b32.xlu0 %v4682, 15
    %v4953 = vpop.permute.xlu0 %4952
    %4954 = vrot.lane.b32.xlu0 %v4684, 15
    %v4955 = vpop.permute.xlu0 %4954
    %4956 = vrot.lane.b32.xlu0 %v4686, 15
    %v4957 = vpop.permute.xlu0 %4956
    %4958 = vrot.lane.b32.xlu0 %v4688, 15
    %v4959 = vpop.permute.xlu0 %4958
    %4960 = vrot.lane.b32.xlu0 %v4679, 15
    %v4961 = vpop.permute.xlu0 %4960
    %4962 = vrot.lane.b32.xlu0 %v4681, 15
    %v4963 = vpop.permute.xlu0 %4962
    %4964 = vrot.lane.b32.xlu0 %v4683, 15
    %v4965 = vpop.permute.xlu0 %4964
    %4966 = vrot.lane.b32.xlu0 %v4685, 15
    %v4967 = vpop.permute.xlu0 %4966
    %4968 = vrot.lane.b32.xlu0 %v4687, 15
    %v4969 = vpop.permute.xlu0 %4968
    %4970 = vrot.lane.b32.xlu0 %v4689, 15
    %v4971 = vpop.permute.xlu0 %4970
    %v4972 = vsel %vm509, %v4949, %v4961
    %v4973 = vsel %vm509, %v4951, %v4963
    %v4974 = vsel %vm509, %v4953, %v4965
    %v4975 = vsel %vm509, %v4955, %v4967
    %v4976 = vsel %vm509, %v4957, %v4969
    %v4977 = vsel %vm509, %v4959, %v4971
    %v4978 = vsel %vm509, %v4961, %v4949
    %v4979 = vsel %vm509, %v4963, %v4951
    %v4980 = vsel %vm509, %v4965, %v4953
    %v4981 = vsel %vm509, %v4967, %v4955
    %v4982 = vsel %vm509, %v4969, %v4957
    %v4983 = vsel %vm509, %v4971, %v4959
    %4984 = vset.pattern.permute.xlu0 2
    %4985 = vperm.xlu0 %4984, %v4564
    %v4986 = vpop.permute.xlu0 %4985
    %4988 = vset.pattern.permute.xlu0 2
    %4989 = vperm.xlu0 %4988, %v4565
    %v4990 = vpop.permute.xlu0 %4989
    %4992 = vset.pattern.permute.xlu0 2
    %4993 = vperm.xlu0 %4992, %v4566
    %v4994 = vpop.permute.xlu0 %4993
    %4996 = vset.pattern.permute.xlu0 2
    %4997 = vperm.xlu0 %4996, %v4567
    %v4998 = vpop.permute.xlu0 %4997
    %5000 = vset.pattern.permute.xlu0 2
    %5001 = vperm.xlu0 %5000, %v4568
    %v5002 = vpop.permute.xlu0 %5001
    %5004 = vset.pattern.permute.xlu0 2
    %5005 = vperm.xlu0 %5004, %v4569
    %v5006 = vpop.permute.xlu0 %5005
    %v5008 = vmul.f32 %v4978, %v4986
    %v5009 = vmul.f32 %v4972, %v4986
    %v5010 = vmul.f32 %v4979, %v4990
    %v5011 = vmul.f32 %v4973, %v4990
    %v5012 = vmul.f32 %v4980, %v4994
    %v5013 = vmul.f32 %v4974, %v4994
    %v5014 = vmul.f32 %v4981, %v4998
    %v5015 = vmul.f32 %v4975, %v4998
    %v5016 = vmul.f32 %v4982, %v5002
    %v5017 = vmul.f32 %v4976, %v5002
    %v5018 = vmul.f32 %v4983, %v5006
    %v5019 = vmul.f32 %v4977, %v5006
    %v5020 = vld [vmem:[%s558] sm:$0x3]
    %v5022 = vlaneseq
    %v5023 = vshrl.u32 %v5022, 7
    %v5024 = vsub.s32 0, %v5023
    %v5025 = vrot.slane %v5020, %v5024
    %v5026 = vlaneseq
    %v5027 = vshrl.u32 %v5026, 7
    %v5028 = vsub.s32 1, %v5027
    %v5029 = vrot.slane %v5020, %v5028
    %v5032 = vmul.f32 %v5008, %v5025
    %v5033 = vmul.f32 %v5009, %v5029
    %v5034 = vmul.f32 %v5010, %v5025
    %v5035 = vmul.f32 %v5011, %v5029
    %v5036 = vmul.f32 %v5012, %v5025
    %v5037 = vmul.f32 %v5013, %v5029
    %v5038 = vmul.f32 %v5014, %v5025
    %v5039 = vmul.f32 %v5015, %v5029
    %v5040 = vmul.f32 %v5016, %v5025
    %v5041 = vmul.f32 %v5017, %v5029
    %v5042 = vmul.f32 %v5018, %v5025
    %v5043 = vmul.f32 %v5019, %v5029
    %v5044 = vadd.f32 %v4936, %v5032
    %v5045 = vadd.f32 %v4937, %v5033
    %v5046 = vadd.f32 %v4938, %v5034
    %v5047 = vadd.f32 %v4939, %v5035
    %v5048 = vadd.f32 %v4940, %v5036
    %v5049 = vadd.f32 %v4941, %v5037
    %v5050 = vadd.f32 %v4942, %v5038
    %v5051 = vadd.f32 %v4943, %v5039
    %v5052 = vadd.f32 %v4944, %v5040
    %v5053 = vadd.f32 %v4945, %v5041
    %v5054 = vadd.f32 %v4946, %v5042
    %v5055 = vadd.f32 %v4947, %v5043
    %5056 = vrot.lane.b32.xlu0 %v4678, 1
    %v5057 = vpop.permute.xlu0 %5056
    %5058 = vrot.lane.b32.xlu0 %v4680, 1
    %v5059 = vpop.permute.xlu0 %5058
    %5060 = vrot.lane.b32.xlu0 %v4682, 1
    %v5061 = vpop.permute.xlu0 %5060
    %5062 = vrot.lane.b32.xlu0 %v4684, 1
    %v5063 = vpop.permute.xlu0 %5062
    %5064 = vrot.lane.b32.xlu0 %v4686, 1
    %v5065 = vpop.permute.xlu0 %5064
    %5066 = vrot.lane.b32.xlu0 %v4688, 1
    %v5067 = vpop.permute.xlu0 %5066
    %5068 = vrot.lane.b32.xlu0 %v4679, 1
    %v5069 = vpop.permute.xlu0 %5068
    %5070 = vrot.lane.b32.xlu0 %v4681, 1
    %v5071 = vpop.permute.xlu0 %5070
    %5072 = vrot.lane.b32.xlu0 %v4683, 1
    %v5073 = vpop.permute.xlu0 %5072
    %5074 = vrot.lane.b32.xlu0 %v4685, 1
    %v5075 = vpop.permute.xlu0 %5074
    %5076 = vrot.lane.b32.xlu0 %v4687, 1
    %v5077 = vpop.permute.xlu0 %5076
    %5078 = vrot.lane.b32.xlu0 %v4689, 1
    %v5079 = vpop.permute.xlu0 %5078
    %v5080 = vsel %vm619, %v5057, %v5069
    %v5081 = vsel %vm619, %v5059, %v5071
    %v5082 = vsel %vm619, %v5061, %v5073
    %v5083 = vsel %vm619, %v5063, %v5075
    %v5084 = vsel %vm619, %v5065, %v5077
    %v5085 = vsel %vm619, %v5067, %v5079
    %v5086 = vsel %vm619, %v5069, %v5057
    %v5087 = vsel %vm619, %v5071, %v5059
    %v5088 = vsel %vm619, %v5073, %v5061
    %v5089 = vsel %vm619, %v5075, %v5063
    %v5090 = vsel %vm619, %v5077, %v5065
    %v5091 = vsel %vm619, %v5079, %v5067
    %5092 = vset.pattern.permute.xlu0 3
    %5093 = vperm.xlu0 %5092, %v4564
    %v5094 = vpop.permute.xlu0 %5093
    %5096 = vset.pattern.permute.xlu0 3
    %5097 = vperm.xlu0 %5096, %v4565
    %v5098 = vpop.permute.xlu0 %5097
    %5100 = vset.pattern.permute.xlu0 3
    %5101 = vperm.xlu0 %5100, %v4566
    %v5102 = vpop.permute.xlu0 %5101
    %5104 = vset.pattern.permute.xlu0 3
    %5105 = vperm.xlu0 %5104, %v4567
    %v5106 = vpop.permute.xlu0 %5105
    %5108 = vset.pattern.permute.xlu0 3
    %5109 = vperm.xlu0 %5108, %v4568
    %v5110 = vpop.permute.xlu0 %5109
    %5112 = vset.pattern.permute.xlu0 3
    %5113 = vperm.xlu0 %5112, %v4569
    %v5114 = vpop.permute.xlu0 %5113
    %v5116 = vmul.f32 %v5086, %v5094
    %v5117 = vmul.f32 %v5080, %v5094
    %v5118 = vmul.f32 %v5087, %v5098
    %v5119 = vmul.f32 %v5081, %v5098
    %v5120 = vmul.f32 %v5088, %v5102
    %v5121 = vmul.f32 %v5082, %v5102
    %v5122 = vmul.f32 %v5089, %v5106
    %v5123 = vmul.f32 %v5083, %v5106
    %v5124 = vmul.f32 %v5090, %v5110
    %v5125 = vmul.f32 %v5084, %v5110
    %v5126 = vmul.f32 %v5091, %v5114
    %v5127 = vmul.f32 %v5085, %v5114
    %v5128 = vld [vmem:[%s668] sm:$0x3]
    %v5130 = vlaneseq
    %v5131 = vshrl.u32 %v5130, 7
    %v5132 = vsub.s32 0, %v5131
    %v5133 = vrot.slane %v5128, %v5132
    %v5134 = vlaneseq
    %v5135 = vshrl.u32 %v5134, 7
    %v5136 = vsub.s32 1, %v5135
    %v5137 = vrot.slane %v5128, %v5136
    %v5140 = vmul.f32 %v5116, %v5133
    %v5141 = vmul.f32 %v5117, %v5137
    %v5142 = vmul.f32 %v5118, %v5133
    %v5143 = vmul.f32 %v5119, %v5137
    %v5144 = vmul.f32 %v5120, %v5133
    %v5145 = vmul.f32 %v5121, %v5137
    %v5146 = vmul.f32 %v5122, %v5133
    %v5147 = vmul.f32 %v5123, %v5137
    %v5148 = vmul.f32 %v5124, %v5133
    %v5149 = vmul.f32 %v5125, %v5137
    %v5150 = vmul.f32 %v5126, %v5133
    %v5151 = vmul.f32 %v5127, %v5137
    %v5152 = vadd.f32 %v5044, %v5140
    %v5153 = vadd.f32 %v5045, %v5141
    %v5154 = vadd.f32 %v5046, %v5142
    %v5155 = vadd.f32 %v5047, %v5143
    %v5156 = vadd.f32 %v5048, %v5144
    %v5157 = vadd.f32 %v5049, %v5145
    %v5158 = vadd.f32 %v5050, %v5146
    %v5159 = vadd.f32 %v5051, %v5147
    %v5160 = vadd.f32 %v5052, %v5148
    %v5161 = vadd.f32 %v5053, %v5149
    %v5162 = vadd.f32 %v5054, %v5150
    %v5163 = vadd.f32 %v5055, %v5151
    %5164 = vrot.lane.b32.xlu0 %v4678, 127
    %v5165 = vpop.permute.xlu0 %5164
    %5166 = vrot.lane.b32.xlu0 %v4680, 127
    %v5167 = vpop.permute.xlu0 %5166
    %5168 = vrot.lane.b32.xlu0 %v4682, 127
    %v5169 = vpop.permute.xlu0 %5168
    %5170 = vrot.lane.b32.xlu0 %v4684, 127
    %v5171 = vpop.permute.xlu0 %5170
    %5172 = vrot.lane.b32.xlu0 %v4686, 127
    %v5173 = vpop.permute.xlu0 %5172
    %5174 = vrot.lane.b32.xlu0 %v4688, 127
    %v5175 = vpop.permute.xlu0 %5174
    %5176 = vrot.lane.b32.xlu0 %v4679, 127
    %v5177 = vpop.permute.xlu0 %5176
    %5178 = vrot.lane.b32.xlu0 %v4681, 127
    %v5179 = vpop.permute.xlu0 %5178
    %5180 = vrot.lane.b32.xlu0 %v4683, 127
    %v5181 = vpop.permute.xlu0 %5180
    %5182 = vrot.lane.b32.xlu0 %v4685, 127
    %v5183 = vpop.permute.xlu0 %5182
    %5184 = vrot.lane.b32.xlu0 %v4687, 127
    %v5185 = vpop.permute.xlu0 %5184
    %5186 = vrot.lane.b32.xlu0 %v4689, 127
    %v5187 = vpop.permute.xlu0 %5186
    %v5188 = vsel %vm729, %v5165, %v5177
    %v5189 = vsel %vm729, %v5167, %v5179
    %v5190 = vsel %vm729, %v5169, %v5181
    %v5191 = vsel %vm729, %v5171, %v5183
    %v5192 = vsel %vm729, %v5173, %v5185
    %v5193 = vsel %vm729, %v5175, %v5187
    %v5194 = vsel %vm729, %v5177, %v5165
    %v5195 = vsel %vm729, %v5179, %v5167
    %v5196 = vsel %vm729, %v5181, %v5169
    %v5197 = vsel %vm729, %v5183, %v5171
    %v5198 = vsel %vm729, %v5185, %v5173
    %v5199 = vsel %vm729, %v5187, %v5175
    %5200 = vset.pattern.permute.xlu0 5
    %5201 = vperm.xlu0 %5200, %v4564
    %v5202 = vpop.permute.xlu0 %5201
    %5204 = vset.pattern.permute.xlu0 5
    %5205 = vperm.xlu0 %5204, %v4565
    %v5206 = vpop.permute.xlu0 %5205
    %5208 = vset.pattern.permute.xlu0 5
    %5209 = vperm.xlu0 %5208, %v4566
    %v5210 = vpop.permute.xlu0 %5209
    %5212 = vset.pattern.permute.xlu0 5
    %5213 = vperm.xlu0 %5212, %v4567
    %v5214 = vpop.permute.xlu0 %5213
    %5216 = vset.pattern.permute.xlu0 5
    %5217 = vperm.xlu0 %5216, %v4568
    %v5218 = vpop.permute.xlu0 %5217
    %5220 = vset.pattern.permute.xlu0 5
    %5221 = vperm.xlu0 %5220, %v4569
    %v5222 = vpop.permute.xlu0 %5221
    %v5224 = vmul.f32 %v5188, %v5202
    %v5225 = vmul.f32 %v5194, %v5202
    %v5226 = vmul.f32 %v5189, %v5206
    %v5227 = vmul.f32 %v5195, %v5206
    %v5228 = vmul.f32 %v5190, %v5210
    %v5229 = vmul.f32 %v5196, %v5210
    %v5230 = vmul.f32 %v5191, %v5214
    %v5231 = vmul.f32 %v5197, %v5214
    %v5232 = vmul.f32 %v5192, %v5218
    %v5233 = vmul.f32 %v5198, %v5218
    %v5234 = vmul.f32 %v5193, %v5222
    %v5235 = vmul.f32 %v5199, %v5222
    %v5236 = vld [vmem:[%s778] sm:$0x3]
    %v5238 = vlaneseq
    %v5239 = vshrl.u32 %v5238, 7
    %v5240 = vsub.s32 0, %v5239
    %v5241 = vrot.slane %v5236, %v5240
    %v5242 = vlaneseq
    %v5243 = vshrl.u32 %v5242, 7
    %v5244 = vsub.s32 1, %v5243
    %v5245 = vrot.slane %v5236, %v5244
    %v5248 = vmul.f32 %v5224, %v5241
    %v5249 = vmul.f32 %v5225, %v5245
    %v5250 = vmul.f32 %v5226, %v5241
    %v5251 = vmul.f32 %v5227, %v5245
    %v5252 = vmul.f32 %v5228, %v5241
    %v5253 = vmul.f32 %v5229, %v5245
    %v5254 = vmul.f32 %v5230, %v5241
    %v5255 = vmul.f32 %v5231, %v5245
    %v5256 = vmul.f32 %v5232, %v5241
    %v5257 = vmul.f32 %v5233, %v5245
    %v5258 = vmul.f32 %v5234, %v5241
    %v5259 = vmul.f32 %v5235, %v5245
    %v5260 = vadd.f32 %v5152, %v5248
    %v5261 = vadd.f32 %v5153, %v5249
    %v5262 = vadd.f32 %v5154, %v5250
    %v5263 = vadd.f32 %v5155, %v5251
    %v5264 = vadd.f32 %v5156, %v5252
    %v5265 = vadd.f32 %v5157, %v5253
    %v5266 = vadd.f32 %v5158, %v5254
    %v5267 = vadd.f32 %v5159, %v5255
    %v5268 = vadd.f32 %v5160, %v5256
    %v5269 = vadd.f32 %v5161, %v5257
    %v5270 = vadd.f32 %v5162, %v5258
    %v5271 = vadd.f32 %v5163, %v5259
    %5272 = vrot.lane.b32.xlu0 %v4678, 113
    %v5273 = vpop.permute.xlu0 %5272
    %5274 = vrot.lane.b32.xlu0 %v4680, 113
    %v5275 = vpop.permute.xlu0 %5274
    %5276 = vrot.lane.b32.xlu0 %v4682, 113
    %v5277 = vpop.permute.xlu0 %5276
    %5278 = vrot.lane.b32.xlu0 %v4684, 113
    %v5279 = vpop.permute.xlu0 %5278
    %5280 = vrot.lane.b32.xlu0 %v4686, 113
    %v5281 = vpop.permute.xlu0 %5280
    %5282 = vrot.lane.b32.xlu0 %v4688, 113
    %v5283 = vpop.permute.xlu0 %5282
    %5284 = vrot.lane.b32.xlu0 %v4679, 113
    %v5285 = vpop.permute.xlu0 %5284
    %5286 = vrot.lane.b32.xlu0 %v4681, 113
    %v5287 = vpop.permute.xlu0 %5286
    %5288 = vrot.lane.b32.xlu0 %v4683, 113
    %v5289 = vpop.permute.xlu0 %5288
    %5290 = vrot.lane.b32.xlu0 %v4685, 113
    %v5291 = vpop.permute.xlu0 %5290
    %5292 = vrot.lane.b32.xlu0 %v4687, 113
    %v5293 = vpop.permute.xlu0 %5292
    %5294 = vrot.lane.b32.xlu0 %v4689, 113
    %v5295 = vpop.permute.xlu0 %5294
    %v5296 = vsel %vm839, %v5273, %v5285
    %v5297 = vsel %vm839, %v5275, %v5287
    %v5298 = vsel %vm839, %v5277, %v5289
    %v5299 = vsel %vm839, %v5279, %v5291
    %v5300 = vsel %vm839, %v5281, %v5293
    %v5301 = vsel %vm839, %v5283, %v5295
    %v5302 = vsel %vm839, %v5285, %v5273
    %v5303 = vsel %vm839, %v5287, %v5275
    %v5304 = vsel %vm839, %v5289, %v5277
    %v5305 = vsel %vm839, %v5291, %v5279
    %v5306 = vsel %vm839, %v5293, %v5281
    %v5307 = vsel %vm839, %v5295, %v5283
    %5308 = vset.pattern.permute.xlu0 6
    %5309 = vperm.xlu0 %5308, %v4564
    %v5310 = vpop.permute.xlu0 %5309
    %5312 = vset.pattern.permute.xlu0 6
    %5313 = vperm.xlu0 %5312, %v4565
    %v5314 = vpop.permute.xlu0 %5313
    %5316 = vset.pattern.permute.xlu0 6
    %5317 = vperm.xlu0 %5316, %v4566
    %v5318 = vpop.permute.xlu0 %5317
    %5320 = vset.pattern.permute.xlu0 6
    %5321 = vperm.xlu0 %5320, %v4567
    %v5322 = vpop.permute.xlu0 %5321
    %5324 = vset.pattern.permute.xlu0 6
    %5325 = vperm.xlu0 %5324, %v4568
    %v5326 = vpop.permute.xlu0 %5325
    %5328 = vset.pattern.permute.xlu0 6
    %5329 = vperm.xlu0 %5328, %v4569
    %v5330 = vpop.permute.xlu0 %5329
    %v5332 = vmul.f32 %v5296, %v5310
    %v5333 = vmul.f32 %v5302, %v5310
    %v5334 = vmul.f32 %v5297, %v5314
    %v5335 = vmul.f32 %v5303, %v5314
    %v5336 = vmul.f32 %v5298, %v5318
    %v5337 = vmul.f32 %v5304, %v5318
    %v5338 = vmul.f32 %v5299, %v5322
    %v5339 = vmul.f32 %v5305, %v5322
    %v5340 = vmul.f32 %v5300, %v5326
    %v5341 = vmul.f32 %v5306, %v5326
    %v5342 = vmul.f32 %v5301, %v5330
    %v5343 = vmul.f32 %v5307, %v5330
    %v5344 = vld [vmem:[%s888] sm:$0x3]
    %v5346 = vlaneseq
    %v5347 = vshrl.u32 %v5346, 7
    %v5348 = vsub.s32 0, %v5347
    %v5349 = vrot.slane %v5344, %v5348
    %v5350 = vlaneseq
    %v5351 = vshrl.u32 %v5350, 7
    %v5352 = vsub.s32 1, %v5351
    %v5353 = vrot.slane %v5344, %v5352
    %v5356 = vmul.f32 %v5332, %v5349
    %v5357 = vmul.f32 %v5333, %v5353
    %v5358 = vmul.f32 %v5334, %v5349
    %v5359 = vmul.f32 %v5335, %v5353
    %v5360 = vmul.f32 %v5336, %v5349
    %v5361 = vmul.f32 %v5337, %v5353
    %v5362 = vmul.f32 %v5338, %v5349
    %v5363 = vmul.f32 %v5339, %v5353
    %v5364 = vmul.f32 %v5340, %v5349
    %v5365 = vmul.f32 %v5341, %v5353
    %v5366 = vmul.f32 %v5342, %v5349
    %v5367 = vmul.f32 %v5343, %v5353
    %v5368 = vadd.f32 %v5260, %v5356
    %v5369 = vadd.f32 %v5261, %v5357
    %v5370 = vadd.f32 %v5262, %v5358
    %v5371 = vadd.f32 %v5263, %v5359
    %v5372 = vadd.f32 %v5264, %v5360
    %v5373 = vadd.f32 %v5265, %v5361
    %v5374 = vadd.f32 %v5266, %v5362
    %v5375 = vadd.f32 %v5267, %v5363
    %v5376 = vadd.f32 %v5268, %v5364
    %v5377 = vadd.f32 %v5269, %v5365
    %v5378 = vadd.f32 %v5270, %v5366
    %v5379 = vadd.f32 %v5271, %v5367
    %5380 = vrot.lane.b32.xlu0 %v4678, 112
    %v5381 = vpop.permute.xlu0 %5380
    %5382 = vrot.lane.b32.xlu0 %v4680, 112
    %v5383 = vpop.permute.xlu0 %5382
    %5384 = vrot.lane.b32.xlu0 %v4682, 112
    %v5385 = vpop.permute.xlu0 %5384
    %5386 = vrot.lane.b32.xlu0 %v4684, 112
    %v5387 = vpop.permute.xlu0 %5386
    %5388 = vrot.lane.b32.xlu0 %v4686, 112
    %v5389 = vpop.permute.xlu0 %5388
    %5390 = vrot.lane.b32.xlu0 %v4688, 112
    %v5391 = vpop.permute.xlu0 %5390
    %5392 = vrot.lane.b32.xlu0 %v4679, 112
    %v5393 = vpop.permute.xlu0 %5392
    %5394 = vrot.lane.b32.xlu0 %v4681, 112
    %v5395 = vpop.permute.xlu0 %5394
    %5396 = vrot.lane.b32.xlu0 %v4683, 112
    %v5397 = vpop.permute.xlu0 %5396
    %5398 = vrot.lane.b32.xlu0 %v4685, 112
    %v5399 = vpop.permute.xlu0 %5398
    %5400 = vrot.lane.b32.xlu0 %v4687, 112
    %v5401 = vpop.permute.xlu0 %5400
    %5402 = vrot.lane.b32.xlu0 %v4689, 112
    %v5403 = vpop.permute.xlu0 %5402
    %v5404 = vsel %vm949, %v5381, %v5393
    %v5405 = vsel %vm949, %v5383, %v5395
    %v5406 = vsel %vm949, %v5385, %v5397
    %v5407 = vsel %vm949, %v5387, %v5399
    %v5408 = vsel %vm949, %v5389, %v5401
    %v5409 = vsel %vm949, %v5391, %v5403
    %v5410 = vsel %vm949, %v5393, %v5381
    %v5411 = vsel %vm949, %v5395, %v5383
    %v5412 = vsel %vm949, %v5397, %v5385
    %v5413 = vsel %vm949, %v5399, %v5387
    %v5414 = vsel %vm949, %v5401, %v5389
    %v5415 = vsel %vm949, %v5403, %v5391
    %5416 = vset.pattern.permute.xlu0 7
    %5417 = vperm.xlu0 %5416, %v4564
    %v5418 = vpop.permute.xlu0 %5417
    %5420 = vset.pattern.permute.xlu0 7
    %5421 = vperm.xlu0 %5420, %v4565
    %v5422 = vpop.permute.xlu0 %5421
    %5424 = vset.pattern.permute.xlu0 7
    %5425 = vperm.xlu0 %5424, %v4566
    %v5426 = vpop.permute.xlu0 %5425
    %5428 = vset.pattern.permute.xlu0 7
    %5429 = vperm.xlu0 %5428, %v4567
    %v5430 = vpop.permute.xlu0 %5429
    %5432 = vset.pattern.permute.xlu0 7
    %5433 = vperm.xlu0 %5432, %v4568
    %v5434 = vpop.permute.xlu0 %5433
    %5436 = vset.pattern.permute.xlu0 7
    %5437 = vperm.xlu0 %5436, %v4569
    %v5438 = vpop.permute.xlu0 %5437
    %v5440 = vmul.f32 %v5404, %v5418
    %v5441 = vmul.f32 %v5410, %v5418
    %v5442 = vmul.f32 %v5405, %v5422
    %v5443 = vmul.f32 %v5411, %v5422
    %v5444 = vmul.f32 %v5406, %v5426
    %v5445 = vmul.f32 %v5412, %v5426
    %v5446 = vmul.f32 %v5407, %v5430
    %v5447 = vmul.f32 %v5413, %v5430
    %v5448 = vmul.f32 %v5408, %v5434
    %v5449 = vmul.f32 %v5414, %v5434
    %v5450 = vmul.f32 %v5409, %v5438
    %v5451 = vmul.f32 %v5415, %v5438
    %v5452 = vld [vmem:[%s998] sm:$0x3]
    %v5454 = vlaneseq
    %v5455 = vshrl.u32 %v5454, 7
    %v5456 = vsub.s32 0, %v5455
    %v5457 = vrot.slane %v5452, %v5456
    %v5458 = vlaneseq
    %v5459 = vshrl.u32 %v5458, 7
    %v5460 = vsub.s32 1, %v5459
    %v5461 = vrot.slane %v5452, %v5460
    %v5464 = vmul.f32 %v5440, %v5457
    %v5465 = vmul.f32 %v5441, %v5461
    %v5466 = vmul.f32 %v5442, %v5457
    %v5467 = vmul.f32 %v5443, %v5461
    %v5468 = vmul.f32 %v5444, %v5457
    %v5469 = vmul.f32 %v5445, %v5461
    %v5470 = vmul.f32 %v5446, %v5457
    %v5471 = vmul.f32 %v5447, %v5461
    %v5472 = vmul.f32 %v5448, %v5457
    %v5473 = vmul.f32 %v5449, %v5461
    %v5474 = vmul.f32 %v5450, %v5457
    %v5475 = vmul.f32 %v5451, %v5461
    %v5476 = vadd.f32 %v5368, %v5464
    %v5477 = vadd.f32 %v5369, %v5465
    %v5478 = vadd.f32 %v5370, %v5466
    %v5479 = vadd.f32 %v5371, %v5467
    %v5480 = vadd.f32 %v5372, %v5468
    %v5481 = vadd.f32 %v5373, %v5469
    %v5482 = vadd.f32 %v5374, %v5470
    %v5483 = vadd.f32 %v5375, %v5471
    %v5484 = vadd.f32 %v5376, %v5472
    %v5485 = vadd.f32 %v5377, %v5473
    %v5486 = vadd.f32 %v5378, %v5474
    %v5487 = vadd.f32 %v5379, %v5475
    %5488 = vrot.lane.b32.xlu0 %v4678, 111
    %v5489 = vpop.permute.xlu0 %5488
    %5490 = vrot.lane.b32.xlu0 %v4680, 111
    %v5491 = vpop.permute.xlu0 %5490
    %5492 = vrot.lane.b32.xlu0 %v4682, 111
    %v5493 = vpop.permute.xlu0 %5492
    %5494 = vrot.lane.b32.xlu0 %v4684, 111
    %v5495 = vpop.permute.xlu0 %5494
    %5496 = vrot.lane.b32.xlu0 %v4686, 111
    %v5497 = vpop.permute.xlu0 %5496
    %5498 = vrot.lane.b32.xlu0 %v4688, 111
    %v5499 = vpop.permute.xlu0 %5498
    %5500 = vrot.lane.b32.xlu0 %v4679, 111
    %v5501 = vpop.permute.xlu0 %5500
    %5502 = vrot.lane.b32.xlu0 %v4681, 111
    %v5503 = vpop.permute.xlu0 %5502
    %5504 = vrot.lane.b32.xlu0 %v4683, 111
    %v5505 = vpop.permute.xlu0 %5504
    %5506 = vrot.lane.b32.xlu0 %v4685, 111
    %v5507 = vpop.permute.xlu0 %5506
    %5508 = vrot.lane.b32.xlu0 %v4687, 111
    %v5509 = vpop.permute.xlu0 %5508
    %5510 = vrot.lane.b32.xlu0 %v4689, 111
    %v5511 = vpop.permute.xlu0 %5510
    %v5512 = vsel %vm1059, %v5489, %v5501
    %v5513 = vsel %vm1059, %v5491, %v5503
    %v5514 = vsel %vm1059, %v5493, %v5505
    %v5515 = vsel %vm1059, %v5495, %v5507
    %v5516 = vsel %vm1059, %v5497, %v5509
    %v5517 = vsel %vm1059, %v5499, %v5511
    %v5518 = vsel %vm1059, %v5501, %v5489
    %v5519 = vsel %vm1059, %v5503, %v5491
    %v5520 = vsel %vm1059, %v5505, %v5493
    %v5521 = vsel %vm1059, %v5507, %v5495
    %v5522 = vsel %vm1059, %v5509, %v5497
    %v5523 = vsel %vm1059, %v5511, %v5499
    %5524 = vset.pattern.permute.xlu0 8
    %5525 = vperm.xlu0 %5524, %v4564
    %v5526 = vpop.permute.xlu0 %5525
    %5528 = vset.pattern.permute.xlu0 8
    %5529 = vperm.xlu0 %5528, %v4565
    %v5530 = vpop.permute.xlu0 %5529
    %5532 = vset.pattern.permute.xlu0 8
    %5533 = vperm.xlu0 %5532, %v4566
    %v5534 = vpop.permute.xlu0 %5533
    %5536 = vset.pattern.permute.xlu0 8
    %5537 = vperm.xlu0 %5536, %v4567
    %v5538 = vpop.permute.xlu0 %5537
    %5540 = vset.pattern.permute.xlu0 8
    %5541 = vperm.xlu0 %5540, %v4568
    %v5542 = vpop.permute.xlu0 %5541
    %5544 = vset.pattern.permute.xlu0 8
    %5545 = vperm.xlu0 %5544, %v4569
    %v5546 = vpop.permute.xlu0 %5545
    %v5548 = vmul.f32 %v5512, %v5526
    %v5549 = vmul.f32 %v5518, %v5526
    %v5550 = vmul.f32 %v5513, %v5530
    %v5551 = vmul.f32 %v5519, %v5530
    %v5552 = vmul.f32 %v5514, %v5534
    %v5553 = vmul.f32 %v5520, %v5534
    %v5554 = vmul.f32 %v5515, %v5538
    %v5555 = vmul.f32 %v5521, %v5538
    %v5556 = vmul.f32 %v5516, %v5542
    %v5557 = vmul.f32 %v5522, %v5542
    %v5558 = vmul.f32 %v5517, %v5546
    %v5559 = vmul.f32 %v5523, %v5546
    %v5560 = vld [vmem:[%s1108] sm:$0x3]
    %v5562 = vlaneseq
    %v5563 = vshrl.u32 %v5562, 7
    %v5564 = vsub.s32 0, %v5563
    %v5565 = vrot.slane %v5560, %v5564
    %v5566 = vlaneseq
    %v5567 = vshrl.u32 %v5566, 7
    %v5568 = vsub.s32 1, %v5567
    %v5569 = vrot.slane %v5560, %v5568
    %v5572 = vmul.f32 %v5548, %v5565
    %v5573 = vmul.f32 %v5549, %v5569
    %v5574 = vmul.f32 %v5550, %v5565
    %v5575 = vmul.f32 %v5551, %v5569
    %v5576 = vmul.f32 %v5552, %v5565
    %v5577 = vmul.f32 %v5553, %v5569
    %v5578 = vmul.f32 %v5554, %v5565
    %v5579 = vmul.f32 %v5555, %v5569
    %v5580 = vmul.f32 %v5556, %v5565
    %v5581 = vmul.f32 %v5557, %v5569
    %v5582 = vmul.f32 %v5558, %v5565
    %v5583 = vmul.f32 %v5559, %v5569
    %v5584 = vadd.f32 %v5476, %v5572
    %v5585 = vadd.f32 %v5477, %v5573
    %v5586 = vadd.f32 %v5478, %v5574
    %v5587 = vadd.f32 %v5479, %v5575
    %v5588 = vadd.f32 %v5480, %v5576
    %v5589 = vadd.f32 %v5481, %v5577
    %v5590 = vadd.f32 %v5482, %v5578
    %v5591 = vadd.f32 %v5483, %v5579
    %v5592 = vadd.f32 %v5484, %v5580
    %v5593 = vadd.f32 %v5485, %v5581
    %v5594 = vadd.f32 %v5486, %v5582
    %v5595 = vadd.f32 %v5487, %v5583
    %v5596 = vmax.f32 %v5584, 0.0
    %v5597 = vmax.f32 %v5585, 0.0
    %v5598 = vmax.f32 %v5586, 0.0
    %v5599 = vmax.f32 %v5587, 0.0
    %v5600 = vmax.f32 %v5588, 0.0
    %v5601 = vmax.f32 %v5589, 0.0
    %v5602 = vmax.f32 %v5590, 0.0
    %v5603 = vmax.f32 %v5591, 0.0
    %v5604 = vmax.f32 %v5592, 0.0
    %v5605 = vmax.f32 %v5593, 0.0
    %v5606 = vmax.f32 %v5594, 0.0
    %v5607 = vmax.f32 %v5595, 0.0
    %v5608 = vmin.f32 %v5596, 6.0
    %v5609 = vmin.f32 %v5597, 6.0
    %v5610 = vmin.f32 %v5598, 6.0
    %v5611 = vmin.f32 %v5599, 6.0
    %v5612 = vmin.f32 %v5600, 6.0
    %v5613 = vmin.f32 %v5601, 6.0
    %v5614 = vmin.f32 %v5602, 6.0
    %v5615 = vmin.f32 %v5603, 6.0
    %v5616 = vmin.f32 %v5604, 6.0
    %v5617 = vmin.f32 %v5605, 6.0
    %v5618 = vmin.f32 %v5606, 6.0
    %v5619 = vmin.f32 %v5607, 6.0
    %v5620 = vpack.c.bf16 %v5610, %v5608
    %v5621 = vpack.c.bf16 %v5611, %v5609
    %v5622 = vpack.c.bf16 %v5614, %v5612
    %v5623 = vpack.c.bf16 %v5615, %v5613
    %v5624 = vpack.c.bf16 %v5618, %v5616
    %v5625 = vpack.c.bf16 %v5619, %v5617
    %v5627 = vsel %vm1175, %v4570, 0
    %5629 = vmatprep.subr.bf16.mxu0 0
    %5630 = vmatpush1.bf16.msra.mxu0 0
    %5631 = vmatprep.subr.bf16.mxu0 0
    %5632 = vmatpush1.bf16.msra.mxu0 0
    %5633 = vmatprep.subr.bf16.mxu0 0
    %5634 = vmatpush1.bf16.msra.mxu0 0
    %5635 = vmatprep.subr.bf16.mxu0 0
    %5636 = vmatpush1.bf16.msra.mxu0 0
    %5637 = vmatprep.subr.bf16.mxu0 0
    %5638 = vmatpush1.bf16.msra.mxu0 0
    %5639 = vmatprep.subr.bf16.mxu0 %v5625
    %5640 = vmatpush1.bf16.msra.mxu0 %v5624
    %5641 = vmatprep.subr.bf16.mxu0 %v5623
    %5642 = vmatpush1.bf16.msra.mxu0 %v5622
    %5643 = vmatprep.subr.bf16.mxu0 %v5621
    %5644 = vmatpush1.bf16.msra.mxu0 %v5620
    %5645 = vmatprep.subr.bf16.mxu0 0
    %5646 = vmatpush2.bf16.msra.mxu0 0
    %5647 = vmatprep.subr.bf16.mxu0 0
    %5648 = vmatpush2.bf16.msra.mxu0 0
    %5649 = vmatprep.subr.bf16.mxu0 0
    %5650 = vmatpush2.bf16.msra.mxu0 0
    %5651 = vmatprep.subr.bf16.mxu0 0
    %5652 = vmatpush2.bf16.msra.mxu0 0
    %5653 = vmatprep.subr.bf16.mxu0 0
    %5654 = vmatpush2.bf16.msra.mxu0 0
    %5655 = vmatprep.subr.bf16.mxu0 0
    %5656 = vmatpush2.bf16.msra.mxu0 0
    %5657 = vmatprep.subr.bf16.mxu0 0
    %5658 = vmatpush2.bf16.msra.mxu0 0
    %5659 = vmatprep.subr.bf16.mxu0 0
    %5660 = vmatpush2.bf16.msra.mxu0 0
    %5661 = vmatprep.mubr.bf16.mxu0 0
    %5662 = vmatmul.mubr.bf16.gmra.mxu0 %v5627
    %v5663 = vpop.f32.mrf.mxu0
    %v5664 = vadd.f32 0.0, %v5663
    %v5665 = vpop.f32.mrf.mxu0
    %v5666 = vadd.f32 0.0, %v5665
    %v5667 = vpop.f32.mrf.mxu0
    %v5668 = vpop.f32.mrf.mxu0
    %5669 = vdwg.mxu0
    %v5670 = vadd.f32 %v4556, %v5664
    %v5671 = vadd.f32 %v4557, %v5666
    %v5672 = vld [vmem:[#allocation6] sm:$0xf]
    %v5673 = vld [vmem:[#allocation7] sm:$0xff]
    %v5674 = vpack.c.bf16 %v5670, %v5670
    %v5675 = vpack.c.bf16 %v5671, %v5671
    %v5678 = vrot.slane %v5674, 4
    %v5679 = vrot.slane %v5675, 4
    %v5681 = vsel %vm128, %v4571, %v5678
    %v5684 = vsel %vm128, %v4572, %v5679
    %5687 = vset.pattern.permute.xlu0 0
    %5688 = vperm.xlu0 %5687, %v5673
    %v5689 = vpop.permute.xlu0 %5688
    %v5692 = vsel %vm1241, %v5672, 0
    %5694 = vmatprep.subr.bf16.mxu0 0
    %5695 = vmatpush1.bf16.msra.mxu0 0
    %5696 = vmatprep.subr.bf16.mxu0 0
    %5697 = vmatpush1.bf16.msra.mxu0 0
    %5698 = vmatprep.subr.bf16.mxu0 0
    %5699 = vmatpush1.bf16.msra.mxu0 0
    %5700 = vmatprep.subr.bf16.mxu0 0
    %5701 = vmatpush1.bf16.msra.mxu0 0
    %5702 = vmatprep.subr.bf16.mxu0 0
    %5703 = vmatpush1.bf16.msra.mxu0 0
    %5704 = vmatprep.subr.bf16.mxu0 0
    %5705 = vmatpush1.bf16.msra.mxu0 0
    %5706 = vmatprep.subr.bf16.mxu0 0
    %5707 = vmatpush1.bf16.msra.mxu0 0
    %5708 = vmatprep.subr.bf16.mxu0 %v5684
    %5709 = vmatpush1.bf16.msra.mxu0 %v5681
    %5710 = vmatprep.subr.bf16.mxu0 0
    %5711 = vmatpush2.bf16.msra.mxu0 0
    %5712 = vmatprep.subr.bf16.mxu0 0
    %5713 = vmatpush2.bf16.msra.mxu0 0
    %5714 = vmatprep.subr.bf16.mxu0 0
    %5715 = vmatpush2.bf16.msra.mxu0 0
    %5716 = vmatprep.subr.bf16.mxu0 0
    %5717 = vmatpush2.bf16.msra.mxu0 0
    %5718 = vmatprep.subr.bf16.mxu0 0
    %5719 = vmatpush2.bf16.msra.mxu0 0
    %5720 = vmatprep.subr.bf16.mxu0 0
    %5721 = vmatpush2.bf16.msra.mxu0 0
    %5722 = vmatprep.subr.bf16.mxu0 0
    %5723 = vmatpush2.bf16.msra.mxu0 0
    %5724 = vmatprep.subr.bf16.mxu0 0
    %5725 = vmatpush2.bf16.msra.mxu0 0
    %5726 = vmatprep.mubr.bf16.mxu0 0
    %5727 = vmatmul.mubr.bf16.gmra.mxu0 %v5692
    %v5728 = vpop.f32.mrf.mxu0
    %v5729 = vadd.f32 %v5689, %v5728
    %v5730 = vpop.f32.mrf.mxu0
    %v5731 = vadd.f32 %v5689, %v5730
    %v5732 = vpop.f32.mrf.mxu0
    %v5733 = vpop.f32.mrf.mxu0
    %5734 = vdwg.mxu0
    %v5735 = vmax.f32 %v5729, 0.0
    %v5736 = vmax.f32 %v5731, 0.0
    %v5737 = vld [vmem:[%s1288] sm:$0xf]
    %v5738 = vld [vmem:[%s1288 + $0x4] sm:$0xf]
    %v5739 = vld [vmem:[%s1288 + $0x8] sm:$0xf]
    %v5740 = vld [vmem:[%s1288 + $0xc] sm:$0xf]
    %v5741 = vld [vmem:[%s1288 + $0x10] sm:$0xf]
    %v5742 = vld [vmem:[%s1288 + $0x14] sm:$0xf]
    %v5743 = vld [vmem:[%s1295] sm:$0xff]
    %v5744 = vld [vmem:[%s1295 + $0x8] sm:$0xff]
    %v5745 = vld [vmem:[%s1295 + $0x10] sm:$0xff]
    %v5746 = vld [vmem:[%s1295 + $0x18] sm:$0xff]
    %v5747 = vld [vmem:[%s1295 + $0x20] sm:$0xff]
    %v5748 = vld [vmem:[%s1295 + $0x28] sm:$0xff]
    %v5749 = vld [vmem:[%s1302] sm:$0xf]
    %v5750 = vpack.c.bf16 %v5735, %v5735
    %v5751 = vpack.c.bf16 %v5736, %v5736
    %v5758 = vunpack.c.l.b16 %v5737
    %v5759 = vunpack.c.l.b16 %v5738
    %v5760 = vunpack.c.l.b16 %v5739
    %v5761 = vunpack.c.l.b16 %v5740
    %v5762 = vunpack.c.l.b16 %v5741
    %v5763 = vunpack.c.l.b16 %v5742
    %v5764 = vpack.c.b16 %v5759, %v5758
    %v5765 = vpack.c.b16 %v5761, %v5760
    %v5766 = vpack.c.b16 %v5763, %v5762
    %v5768 = vsel %vm118, %v5764, 0
    %v5771 = vsel %vm118, %v5765, 0
    %v5774 = vsel %vm118, %v5766, 0
    %v5777 = vsel %vm128, %v5750, 0
    %v5780 = vsel %vm128, %v5751, 0
    %5782 = vmatprep.subr.bf16.mxu0 0
    %5783 = vmatpush1.bf16.msra.mxu0 0
    %5784 = vmatprep.subr.bf16.mxu0 0
    %5785 = vmatpush1.bf16.msra.mxu0 0
    %5786 = vmatprep.subr.bf16.mxu0 0
    %5787 = vmatpush1.bf16.msra.mxu0 0
    %5788 = vmatprep.subr.bf16.mxu0 0
    %5789 = vmatpush1.bf16.msra.mxu0 0
    %5790 = vmatprep.subr.bf16.mxu0 0
    %5791 = vmatpush1.bf16.msra.mxu0 0
    %5792 = vmatprep.subr.bf16.mxu0 0
    %5793 = vmatpush1.bf16.msra.mxu0 0
    %5794 = vmatprep.subr.bf16.mxu0 0
    %5795 = vmatpush1.bf16.msra.mxu0 0
    %5796 = vmatprep.subr.bf16.mxu0 %v5780
    %5797 = vmatpush1.bf16.msra.mxu0 %v5777
    %5798 = vmatprep.subr.bf16.mxu0 0
    %5799 = vmatpush2.bf16.msra.mxu0 0
    %5800 = vmatprep.subr.bf16.mxu0 0
    %5801 = vmatpush2.bf16.msra.mxu0 0
    %5802 = vmatprep.subr.bf16.mxu0 0
    %5803 = vmatpush2.bf16.msra.mxu0 0
    %5804 = vmatprep.subr.bf16.mxu0 0
    %5805 = vmatpush2.bf16.msra.mxu0 0
    %5806 = vmatprep.subr.bf16.mxu0 0
    %5807 = vmatpush2.bf16.msra.mxu0 0
    %5808 = vmatprep.subr.bf16.mxu0 0
    %5809 = vmatpush2.bf16.msra.mxu0 0
    %5810 = vmatprep.subr.bf16.mxu0 0
    %5811 = vmatpush2.bf16.msra.mxu0 0
    %5812 = vmatprep.subr.bf16.mxu0 0
    %5813 = vmatpush2.bf16.msra.mxu0 0
    %5814 = vmatprep.mubr.bf16.mxu0 0
    %5815 = vmatmul.mubr.bf16.gmra.mxu0 %v5768
    %v5816 = vpop.f32.mrf.mxu0
    %v5817 = vadd.f32 0.0, %v5816
    %v5818 = vpop.f32.mrf.mxu0
    %v5819 = vadd.f32 0.0, %v5818
    %v5820 = vpop.f32.mrf.mxu0
    %v5821 = vadd.f32 0.0, %v5820
    %v5822 = vpop.f32.mrf.mxu0
    %v5823 = vadd.f32 0.0, %v5822
    %5824 = vmatprep.mubr.bf16.mxu0 0
    %5825 = vmatmul.mubr.bf16.gmra.mxu0 %v5771
    %v5826 = vpop.f32.mrf.mxu0
    %v5827 = vadd.f32 0.0, %v5826
    %v5828 = vpop.f32.mrf.mxu0
    %v5829 = vadd.f32 0.0, %v5828
    %v5830 = vpop.f32.mrf.mxu0
    %v5831 = vadd.f32 0.0, %v5830
    %v5832 = vpop.f32.mrf.mxu0
    %v5833 = vadd.f32 0.0, %v5832
    %5834 = vmatprep.mubr.bf16.mxu0 0
    %5835 = vmatmul.mubr.bf16.gmra.mxu0 %v5774
    %v5836 = vpop.f32.mrf.mxu0
    %v5837 = vadd.f32 0.0, %v5836
    %v5838 = vpop.f32.mrf.mxu0
    %v5839 = vadd.f32 0.0, %v5838
    %v5840 = vpop.f32.mrf.mxu0
    %v5841 = vadd.f32 0.0, %v5840
    %v5842 = vpop.f32.mrf.mxu0
    %v5843 = vadd.f32 0.0, %v5842
    %5844 = vdwg.mxu0
    %v5845 = vmax.f32 %v5817, 0.0
    %v5846 = vmax.f32 %v5819, 0.0
    %v5847 = vmax.f32 %v5821, 0.0
    %v5848 = vmax.f32 %v5823, 0.0
    %v5849 = vmax.f32 %v5827, 0.0
    %v5850 = vmax.f32 %v5829, 0.0
    %v5851 = vmax.f32 %v5831, 0.0
    %v5852 = vmax.f32 %v5833, 0.0
    %v5853 = vmax.f32 %v5837, 0.0
    %v5854 = vmax.f32 %v5839, 0.0
    %v5855 = vmax.f32 %v5841, 0.0
    %v5856 = vmax.f32 %v5843, 0.0
    %v5857 = vmin.f32 %v5845, 6.0
    %v5858 = vmin.f32 %v5846, 6.0
    %v5859 = vmin.f32 %v5847, 6.0
    %v5860 = vmin.f32 %v5848, 6.0
    %v5861 = vmin.f32 %v5849, 6.0
    %v5862 = vmin.f32 %v5850, 6.0
    %v5863 = vmin.f32 %v5851, 6.0
    %v5864 = vmin.f32 %v5852, 6.0
    %v5865 = vmin.f32 %v5853, 6.0
    %v5866 = vmin.f32 %v5854, 6.0
    %v5867 = vmin.f32 %v5855, 6.0
    %v5868 = vmin.f32 %v5856, 6.0
    %5870 = vset.pattern.permute.xlu0 4
    %5871 = vperm.xlu0 %5870, %v5743
    %v5872 = vpop.permute.xlu0 %5871
    %5875 = vset.pattern.permute.xlu0 4
    %5876 = vperm.xlu0 %5875, %v5744
    %v5877 = vpop.permute.xlu0 %5876
    %5880 = vset.pattern.permute.xlu0 4
    %5881 = vperm.xlu0 %5880, %v5745
    %v5882 = vpop.permute.xlu0 %5881
    %5885 = vset.pattern.permute.xlu0 4
    %5886 = vperm.xlu0 %5885, %v5746
    %v5887 = vpop.permute.xlu0 %5886
    %5890 = vset.pattern.permute.xlu0 4
    %5891 = vperm.xlu0 %5890, %v5747
    %v5892 = vpop.permute.xlu0 %5891
    %5895 = vset.pattern.permute.xlu0 4
    %5896 = vperm.xlu0 %5895, %v5748
    %v5897 = vpop.permute.xlu0 %5896
    %v5899 = vmul.f32 %v5857, %v5872
    %v5900 = vmul.f32 %v5858, %v5872
    %v5901 = vmul.f32 %v5859, %v5877
    %v5902 = vmul.f32 %v5860, %v5877
    %v5903 = vmul.f32 %v5861, %v5882
    %v5904 = vmul.f32 %v5862, %v5882
    %v5905 = vmul.f32 %v5863, %v5887
    %v5906 = vmul.f32 %v5864, %v5887
    %v5907 = vmul.f32 %v5865, %v5892
    %v5908 = vmul.f32 %v5866, %v5892
    %v5909 = vmul.f32 %v5867, %v5897
    %v5910 = vmul.f32 %v5868, %v5897
    %5911 = vrot.lane.b32.xlu0 %v5857, 17
    %v5912 = vpop.permute.xlu0 %5911
    %5913 = vrot.lane.b32.xlu0 %v5859, 17
    %v5914 = vpop.permute.xlu0 %5913
    %5915 = vrot.lane.b32.xlu0 %v5861, 17
    %v5916 = vpop.permute.xlu0 %5915
    %5917 = vrot.lane.b32.xlu0 %v5863, 17
    %v5918 = vpop.permute.xlu0 %5917
    %5919 = vrot.lane.b32.xlu0 %v5865, 17
    %v5920 = vpop.permute.xlu0 %5919
    %5921 = vrot.lane.b32.xlu0 %v5867, 17
    %v5922 = vpop.permute.xlu0 %5921
    %5923 = vrot.lane.b32.xlu0 %v5858, 17
    %v5924 = vpop.permute.xlu0 %5923
    %5925 = vrot.lane.b32.xlu0 %v5860, 17
    %v5926 = vpop.permute.xlu0 %5925
    %5927 = vrot.lane.b32.xlu0 %v5862, 17
    %v5928 = vpop.permute.xlu0 %5927
    %5929 = vrot.lane.b32.xlu0 %v5864, 17
    %v5930 = vpop.permute.xlu0 %5929
    %5931 = vrot.lane.b32.xlu0 %v5866, 17
    %v5932 = vpop.permute.xlu0 %5931
    %5933 = vrot.lane.b32.xlu0 %v5868, 17
    %v5934 = vpop.permute.xlu0 %5933
    %v5935 = vsel %vm290, %v5912, %v5924
    %v5936 = vsel %vm290, %v5914, %v5926
    %v5937 = vsel %vm290, %v5916, %v5928
    %v5938 = vsel %vm290, %v5918, %v5930
    %v5939 = vsel %vm290, %v5920, %v5932
    %v5940 = vsel %vm290, %v5922, %v5934
    %v5941 = vsel %vm290, %v5924, %v5912
    %v5942 = vsel %vm290, %v5926, %v5914
    %v5943 = vsel %vm290, %v5928, %v5916
    %v5944 = vsel %vm290, %v5930, %v5918
    %v5945 = vsel %vm290, %v5932, %v5920
    %v5946 = vsel %vm290, %v5934, %v5922
    %5947 = vset.pattern.permute.xlu0 0
    %5948 = vperm.xlu0 %5947, %v5743
    %v5949 = vpop.permute.xlu0 %5948
    %5951 = vset.pattern.permute.xlu0 0
    %5952 = vperm.xlu0 %5951, %v5744
    %v5953 = vpop.permute.xlu0 %5952
    %5955 = vset.pattern.permute.xlu0 0
    %5956 = vperm.xlu0 %5955, %v5745
    %v5957 = vpop.permute.xlu0 %5956
    %5959 = vset.pattern.permute.xlu0 0
    %5960 = vperm.xlu0 %5959, %v5746
    %v5961 = vpop.permute.xlu0 %5960
    %5963 = vset.pattern.permute.xlu0 0
    %5964 = vperm.xlu0 %5963, %v5747
    %v5965 = vpop.permute.xlu0 %5964
    %5967 = vset.pattern.permute.xlu0 0
    %5968 = vperm.xlu0 %5967, %v5748
    %v5969 = vpop.permute.xlu0 %5968
    %v5971 = vmul.f32 %v5941, %v5949
    %v5972 = vmul.f32 %v5935, %v5949
    %v5973 = vmul.f32 %v5942, %v5953
    %v5974 = vmul.f32 %v5936, %v5953
    %v5975 = vmul.f32 %v5943, %v5957
    %v5976 = vmul.f32 %v5937, %v5957
    %v5977 = vmul.f32 %v5944, %v5961
    %v5978 = vmul.f32 %v5938, %v5961
    %v5979 = vmul.f32 %v5945, %v5965
    %v5980 = vmul.f32 %v5939, %v5965
    %v5981 = vmul.f32 %v5946, %v5969
    %v5982 = vmul.f32 %v5940, %v5969
    %v5983 = vmul.f32 %v5971, %v4809
    %v5984 = vmul.f32 %v5972, %v4813
    %v5985 = vmul.f32 %v5973, %v4809
    %v5986 = vmul.f32 %v5974, %v4813
    %v5987 = vmul.f32 %v5975, %v4809
    %v5988 = vmul.f32 %v5976, %v4813
    %v5989 = vmul.f32 %v5977, %v4809
    %v5990 = vmul.f32 %v5978, %v4813
    %v5991 = vmul.f32 %v5979, %v4809
    %v5992 = vmul.f32 %v5980, %v4813
    %v5993 = vmul.f32 %v5981, %v4809
    %v5994 = vmul.f32 %v5982, %v4813
    %v5995 = vadd.f32 %v5899, %v5983
    %v5996 = vadd.f32 %v5900, %v5984
    %v5997 = vadd.f32 %v5901, %v5985
    %v5998 = vadd.f32 %v5902, %v5986
    %v5999 = vadd.f32 %v5903, %v5987
    %v6000 = vadd.f32 %v5904, %v5988
    %v6001 = vadd.f32 %v5905, %v5989
    %v6002 = vadd.f32 %v5906, %v5990
    %v6003 = vadd.f32 %v5907, %v5991
    %v6004 = vadd.f32 %v5908, %v5992
    %v6005 = vadd.f32 %v5909, %v5993
    %v6006 = vadd.f32 %v5910, %v5994
    %6007 = vrot.lane.b32.xlu0 %v5857, 16
    %v6008 = vpop.permute.xlu0 %6007
    %6009 = vrot.lane.b32.xlu0 %v5859, 16
    %v6010 = vpop.permute.xlu0 %6009
    %6011 = vrot.lane.b32.xlu0 %v5861, 16
    %v6012 = vpop.permute.xlu0 %6011
    %6013 = vrot.lane.b32.xlu0 %v5863, 16
    %v6014 = vpop.permute.xlu0 %6013
    %6015 = vrot.lane.b32.xlu0 %v5865, 16
    %v6016 = vpop.permute.xlu0 %6015
    %6017 = vrot.lane.b32.xlu0 %v5867, 16
    %v6018 = vpop.permute.xlu0 %6017
    %6019 = vrot.lane.b32.xlu0 %v5858, 16
    %v6020 = vpop.permute.xlu0 %6019
    %6021 = vrot.lane.b32.xlu0 %v5860, 16
    %v6022 = vpop.permute.xlu0 %6021
    %6023 = vrot.lane.b32.xlu0 %v5862, 16
    %v6024 = vpop.permute.xlu0 %6023
    %6025 = vrot.lane.b32.xlu0 %v5864, 16
    %v6026 = vpop.permute.xlu0 %6025
    %6027 = vrot.lane.b32.xlu0 %v5866, 16
    %v6028 = vpop.permute.xlu0 %6027
    %6029 = vrot.lane.b32.xlu0 %v5868, 16
    %v6030 = vpop.permute.xlu0 %6029
    %v6031 = vsel %vm399, %v6008, %v6020
    %v6032 = vsel %vm399, %v6010, %v6022
    %v6033 = vsel %vm399, %v6012, %v6024
    %v6034 = vsel %vm399, %v6014, %v6026
    %v6035 = vsel %vm399, %v6016, %v6028
    %v6036 = vsel %vm399, %v6018, %v6030
    %v6037 = vsel %vm399, %v6020, %v6008
    %v6038 = vsel %vm399, %v6022, %v6010
    %v6039 = vsel %vm399, %v6024, %v6012
    %v6040 = vsel %vm399, %v6026, %v6014
    %v6041 = vsel %vm399, %v6028, %v6016
    %v6042 = vsel %vm399, %v6030, %v6018
    %6043 = vset.pattern.permute.xlu0 1
    %6044 = vperm.xlu0 %6043, %v5743
    %v6045 = vpop.permute.xlu0 %6044
    %6047 = vset.pattern.permute.xlu0 1
    %6048 = vperm.xlu0 %6047, %v5744
    %v6049 = vpop.permute.xlu0 %6048
    %6051 = vset.pattern.permute.xlu0 1
    %6052 = vperm.xlu0 %6051, %v5745
    %v6053 = vpop.permute.xlu0 %6052
    %6055 = vset.pattern.permute.xlu0 1
    %6056 = vperm.xlu0 %6055, %v5746
    %v6057 = vpop.permute.xlu0 %6056
    %6059 = vset.pattern.permute.xlu0 1
    %6060 = vperm.xlu0 %6059, %v5747
    %v6061 = vpop.permute.xlu0 %6060
    %6063 = vset.pattern.permute.xlu0 1
    %6064 = vperm.xlu0 %6063, %v5748
    %v6065 = vpop.permute.xlu0 %6064
    %v6067 = vmul.f32 %v6037, %v6045
    %v6068 = vmul.f32 %v6031, %v6045
    %v6069 = vmul.f32 %v6038, %v6049
    %v6070 = vmul.f32 %v6032, %v6049
    %v6071 = vmul.f32 %v6039, %v6053
    %v6072 = vmul.f32 %v6033, %v6053
    %v6073 = vmul.f32 %v6040, %v6057
    %v6074 = vmul.f32 %v6034, %v6057
    %v6075 = vmul.f32 %v6041, %v6061
    %v6076 = vmul.f32 %v6035, %v6061
    %v6077 = vmul.f32 %v6042, %v6065
    %v6078 = vmul.f32 %v6036, %v6065
    %v6079 = vmul.f32 %v6067, %v4917
    %v6080 = vmul.f32 %v6068, %v4921
    %v6081 = vmul.f32 %v6069, %v4917
    %v6082 = vmul.f32 %v6070, %v4921
    %v6083 = vmul.f32 %v6071, %v4917
    %v6084 = vmul.f32 %v6072, %v4921
    %v6085 = vmul.f32 %v6073, %v4917
    %v6086 = vmul.f32 %v6074, %v4921
    %v6087 = vmul.f32 %v6075, %v4917
    %v6088 = vmul.f32 %v6076, %v4921
    %v6089 = vmul.f32 %v6077, %v4917
    %v6090 = vmul.f32 %v6078, %v4921
    %v6091 = vadd.f32 %v5995, %v6079
    %v6092 = vadd.f32 %v5996, %v6080
    %v6093 = vadd.f32 %v5997, %v6081
    %v6094 = vadd.f32 %v5998, %v6082
    %v6095 = vadd.f32 %v5999, %v6083
    %v6096 = vadd.f32 %v6000, %v6084
    %v6097 = vadd.f32 %v6001, %v6085
    %v6098 = vadd.f32 %v6002, %v6086
    %v6099 = vadd.f32 %v6003, %v6087
    %v6100 = vadd.f32 %v6004, %v6088
    %v6101 = vadd.f32 %v6005, %v6089
    %v6102 = vadd.f32 %v6006, %v6090
    %6103 = vrot.lane.b32.xlu0 %v5857, 15
    %v6104 = vpop.permute.xlu0 %6103
    %6105 = vrot.lane.b32.xlu0 %v5859, 15
    %v6106 = vpop.permute.xlu0 %6105
    %6107 = vrot.lane.b32.xlu0 %v5861, 15
    %v6108 = vpop.permute.xlu0 %6107
    %6109 = vrot.lane.b32.xlu0 %v5863, 15
    %v6110 = vpop.permute.xlu0 %6109
    %6111 = vrot.lane.b32.xlu0 %v5865, 15
    %v6112 = vpop.permute.xlu0 %6111
    %6113 = vrot.lane.b32.xlu0 %v5867, 15
    %v6114 = vpop.permute.xlu0 %6113
    %6115 = vrot.lane.b32.xlu0 %v5858, 15
    %v6116 = vpop.permute.xlu0 %6115
    %6117 = vrot.lane.b32.xlu0 %v5860, 15
    %v6118 = vpop.permute.xlu0 %6117
    %6119 = vrot.lane.b32.xlu0 %v5862, 15
    %v6120 = vpop.permute.xlu0 %6119
    %6121 = vrot.lane.b32.xlu0 %v5864, 15
    %v6122 = vpop.permute.xlu0 %6121
    %6123 = vrot.lane.b32.xlu0 %v5866, 15
    %v6124 = vpop.permute.xlu0 %6123
    %6125 = vrot.lane.b32.xlu0 %v5868, 15
    %v6126 = vpop.permute.xlu0 %6125
    %v6127 = vsel %vm509, %v6104, %v6116
    %v6128 = vsel %vm509, %v6106, %v6118
    %v6129 = vsel %vm509, %v6108, %v6120
    %v6130 = vsel %vm509, %v6110, %v6122
    %v6131 = vsel %vm509, %v6112, %v6124
    %v6132 = vsel %vm509, %v6114, %v6126
    %v6133 = vsel %vm509, %v6116, %v6104
    %v6134 = vsel %vm509, %v6118, %v6106
    %v6135 = vsel %vm509, %v6120, %v6108
    %v6136 = vsel %vm509, %v6122, %v6110
    %v6137 = vsel %vm509, %v6124, %v6112
    %v6138 = vsel %vm509, %v6126, %v6114
    %6139 = vset.pattern.permute.xlu0 2
    %6140 = vperm.xlu0 %6139, %v5743
    %v6141 = vpop.permute.xlu0 %6140
    %6143 = vset.pattern.permute.xlu0 2
    %6144 = vperm.xlu0 %6143, %v5744
    %v6145 = vpop.permute.xlu0 %6144
    %6147 = vset.pattern.permute.xlu0 2
    %6148 = vperm.xlu0 %6147, %v5745
    %v6149 = vpop.permute.xlu0 %6148
    %6151 = vset.pattern.permute.xlu0 2
    %6152 = vperm.xlu0 %6151, %v5746
    %v6153 = vpop.permute.xlu0 %6152
    %6155 = vset.pattern.permute.xlu0 2
    %6156 = vperm.xlu0 %6155, %v5747
    %v6157 = vpop.permute.xlu0 %6156
    %6159 = vset.pattern.permute.xlu0 2
    %6160 = vperm.xlu0 %6159, %v5748
    %v6161 = vpop.permute.xlu0 %6160
    %v6163 = vmul.f32 %v6133, %v6141
    %v6164 = vmul.f32 %v6127, %v6141
    %v6165 = vmul.f32 %v6134, %v6145
    %v6166 = vmul.f32 %v6128, %v6145
    %v6167 = vmul.f32 %v6135, %v6149
    %v6168 = vmul.f32 %v6129, %v6149
    %v6169 = vmul.f32 %v6136, %v6153
    %v6170 = vmul.f32 %v6130, %v6153
    %v6171 = vmul.f32 %v6137, %v6157
    %v6172 = vmul.f32 %v6131, %v6157
    %v6173 = vmul.f32 %v6138, %v6161
    %v6174 = vmul.f32 %v6132, %v6161
    %v6175 = vmul.f32 %v6163, %v5025
    %v6176 = vmul.f32 %v6164, %v5029
    %v6177 = vmul.f32 %v6165, %v5025
    %v6178 = vmul.f32 %v6166, %v5029
    %v6179 = vmul.f32 %v6167, %v5025
    %v6180 = vmul.f32 %v6168, %v5029
    %v6181 = vmul.f32 %v6169, %v5025
    %v6182 = vmul.f32 %v6170, %v5029
    %v6183 = vmul.f32 %v6171, %v5025
    %v6184 = vmul.f32 %v6172, %v5029
    %v6185 = vmul.f32 %v6173, %v5025
    %v6186 = vmul.f32 %v6174, %v5029
    %v6187 = vadd.f32 %v6091, %v6175
    %v6188 = vadd.f32 %v6092, %v6176
    %v6189 = vadd.f32 %v6093, %v6177
    %v6190 = vadd.f32 %v6094, %v6178
    %v6191 = vadd.f32 %v6095, %v6179
    %v6192 = vadd.f32 %v6096, %v6180
    %v6193 = vadd.f32 %v6097, %v6181
    %v6194 = vadd.f32 %v6098, %v6182
    %v6195 = vadd.f32 %v6099, %v6183
    %v6196 = vadd.f32 %v6100, %v6184
    %v6197 = vadd.f32 %v6101, %v6185
    %v6198 = vadd.f32 %v6102, %v6186
    %6199 = vrot.lane.b32.xlu0 %v5857, 1
    %v6200 = vpop.permute.xlu0 %6199
    %6201 = vrot.lane.b32.xlu0 %v5859, 1
    %v6202 = vpop.permute.xlu0 %6201
    %6203 = vrot.lane.b32.xlu0 %v5861, 1
    %v6204 = vpop.permute.xlu0 %6203
    %6205 = vrot.lane.b32.xlu0 %v5863, 1
    %v6206 = vpop.permute.xlu0 %6205
    %6207 = vrot.lane.b32.xlu0 %v5865, 1
    %v6208 = vpop.permute.xlu0 %6207
    %6209 = vrot.lane.b32.xlu0 %v5867, 1
    %v6210 = vpop.permute.xlu0 %6209
    %6211 = vrot.lane.b32.xlu0 %v5858, 1
    %v6212 = vpop.permute.xlu0 %6211
    %6213 = vrot.lane.b32.xlu0 %v5860, 1
    %v6214 = vpop.permute.xlu0 %6213
    %6215 = vrot.lane.b32.xlu0 %v5862, 1
    %v6216 = vpop.permute.xlu0 %6215
    %6217 = vrot.lane.b32.xlu0 %v5864, 1
    %v6218 = vpop.permute.xlu0 %6217
    %6219 = vrot.lane.b32.xlu0 %v5866, 1
    %v6220 = vpop.permute.xlu0 %6219
    %6221 = vrot.lane.b32.xlu0 %v5868, 1
    %v6222 = vpop.permute.xlu0 %6221
    %v6223 = vsel %vm619, %v6200, %v6212
    %v6224 = vsel %vm619, %v6202, %v6214
    %v6225 = vsel %vm619, %v6204, %v6216
    %v6226 = vsel %vm619, %v6206, %v6218
    %v6227 = vsel %vm619, %v6208, %v6220
    %v6228 = vsel %vm619, %v6210, %v6222
    %v6229 = vsel %vm619, %v6212, %v6200
    %v6230 = vsel %vm619, %v6214, %v6202
    %v6231 = vsel %vm619, %v6216, %v6204
    %v6232 = vsel %vm619, %v6218, %v6206
    %v6233 = vsel %vm619, %v6220, %v6208
    %v6234 = vsel %vm619, %v6222, %v6210
    %6235 = vset.pattern.permute.xlu0 3
    %6236 = vperm.xlu0 %6235, %v5743
    %v6237 = vpop.permute.xlu0 %6236
    %6239 = vset.pattern.permute.xlu0 3
    %6240 = vperm.xlu0 %6239, %v5744
    %v6241 = vpop.permute.xlu0 %6240
    %6243 = vset.pattern.permute.xlu0 3
    %6244 = vperm.xlu0 %6243, %v5745
    %v6245 = vpop.permute.xlu0 %6244
    %6247 = vset.pattern.permute.xlu0 3
    %6248 = vperm.xlu0 %6247, %v5746
    %v6249 = vpop.permute.xlu0 %6248
    %6251 = vset.pattern.permute.xlu0 3
    %6252 = vperm.xlu0 %6251, %v5747
    %v6253 = vpop.permute.xlu0 %6252
    %6255 = vset.pattern.permute.xlu0 3
    %6256 = vperm.xlu0 %6255, %v5748
    %v6257 = vpop.permute.xlu0 %6256
    %v6259 = vmul.f32 %v6229, %v6237
    %v6260 = vmul.f32 %v6223, %v6237
    %v6261 = vmul.f32 %v6230, %v6241
    %v6262 = vmul.f32 %v6224, %v6241
    %v6263 = vmul.f32 %v6231, %v6245
    %v6264 = vmul.f32 %v6225, %v6245
    %v6265 = vmul.f32 %v6232, %v6249
    %v6266 = vmul.f32 %v6226, %v6249
    %v6267 = vmul.f32 %v6233, %v6253
    %v6268 = vmul.f32 %v6227, %v6253
    %v6269 = vmul.f32 %v6234, %v6257
    %v6270 = vmul.f32 %v6228, %v6257
    %v6271 = vmul.f32 %v6259, %v5133
    %v6272 = vmul.f32 %v6260, %v5137
    %v6273 = vmul.f32 %v6261, %v5133
    %v6274 = vmul.f32 %v6262, %v5137
    %v6275 = vmul.f32 %v6263, %v5133
    %v6276 = vmul.f32 %v6264, %v5137
    %v6277 = vmul.f32 %v6265, %v5133
    %v6278 = vmul.f32 %v6266, %v5137
    %v6279 = vmul.f32 %v6267, %v5133
    %v6280 = vmul.f32 %v6268, %v5137
    %v6281 = vmul.f32 %v6269, %v5133
    %v6282 = vmul.f32 %v6270, %v5137
    %v6283 = vadd.f32 %v6187, %v6271
    %v6284 = vadd.f32 %v6188, %v6272
    %v6285 = vadd.f32 %v6189, %v6273
    %v6286 = vadd.f32 %v6190, %v6274
    %v6287 = vadd.f32 %v6191, %v6275
    %v6288 = vadd.f32 %v6192, %v6276
    %v6289 = vadd.f32 %v6193, %v6277
    %v6290 = vadd.f32 %v6194, %v6278
    %v6291 = vadd.f32 %v6195, %v6279
    %v6292 = vadd.f32 %v6196, %v6280
    %v6293 = vadd.f32 %v6197, %v6281
    %v6294 = vadd.f32 %v6198, %v6282
    %6295 = vrot.lane.b32.xlu0 %v5857, 127
    %v6296 = vpop.permute.xlu0 %6295
    %6297 = vrot.lane.b32.xlu0 %v5859, 127
    %v6298 = vpop.permute.xlu0 %6297
    %6299 = vrot.lane.b32.xlu0 %v5861, 127
    %v6300 = vpop.permute.xlu0 %6299
    %6301 = vrot.lane.b32.xlu0 %v5863, 127
    %v6302 = vpop.permute.xlu0 %6301
    %6303 = vrot.lane.b32.xlu0 %v5865, 127
    %v6304 = vpop.permute.xlu0 %6303
    %6305 = vrot.lane.b32.xlu0 %v5867, 127
    %v6306 = vpop.permute.xlu0 %6305
    %6307 = vrot.lane.b32.xlu0 %v5858, 127
    %v6308 = vpop.permute.xlu0 %6307
    %6309 = vrot.lane.b32.xlu0 %v5860, 127
    %v6310 = vpop.permute.xlu0 %6309
    %6311 = vrot.lane.b32.xlu0 %v5862, 127
    %v6312 = vpop.permute.xlu0 %6311
    %6313 = vrot.lane.b32.xlu0 %v5864, 127
    %v6314 = vpop.permute.xlu0 %6313
    %6315 = vrot.lane.b32.xlu0 %v5866, 127
    %v6316 = vpop.permute.xlu0 %6315
    %6317 = vrot.lane.b32.xlu0 %v5868, 127
    %v6318 = vpop.permute.xlu0 %6317
    %v6319 = vsel %vm729, %v6296, %v6308
    %v6320 = vsel %vm729, %v6298, %v6310
    %v6321 = vsel %vm729, %v6300, %v6312
    %v6322 = vsel %vm729, %v6302, %v6314
    %v6323 = vsel %vm729, %v6304, %v6316
    %v6324 = vsel %vm729, %v6306, %v6318
    %v6325 = vsel %vm729, %v6308, %v6296
    %v6326 = vsel %vm729, %v6310, %v6298
    %v6327 = vsel %vm729, %v6312, %v6300
    %v6328 = vsel %vm729, %v6314, %v6302
    %v6329 = vsel %vm729, %v6316, %v6304
    %v6330 = vsel %vm729, %v6318, %v6306
    %6331 = vset.pattern.permute.xlu0 5
    %6332 = vperm.xlu0 %6331, %v5743
    %v6333 = vpop.permute.xlu0 %6332
    %6335 = vset.pattern.permute.xlu0 5
    %6336 = vperm.xlu0 %6335, %v5744
    %v6337 = vpop.permute.xlu0 %6336
    %6339 = vset.pattern.permute.xlu0 5
    %6340 = vperm.xlu0 %6339, %v5745
    %v6341 = vpop.permute.xlu0 %6340
    %6343 = vset.pattern.permute.xlu0 5
    %6344 = vperm.xlu0 %6343, %v5746
    %v6345 = vpop.permute.xlu0 %6344
    %6347 = vset.pattern.permute.xlu0 5
    %6348 = vperm.xlu0 %6347, %v5747
    %v6349 = vpop.permute.xlu0 %6348
    %6351 = vset.pattern.permute.xlu0 5
    %6352 = vperm.xlu0 %6351, %v5748
    %v6353 = vpop.permute.xlu0 %6352
    %v6355 = vmul.f32 %v6319, %v6333
    %v6356 = vmul.f32 %v6325, %v6333
    %v6357 = vmul.f32 %v6320, %v6337
    %v6358 = vmul.f32 %v6326, %v6337
    %v6359 = vmul.f32 %v6321, %v6341
    %v6360 = vmul.f32 %v6327, %v6341
    %v6361 = vmul.f32 %v6322, %v6345
    %v6362 = vmul.f32 %v6328, %v6345
    %v6363 = vmul.f32 %v6323, %v6349
    %v6364 = vmul.f32 %v6329, %v6349
    %v6365 = vmul.f32 %v6324, %v6353
    %v6366 = vmul.f32 %v6330, %v6353
    %v6367 = vmul.f32 %v6355, %v5241
    %v6368 = vmul.f32 %v6356, %v5245
    %v6369 = vmul.f32 %v6357, %v5241
    %v6370 = vmul.f32 %v6358, %v5245
    %v6371 = vmul.f32 %v6359, %v5241
    %v6372 = vmul.f32 %v6360, %v5245
    %v6373 = vmul.f32 %v6361, %v5241
    %v6374 = vmul.f32 %v6362, %v5245
    %v6375 = vmul.f32 %v6363, %v5241
    %v6376 = vmul.f32 %v6364, %v5245
    %v6377 = vmul.f32 %v6365, %v5241
    %v6378 = vmul.f32 %v6366, %v5245
    %v6379 = vadd.f32 %v6283, %v6367
    %v6380 = vadd.f32 %v6284, %v6368
    %v6381 = vadd.f32 %v6285, %v6369
    %v6382 = vadd.f32 %v6286, %v6370
    %v6383 = vadd.f32 %v6287, %v6371
    %v6384 = vadd.f32 %v6288, %v6372
    %v6385 = vadd.f32 %v6289, %v6373
    %v6386 = vadd.f32 %v6290, %v6374
    %v6387 = vadd.f32 %v6291, %v6375
    %v6388 = vadd.f32 %v6292, %v6376
    %v6389 = vadd.f32 %v6293, %v6377
    %v6390 = vadd.f32 %v6294, %v6378
    %6391 = vrot.lane.b32.xlu0 %v5857, 113
    %v6392 = vpop.permute.xlu0 %6391
    %6393 = vrot.lane.b32.xlu0 %v5859, 113
    %v6394 = vpop.permute.xlu0 %6393
    %6395 = vrot.lane.b32.xlu0 %v5861, 113
    %v6396 = vpop.permute.xlu0 %6395
    %6397 = vrot.lane.b32.xlu0 %v5863, 113
    %v6398 = vpop.permute.xlu0 %6397
    %6399 = vrot.lane.b32.xlu0 %v5865, 113
    %v6400 = vpop.permute.xlu0 %6399
    %6401 = vrot.lane.b32.xlu0 %v5867, 113
    %v6402 = vpop.permute.xlu0 %6401
    %6403 = vrot.lane.b32.xlu0 %v5858, 113
    %v6404 = vpop.permute.xlu0 %6403
    %6405 = vrot.lane.b32.xlu0 %v5860, 113
    %v6406 = vpop.permute.xlu0 %6405
    %6407 = vrot.lane.b32.xlu0 %v5862, 113
    %v6408 = vpop.permute.xlu0 %6407
    %6409 = vrot.lane.b32.xlu0 %v5864, 113
    %v6410 = vpop.permute.xlu0 %6409
    %6411 = vrot.lane.b32.xlu0 %v5866, 113
    %v6412 = vpop.permute.xlu0 %6411
    %6413 = vrot.lane.b32.xlu0 %v5868, 113
    %v6414 = vpop.permute.xlu0 %6413
    %v6415 = vsel %vm839, %v6392, %v6404
    %v6416 = vsel %vm839, %v6394, %v6406
    %v6417 = vsel %vm839, %v6396, %v6408
    %v6418 = vsel %vm839, %v6398, %v6410
    %v6419 = vsel %vm839, %v6400, %v6412
    %v6420 = vsel %vm839, %v6402, %v6414
    %v6421 = vsel %vm839, %v6404, %v6392
    %v6422 = vsel %vm839, %v6406, %v6394
    %v6423 = vsel %vm839, %v6408, %v6396
    %v6424 = vsel %vm839, %v6410, %v6398
    %v6425 = vsel %vm839, %v6412, %v6400
    %v6426 = vsel %vm839, %v6414, %v6402
    %6427 = vset.pattern.permute.xlu0 6
    %6428 = vperm.xlu0 %6427, %v5743
    %v6429 = vpop.permute.xlu0 %6428
    %6431 = vset.pattern.permute.xlu0 6
    %6432 = vperm.xlu0 %6431, %v5744
    %v6433 = vpop.permute.xlu0 %6432
    %6435 = vset.pattern.permute.xlu0 6
    %6436 = vperm.xlu0 %6435, %v5745
    %v6437 = vpop.permute.xlu0 %6436
    %6439 = vset.pattern.permute.xlu0 6
    %6440 = vperm.xlu0 %6439, %v5746
    %v6441 = vpop.permute.xlu0 %6440
    %6443 = vset.pattern.permute.xlu0 6
    %6444 = vperm.xlu0 %6443, %v5747
    %v6445 = vpop.permute.xlu0 %6444
    %6447 = vset.pattern.permute.xlu0 6
    %6448 = vperm.xlu0 %6447, %v5748
    %v6449 = vpop.permute.xlu0 %6448
    %v6451 = vmul.f32 %v6415, %v6429
    %v6452 = vmul.f32 %v6421, %v6429
    %v6453 = vmul.f32 %v6416, %v6433
    %v6454 = vmul.f32 %v6422, %v6433
    %v6455 = vmul.f32 %v6417, %v6437
    %v6456 = vmul.f32 %v6423, %v6437
    %v6457 = vmul.f32 %v6418, %v6441
    %v6458 = vmul.f32 %v6424, %v6441
    %v6459 = vmul.f32 %v6419, %v6445
    %v6460 = vmul.f32 %v6425, %v6445
    %v6461 = vmul.f32 %v6420, %v6449
    %v6462 = vmul.f32 %v6426, %v6449
    %v6463 = vmul.f32 %v6451, %v5349
    %v6464 = vmul.f32 %v6452, %v5353
    %v6465 = vmul.f32 %v6453, %v5349
    %v6466 = vmul.f32 %v6454, %v5353
    %v6467 = vmul.f32 %v6455, %v5349
    %v6468 = vmul.f32 %v6456, %v5353
    %v6469 = vmul.f32 %v6457, %v5349
    %v6470 = vmul.f32 %v6458, %v5353
    %v6471 = vmul.f32 %v6459, %v5349
    %v6472 = vmul.f32 %v6460, %v5353
    %v6473 = vmul.f32 %v6461, %v5349
    %v6474 = vmul.f32 %v6462, %v5353
    %v6475 = vadd.f32 %v6379, %v6463
    %v6476 = vadd.f32 %v6380, %v6464
    %v6477 = vadd.f32 %v6381, %v6465
    %v6478 = vadd.f32 %v6382, %v6466
    %v6479 = vadd.f32 %v6383, %v6467
    %v6480 = vadd.f32 %v6384, %v6468
    %v6481 = vadd.f32 %v6385, %v6469
    %v6482 = vadd.f32 %v6386, %v6470
    %v6483 = vadd.f32 %v6387, %v6471
    %v6484 = vadd.f32 %v6388, %v6472
    %v6485 = vadd.f32 %v6389, %v6473
    %v6486 = vadd.f32 %v6390, %v6474
    %6487 = vrot.lane.b32.xlu0 %v5857, 112
    %v6488 = vpop.permute.xlu0 %6487
    %6489 = vrot.lane.b32.xlu0 %v5859, 112
    %v6490 = vpop.permute.xlu0 %6489
    %6491 = vrot.lane.b32.xlu0 %v5861, 112
    %v6492 = vpop.permute.xlu0 %6491
    %6493 = vrot.lane.b32.xlu0 %v5863, 112
    %v6494 = vpop.permute.xlu0 %6493
    %6495 = vrot.lane.b32.xlu0 %v5865, 112
    %v6496 = vpop.permute.xlu0 %6495
    %6497 = vrot.lane.b32.xlu0 %v5867, 112
    %v6498 = vpop.permute.xlu0 %6497
    %6499 = vrot.lane.b32.xlu0 %v5858, 112
    %v6500 = vpop.permute.xlu0 %6499
    %6501 = vrot.lane.b32.xlu0 %v5860, 112
    %v6502 = vpop.permute.xlu0 %6501
    %6503 = vrot.lane.b32.xlu0 %v5862, 112
    %v6504 = vpop.permute.xlu0 %6503
    %6505 = vrot.lane.b32.xlu0 %v5864, 112
    %v6506 = vpop.permute.xlu0 %6505
    %6507 = vrot.lane.b32.xlu0 %v5866, 112
    %v6508 = vpop.permute.xlu0 %6507
    %6509 = vrot.lane.b32.xlu0 %v5868, 112
    %v6510 = vpop.permute.xlu0 %6509
    %v6511 = vsel %vm949, %v6488, %v6500
    %v6512 = vsel %vm949, %v6490, %v6502
    %v6513 = vsel %vm949, %v6492, %v6504
    %v6514 = vsel %vm949, %v6494, %v6506
    %v6515 = vsel %vm949, %v6496, %v6508
    %v6516 = vsel %vm949, %v6498, %v6510
    %v6517 = vsel %vm949, %v6500, %v6488
    %v6518 = vsel %vm949, %v6502, %v6490
    %v6519 = vsel %vm949, %v6504, %v6492
    %v6520 = vsel %vm949, %v6506, %v6494
    %v6521 = vsel %vm949, %v6508, %v6496
    %v6522 = vsel %vm949, %v6510, %v6498
    %6523 = vset.pattern.permute.xlu0 7
    %6524 = vperm.xlu0 %6523, %v5743
    %v6525 = vpop.permute.xlu0 %6524
    %6527 = vset.pattern.permute.xlu0 7
    %6528 = vperm.xlu0 %6527, %v5744
    %v6529 = vpop.permute.xlu0 %6528
    %6531 = vset.pattern.permute.xlu0 7
    %6532 = vperm.xlu0 %6531, %v5745
    %v6533 = vpop.permute.xlu0 %6532
    %6535 = vset.pattern.permute.xlu0 7
    %6536 = vperm.xlu0 %6535, %v5746
    %v6537 = vpop.permute.xlu0 %6536
    %6539 = vset.pattern.permute.xlu0 7
    %6540 = vperm.xlu0 %6539, %v5747
    %v6541 = vpop.permute.xlu0 %6540
    %6543 = vset.pattern.permute.xlu0 7
    %6544 = vperm.xlu0 %6543, %v5748
    %v6545 = vpop.permute.xlu0 %6544
    %v6547 = vmul.f32 %v6511, %v6525
    %v6548 = vmul.f32 %v6517, %v6525
    %v6549 = vmul.f32 %v6512, %v6529
    %v6550 = vmul.f32 %v6518, %v6529
    %v6551 = vmul.f32 %v6513, %v6533
    %v6552 = vmul.f32 %v6519, %v6533
    %v6553 = vmul.f32 %v6514, %v6537
    %v6554 = vmul.f32 %v6520, %v6537
    %v6555 = vmul.f32 %v6515, %v6541
    %v6556 = vmul.f32 %v6521, %v6541
    %v6557 = vmul.f32 %v6516, %v6545
    %v6558 = vmul.f32 %v6522, %v6545
    %v6559 = vmul.f32 %v6547, %v5457
    %v6560 = vmul.f32 %v6548, %v5461
    %v6561 = vmul.f32 %v6549, %v5457
    %v6562 = vmul.f32 %v6550, %v5461
    %v6563 = vmul.f32 %v6551, %v5457
    %v6564 = vmul.f32 %v6552, %v5461
    %v6565 = vmul.f32 %v6553, %v5457
    %v6566 = vmul.f32 %v6554, %v5461
    %v6567 = vmul.f32 %v6555, %v5457
    %v6568 = vmul.f32 %v6556, %v5461
    %v6569 = vmul.f32 %v6557, %v5457
    %v6570 = vmul.f32 %v6558, %v5461
    %v6571 = vadd.f32 %v6475, %v6559
    %v6572 = vadd.f32 %v6476, %v6560
    %v6573 = vadd.f32 %v6477, %v6561
    %v6574 = vadd.f32 %v6478, %v6562
    %v6575 = vadd.f32 %v6479, %v6563
    %v6576 = vadd.f32 %v6480, %v6564
    %v6577 = vadd.f32 %v6481, %v6565
    %v6578 = vadd.f32 %v6482, %v6566
    %v6579 = vadd.f32 %v6483, %v6567
    %v6580 = vadd.f32 %v6484, %v6568
    %v6581 = vadd.f32 %v6485, %v6569
    %v6582 = vadd.f32 %v6486, %v6570
    %6583 = vrot.lane.b32.xlu0 %v5857, 111
    %v6584 = vpop.permute.xlu0 %6583
    %6585 = vrot.lane.b32.xlu0 %v5859, 111
    %v6586 = vpop.permute.xlu0 %6585
    %6587 = vrot.lane.b32.xlu0 %v5861, 111
    %v6588 = vpop.permute.xlu0 %6587
    %6589 = vrot.lane.b32.xlu0 %v5863, 111
    %v6590 = vpop.permute.xlu0 %6589
    %6591 = vrot.lane.b32.xlu0 %v5865, 111
    %v6592 = vpop.permute.xlu0 %6591
    %6593 = vrot.lane.b32.xlu0 %v5867, 111
    %v6594 = vpop.permute.xlu0 %6593
    %6595 = vrot.lane.b32.xlu0 %v5858, 111
    %v6596 = vpop.permute.xlu0 %6595
    %6597 = vrot.lane.b32.xlu0 %v5860, 111
    %v6598 = vpop.permute.xlu0 %6597
    %6599 = vrot.lane.b32.xlu0 %v5862, 111
    %v6600 = vpop.permute.xlu0 %6599
    %6601 = vrot.lane.b32.xlu0 %v5864, 111
    %v6602 = vpop.permute.xlu0 %6601
    %6603 = vrot.lane.b32.xlu0 %v5866, 111
    %v6604 = vpop.permute.xlu0 %6603
    %6605 = vrot.lane.b32.xlu0 %v5868, 111
    %v6606 = vpop.permute.xlu0 %6605
    %v6607 = vsel %vm1059, %v6584, %v6596
    %v6608 = vsel %vm1059, %v6586, %v6598
    %v6609 = vsel %vm1059, %v6588, %v6600
    %v6610 = vsel %vm1059, %v6590, %v6602
    %v6611 = vsel %vm1059, %v6592, %v6604
    %v6612 = vsel %vm1059, %v6594, %v6606
    %v6613 = vsel %vm1059, %v6596, %v6584
    %v6614 = vsel %vm1059, %v6598, %v6586
    %v6615 = vsel %vm1059, %v6600, %v6588
    %v6616 = vsel %vm1059, %v6602, %v6590
    %v6617 = vsel %vm1059, %v6604, %v6592
    %v6618 = vsel %vm1059, %v6606, %v6594
    %6619 = vset.pattern.permute.xlu0 8
    %6620 = vperm.xlu0 %6619, %v5743
    %v6621 = vpop.permute.xlu0 %6620
    %6623 = vset.pattern.permute.xlu0 8
    %6624 = vperm.xlu0 %6623, %v5744
    %v6625 = vpop.permute.xlu0 %6624
    %6627 = vset.pattern.permute.xlu0 8
    %6628 = vperm.xlu0 %6627, %v5745
    %v6629 = vpop.permute.xlu0 %6628
    %6631 = vset.pattern.permute.xlu0 8
    %6632 = vperm.xlu0 %6631, %v5746
    %v6633 = vpop.permute.xlu0 %6632
    %6635 = vset.pattern.permute.xlu0 8
    %6636 = vperm.xlu0 %6635, %v5747
    %v6637 = vpop.permute.xlu0 %6636
    %6639 = vset.pattern.permute.xlu0 8
    %6640 = vperm.xlu0 %6639, %v5748
    %v6641 = vpop.permute.xlu0 %6640
    %v6643 = vmul.f32 %v6607, %v6621
    %v6644 = vmul.f32 %v6613, %v6621
    %v6645 = vmul.f32 %v6608, %v6625
    %v6646 = vmul.f32 %v6614, %v6625
    %v6647 = vmul.f32 %v6609, %v6629
    %v6648 = vmul.f32 %v6615, %v6629
    %v6649 = vmul.f32 %v6610, %v6633
    %v6650 = vmul.f32 %v6616, %v6633
    %v6651 = vmul.f32 %v6611, %v6637
    %v6652 = vmul.f32 %v6617, %v6637
    %v6653 = vmul.f32 %v6612, %v6641
    %v6654 = vmul.f32 %v6618, %v6641
    %v6655 = vmul.f32 %v6643, %v5565
    %v6656 = vmul.f32 %v6644, %v5569
    %v6657 = vmul.f32 %v6645, %v5565
    %v6658 = vmul.f32 %v6646, %v5569
    %v6659 = vmul.f32 %v6647, %v5565
    %v6660 = vmul.f32 %v6648, %v5569
    %v6661 = vmul.f32 %v6649, %v5565
    %v6662 = vmul.f32 %v6650, %v5569
    %v6663 = vmul.f32 %v6651, %v5565
    %v6664 = vmul.f32 %v6652, %v5569
    %v6665 = vmul.f32 %v6653, %v5565
    %v6666 = vmul.f32 %v6654, %v5569
    %v6667 = vadd.f32 %v6571, %v6655
    %v6668 = vadd.f32 %v6572, %v6656
    %v6669 = vadd.f32 %v6573, %v6657
    %v6670 = vadd.f32 %v6574, %v6658
    %v6671 = vadd.f32 %v6575, %v6659
    %v6672 = vadd.f32 %v6576, %v6660
    %v6673 = vadd.f32 %v6577, %v6661
    %v6674 = vadd.f32 %v6578, %v6662
    %v6675 = vadd.f32 %v6579, %v6663
    %v6676 = vadd.f32 %v6580, %v6664
    %v6677 = vadd.f32 %v6581, %v6665
    %v6678 = vadd.f32 %v6582, %v6666
    %v6679 = vmax.f32 %v6667, 0.0
    %v6680 = vmax.f32 %v6668, 0.0
    %v6681 = vmax.f32 %v6669, 0.0
    %v6682 = vmax.f32 %v6670, 0.0
    %v6683 = vmax.f32 %v6671, 0.0
    %v6684 = vmax.f32 %v6672, 0.0
    %v6685 = vmax.f32 %v6673, 0.0
    %v6686 = vmax.f32 %v6674, 0.0
    %v6687 = vmax.f32 %v6675, 0.0
    %v6688 = vmax.f32 %v6676, 0.0
    %v6689 = vmax.f32 %v6677, 0.0
    %v6690 = vmax.f32 %v6678, 0.0
    %v6691 = vmin.f32 %v6679, 6.0
    %v6692 = vmin.f32 %v6680, 6.0
    %v6693 = vmin.f32 %v6681, 6.0
    %v6694 = vmin.f32 %v6682, 6.0
    %v6695 = vmin.f32 %v6683, 6.0
    %v6696 = vmin.f32 %v6684, 6.0
    %v6697 = vmin.f32 %v6685, 6.0
    %v6698 = vmin.f32 %v6686, 6.0
    %v6699 = vmin.f32 %v6687, 6.0
    %v6700 = vmin.f32 %v6688, 6.0
    %v6701 = vmin.f32 %v6689, 6.0
    %v6702 = vmin.f32 %v6690, 6.0
    %v6703 = vpack.c.bf16 %v6693, %v6691
    %v6704 = vpack.c.bf16 %v6694, %v6692
    %v6705 = vpack.c.bf16 %v6697, %v6695
    %v6706 = vpack.c.bf16 %v6698, %v6696
    %v6707 = vpack.c.bf16 %v6701, %v6699
    %v6708 = vpack.c.bf16 %v6702, %v6700
    %v6710 = vsel %vm1175, %v5749, 0
    %6712 = vmatprep.subr.bf16.mxu0 0
    %6713 = vmatpush1.bf16.msra.mxu0 0
    %6714 = vmatprep.subr.bf16.mxu0 0
    %6715 = vmatpush1.bf16.msra.mxu0 0
    %6716 = vmatprep.subr.bf16.mxu0 0
    %6717 = vmatpush1.bf16.msra.mxu0 0
    %6718 = vmatprep.subr.bf16.mxu0 0
    %6719 = vmatpush1.bf16.msra.mxu0 0
    %6720 = vmatprep.subr.bf16.mxu0 0
    %6721 = vmatpush1.bf16.msra.mxu0 0
    %6722 = vmatprep.subr.bf16.mxu0 %v6708
    %6723 = vmatpush1.bf16.msra.mxu0 %v6707
    %6724 = vmatprep.subr.bf16.mxu0 %v6706
    %6725 = vmatpush1.bf16.msra.mxu0 %v6705
    %6726 = vmatprep.subr.bf16.mxu0 %v6704
    %6727 = vmatpush1.bf16.msra.mxu0 %v6703
    %6728 = vmatprep.subr.bf16.mxu0 0
    %6729 = vmatpush2.bf16.msra.mxu0 0
    %6730 = vmatprep.subr.bf16.mxu0 0
    %6731 = vmatpush2.bf16.msra.mxu0 0
    %6732 = vmatprep.subr.bf16.mxu0 0
    %6733 = vmatpush2.bf16.msra.mxu0 0
    %6734 = vmatprep.subr.bf16.mxu0 0
    %6735 = vmatpush2.bf16.msra.mxu0 0
    %6736 = vmatprep.subr.bf16.mxu0 0
    %6737 = vmatpush2.bf16.msra.mxu0 0
    %6738 = vmatprep.subr.bf16.mxu0 0
    %6739 = vmatpush2.bf16.msra.mxu0 0
    %6740 = vmatprep.subr.bf16.mxu0 0
    %6741 = vmatpush2.bf16.msra.mxu0 0
    %6742 = vmatprep.subr.bf16.mxu0 0
    %6743 = vmatpush2.bf16.msra.mxu0 0
    %6744 = vmatprep.mubr.bf16.mxu0 0
    %6745 = vmatmul.mubr.bf16.gmra.mxu0 %v6710
    %v6746 = vpop.f32.mrf.mxu0
    %v6747 = vadd.f32 0.0, %v6746
    %v6748 = vpop.f32.mrf.mxu0
    %v6749 = vadd.f32 0.0, %v6748
    %v6750 = vpop.f32.mrf.mxu0
    %v6751 = vpop.f32.mrf.mxu0
    %6752 = vdwg.mxu0
    %v6753 = vadd.f32 %v5735, %v6747
    %v6754 = vadd.f32 %v5736, %v6749
    %v6755 = vld [vmem:[%s2309] sm:$0xf]
    %v6756 = vld [vmem:[%s2311] sm:$0xff]
    %v6757 = vpack.c.bf16 %v6753, %v6753
    %v6758 = vpack.c.bf16 %v6754, %v6754
    %6760 = vset.pattern.permute.xlu0 0
    %6761 = vperm.xlu0 %6760, %v6756
    %v6762 = vpop.permute.xlu0 %6761
    %v6765 = vsel %vm2320, %v6755, 0
    %v6768 = vsel %vm128, %v6757, 0
    %v6771 = vsel %vm128, %v6758, 0
    %6773 = vmatprep.subr.bf16.mxu0 0
    %6774 = vmatpush1.bf16.msra.mxu0 0
    %6775 = vmatprep.subr.bf16.mxu0 0
    %6776 = vmatpush1.bf16.msra.mxu0 0
    %6777 = vmatprep.subr.bf16.mxu0 0
    %6778 = vmatpush1.bf16.msra.mxu0 0
    %6779 = vmatprep.subr.bf16.mxu0 0
    %6780 = vmatpush1.bf16.msra.mxu0 0
    %6781 = vmatprep.subr.bf16.mxu0 0
    %6782 = vmatpush1.bf16.msra.mxu0 0
    %6783 = vmatprep.subr.bf16.mxu0 0
    %6784 = vmatpush1.bf16.msra.mxu0 0
    %6785 = vmatprep.subr.bf16.mxu0 %v6771
    %6786 = vmatpush1.bf16.msra.mxu0 %v6768
    %6787 = vmatprep.subr.bf16.mxu0 %v5684
    %6788 = vmatpush1.bf16.msra.mxu0 %v5681
    %6789 = vmatprep.subr.bf16.mxu0 0
    %6790 = vmatpush2.bf16.msra.mxu0 0
    %6791 = vmatprep.subr.bf16.mxu0 0
    %6792 = vmatpush2.bf16.msra.mxu0 0
    %6793 = vmatprep.subr.bf16.mxu0 0
    %6794 = vmatpush2.bf16.msra.mxu0 0
    %6795 = vmatprep.subr.bf16.mxu0 0
    %6796 = vmatpush2.bf16.msra.mxu0 0
    %6797 = vmatprep.subr.bf16.mxu0 0
    %6798 = vmatpush2.bf16.msra.mxu0 0
    %6799 = vmatprep.subr.bf16.mxu0 0
    %6800 = vmatpush2.bf16.msra.mxu0 0
    %6801 = vmatprep.subr.bf16.mxu0 0
    %6802 = vmatpush2.bf16.msra.mxu0 0
    %6803 = vmatprep.subr.bf16.mxu0 0
    %6804 = vmatpush2.bf16.msra.mxu0 0
    %6805 = vmatprep.mubr.bf16.mxu0 0
    %6806 = vmatmul.mubr.bf16.gmra.mxu0 %v6765
    %v6807 = vpop.f32.mrf.mxu0
    %v6808 = vadd.f32 %v6762, %v6807
    %v6809 = vpop.f32.mrf.mxu0
    %v6810 = vadd.f32 %v6762, %v6809
    %v6811 = vpop.f32.mrf.mxu0
    %v6812 = vpop.f32.mrf.mxu0
    %6813 = vdwg.mxu0
    %v6814 = vmax.f32 %v6808, 0.0
    %v6815 = vmax.f32 %v6810, 0.0
    %v6816 = vld [vmem:[%s2373] sm:$0xf]
    %v6817 = vld [vmem:[%s2373 + $0x4] sm:$0xf]
    %v6818 = vld [vmem:[%s2373 + $0x8] sm:$0xf]
    %v6819 = vld [vmem:[%s2373 + $0xc] sm:$0xf]
    %v6820 = vld [vmem:[%s2373 + $0x10] sm:$0xf]
    %v6821 = vld [vmem:[%s2373 + $0x14] sm:$0xf]
    %v6822 = vld [vmem:[%s2380] sm:$0xff]
    %v6823 = vld [vmem:[%s2380 + $0x8] sm:$0xff]
    %v6824 = vld [vmem:[%s2380 + $0x10] sm:$0xff]
    %v6825 = vld [vmem:[%s2380 + $0x18] sm:$0xff]
    %v6826 = vld [vmem:[%s2380 + $0x20] sm:$0xff]
    %v6827 = vld [vmem:[%s2380 + $0x28] sm:$0xff]
    %v6828 = vld [vmem:[%s2387] sm:$0xf]
    %v6829 = vpack.c.bf16 %v6814, %v6814
    %v6830 = vpack.c.bf16 %v6815, %v6815
    %v6837 = vunpack.c.l.b16 %v6816
    %v6838 = vunpack.c.l.b16 %v6817
    %v6839 = vunpack.c.l.b16 %v6818
    %v6840 = vunpack.c.l.b16 %v6819
    %v6841 = vunpack.c.l.b16 %v6820
    %v6842 = vunpack.c.l.b16 %v6821
    %v6843 = vpack.c.b16 %v6838, %v6837
    %v6844 = vpack.c.b16 %v6840, %v6839
    %v6845 = vpack.c.b16 %v6842, %v6841
    %v6847 = vsel %vm118, %v6843, 0
    %v6850 = vsel %vm118, %v6844, 0
    %v6853 = vsel %vm118, %v6845, 0
    %v6856 = vsel %vm128, %v6829, 0
    %v6859 = vsel %vm128, %v6830, 0
    %6861 = vmatprep.subr.bf16.mxu0 0
    %6862 = vmatpush1.bf16.msra.mxu0 0
    %6863 = vmatprep.subr.bf16.mxu0 0
    %6864 = vmatpush1.bf16.msra.mxu0 0
    %6865 = vmatprep.subr.bf16.mxu0 0
    %6866 = vmatpush1.bf16.msra.mxu0 0
    %6867 = vmatprep.subr.bf16.mxu0 0
    %6868 = vmatpush1.bf16.msra.mxu0 0
    %6869 = vmatprep.subr.bf16.mxu0 0
    %6870 = vmatpush1.bf16.msra.mxu0 0
    %6871 = vmatprep.subr.bf16.mxu0 0
    %6872 = vmatpush1.bf16.msra.mxu0 0
    %6873 = vmatprep.subr.bf16.mxu0 0
    %6874 = vmatpush1.bf16.msra.mxu0 0
    %6875 = vmatprep.subr.bf16.mxu0 %v6859
    %6876 = vmatpush1.bf16.msra.mxu0 %v6856
    %6877 = vmatprep.subr.bf16.mxu0 0
    %6878 = vmatpush2.bf16.msra.mxu0 0
    %6879 = vmatprep.subr.bf16.mxu0 0
    %6880 = vmatpush2.bf16.msra.mxu0 0
    %6881 = vmatprep.subr.bf16.mxu0 0
    %6882 = vmatpush2.bf16.msra.mxu0 0
    %6883 = vmatprep.subr.bf16.mxu0 0
    %6884 = vmatpush2.bf16.msra.mxu0 0
    %6885 = vmatprep.subr.bf16.mxu0 0
    %6886 = vmatpush2.bf16.msra.mxu0 0
    %6887 = vmatprep.subr.bf16.mxu0 0
    %6888 = vmatpush2.bf16.msra.mxu0 0
    %6889 = vmatprep.subr.bf16.mxu0 0
    %6890 = vmatpush2.bf16.msra.mxu0 0
    %6891 = vmatprep.subr.bf16.mxu0 0
    %6892 = vmatpush2.bf16.msra.mxu0 0
    %6893 = vmatprep.mubr.bf16.mxu0 0
    %6894 = vmatmul.mubr.bf16.gmra.mxu0 %v6847
    %v6895 = vpop.f32.mrf.mxu0
    %v6896 = vadd.f32 0.0, %v6895
    %v6897 = vpop.f32.mrf.mxu0
    %v6898 = vadd.f32 0.0, %v6897
    %v6899 = vpop.f32.mrf.mxu0
    %v6900 = vadd.f32 0.0, %v6899
    %v6901 = vpop.f32.mrf.mxu0
    %v6902 = vadd.f32 0.0, %v6901
    %6903 = vmatprep.mubr.bf16.mxu0 0
    %6904 = vmatmul.mubr.bf16.gmra.mxu0 %v6850
    %v6905 = vpop.f32.mrf.mxu0
    %v6906 = vadd.f32 0.0, %v6905
    %v6907 = vpop.f32.mrf.mxu0
    %v6908 = vadd.f32 0.0, %v6907
    %v6909 = vpop.f32.mrf.mxu0
    %v6910 = vadd.f32 0.0, %v6909
    %v6911 = vpop.f32.mrf.mxu0
    %v6912 = vadd.f32 0.0, %v6911
    %6913 = vmatprep.mubr.bf16.mxu0 0
    %6914 = vmatmul.mubr.bf16.gmra.mxu0 %v6853
    %v6915 = vpop.f32.mrf.mxu0
    %v6916 = vadd.f32 0.0, %v6915
    %v6917 = vpop.f32.mrf.mxu0
    %v6918 = vadd.f32 0.0, %v6917
    %v6919 = vpop.f32.mrf.mxu0
    %v6920 = vadd.f32 0.0, %v6919
    %v6921 = vpop.f32.mrf.mxu0
    %v6922 = vadd.f32 0.0, %v6921
    %6923 = vdwg.mxu0
    %v6924 = vmax.f32 %v6896, 0.0
    %v6925 = vmax.f32 %v6898, 0.0
    %v6926 = vmax.f32 %v6900, 0.0
    %v6927 = vmax.f32 %v6902, 0.0
    %v6928 = vmax.f32 %v6906, 0.0
    %v6929 = vmax.f32 %v6908, 0.0
    %v6930 = vmax.f32 %v6910, 0.0
    %v6931 = vmax.f32 %v6912, 0.0
    %v6932 = vmax.f32 %v6916, 0.0
    %v6933 = vmax.f32 %v6918, 0.0
    %v6934 = vmax.f32 %v6920, 0.0
    %v6935 = vmax.f32 %v6922, 0.0
    %v6936 = vmin.f32 %v6924, 6.0
    %v6937 = vmin.f32 %v6925, 6.0
    %v6938 = vmin.f32 %v6926, 6.0
    %v6939 = vmin.f32 %v6927, 6.0
    %v6940 = vmin.f32 %v6928, 6.0
    %v6941 = vmin.f32 %v6929, 6.0
    %v6942 = vmin.f32 %v6930, 6.0
    %v6943 = vmin.f32 %v6931, 6.0
    %v6944 = vmin.f32 %v6932, 6.0
    %v6945 = vmin.f32 %v6933, 6.0
    %v6946 = vmin.f32 %v6934, 6.0
    %v6947 = vmin.f32 %v6935, 6.0
    %6949 = vset.pattern.permute.xlu0 4
    %6950 = vperm.xlu0 %6949, %v6822
    %v6951 = vpop.permute.xlu0 %6950
    %6954 = vset.pattern.permute.xlu0 4
    %6955 = vperm.xlu0 %6954, %v6823
    %v6956 = vpop.permute.xlu0 %6955
    %6959 = vset.pattern.permute.xlu0 4
    %6960 = vperm.xlu0 %6959, %v6824
    %v6961 = vpop.permute.xlu0 %6960
    %6964 = vset.pattern.permute.xlu0 4
    %6965 = vperm.xlu0 %6964, %v6825
    %v6966 = vpop.permute.xlu0 %6965
    %6969 = vset.pattern.permute.xlu0 4
    %6970 = vperm.xlu0 %6969, %v6826
    %v6971 = vpop.permute.xlu0 %6970
    %6974 = vset.pattern.permute.xlu0 4
    %6975 = vperm.xlu0 %6974, %v6827
    %v6976 = vpop.permute.xlu0 %6975
    %v6978 = vmul.f32 %v6936, %v6951
    %v6979 = vmul.f32 %v6937, %v6951
    %v6980 = vmul.f32 %v6938, %v6956
    %v6981 = vmul.f32 %v6939, %v6956
    %v6982 = vmul.f32 %v6940, %v6961
    %v6983 = vmul.f32 %v6941, %v6961
    %v6984 = vmul.f32 %v6942, %v6966
    %v6985 = vmul.f32 %v6943, %v6966
    %v6986 = vmul.f32 %v6944, %v6971
    %v6987 = vmul.f32 %v6945, %v6971
    %v6988 = vmul.f32 %v6946, %v6976
    %v6989 = vmul.f32 %v6947, %v6976
    %6990 = vrot.lane.b32.xlu0 %v6936, 17
    %v6991 = vpop.permute.xlu0 %6990
    %6992 = vrot.lane.b32.xlu0 %v6938, 17
    %v6993 = vpop.permute.xlu0 %6992
    %6994 = vrot.lane.b32.xlu0 %v6940, 17
    %v6995 = vpop.permute.xlu0 %6994
    %6996 = vrot.lane.b32.xlu0 %v6942, 17
    %v6997 = vpop.permute.xlu0 %6996
    %6998 = vrot.lane.b32.xlu0 %v6944, 17
    %v6999 = vpop.permute.xlu0 %6998
    %7000 = vrot.lane.b32.xlu0 %v6946, 17
    %v7001 = vpop.permute.xlu0 %7000
    %7002 = vrot.lane.b32.xlu0 %v6937, 17
    %v7003 = vpop.permute.xlu0 %7002
    %7004 = vrot.lane.b32.xlu0 %v6939, 17
    %v7005 = vpop.permute.xlu0 %7004
    %7006 = vrot.lane.b32.xlu0 %v6941, 17
    %v7007 = vpop.permute.xlu0 %7006
    %7008 = vrot.lane.b32.xlu0 %v6943, 17
    %v7009 = vpop.permute.xlu0 %7008
    %7010 = vrot.lane.b32.xlu0 %v6945, 17
    %v7011 = vpop.permute.xlu0 %7010
    %7012 = vrot.lane.b32.xlu0 %v6947, 17
    %v7013 = vpop.permute.xlu0 %7012
    %v7014 = vsel %vm290, %v6991, %v7003
    %v7015 = vsel %vm290, %v6993, %v7005
    %v7016 = vsel %vm290, %v6995, %v7007
    %v7017 = vsel %vm290, %v6997, %v7009
    %v7018 = vsel %vm290, %v6999, %v7011
    %v7019 = vsel %vm290, %v7001, %v7013
    %v7020 = vsel %vm290, %v7003, %v6991
    %v7021 = vsel %vm290, %v7005, %v6993
    %v7022 = vsel %vm290, %v7007, %v6995
    %v7023 = vsel %vm290, %v7009, %v6997
    %v7024 = vsel %vm290, %v7011, %v6999
    %v7025 = vsel %vm290, %v7013, %v7001
    %7026 = vset.pattern.permute.xlu0 0
    %7027 = vperm.xlu0 %7026, %v6822
    %v7028 = vpop.permute.xlu0 %7027
    %7030 = vset.pattern.permute.xlu0 0
    %7031 = vperm.xlu0 %7030, %v6823
    %v7032 = vpop.permute.xlu0 %7031
    %7034 = vset.pattern.permute.xlu0 0
    %7035 = vperm.xlu0 %7034, %v6824
    %v7036 = vpop.permute.xlu0 %7035
    %7038 = vset.pattern.permute.xlu0 0
    %7039 = vperm.xlu0 %7038, %v6825
    %v7040 = vpop.permute.xlu0 %7039
    %7042 = vset.pattern.permute.xlu0 0
    %7043 = vperm.xlu0 %7042, %v6826
    %v7044 = vpop.permute.xlu0 %7043
    %7046 = vset.pattern.permute.xlu0 0
    %7047 = vperm.xlu0 %7046, %v6827
    %v7048 = vpop.permute.xlu0 %7047
    %v7050 = vmul.f32 %v7020, %v7028
    %v7051 = vmul.f32 %v7014, %v7028
    %v7052 = vmul.f32 %v7021, %v7032
    %v7053 = vmul.f32 %v7015, %v7032
    %v7054 = vmul.f32 %v7022, %v7036
    %v7055 = vmul.f32 %v7016, %v7036
    %v7056 = vmul.f32 %v7023, %v7040
    %v7057 = vmul.f32 %v7017, %v7040
    %v7058 = vmul.f32 %v7024, %v7044
    %v7059 = vmul.f32 %v7018, %v7044
    %v7060 = vmul.f32 %v7025, %v7048
    %v7061 = vmul.f32 %v7019, %v7048
    %v7062 = vmul.f32 %v7050, %v4809
    %v7063 = vmul.f32 %v7051, %v4813
    %v7064 = vmul.f32 %v7052, %v4809
    %v7065 = vmul.f32 %v7053, %v4813
    %v7066 = vmul.f32 %v7054, %v4809
    %v7067 = vmul.f32 %v7055, %v4813
    %v7068 = vmul.f32 %v7056, %v4809
    %v7069 = vmul.f32 %v7057, %v4813
    %v7070 = vmul.f32 %v7058, %v4809
    %v7071 = vmul.f32 %v7059, %v4813
    %v7072 = vmul.f32 %v7060, %v4809
    %v7073 = vmul.f32 %v7061, %v4813
    %v7074 = vadd.f32 %v6978, %v7062
    %v7075 = vadd.f32 %v6979, %v7063
    %v7076 = vadd.f32 %v6980, %v7064
    %v7077 = vadd.f32 %v6981, %v7065
    %v7078 = vadd.f32 %v6982, %v7066
    %v7079 = vadd.f32 %v6983, %v7067
    %v7080 = vadd.f32 %v6984, %v7068
    %v7081 = vadd.f32 %v6985, %v7069
    %v7082 = vadd.f32 %v6986, %v7070
    %v7083 = vadd.f32 %v6987, %v7071
    %v7084 = vadd.f32 %v6988, %v7072
    %v7085 = vadd.f32 %v6989, %v7073
    %7086 = vrot.lane.b32.xlu0 %v6936, 16
    %v7087 = vpop.permute.xlu0 %7086
    %7088 = vrot.lane.b32.xlu0 %v6938, 16
    %v7089 = vpop.permute.xlu0 %7088
    %7090 = vrot.lane.b32.xlu0 %v6940, 16
    %v7091 = vpop.permute.xlu0 %7090
    %7092 = vrot.lane.b32.xlu0 %v6942, 16
    %v7093 = vpop.permute.xlu0 %7092
    %7094 = vrot.lane.b32.xlu0 %v6944, 16
    %v7095 = vpop.permute.xlu0 %7094
    %7096 = vrot.lane.b32.xlu0 %v6946, 16
    %v7097 = vpop.permute.xlu0 %7096
    %7098 = vrot.lane.b32.xlu0 %v6937, 16
    %v7099 = vpop.permute.xlu0 %7098
    %7100 = vrot.lane.b32.xlu0 %v6939, 16
    %v7101 = vpop.permute.xlu0 %7100
    %7102 = vrot.lane.b32.xlu0 %v6941, 16
    %v7103 = vpop.permute.xlu0 %7102
    %7104 = vrot.lane.b32.xlu0 %v6943, 16
    %v7105 = vpop.permute.xlu0 %7104
    %7106 = vrot.lane.b32.xlu0 %v6945, 16
    %v7107 = vpop.permute.xlu0 %7106
    %7108 = vrot.lane.b32.xlu0 %v6947, 16
    %v7109 = vpop.permute.xlu0 %7108
    %v7110 = vsel %vm399, %v7087, %v7099
    %v7111 = vsel %vm399, %v7089, %v7101
    %v7112 = vsel %vm399, %v7091, %v7103
    %v7113 = vsel %vm399, %v7093, %v7105
    %v7114 = vsel %vm399, %v7095, %v7107
    %v7115 = vsel %vm399, %v7097, %v7109
    %v7116 = vsel %vm399, %v7099, %v7087
    %v7117 = vsel %vm399, %v7101, %v7089
    %v7118 = vsel %vm399, %v7103, %v7091
    %v7119 = vsel %vm399, %v7105, %v7093
    %v7120 = vsel %vm399, %v7107, %v7095
    %v7121 = vsel %vm399, %v7109, %v7097
    %7122 = vset.pattern.permute.xlu0 1
    %7123 = vperm.xlu0 %7122, %v6822
    %v7124 = vpop.permute.xlu0 %7123
    %7126 = vset.pattern.permute.xlu0 1
    %7127 = vperm.xlu0 %7126, %v6823
    %v7128 = vpop.permute.xlu0 %7127
    %7130 = vset.pattern.permute.xlu0 1
    %7131 = vperm.xlu0 %7130, %v6824
    %v7132 = vpop.permute.xlu0 %7131
    %7134 = vset.pattern.permute.xlu0 1
    %7135 = vperm.xlu0 %7134, %v6825
    %v7136 = vpop.permute.xlu0 %7135
    %7138 = vset.pattern.permute.xlu0 1
    %7139 = vperm.xlu0 %7138, %v6826
    %v7140 = vpop.permute.xlu0 %7139
    %7142 = vset.pattern.permute.xlu0 1
    %7143 = vperm.xlu0 %7142, %v6827
    %v7144 = vpop.permute.xlu0 %7143
    %v7146 = vmul.f32 %v7116, %v7124
    %v7147 = vmul.f32 %v7110, %v7124
    %v7148 = vmul.f32 %v7117, %v7128
    %v7149 = vmul.f32 %v7111, %v7128
    %v7150 = vmul.f32 %v7118, %v7132
    %v7151 = vmul.f32 %v7112, %v7132
    %v7152 = vmul.f32 %v7119, %v7136
    %v7153 = vmul.f32 %v7113, %v7136
    %v7154 = vmul.f32 %v7120, %v7140
    %v7155 = vmul.f32 %v7114, %v7140
    %v7156 = vmul.f32 %v7121, %v7144
    %v7157 = vmul.f32 %v7115, %v7144
    %v7158 = vmul.f32 %v7146, %v4917
    %v7159 = vmul.f32 %v7147, %v4921
    %v7160 = vmul.f32 %v7148, %v4917
    %v7161 = vmul.f32 %v7149, %v4921
    %v7162 = vmul.f32 %v7150, %v4917
    %v7163 = vmul.f32 %v7151, %v4921
    %v7164 = vmul.f32 %v7152, %v4917
    %v7165 = vmul.f32 %v7153, %v4921
    %v7166 = vmul.f32 %v7154, %v4917
    %v7167 = vmul.f32 %v7155, %v4921
    %v7168 = vmul.f32 %v7156, %v4917
    %v7169 = vmul.f32 %v7157, %v4921
    %v7170 = vadd.f32 %v7074, %v7158
    %v7171 = vadd.f32 %v7075, %v7159
    %v7172 = vadd.f32 %v7076, %v7160
    %v7173 = vadd.f32 %v7077, %v7161
    %v7174 = vadd.f32 %v7078, %v7162
    %v7175 = vadd.f32 %v7079, %v7163
    %v7176 = vadd.f32 %v7080, %v7164
    %v7177 = vadd.f32 %v7081, %v7165
    %v7178 = vadd.f32 %v7082, %v7166
    %v7179 = vadd.f32 %v7083, %v7167
    %v7180 = vadd.f32 %v7084, %v7168
    %v7181 = vadd.f32 %v7085, %v7169
    %7182 = vrot.lane.b32.xlu0 %v6936, 15
    %v7183 = vpop.permute.xlu0 %7182
    %7184 = vrot.lane.b32.xlu0 %v6938, 15
    %v7185 = vpop.permute.xlu0 %7184
    %7186 = vrot.lane.b32.xlu0 %v6940, 15
    %v7187 = vpop.permute.xlu0 %7186
    %7188 = vrot.lane.b32.xlu0 %v6942, 15
    %v7189 = vpop.permute.xlu0 %7188
    %7190 = vrot.lane.b32.xlu0 %v6944, 15
    %v7191 = vpop.permute.xlu0 %7190
    %7192 = vrot.lane.b32.xlu0 %v6946, 15
    %v7193 = vpop.permute.xlu0 %7192
    %7194 = vrot.lane.b32.xlu0 %v6937, 15
    %v7195 = vpop.permute.xlu0 %7194
    %7196 = vrot.lane.b32.xlu0 %v6939, 15
    %v7197 = vpop.permute.xlu0 %7196
    %7198 = vrot.lane.b32.xlu0 %v6941, 15
    %v7199 = vpop.permute.xlu0 %7198
    %7200 = vrot.lane.b32.xlu0 %v6943, 15
    %v7201 = vpop.permute.xlu0 %7200
    %7202 = vrot.lane.b32.xlu0 %v6945, 15
    %v7203 = vpop.permute.xlu0 %7202
    %7204 = vrot.lane.b32.xlu0 %v6947, 15
    %v7205 = vpop.permute.xlu0 %7204
    %v7206 = vsel %vm509, %v7183, %v7195
    %v7207 = vsel %vm509, %v7185, %v7197
    %v7208 = vsel %vm509, %v7187, %v7199
    %v7209 = vsel %vm509, %v7189, %v7201
    %v7210 = vsel %vm509, %v7191, %v7203
    %v7211 = vsel %vm509, %v7193, %v7205
    %v7212 = vsel %vm509, %v7195, %v7183
    %v7213 = vsel %vm509, %v7197, %v7185
    %v7214 = vsel %vm509, %v7199, %v7187
    %v7215 = vsel %vm509, %v7201, %v7189
    %v7216 = vsel %vm509, %v7203, %v7191
    %v7217 = vsel %vm509, %v7205, %v7193
    %7218 = vset.pattern.permute.xlu0 2
    %7219 = vperm.xlu0 %7218, %v6822
    %v7220 = vpop.permute.xlu0 %7219
    %7222 = vset.pattern.permute.xlu0 2
    %7223 = vperm.xlu0 %7222, %v6823
    %v7224 = vpop.permute.xlu0 %7223
    %7226 = vset.pattern.permute.xlu0 2
    %7227 = vperm.xlu0 %7226, %v6824
    %v7228 = vpop.permute.xlu0 %7227
    %7230 = vset.pattern.permute.xlu0 2
    %7231 = vperm.xlu0 %7230, %v6825
    %v7232 = vpop.permute.xlu0 %7231
    %7234 = vset.pattern.permute.xlu0 2
    %7235 = vperm.xlu0 %7234, %v6826
    %v7236 = vpop.permute.xlu0 %7235
    %7238 = vset.pattern.permute.xlu0 2
    %7239 = vperm.xlu0 %7238, %v6827
    %v7240 = vpop.permute.xlu0 %7239
    %v7242 = vmul.f32 %v7212, %v7220
    %v7243 = vmul.f32 %v7206, %v7220
    %v7244 = vmul.f32 %v7213, %v7224
    %v7245 = vmul.f32 %v7207, %v7224
    %v7246 = vmul.f32 %v7214, %v7228
    %v7247 = vmul.f32 %v7208, %v7228
    %v7248 = vmul.f32 %v7215, %v7232
    %v7249 = vmul.f32 %v7209, %v7232
    %v7250 = vmul.f32 %v7216, %v7236
    %v7251 = vmul.f32 %v7210, %v7236
    %v7252 = vmul.f32 %v7217, %v7240
    %v7253 = vmul.f32 %v7211, %v7240
    %v7254 = vmul.f32 %v7242, %v5025
    %v7255 = vmul.f32 %v7243, %v5029
    %v7256 = vmul.f32 %v7244, %v5025
    %v7257 = vmul.f32 %v7245, %v5029
    %v7258 = vmul.f32 %v7246, %v5025
    %v7259 = vmul.f32 %v7247, %v5029
    %v7260 = vmul.f32 %v7248, %v5025
    %v7261 = vmul.f32 %v7249, %v5029
    %v7262 = vmul.f32 %v7250, %v5025
    %v7263 = vmul.f32 %v7251, %v5029
    %v7264 = vmul.f32 %v7252, %v5025
    %v7265 = vmul.f32 %v7253, %v5029
    %v7266 = vadd.f32 %v7170, %v7254
    %v7267 = vadd.f32 %v7171, %v7255
    %v7268 = vadd.f32 %v7172, %v7256
    %v7269 = vadd.f32 %v7173, %v7257
    %v7270 = vadd.f32 %v7174, %v7258
    %v7271 = vadd.f32 %v7175, %v7259
    %v7272 = vadd.f32 %v7176, %v7260
    %v7273 = vadd.f32 %v7177, %v7261
    %v7274 = vadd.f32 %v7178, %v7262
    %v7275 = vadd.f32 %v7179, %v7263
    %v7276 = vadd.f32 %v7180, %v7264
    %v7277 = vadd.f32 %v7181, %v7265
    %7278 = vrot.lane.b32.xlu0 %v6936, 1
    %v7279 = vpop.permute.xlu0 %7278
    %7280 = vrot.lane.b32.xlu0 %v6938, 1
    %v7281 = vpop.permute.xlu0 %7280
    %7282 = vrot.lane.b32.xlu0 %v6940, 1
    %v7283 = vpop.permute.xlu0 %7282
    %7284 = vrot.lane.b32.xlu0 %v6942, 1
    %v7285 = vpop.permute.xlu0 %7284
    %7286 = vrot.lane.b32.xlu0 %v6944, 1
    %v7287 = vpop.permute.xlu0 %7286
    %7288 = vrot.lane.b32.xlu0 %v6946, 1
    %v7289 = vpop.permute.xlu0 %7288
    %7290 = vrot.lane.b32.xlu0 %v6937, 1
    %v7291 = vpop.permute.xlu0 %7290
    %7292 = vrot.lane.b32.xlu0 %v6939, 1
    %v7293 = vpop.permute.xlu0 %7292
    %7294 = vrot.lane.b32.xlu0 %v6941, 1
    %v7295 = vpop.permute.xlu0 %7294
    %7296 = vrot.lane.b32.xlu0 %v6943, 1
    %v7297 = vpop.permute.xlu0 %7296
    %7298 = vrot.lane.b32.xlu0 %v6945, 1
    %v7299 = vpop.permute.xlu0 %7298
    %7300 = vrot.lane.b32.xlu0 %v6947, 1
    %v7301 = vpop.permute.xlu0 %7300
    %v7302 = vsel %vm619, %v7279, %v7291
    %v7303 = vsel %vm619, %v7281, %v7293
    %v7304 = vsel %vm619, %v7283, %v7295
    %v7305 = vsel %vm619, %v7285, %v7297
    %v7306 = vsel %vm619, %v7287, %v7299
    %v7307 = vsel %vm619, %v7289, %v7301
    %v7308 = vsel %vm619, %v7291, %v7279
    %v7309 = vsel %vm619, %v7293, %v7281
    %v7310 = vsel %vm619, %v7295, %v7283
    %v7311 = vsel %vm619, %v7297, %v7285
    %v7312 = vsel %vm619, %v7299, %v7287
    %v7313 = vsel %vm619, %v7301, %v7289
    %7314 = vset.pattern.permute.xlu0 3
    %7315 = vperm.xlu0 %7314, %v6822
    %v7316 = vpop.permute.xlu0 %7315
    %7318 = vset.pattern.permute.xlu0 3
    %7319 = vperm.xlu0 %7318, %v6823
    %v7320 = vpop.permute.xlu0 %7319
    %7322 = vset.pattern.permute.xlu0 3
    %7323 = vperm.xlu0 %7322, %v6824
    %v7324 = vpop.permute.xlu0 %7323
    %7326 = vset.pattern.permute.xlu0 3
    %7327 = vperm.xlu0 %7326, %v6825
    %v7328 = vpop.permute.xlu0 %7327
    %7330 = vset.pattern.permute.xlu0 3
    %7331 = vperm.xlu0 %7330, %v6826
    %v7332 = vpop.permute.xlu0 %7331
    %7334 = vset.pattern.permute.xlu0 3
    %7335 = vperm.xlu0 %7334, %v6827
    %v7336 = vpop.permute.xlu0 %7335
    %v7338 = vmul.f32 %v7308, %v7316
    %v7339 = vmul.f32 %v7302, %v7316
    %v7340 = vmul.f32 %v7309, %v7320
    %v7341 = vmul.f32 %v7303, %v7320
    %v7342 = vmul.f32 %v7310, %v7324
    %v7343 = vmul.f32 %v7304, %v7324
    %v7344 = vmul.f32 %v7311, %v7328
    %v7345 = vmul.f32 %v7305, %v7328
    %v7346 = vmul.f32 %v7312, %v7332
    %v7347 = vmul.f32 %v7306, %v7332
    %v7348 = vmul.f32 %v7313, %v7336
    %v7349 = vmul.f32 %v7307, %v7336
    %v7350 = vmul.f32 %v7338, %v5133
    %v7351 = vmul.f32 %v7339, %v5137
    %v7352 = vmul.f32 %v7340, %v5133
    %v7353 = vmul.f32 %v7341, %v5137
    %v7354 = vmul.f32 %v7342, %v5133
    %v7355 = vmul.f32 %v7343, %v5137
    %v7356 = vmul.f32 %v7344, %v5133
    %v7357 = vmul.f32 %v7345, %v5137
    %v7358 = vmul.f32 %v7346, %v5133
    %v7359 = vmul.f32 %v7347, %v5137
    %v7360 = vmul.f32 %v7348, %v5133
    %v7361 = vmul.f32 %v7349, %v5137
    %v7362 = vadd.f32 %v7266, %v7350
    %v7363 = vadd.f32 %v7267, %v7351
    %v7364 = vadd.f32 %v7268, %v7352
    %v7365 = vadd.f32 %v7269, %v7353
    %v7366 = vadd.f32 %v7270, %v7354
    %v7367 = vadd.f32 %v7271, %v7355
    %v7368 = vadd.f32 %v7272, %v7356
    %v7369 = vadd.f32 %v7273, %v7357
    %v7370 = vadd.f32 %v7274, %v7358
    %v7371 = vadd.f32 %v7275, %v7359
    %v7372 = vadd.f32 %v7276, %v7360
    %v7373 = vadd.f32 %v7277, %v7361
    %7374 = vrot.lane.b32.xlu0 %v6936, 127
    %v7375 = vpop.permute.xlu0 %7374
    %7376 = vrot.lane.b32.xlu0 %v6938, 127
    %v7377 = vpop.permute.xlu0 %7376
    %7378 = vrot.lane.b32.xlu0 %v6940, 127
    %v7379 = vpop.permute.xlu0 %7378
    %7380 = vrot.lane.b32.xlu0 %v6942, 127
    %v7381 = vpop.permute.xlu0 %7380
    %7382 = vrot.lane.b32.xlu0 %v6944, 127
    %v7383 = vpop.permute.xlu0 %7382
    %7384 = vrot.lane.b32.xlu0 %v6946, 127
    %v7385 = vpop.permute.xlu0 %7384
    %7386 = vrot.lane.b32.xlu0 %v6937, 127
    %v7387 = vpop.permute.xlu0 %7386
    %7388 = vrot.lane.b32.xlu0 %v6939, 127
    %v7389 = vpop.permute.xlu0 %7388
    %7390 = vrot.lane.b32.xlu0 %v6941, 127
    %v7391 = vpop.permute.xlu0 %7390
    %7392 = vrot.lane.b32.xlu0 %v6943, 127
    %v7393 = vpop.permute.xlu0 %7392
    %7394 = vrot.lane.b32.xlu0 %v6945, 127
    %v7395 = vpop.permute.xlu0 %7394
    %7396 = vrot.lane.b32.xlu0 %v6947, 127
    %v7397 = vpop.permute.xlu0 %7396
    %v7398 = vsel %vm729, %v7375, %v7387
    %v7399 = vsel %vm729, %v7377, %v7389
    %v7400 = vsel %vm729, %v7379, %v7391
    %v7401 = vsel %vm729, %v7381, %v7393
    %v7402 = vsel %vm729, %v7383, %v7395
    %v7403 = vsel %vm729, %v7385, %v7397
    %v7404 = vsel %vm729, %v7387, %v7375
    %v7405 = vsel %vm729, %v7389, %v7377
    %v7406 = vsel %vm729, %v7391, %v7379
    %v7407 = vsel %vm729, %v7393, %v7381
    %v7408 = vsel %vm729, %v7395, %v7383
    %v7409 = vsel %vm729, %v7397, %v7385
    %7410 = vset.pattern.permute.xlu0 5
    %7411 = vperm.xlu0 %7410, %v6822
    %v7412 = vpop.permute.xlu0 %7411
    %7414 = vset.pattern.permute.xlu0 5
    %7415 = vperm.xlu0 %7414, %v6823
    %v7416 = vpop.permute.xlu0 %7415
    %7418 = vset.pattern.permute.xlu0 5
    %7419 = vperm.xlu0 %7418, %v6824
    %v7420 = vpop.permute.xlu0 %7419
    %7422 = vset.pattern.permute.xlu0 5
    %7423 = vperm.xlu0 %7422, %v6825
    %v7424 = vpop.permute.xlu0 %7423
    %7426 = vset.pattern.permute.xlu0 5
    %7427 = vperm.xlu0 %7426, %v6826
    %v7428 = vpop.permute.xlu0 %7427
    %7430 = vset.pattern.permute.xlu0 5
    %7431 = vperm.xlu0 %7430, %v6827
    %v7432 = vpop.permute.xlu0 %7431
    %v7434 = vmul.f32 %v7398, %v7412
    %v7435 = vmul.f32 %v7404, %v7412
    %v7436 = vmul.f32 %v7399, %v7416
    %v7437 = vmul.f32 %v7405, %v7416
    %v7438 = vmul.f32 %v7400, %v7420
    %v7439 = vmul.f32 %v7406, %v7420
    %v7440 = vmul.f32 %v7401, %v7424
    %v7441 = vmul.f32 %v7407, %v7424
    %v7442 = vmul.f32 %v7402, %v7428
    %v7443 = vmul.f32 %v7408, %v7428
    %v7444 = vmul.f32 %v7403, %v7432
    %v7445 = vmul.f32 %v7409, %v7432
    %v7446 = vmul.f32 %v7434, %v5241
    %v7447 = vmul.f32 %v7435, %v5245
    %v7448 = vmul.f32 %v7436, %v5241
    %v7449 = vmul.f32 %v7437, %v5245
    %v7450 = vmul.f32 %v7438, %v5241
    %v7451 = vmul.f32 %v7439, %v5245
    %v7452 = vmul.f32 %v7440, %v5241
    %v7453 = vmul.f32 %v7441, %v5245
    %v7454 = vmul.f32 %v7442, %v5241
    %v7455 = vmul.f32 %v7443, %v5245
    %v7456 = vmul.f32 %v7444, %v5241
    %v7457 = vmul.f32 %v7445, %v5245
    %v7458 = vadd.f32 %v7362, %v7446
    %v7459 = vadd.f32 %v7363, %v7447
    %v7460 = vadd.f32 %v7364, %v7448
    %v7461 = vadd.f32 %v7365, %v7449
    %v7462 = vadd.f32 %v7366, %v7450
    %v7463 = vadd.f32 %v7367, %v7451
    %v7464 = vadd.f32 %v7368, %v7452
    %v7465 = vadd.f32 %v7369, %v7453
    %v7466 = vadd.f32 %v7370, %v7454
    %v7467 = vadd.f32 %v7371, %v7455
    %v7468 = vadd.f32 %v7372, %v7456
    %v7469 = vadd.f32 %v7373, %v7457
    %7470 = vrot.lane.b32.xlu0 %v6936, 113
    %v7471 = vpop.permute.xlu0 %7470
    %7472 = vrot.lane.b32.xlu0 %v6938, 113
    %v7473 = vpop.permute.xlu0 %7472
    %7474 = vrot.lane.b32.xlu0 %v6940, 113
    %v7475 = vpop.permute.xlu0 %7474
    %7476 = vrot.lane.b32.xlu0 %v6942, 113
    %v7477 = vpop.permute.xlu0 %7476
    %7478 = vrot.lane.b32.xlu0 %v6944, 113
    %v7479 = vpop.permute.xlu0 %7478
    %7480 = vrot.lane.b32.xlu0 %v6946, 113
    %v7481 = vpop.permute.xlu0 %7480
    %7482 = vrot.lane.b32.xlu0 %v6937, 113
    %v7483 = vpop.permute.xlu0 %7482
    %7484 = vrot.lane.b32.xlu0 %v6939, 113
    %v7485 = vpop.permute.xlu0 %7484
    %7486 = vrot.lane.b32.xlu0 %v6941, 113
    %v7487 = vpop.permute.xlu0 %7486
    %7488 = vrot.lane.b32.xlu0 %v6943, 113
    %v7489 = vpop.permute.xlu0 %7488
    %7490 = vrot.lane.b32.xlu0 %v6945, 113
    %v7491 = vpop.permute.xlu0 %7490
    %7492 = vrot.lane.b32.xlu0 %v6947, 113
    %v7493 = vpop.permute.xlu0 %7492
    %v7494 = vsel %vm839, %v7471, %v7483
    %v7495 = vsel %vm839, %v7473, %v7485
    %v7496 = vsel %vm839, %v7475, %v7487
    %v7497 = vsel %vm839, %v7477, %v7489
    %v7498 = vsel %vm839, %v7479, %v7491
    %v7499 = vsel %vm839, %v7481, %v7493
    %v7500 = vsel %vm839, %v7483, %v7471
    %v7501 = vsel %vm839, %v7485, %v7473
    %v7502 = vsel %vm839, %v7487, %v7475
    %v7503 = vsel %vm839, %v7489, %v7477
    %v7504 = vsel %vm839, %v7491, %v7479
    %v7505 = vsel %vm839, %v7493, %v7481
    %7506 = vset.pattern.permute.xlu0 6
    %7507 = vperm.xlu0 %7506, %v6822
    %v7508 = vpop.permute.xlu0 %7507
    %7510 = vset.pattern.permute.xlu0 6
    %7511 = vperm.xlu0 %7510, %v6823
    %v7512 = vpop.permute.xlu0 %7511
    %7514 = vset.pattern.permute.xlu0 6
    %7515 = vperm.xlu0 %7514, %v6824
    %v7516 = vpop.permute.xlu0 %7515
    %7518 = vset.pattern.permute.xlu0 6
    %7519 = vperm.xlu0 %7518, %v6825
    %v7520 = vpop.permute.xlu0 %7519
    %7522 = vset.pattern.permute.xlu0 6
    %7523 = vperm.xlu0 %7522, %v6826
    %v7524 = vpop.permute.xlu0 %7523
    %7526 = vset.pattern.permute.xlu0 6
    %7527 = vperm.xlu0 %7526, %v6827
    %v7528 = vpop.permute.xlu0 %7527
    %v7530 = vmul.f32 %v7494, %v7508
    %v7531 = vmul.f32 %v7500, %v7508
    %v7532 = vmul.f32 %v7495, %v7512
    %v7533 = vmul.f32 %v7501, %v7512
    %v7534 = vmul.f32 %v7496, %v7516
    %v7535 = vmul.f32 %v7502, %v7516
    %v7536 = vmul.f32 %v7497, %v7520
    %v7537 = vmul.f32 %v7503, %v7520
    %v7538 = vmul.f32 %v7498, %v7524
    %v7539 = vmul.f32 %v7504, %v7524
    %v7540 = vmul.f32 %v7499, %v7528
    %v7541 = vmul.f32 %v7505, %v7528
    %v7542 = vmul.f32 %v7530, %v5349
    %v7543 = vmul.f32 %v7531, %v5353
    %v7544 = vmul.f32 %v7532, %v5349
    %v7545 = vmul.f32 %v7533, %v5353
    %v7546 = vmul.f32 %v7534, %v5349
    %v7547 = vmul.f32 %v7535, %v5353
    %v7548 = vmul.f32 %v7536, %v5349
    %v7549 = vmul.f32 %v7537, %v5353
    %v7550 = vmul.f32 %v7538, %v5349
    %v7551 = vmul.f32 %v7539, %v5353
    %v7552 = vmul.f32 %v7540, %v5349
    %v7553 = vmul.f32 %v7541, %v5353
    %v7554 = vadd.f32 %v7458, %v7542
    %v7555 = vadd.f32 %v7459, %v7543
    %v7556 = vadd.f32 %v7460, %v7544
    %v7557 = vadd.f32 %v7461, %v7545
    %v7558 = vadd.f32 %v7462, %v7546
    %v7559 = vadd.f32 %v7463, %v7547
    %v7560 = vadd.f32 %v7464, %v7548
    %v7561 = vadd.f32 %v7465, %v7549
    %v7562 = vadd.f32 %v7466, %v7550
    %v7563 = vadd.f32 %v7467, %v7551
    %v7564 = vadd.f32 %v7468, %v7552
    %v7565 = vadd.f32 %v7469, %v7553
    %7566 = vrot.lane.b32.xlu0 %v6936, 112
    %v7567 = vpop.permute.xlu0 %7566
    %7568 = vrot.lane.b32.xlu0 %v6938, 112
    %v7569 = vpop.permute.xlu0 %7568
    %7570 = vrot.lane.b32.xlu0 %v6940, 112
    %v7571 = vpop.permute.xlu0 %7570
    %7572 = vrot.lane.b32.xlu0 %v6942, 112
    %v7573 = vpop.permute.xlu0 %7572
    %7574 = vrot.lane.b32.xlu0 %v6944, 112
    %v7575 = vpop.permute.xlu0 %7574
    %7576 = vrot.lane.b32.xlu0 %v6946, 112
    %v7577 = vpop.permute.xlu0 %7576
    %7578 = vrot.lane.b32.xlu0 %v6937, 112
    %v7579 = vpop.permute.xlu0 %7578
    %7580 = vrot.lane.b32.xlu0 %v6939, 112
    %v7581 = vpop.permute.xlu0 %7580
    %7582 = vrot.lane.b32.xlu0 %v6941, 112
    %v7583 = vpop.permute.xlu0 %7582
    %7584 = vrot.lane.b32.xlu0 %v6943, 112
    %v7585 = vpop.permute.xlu0 %7584
    %7586 = vrot.lane.b32.xlu0 %v6945, 112
    %v7587 = vpop.permute.xlu0 %7586
    %7588 = vrot.lane.b32.xlu0 %v6947, 112
    %v7589 = vpop.permute.xlu0 %7588
    %v7590 = vsel %vm949, %v7567, %v7579
    %v7591 = vsel %vm949, %v7569, %v7581
    %v7592 = vsel %vm949, %v7571, %v7583
    %v7593 = vsel %vm949, %v7573, %v7585
    %v7594 = vsel %vm949, %v7575, %v7587
    %v7595 = vsel %vm949, %v7577, %v7589
    %v7596 = vsel %vm949, %v7579, %v7567
    %v7597 = vsel %vm949, %v7581, %v7569
    %v7598 = vsel %vm949, %v7583, %v7571
    %v7599 = vsel %vm949, %v7585, %v7573
    %v7600 = vsel %vm949, %v7587, %v7575
    %v7601 = vsel %vm949, %v7589, %v7577
    %7602 = vset.pattern.permute.xlu0 7
    %7603 = vperm.xlu0 %7602, %v6822
    %v7604 = vpop.permute.xlu0 %7603
    %7606 = vset.pattern.permute.xlu0 7
    %7607 = vperm.xlu0 %7606, %v6823
    %v7608 = vpop.permute.xlu0 %7607
    %7610 = vset.pattern.permute.xlu0 7
    %7611 = vperm.xlu0 %7610, %v6824
    %v7612 = vpop.permute.xlu0 %7611
    %7614 = vset.pattern.permute.xlu0 7
    %7615 = vperm.xlu0 %7614, %v6825
    %v7616 = vpop.permute.xlu0 %7615
    %7618 = vset.pattern.permute.xlu0 7
    %7619 = vperm.xlu0 %7618, %v6826
    %v7620 = vpop.permute.xlu0 %7619
    %7622 = vset.pattern.permute.xlu0 7
    %7623 = vperm.xlu0 %7622, %v6827
    %v7624 = vpop.permute.xlu0 %7623
    %v7626 = vmul.f32 %v7590, %v7604
    %v7627 = vmul.f32 %v7596, %v7604
    %v7628 = vmul.f32 %v7591, %v7608
    %v7629 = vmul.f32 %v7597, %v7608
    %v7630 = vmul.f32 %v7592, %v7612
    %v7631 = vmul.f32 %v7598, %v7612
    %v7632 = vmul.f32 %v7593, %v7616
    %v7633 = vmul.f32 %v7599, %v7616
    %v7634 = vmul.f32 %v7594, %v7620
    %v7635 = vmul.f32 %v7600, %v7620
    %v7636 = vmul.f32 %v7595, %v7624
    %v7637 = vmul.f32 %v7601, %v7624
    %v7638 = vmul.f32 %v7626, %v5457
    %v7639 = vmul.f32 %v7627, %v5461
    %v7640 = vmul.f32 %v7628, %v5457
    %v7641 = vmul.f32 %v7629, %v5461
    %v7642 = vmul.f32 %v7630, %v5457
    %v7643 = vmul.f32 %v7631, %v5461
    %v7644 = vmul.f32 %v7632, %v5457
    %v7645 = vmul.f32 %v7633, %v5461
    %v7646 = vmul.f32 %v7634, %v5457
    %v7647 = vmul.f32 %v7635, %v5461
    %v7648 = vmul.f32 %v7636, %v5457
    %v7649 = vmul.f32 %v7637, %v5461
    %v7650 = vadd.f32 %v7554, %v7638
    %v7651 = vadd.f32 %v7555, %v7639
    %v7652 = vadd.f32 %v7556, %v7640
    %v7653 = vadd.f32 %v7557, %v7641
    %v7654 = vadd.f32 %v7558, %v7642
    %v7655 = vadd.f32 %v7559, %v7643
    %v7656 = vadd.f32 %v7560, %v7644
    %v7657 = vadd.f32 %v7561, %v7645
    %v7658 = vadd.f32 %v7562, %v7646
    %v7659 = vadd.f32 %v7563, %v7647
    %v7660 = vadd.f32 %v7564, %v7648
    %v7661 = vadd.f32 %v7565, %v7649
    %7662 = vrot.lane.b32.xlu0 %v6936, 111
    %v7663 = vpop.permute.xlu0 %7662
    %7664 = vrot.lane.b32.xlu0 %v6938, 111
    %v7665 = vpop.permute.xlu0 %7664
    %7666 = vrot.lane.b32.xlu0 %v6940, 111
    %v7667 = vpop.permute.xlu0 %7666
    %7668 = vrot.lane.b32.xlu0 %v6942, 111
    %v7669 = vpop.permute.xlu0 %7668
    %7670 = vrot.lane.b32.xlu0 %v6944, 111
    %v7671 = vpop.permute.xlu0 %7670
    %7672 = vrot.lane.b32.xlu0 %v6946, 111
    %v7673 = vpop.permute.xlu0 %7672
    %7674 = vrot.lane.b32.xlu0 %v6937, 111
    %v7675 = vpop.permute.xlu0 %7674
    %7676 = vrot.lane.b32.xlu0 %v6939, 111
    %v7677 = vpop.permute.xlu0 %7676
    %7678 = vrot.lane.b32.xlu0 %v6941, 111
    %v7679 = vpop.permute.xlu0 %7678
    %7680 = vrot.lane.b32.xlu0 %v6943, 111
    %v7681 = vpop.permute.xlu0 %7680
    %7682 = vrot.lane.b32.xlu0 %v6945, 111
    %v7683 = vpop.permute.xlu0 %7682
    %7684 = vrot.lane.b32.xlu0 %v6947, 111
    %v7685 = vpop.permute.xlu0 %7684
    %v7686 = vsel %vm1059, %v7663, %v7675
    %v7687 = vsel %vm1059, %v7665, %v7677
    %v7688 = vsel %vm1059, %v7667, %v7679
    %v7689 = vsel %vm1059, %v7669, %v7681
    %v7690 = vsel %vm1059, %v7671, %v7683
    %v7691 = vsel %vm1059, %v7673, %v7685
    %v7692 = vsel %vm1059, %v7675, %v7663
    %v7693 = vsel %vm1059, %v7677, %v7665
    %v7694 = vsel %vm1059, %v7679, %v7667
    %v7695 = vsel %vm1059, %v7681, %v7669
    %v7696 = vsel %vm1059, %v7683, %v7671
    %v7697 = vsel %vm1059, %v7685, %v7673
    %7698 = vset.pattern.permute.xlu0 8
    %7699 = vperm.xlu0 %7698, %v6822
    %v7700 = vpop.permute.xlu0 %7699
    %7702 = vset.pattern.permute.xlu0 8
    %7703 = vperm.xlu0 %7702, %v6823
    %v7704 = vpop.permute.xlu0 %7703
    %7706 = vset.pattern.permute.xlu0 8
    %7707 = vperm.xlu0 %7706, %v6824
    %v7708 = vpop.permute.xlu0 %7707
    %7710 = vset.pattern.permute.xlu0 8
    %7711 = vperm.xlu0 %7710, %v6825
    %v7712 = vpop.permute.xlu0 %7711
    %7714 = vset.pattern.permute.xlu0 8
    %7715 = vperm.xlu0 %7714, %v6826
    %v7716 = vpop.permute.xlu0 %7715
    %7718 = vset.pattern.permute.xlu0 8
    %7719 = vperm.xlu0 %7718, %v6827
    %v7720 = vpop.permute.xlu0 %7719
    %v7722 = vmul.f32 %v7686, %v7700
    %v7723 = vmul.f32 %v7692, %v7700
    %v7724 = vmul.f32 %v7687, %v7704
    %v7725 = vmul.f32 %v7693, %v7704
    %v7726 = vmul.f32 %v7688, %v7708
    %v7727 = vmul.f32 %v7694, %v7708
    %v7728 = vmul.f32 %v7689, %v7712
    %v7729 = vmul.f32 %v7695, %v7712
    %v7730 = vmul.f32 %v7690, %v7716
    %v7731 = vmul.f32 %v7696, %v7716
    %v7732 = vmul.f32 %v7691, %v7720
    %v7733 = vmul.f32 %v7697, %v7720
    %v7734 = vmul.f32 %v7722, %v5565
    %v7735 = vmul.f32 %v7723, %v5569
    %v7736 = vmul.f32 %v7724, %v5565
    %v7737 = vmul.f32 %v7725, %v5569
    %v7738 = vmul.f32 %v7726, %v5565
    %v7739 = vmul.f32 %v7727, %v5569
    %v7740 = vmul.f32 %v7728, %v5565
    %v7741 = vmul.f32 %v7729, %v5569
    %v7742 = vmul.f32 %v7730, %v5565
    %v7743 = vmul.f32 %v7731, %v5569
    %v7744 = vmul.f32 %v7732, %v5565
    %v7745 = vmul.f32 %v7733, %v5569
    %v7746 = vadd.f32 %v7650, %v7734
    %v7747 = vadd.f32 %v7651, %v7735
    %v7748 = vadd.f32 %v7652, %v7736
    %v7749 = vadd.f32 %v7653, %v7737
    %v7750 = vadd.f32 %v7654, %v7738
    %v7751 = vadd.f32 %v7655, %v7739
    %v7752 = vadd.f32 %v7656, %v7740
    %v7753 = vadd.f32 %v7657, %v7741
    %v7754 = vadd.f32 %v7658, %v7742
    %v7755 = vadd.f32 %v7659, %v7743
    %v7756 = vadd.f32 %v7660, %v7744
    %v7757 = vadd.f32 %v7661, %v7745
    %v7758 = vmax.f32 %v7746, 0.0
    %v7759 = vmax.f32 %v7747, 0.0
    %v7760 = vmax.f32 %v7748, 0.0
    %v7761 = vmax.f32 %v7749, 0.0
    %v7762 = vmax.f32 %v7750, 0.0
    %v7763 = vmax.f32 %v7751, 0.0
    %v7764 = vmax.f32 %v7752, 0.0
    %v7765 = vmax.f32 %v7753, 0.0
    %v7766 = vmax.f32 %v7754, 0.0
    %v7767 = vmax.f32 %v7755, 0.0
    %v7768 = vmax.f32 %v7756, 0.0
    %v7769 = vmax.f32 %v7757, 0.0
    %v7770 = vmin.f32 %v7758, 6.0
    %v7771 = vmin.f32 %v7759, 6.0
    %v7772 = vmin.f32 %v7760, 6.0
    %v7773 = vmin.f32 %v7761, 6.0
    %v7774 = vmin.f32 %v7762, 6.0
    %v7775 = vmin.f32 %v7763, 6.0
    %v7776 = vmin.f32 %v7764, 6.0
    %v7777 = vmin.f32 %v7765, 6.0
    %v7778 = vmin.f32 %v7766, 6.0
    %v7779 = vmin.f32 %v7767, 6.0
    %v7780 = vmin.f32 %v7768, 6.0
    %v7781 = vmin.f32 %v7769, 6.0
    %v7782 = vpack.c.bf16 %v7772, %v7770
    %v7783 = vpack.c.bf16 %v7773, %v7771
    %v7784 = vpack.c.bf16 %v7776, %v7774
    %v7785 = vpack.c.bf16 %v7777, %v7775
    %v7786 = vpack.c.bf16 %v7780, %v7778
    %v7787 = vpack.c.bf16 %v7781, %v7779
    %v7789 = vsel %vm1175, %v6828, 0
    %7791 = vmatprep.subr.bf16.mxu0 0
    %7792 = vmatpush1.bf16.msra.mxu0 0
    %7793 = vmatprep.subr.bf16.mxu0 0
    %7794 = vmatpush1.bf16.msra.mxu0 0
    %7795 = vmatprep.subr.bf16.mxu0 0
    %7796 = vmatpush1.bf16.msra.mxu0 0
    %7797 = vmatprep.subr.bf16.mxu0 0
    %7798 = vmatpush1.bf16.msra.mxu0 0
    %7799 = vmatprep.subr.bf16.mxu0 0
    %7800 = vmatpush1.bf16.msra.mxu0 0
    %7801 = vmatprep.subr.bf16.mxu0 %v7787
    %7802 = vmatpush1.bf16.msra.mxu0 %v7786
    %7803 = vmatprep.subr.bf16.mxu0 %v7785
    %7804 = vmatpush1.bf16.msra.mxu0 %v7784
    %7805 = vmatprep.subr.bf16.mxu0 %v7783
    %7806 = vmatpush1.bf16.msra.mxu0 %v7782
    %7807 = vmatprep.subr.bf16.mxu0 0
    %7808 = vmatpush2.bf16.msra.mxu0 0
    %7809 = vmatprep.subr.bf16.mxu0 0
    %7810 = vmatpush2.bf16.msra.mxu0 0
    %7811 = vmatprep.subr.bf16.mxu0 0
    %7812 = vmatpush2.bf16.msra.mxu0 0
    %7813 = vmatprep.subr.bf16.mxu0 0
    %7814 = vmatpush2.bf16.msra.mxu0 0
    %7815 = vmatprep.subr.bf16.mxu0 0
    %7816 = vmatpush2.bf16.msra.mxu0 0
    %7817 = vmatprep.subr.bf16.mxu0 0
    %7818 = vmatpush2.bf16.msra.mxu0 0
    %7819 = vmatprep.subr.bf16.mxu0 0
    %7820 = vmatpush2.bf16.msra.mxu0 0
    %7821 = vmatprep.subr.bf16.mxu0 0
    %7822 = vmatpush2.bf16.msra.mxu0 0
    %7823 = vmatprep.mubr.bf16.mxu0 0
    %7824 = vmatmul.mubr.bf16.gmra.mxu0 %v7789
    %v7825 = vpop.f32.mrf.mxu0
    %v7826 = vadd.f32 0.0, %v7825
    %v7827 = vpop.f32.mrf.mxu0
    %v7828 = vadd.f32 0.0, %v7827
    %v7829 = vpop.f32.mrf.mxu0
    %v7830 = vpop.f32.mrf.mxu0
    %7831 = vdwg.mxu0
    %v7832 = vadd.f32 %v6814, %v7826
    %v7833 = vadd.f32 %v6815, %v7828
    %v7834 = vld [vmem:[%s3394] sm:$0xf]
    %v7835 = vld [vmem:[%s3396] sm:$0xff]
    %v7836 = vpack.c.bf16 %v7832, %v7832
    %v7837 = vpack.c.bf16 %v7833, %v7833
    %v7840 = vrot.slane %v7836, 4
    %v7841 = vrot.slane %v7837, 4
    %v7843 = vsel %vm128, %v6757, %v7840
    %v7846 = vsel %vm128, %v6758, %v7841
    %7849 = vset.pattern.permute.xlu0 0
    %7850 = vperm.xlu0 %7849, %v7835
    %v7851 = vpop.permute.xlu0 %7850
    %v7854 = vsel %vm3415, %v7834, 0
    %7856 = vmatprep.subr.bf16.mxu0 0
    %7857 = vmatpush1.bf16.msra.mxu0 0
    %7858 = vmatprep.subr.bf16.mxu0 0
    %7859 = vmatpush1.bf16.msra.mxu0 0
    %7860 = vmatprep.subr.bf16.mxu0 0
    %7861 = vmatpush1.bf16.msra.mxu0 0
    %7862 = vmatprep.subr.bf16.mxu0 0
    %7863 = vmatpush1.bf16.msra.mxu0 0
    %7864 = vmatprep.subr.bf16.mxu0 0
    %7865 = vmatpush1.bf16.msra.mxu0 0
    %7866 = vmatprep.subr.bf16.mxu0 0
    %7867 = vmatpush1.bf16.msra.mxu0 0
    %7868 = vmatprep.subr.bf16.mxu0 %v7846
    %7869 = vmatpush1.bf16.msra.mxu0 %v7843
    %7870 = vmatprep.subr.bf16.mxu0 %v5684
    %7871 = vmatpush1.bf16.msra.mxu0 %v5681
    %7872 = vmatprep.subr.bf16.mxu0 0
    %7873 = vmatpush2.bf16.msra.mxu0 0
    %7874 = vmatprep.subr.bf16.mxu0 0
    %7875 = vmatpush2.bf16.msra.mxu0 0
    %7876 = vmatprep.subr.bf16.mxu0 0
    %7877 = vmatpush2.bf16.msra.mxu0 0
    %7878 = vmatprep.subr.bf16.mxu0 0
    %7879 = vmatpush2.bf16.msra.mxu0 0
    %7880 = vmatprep.subr.bf16.mxu0 0
    %7881 = vmatpush2.bf16.msra.mxu0 0
    %7882 = vmatprep.subr.bf16.mxu0 0
    %7883 = vmatpush2.bf16.msra.mxu0 0
    %7884 = vmatprep.subr.bf16.mxu0 0
    %7885 = vmatpush2.bf16.msra.mxu0 0
    %7886 = vmatprep.subr.bf16.mxu0 0
    %7887 = vmatpush2.bf16.msra.mxu0 0
    %7888 = vmatprep.mubr.bf16.mxu0 0
    %7889 = vmatmul.mubr.bf16.gmra.mxu0 %v7854
    %v7890 = vpop.f32.mrf.mxu0
    %v7891 = vadd.f32 %v7851, %v7890
    %v7892 = vpop.f32.mrf.mxu0
    %v7893 = vadd.f32 %v7851, %v7892
    %v7894 = vpop.f32.mrf.mxu0
    %v7895 = vpop.f32.mrf.mxu0
    %7896 = vdwg.mxu0
    %v7897 = vmax.f32 %v7891, 0.0
    %v7898 = vmax.f32 %v7893, 0.0
    %v7899 = vld [vmem:[%s3462] sm:$0xf]
    %v7900 = vld [vmem:[%s3462 + $0x4] sm:$0xf]
    %v7901 = vld [vmem:[%s3462 + $0x8] sm:$0xf]
    %v7902 = vld [vmem:[%s3462 + $0xc] sm:$0xf]
    %v7903 = vld [vmem:[%s3462 + $0x10] sm:$0xf]
    %v7904 = vld [vmem:[%s3462 + $0x14] sm:$0xf]
    %v7905 = vld [vmem:[%s3469] sm:$0xff]
    %v7906 = vld [vmem:[%s3469 + $0x8] sm:$0xff]
    %v7907 = vld [vmem:[%s3469 + $0x10] sm:$0xff]
    %v7908 = vld [vmem:[%s3469 + $0x18] sm:$0xff]
    %v7909 = vld [vmem:[%s3469 + $0x20] sm:$0xff]
    %v7910 = vld [vmem:[%s3469 + $0x28] sm:$0xff]
    %v7911 = vld [vmem:[%s3476] sm:$0xf]
    %v7912 = vpack.c.bf16 %v7897, %v7897
    %v7913 = vpack.c.bf16 %v7898, %v7898
    %v7920 = vunpack.c.l.b16 %v7899
    %v7921 = vunpack.c.l.b16 %v7900
    %v7922 = vunpack.c.l.b16 %v7901
    %v7923 = vunpack.c.l.b16 %v7902
    %v7924 = vunpack.c.l.b16 %v7903
    %v7925 = vunpack.c.l.b16 %v7904
    %v7926 = vpack.c.b16 %v7921, %v7920
    %v7927 = vpack.c.b16 %v7923, %v7922
    %v7928 = vpack.c.b16 %v7925, %v7924
    %v7930 = vsel %vm118, %v7926, 0
    %v7933 = vsel %vm118, %v7927, 0
    %v7936 = vsel %vm118, %v7928, 0
    %v7939 = vsel %vm128, %v7912, 0
    %v7942 = vsel %vm128, %v7913, 0
    %7944 = vmatprep.subr.bf16.mxu0 0
    %7945 = vmatpush1.bf16.msra.mxu0 0
    %7946 = vmatprep.subr.bf16.mxu0 0
    %7947 = vmatpush1.bf16.msra.mxu0 0
    %7948 = vmatprep.subr.bf16.mxu0 0
    %7949 = vmatpush1.bf16.msra.mxu0 0
    %7950 = vmatprep.subr.bf16.mxu0 0
    %7951 = vmatpush1.bf16.msra.mxu0 0
    %7952 = vmatprep.subr.bf16.mxu0 0
    %7953 = vmatpush1.bf16.msra.mxu0 0
    %7954 = vmatprep.subr.bf16.mxu0 0
    %7955 = vmatpush1.bf16.msra.mxu0 0
    %7956 = vmatprep.subr.bf16.mxu0 0
    %7957 = vmatpush1.bf16.msra.mxu0 0
    %7958 = vmatprep.subr.bf16.mxu0 %v7942
    %7959 = vmatpush1.bf16.msra.mxu0 %v7939
    %7960 = vmatprep.subr.bf16.mxu0 0
    %7961 = vmatpush2.bf16.msra.mxu0 0
    %7962 = vmatprep.subr.bf16.mxu0 0
    %7963 = vmatpush2.bf16.msra.mxu0 0
    %7964 = vmatprep.subr.bf16.mxu0 0
    %7965 = vmatpush2.bf16.msra.mxu0 0
    %7966 = vmatprep.subr.bf16.mxu0 0
    %7967 = vmatpush2.bf16.msra.mxu0 0
    %7968 = vmatprep.subr.bf16.mxu0 0
    %7969 = vmatpush2.bf16.msra.mxu0 0
    %7970 = vmatprep.subr.bf16.mxu0 0
    %7971 = vmatpush2.bf16.msra.mxu0 0
    %7972 = vmatprep.subr.bf16.mxu0 0
    %7973 = vmatpush2.bf16.msra.mxu0 0
    %7974 = vmatprep.subr.bf16.mxu0 0
    %7975 = vmatpush2.bf16.msra.mxu0 0
    %7976 = vmatprep.mubr.bf16.mxu0 0
    %7977 = vmatmul.mubr.bf16.gmra.mxu0 %v7930
    %v7978 = vpop.f32.mrf.mxu0
    %v7979 = vadd.f32 0.0, %v7978
    %v7980 = vpop.f32.mrf.mxu0
    %v7981 = vadd.f32 0.0, %v7980
    %v7982 = vpop.f32.mrf.mxu0
    %v7983 = vadd.f32 0.0, %v7982
    %v7984 = vpop.f32.mrf.mxu0
    %v7985 = vadd.f32 0.0, %v7984
    %7986 = vmatprep.mubr.bf16.mxu0 0
    %7987 = vmatmul.mubr.bf16.gmra.mxu0 %v7933
    %v7988 = vpop.f32.mrf.mxu0
    %v7989 = vadd.f32 0.0, %v7988
    %v7990 = vpop.f32.mrf.mxu0
    %v7991 = vadd.f32 0.0, %v7990
    %v7992 = vpop.f32.mrf.mxu0
    %v7993 = vadd.f32 0.0, %v7992
    %v7994 = vpop.f32.mrf.mxu0
    %v7995 = vadd.f32 0.0, %v7994
    %7996 = vmatprep.mubr.bf16.mxu0 0
    %7997 = vmatmul.mubr.bf16.gmra.mxu0 %v7936
    %v7998 = vpop.f32.mrf.mxu0
    %v7999 = vadd.f32 0.0, %v7998
    %v8000 = vpop.f32.mrf.mxu0
    %v8001 = vadd.f32 0.0, %v8000
    %v8002 = vpop.f32.mrf.mxu0
    %v8003 = vadd.f32 0.0, %v8002
    %v8004 = vpop.f32.mrf.mxu0
    %v8005 = vadd.f32 0.0, %v8004
    %8006 = vdwg.mxu0
    %v8007 = vmax.f32 %v7979, 0.0
    %v8008 = vmax.f32 %v7981, 0.0
    %v8009 = vmax.f32 %v7983, 0.0
    %v8010 = vmax.f32 %v7985, 0.0
    %v8011 = vmax.f32 %v7989, 0.0
    %v8012 = vmax.f32 %v7991, 0.0
    %v8013 = vmax.f32 %v7993, 0.0
    %v8014 = vmax.f32 %v7995, 0.0
    %v8015 = vmax.f32 %v7999, 0.0
    %v8016 = vmax.f32 %v8001, 0.0
    %v8017 = vmax.f32 %v8003, 0.0
    %v8018 = vmax.f32 %v8005, 0.0
    %v8019 = vmin.f32 %v8007, 6.0
    %v8020 = vmin.f32 %v8008, 6.0
    %v8021 = vmin.f32 %v8009, 6.0
    %v8022 = vmin.f32 %v8010, 6.0
    %v8023 = vmin.f32 %v8011, 6.0
    %v8024 = vmin.f32 %v8012, 6.0
    %v8025 = vmin.f32 %v8013, 6.0
    %v8026 = vmin.f32 %v8014, 6.0
    %v8027 = vmin.f32 %v8015, 6.0
    %v8028 = vmin.f32 %v8016, 6.0
    %v8029 = vmin.f32 %v8017, 6.0
    %v8030 = vmin.f32 %v8018, 6.0
    %8032 = vset.pattern.permute.xlu0 4
    %8033 = vperm.xlu0 %8032, %v7905
    %v8034 = vpop.permute.xlu0 %8033
    %8037 = vset.pattern.permute.xlu0 4
    %8038 = vperm.xlu0 %8037, %v7906
    %v8039 = vpop.permute.xlu0 %8038
    %8042 = vset.pattern.permute.xlu0 4
    %8043 = vperm.xlu0 %8042, %v7907
    %v8044 = vpop.permute.xlu0 %8043
    %8047 = vset.pattern.permute.xlu0 4
    %8048 = vperm.xlu0 %8047, %v7908
    %v8049 = vpop.permute.xlu0 %8048
    %8052 = vset.pattern.permute.xlu0 4
    %8053 = vperm.xlu0 %8052, %v7909
    %v8054 = vpop.permute.xlu0 %8053
    %8057 = vset.pattern.permute.xlu0 4
    %8058 = vperm.xlu0 %8057, %v7910
    %v8059 = vpop.permute.xlu0 %8058
    %v8061 = vmul.f32 %v8019, %v8034
    %v8062 = vmul.f32 %v8020, %v8034
    %v8063 = vmul.f32 %v8021, %v8039
    %v8064 = vmul.f32 %v8022, %v8039
    %v8065 = vmul.f32 %v8023, %v8044
    %v8066 = vmul.f32 %v8024, %v8044
    %v8067 = vmul.f32 %v8025, %v8049
    %v8068 = vmul.f32 %v8026, %v8049
    %v8069 = vmul.f32 %v8027, %v8054
    %v8070 = vmul.f32 %v8028, %v8054
    %v8071 = vmul.f32 %v8029, %v8059
    %v8072 = vmul.f32 %v8030, %v8059
    %8073 = vrot.lane.b32.xlu0 %v8019, 17
    %v8074 = vpop.permute.xlu0 %8073
    %8075 = vrot.lane.b32.xlu0 %v8021, 17
    %v8076 = vpop.permute.xlu0 %8075
    %8077 = vrot.lane.b32.xlu0 %v8023, 17
    %v8078 = vpop.permute.xlu0 %8077
    %8079 = vrot.lane.b32.xlu0 %v8025, 17
    %v8080 = vpop.permute.xlu0 %8079
    %8081 = vrot.lane.b32.xlu0 %v8027, 17
    %v8082 = vpop.permute.xlu0 %8081
    %8083 = vrot.lane.b32.xlu0 %v8029, 17
    %v8084 = vpop.permute.xlu0 %8083
    %8085 = vrot.lane.b32.xlu0 %v8020, 17
    %v8086 = vpop.permute.xlu0 %8085
    %8087 = vrot.lane.b32.xlu0 %v8022, 17
    %v8088 = vpop.permute.xlu0 %8087
    %8089 = vrot.lane.b32.xlu0 %v8024, 17
    %v8090 = vpop.permute.xlu0 %8089
    %8091 = vrot.lane.b32.xlu0 %v8026, 17
    %v8092 = vpop.permute.xlu0 %8091
    %8093 = vrot.lane.b32.xlu0 %v8028, 17
    %v8094 = vpop.permute.xlu0 %8093
    %8095 = vrot.lane.b32.xlu0 %v8030, 17
    %v8096 = vpop.permute.xlu0 %8095
    %v8097 = vsel %vm290, %v8074, %v8086
    %v8098 = vsel %vm290, %v8076, %v8088
    %v8099 = vsel %vm290, %v8078, %v8090
    %v8100 = vsel %vm290, %v8080, %v8092
    %v8101 = vsel %vm290, %v8082, %v8094
    %v8102 = vsel %vm290, %v8084, %v8096
    %v8103 = vsel %vm290, %v8086, %v8074
    %v8104 = vsel %vm290, %v8088, %v8076
    %v8105 = vsel %vm290, %v8090, %v8078
    %v8106 = vsel %vm290, %v8092, %v8080
    %v8107 = vsel %vm290, %v8094, %v8082
    %v8108 = vsel %vm290, %v8096, %v8084
    %8109 = vset.pattern.permute.xlu0 0
    %8110 = vperm.xlu0 %8109, %v7905
    %v8111 = vpop.permute.xlu0 %8110
    %8113 = vset.pattern.permute.xlu0 0
    %8114 = vperm.xlu0 %8113, %v7906
    %v8115 = vpop.permute.xlu0 %8114
    %8117 = vset.pattern.permute.xlu0 0
    %8118 = vperm.xlu0 %8117, %v7907
    %v8119 = vpop.permute.xlu0 %8118
    %8121 = vset.pattern.permute.xlu0 0
    %8122 = vperm.xlu0 %8121, %v7908
    %v8123 = vpop.permute.xlu0 %8122
    %8125 = vset.pattern.permute.xlu0 0
    %8126 = vperm.xlu0 %8125, %v7909
    %v8127 = vpop.permute.xlu0 %8126
    %8129 = vset.pattern.permute.xlu0 0
    %8130 = vperm.xlu0 %8129, %v7910
    %v8131 = vpop.permute.xlu0 %8130
    %v8133 = vmul.f32 %v8103, %v8111
    %v8134 = vmul.f32 %v8097, %v8111
    %v8135 = vmul.f32 %v8104, %v8115
    %v8136 = vmul.f32 %v8098, %v8115
    %v8137 = vmul.f32 %v8105, %v8119
    %v8138 = vmul.f32 %v8099, %v8119
    %v8139 = vmul.f32 %v8106, %v8123
    %v8140 = vmul.f32 %v8100, %v8123
    %v8141 = vmul.f32 %v8107, %v8127
    %v8142 = vmul.f32 %v8101, %v8127
    %v8143 = vmul.f32 %v8108, %v8131
    %v8144 = vmul.f32 %v8102, %v8131
    %v8145 = vmul.f32 %v8133, %v4809
    %v8146 = vmul.f32 %v8134, %v4813
    %v8147 = vmul.f32 %v8135, %v4809
    %v8148 = vmul.f32 %v8136, %v4813
    %v8149 = vmul.f32 %v8137, %v4809
    %v8150 = vmul.f32 %v8138, %v4813
    %v8151 = vmul.f32 %v8139, %v4809
    %v8152 = vmul.f32 %v8140, %v4813
    %v8153 = vmul.f32 %v8141, %v4809
    %v8154 = vmul.f32 %v8142, %v4813
    %v8155 = vmul.f32 %v8143, %v4809
    %v8156 = vmul.f32 %v8144, %v4813
    %v8157 = vadd.f32 %v8061, %v8145
    %v8158 = vadd.f32 %v8062, %v8146
    %v8159 = vadd.f32 %v8063, %v8147
    %v8160 = vadd.f32 %v8064, %v8148
    %v8161 = vadd.f32 %v8065, %v8149
    %v8162 = vadd.f32 %v8066, %v8150
    %v8163 = vadd.f32 %v8067, %v8151
    %v8164 = vadd.f32 %v8068, %v8152
    %v8165 = vadd.f32 %v8069, %v8153
    %v8166 = vadd.f32 %v8070, %v8154
    %v8167 = vadd.f32 %v8071, %v8155
    %v8168 = vadd.f32 %v8072, %v8156
    %8169 = vrot.lane.b32.xlu0 %v8019, 16
    %v8170 = vpop.permute.xlu0 %8169
    %8171 = vrot.lane.b32.xlu0 %v8021, 16
    %v8172 = vpop.permute.xlu0 %8171
    %8173 = vrot.lane.b32.xlu0 %v8023, 16
    %v8174 = vpop.permute.xlu0 %8173
    %8175 = vrot.lane.b32.xlu0 %v8025, 16
    %v8176 = vpop.permute.xlu0 %8175
    %8177 = vrot.lane.b32.xlu0 %v8027, 16
    %v8178 = vpop.permute.xlu0 %8177
    %8179 = vrot.lane.b32.xlu0 %v8029, 16
    %v8180 = vpop.permute.xlu0 %8179
    %8181 = vrot.lane.b32.xlu0 %v8020, 16
    %v8182 = vpop.permute.xlu0 %8181
    %8183 = vrot.lane.b32.xlu0 %v8022, 16
    %v8184 = vpop.permute.xlu0 %8183
    %8185 = vrot.lane.b32.xlu0 %v8024, 16
    %v8186 = vpop.permute.xlu0 %8185
    %8187 = vrot.lane.b32.xlu0 %v8026, 16
    %v8188 = vpop.permute.xlu0 %8187
    %8189 = vrot.lane.b32.xlu0 %v8028, 16
    %v8190 = vpop.permute.xlu0 %8189
    %8191 = vrot.lane.b32.xlu0 %v8030, 16
    %v8192 = vpop.permute.xlu0 %8191
    %v8193 = vsel %vm399, %v8170, %v8182
    %v8194 = vsel %vm399, %v8172, %v8184
    %v8195 = vsel %vm399, %v8174, %v8186
    %v8196 = vsel %vm399, %v8176, %v8188
    %v8197 = vsel %vm399, %v8178, %v8190
    %v8198 = vsel %vm399, %v8180, %v8192
    %v8199 = vsel %vm399, %v8182, %v8170
    %v8200 = vsel %vm399, %v8184, %v8172
    %v8201 = vsel %vm399, %v8186, %v8174
    %v8202 = vsel %vm399, %v8188, %v8176
    %v8203 = vsel %vm399, %v8190, %v8178
    %v8204 = vsel %vm399, %v8192, %v8180
    %8205 = vset.pattern.permute.xlu0 1
    %8206 = vperm.xlu0 %8205, %v7905
    %v8207 = vpop.permute.xlu0 %8206
    %8209 = vset.pattern.permute.xlu0 1
    %8210 = vperm.xlu0 %8209, %v7906
    %v8211 = vpop.permute.xlu0 %8210
    %8213 = vset.pattern.permute.xlu0 1
    %8214 = vperm.xlu0 %8213, %v7907
    %v8215 = vpop.permute.xlu0 %8214
    %8217 = vset.pattern.permute.xlu0 1
    %8218 = vperm.xlu0 %8217, %v7908
    %v8219 = vpop.permute.xlu0 %8218
    %8221 = vset.pattern.permute.xlu0 1
    %8222 = vperm.xlu0 %8221, %v7909
    %v8223 = vpop.permute.xlu0 %8222
    %8225 = vset.pattern.permute.xlu0 1
    %8226 = vperm.xlu0 %8225, %v7910
    %v8227 = vpop.permute.xlu0 %8226
    %v8229 = vmul.f32 %v8199, %v8207
    %v8230 = vmul.f32 %v8193, %v8207
    %v8231 = vmul.f32 %v8200, %v8211
    %v8232 = vmul.f32 %v8194, %v8211
    %v8233 = vmul.f32 %v8201, %v8215
    %v8234 = vmul.f32 %v8195, %v8215
    %v8235 = vmul.f32 %v8202, %v8219
    %v8236 = vmul.f32 %v8196, %v8219
    %v8237 = vmul.f32 %v8203, %v8223
    %v8238 = vmul.f32 %v8197, %v8223
    %v8239 = vmul.f32 %v8204, %v8227
    %v8240 = vmul.f32 %v8198, %v8227
    %v8241 = vmul.f32 %v8229, %v4917
    %v8242 = vmul.f32 %v8230, %v4921
    %v8243 = vmul.f32 %v8231, %v4917
    %v8244 = vmul.f32 %v8232, %v4921
    %v8245 = vmul.f32 %v8233, %v4917
    %v8246 = vmul.f32 %v8234, %v4921
    %v8247 = vmul.f32 %v8235, %v4917
    %v8248 = vmul.f32 %v8236, %v4921
    %v8249 = vmul.f32 %v8237, %v4917
    %v8250 = vmul.f32 %v8238, %v4921
    %v8251 = vmul.f32 %v8239, %v4917
    %v8252 = vmul.f32 %v8240, %v4921
    %v8253 = vadd.f32 %v8157, %v8241
    %v8254 = vadd.f32 %v8158, %v8242
    %v8255 = vadd.f32 %v8159, %v8243
    %v8256 = vadd.f32 %v8160, %v8244
    %v8257 = vadd.f32 %v8161, %v8245
    %v8258 = vadd.f32 %v8162, %v8246
    %v8259 = vadd.f32 %v8163, %v8247
    %v8260 = vadd.f32 %v8164, %v8248
    %v8261 = vadd.f32 %v8165, %v8249
    %v8262 = vadd.f32 %v8166, %v8250
    %v8263 = vadd.f32 %v8167, %v8251
    %v8264 = vadd.f32 %v8168, %v8252
    %8265 = vrot.lane.b32.xlu0 %v8019, 15
    %v8266 = vpop.permute.xlu0 %8265
    %8267 = vrot.lane.b32.xlu0 %v8021, 15
    %v8268 = vpop.permute.xlu0 %8267
    %8269 = vrot.lane.b32.xlu0 %v8023, 15
    %v8270 = vpop.permute.xlu0 %8269
    %8271 = vrot.lane.b32.xlu0 %v8025, 15
    %v8272 = vpop.permute.xlu0 %8271
    %8273 = vrot.lane.b32.xlu0 %v8027, 15
    %v8274 = vpop.permute.xlu0 %8273
    %8275 = vrot.lane.b32.xlu0 %v8029, 15
    %v8276 = vpop.permute.xlu0 %8275
    %8277 = vrot.lane.b32.xlu0 %v8020, 15
    %v8278 = vpop.permute.xlu0 %8277
    %8279 = vrot.lane.b32.xlu0 %v8022, 15
    %v8280 = vpop.permute.xlu0 %8279
    %8281 = vrot.lane.b32.xlu0 %v8024, 15
    %v8282 = vpop.permute.xlu0 %8281
    %8283 = vrot.lane.b32.xlu0 %v8026, 15
    %v8284 = vpop.permute.xlu0 %8283
    %8285 = vrot.lane.b32.xlu0 %v8028, 15
    %v8286 = vpop.permute.xlu0 %8285
    %8287 = vrot.lane.b32.xlu0 %v8030, 15
    %v8288 = vpop.permute.xlu0 %8287
    %v8289 = vsel %vm509, %v8266, %v8278
    %v8290 = vsel %vm509, %v8268, %v8280
    %v8291 = vsel %vm509, %v8270, %v8282
    %v8292 = vsel %vm509, %v8272, %v8284
    %v8293 = vsel %vm509, %v8274, %v8286
    %v8294 = vsel %vm509, %v8276, %v8288
    %v8295 = vsel %vm509, %v8278, %v8266
    %v8296 = vsel %vm509, %v8280, %v8268
    %v8297 = vsel %vm509, %v8282, %v8270
    %v8298 = vsel %vm509, %v8284, %v8272
    %v8299 = vsel %vm509, %v8286, %v8274
    %v8300 = vsel %vm509, %v8288, %v8276
    %8301 = vset.pattern.permute.xlu0 2
    %8302 = vperm.xlu0 %8301, %v7905
    %v8303 = vpop.permute.xlu0 %8302
    %8305 = vset.pattern.permute.xlu0 2
    %8306 = vperm.xlu0 %8305, %v7906
    %v8307 = vpop.permute.xlu0 %8306
    %8309 = vset.pattern.permute.xlu0 2
    %8310 = vperm.xlu0 %8309, %v7907
    %v8311 = vpop.permute.xlu0 %8310
    %8313 = vset.pattern.permute.xlu0 2
    %8314 = vperm.xlu0 %8313, %v7908
    %v8315 = vpop.permute.xlu0 %8314
    %8317 = vset.pattern.permute.xlu0 2
    %8318 = vperm.xlu0 %8317, %v7909
    %v8319 = vpop.permute.xlu0 %8318
    %8321 = vset.pattern.permute.xlu0 2
    %8322 = vperm.xlu0 %8321, %v7910
    %v8323 = vpop.permute.xlu0 %8322
    %v8325 = vmul.f32 %v8295, %v8303
    %v8326 = vmul.f32 %v8289, %v8303
    %v8327 = vmul.f32 %v8296, %v8307
    %v8328 = vmul.f32 %v8290, %v8307
    %v8329 = vmul.f32 %v8297, %v8311
    %v8330 = vmul.f32 %v8291, %v8311
    %v8331 = vmul.f32 %v8298, %v8315
    %v8332 = vmul.f32 %v8292, %v8315
    %v8333 = vmul.f32 %v8299, %v8319
    %v8334 = vmul.f32 %v8293, %v8319
    %v8335 = vmul.f32 %v8300, %v8323
    %v8336 = vmul.f32 %v8294, %v8323
    %v8337 = vmul.f32 %v8325, %v5025
    %v8338 = vmul.f32 %v8326, %v5029
    %v8339 = vmul.f32 %v8327, %v5025
    %v8340 = vmul.f32 %v8328, %v5029
    %v8341 = vmul.f32 %v8329, %v5025
    %v8342 = vmul.f32 %v8330, %v5029
    %v8343 = vmul.f32 %v8331, %v5025
    %v8344 = vmul.f32 %v8332, %v5029
    %v8345 = vmul.f32 %v8333, %v5025
    %v8346 = vmul.f32 %v8334, %v5029
    %v8347 = vmul.f32 %v8335, %v5025
    %v8348 = vmul.f32 %v8336, %v5029
    %v8349 = vadd.f32 %v8253, %v8337
    %v8350 = vadd.f32 %v8254, %v8338
    %v8351 = vadd.f32 %v8255, %v8339
    %v8352 = vadd.f32 %v8256, %v8340
    %v8353 = vadd.f32 %v8257, %v8341
    %v8354 = vadd.f32 %v8258, %v8342
    %v8355 = vadd.f32 %v8259, %v8343
    %v8356 = vadd.f32 %v8260, %v8344
    %v8357 = vadd.f32 %v8261, %v8345
    %v8358 = vadd.f32 %v8262, %v8346
    %v8359 = vadd.f32 %v8263, %v8347
    %v8360 = vadd.f32 %v8264, %v8348
    %8361 = vrot.lane.b32.xlu0 %v8019, 1
    %v8362 = vpop.permute.xlu0 %8361
    %8363 = vrot.lane.b32.xlu0 %v8021, 1
    %v8364 = vpop.permute.xlu0 %8363
    %8365 = vrot.lane.b32.xlu0 %v8023, 1
    %v8366 = vpop.permute.xlu0 %8365
    %8367 = vrot.lane.b32.xlu0 %v8025, 1
    %v8368 = vpop.permute.xlu0 %8367
    %8369 = vrot.lane.b32.xlu0 %v8027, 1
    %v8370 = vpop.permute.xlu0 %8369
    %8371 = vrot.lane.b32.xlu0 %v8029, 1
    %v8372 = vpop.permute.xlu0 %8371
    %8373 = vrot.lane.b32.xlu0 %v8020, 1
    %v8374 = vpop.permute.xlu0 %8373
    %8375 = vrot.lane.b32.xlu0 %v8022, 1
    %v8376 = vpop.permute.xlu0 %8375
    %8377 = vrot.lane.b32.xlu0 %v8024, 1
    %v8378 = vpop.permute.xlu0 %8377
    %8379 = vrot.lane.b32.xlu0 %v8026, 1
    %v8380 = vpop.permute.xlu0 %8379
    %8381 = vrot.lane.b32.xlu0 %v8028, 1
    %v8382 = vpop.permute.xlu0 %8381
    %8383 = vrot.lane.b32.xlu0 %v8030, 1
    %v8384 = vpop.permute.xlu0 %8383
    %v8385 = vsel %vm619, %v8362, %v8374
    %v8386 = vsel %vm619, %v8364, %v8376
    %v8387 = vsel %vm619, %v8366, %v8378
    %v8388 = vsel %vm619, %v8368, %v8380
    %v8389 = vsel %vm619, %v8370, %v8382
    %v8390 = vsel %vm619, %v8372, %v8384
    %v8391 = vsel %vm619, %v8374, %v8362
    %v8392 = vsel %vm619, %v8376, %v8364
    %v8393 = vsel %vm619, %v8378, %v8366
    %v8394 = vsel %vm619, %v8380, %v8368
    %v8395 = vsel %vm619, %v8382, %v8370
    %v8396 = vsel %vm619, %v8384, %v8372
    %8397 = vset.pattern.permute.xlu0 3
    %8398 = vperm.xlu0 %8397, %v7905
    %v8399 = vpop.permute.xlu0 %8398
    %8401 = vset.pattern.permute.xlu0 3
    %8402 = vperm.xlu0 %8401, %v7906
    %v8403 = vpop.permute.xlu0 %8402
    %8405 = vset.pattern.permute.xlu0 3
    %8406 = vperm.xlu0 %8405, %v7907
    %v8407 = vpop.permute.xlu0 %8406
    %8409 = vset.pattern.permute.xlu0 3
    %8410 = vperm.xlu0 %8409, %v7908
    %v8411 = vpop.permute.xlu0 %8410
    %8413 = vset.pattern.permute.xlu0 3
    %8414 = vperm.xlu0 %8413, %v7909
    %v8415 = vpop.permute.xlu0 %8414
    %8417 = vset.pattern.permute.xlu0 3
    %8418 = vperm.xlu0 %8417, %v7910
    %v8419 = vpop.permute.xlu0 %8418
    %v8421 = vmul.f32 %v8391, %v8399
    %v8422 = vmul.f32 %v8385, %v8399
    %v8423 = vmul.f32 %v8392, %v8403
    %v8424 = vmul.f32 %v8386, %v8403
    %v8425 = vmul.f32 %v8393, %v8407
    %v8426 = vmul.f32 %v8387, %v8407
    %v8427 = vmul.f32 %v8394, %v8411
    %v8428 = vmul.f32 %v8388, %v8411
    %v8429 = vmul.f32 %v8395, %v8415
    %v8430 = vmul.f32 %v8389, %v8415
    %v8431 = vmul.f32 %v8396, %v8419
    %v8432 = vmul.f32 %v8390, %v8419
    %v8433 = vmul.f32 %v8421, %v5133
    %v8434 = vmul.f32 %v8422, %v5137
    %v8435 = vmul.f32 %v8423, %v5133
    %v8436 = vmul.f32 %v8424, %v5137
    %v8437 = vmul.f32 %v8425, %v5133
    %v8438 = vmul.f32 %v8426, %v5137
    %v8439 = vmul.f32 %v8427, %v5133
    %v8440 = vmul.f32 %v8428, %v5137
    %v8441 = vmul.f32 %v8429, %v5133
    %v8442 = vmul.f32 %v8430, %v5137
    %v8443 = vmul.f32 %v8431, %v5133
    %v8444 = vmul.f32 %v8432, %v5137
    %v8445 = vadd.f32 %v8349, %v8433
    %v8446 = vadd.f32 %v8350, %v8434
    %v8447 = vadd.f32 %v8351, %v8435
    %v8448 = vadd.f32 %v8352, %v8436
    %v8449 = vadd.f32 %v8353, %v8437
    %v8450 = vadd.f32 %v8354, %v8438
    %v8451 = vadd.f32 %v8355, %v8439
    %v8452 = vadd.f32 %v8356, %v8440
    %v8453 = vadd.f32 %v8357, %v8441
    %v8454 = vadd.f32 %v8358, %v8442
    %v8455 = vadd.f32 %v8359, %v8443
    %v8456 = vadd.f32 %v8360, %v8444
    %8457 = vrot.lane.b32.xlu0 %v8019, 127
    %v8458 = vpop.permute.xlu0 %8457
    %8459 = vrot.lane.b32.xlu0 %v8021, 127
    %v8460 = vpop.permute.xlu0 %8459
    %8461 = vrot.lane.b32.xlu0 %v8023, 127
    %v8462 = vpop.permute.xlu0 %8461
    %8463 = vrot.lane.b32.xlu0 %v8025, 127
    %v8464 = vpop.permute.xlu0 %8463
    %8465 = vrot.lane.b32.xlu0 %v8027, 127
    %v8466 = vpop.permute.xlu0 %8465
    %8467 = vrot.lane.b32.xlu0 %v8029, 127
    %v8468 = vpop.permute.xlu0 %8467
    %8469 = vrot.lane.b32.xlu0 %v8020, 127
    %v8470 = vpop.permute.xlu0 %8469
    %8471 = vrot.lane.b32.xlu0 %v8022, 127
    %v8472 = vpop.permute.xlu0 %8471
    %8473 = vrot.lane.b32.xlu0 %v8024, 127
    %v8474 = vpop.permute.xlu0 %8473
    %8475 = vrot.lane.b32.xlu0 %v8026, 127
    %v8476 = vpop.permute.xlu0 %8475
    %8477 = vrot.lane.b32.xlu0 %v8028, 127
    %v8478 = vpop.permute.xlu0 %8477
    %8479 = vrot.lane.b32.xlu0 %v8030, 127
    %v8480 = vpop.permute.xlu0 %8479
    %v8481 = vsel %vm729, %v8458, %v8470
    %v8482 = vsel %vm729, %v8460, %v8472
    %v8483 = vsel %vm729, %v8462, %v8474
    %v8484 = vsel %vm729, %v8464, %v8476
    %v8485 = vsel %vm729, %v8466, %v8478
    %v8486 = vsel %vm729, %v8468, %v8480
    %v8487 = vsel %vm729, %v8470, %v8458
    %v8488 = vsel %vm729, %v8472, %v8460
    %v8489 = vsel %vm729, %v8474, %v8462
    %v8490 = vsel %vm729, %v8476, %v8464
    %v8491 = vsel %vm729, %v8478, %v8466
    %v8492 = vsel %vm729, %v8480, %v8468
    %8493 = vset.pattern.permute.xlu0 5
    %8494 = vperm.xlu0 %8493, %v7905
    %v8495 = vpop.permute.xlu0 %8494
    %8497 = vset.pattern.permute.xlu0 5
    %8498 = vperm.xlu0 %8497, %v7906
    %v8499 = vpop.permute.xlu0 %8498
    %8501 = vset.pattern.permute.xlu0 5
    %8502 = vperm.xlu0 %8501, %v7907
    %v8503 = vpop.permute.xlu0 %8502
    %8505 = vset.pattern.permute.xlu0 5
    %8506 = vperm.xlu0 %8505, %v7908
    %v8507 = vpop.permute.xlu0 %8506
    %8509 = vset.pattern.permute.xlu0 5
    %8510 = vperm.xlu0 %8509, %v7909
    %v8511 = vpop.permute.xlu0 %8510
    %8513 = vset.pattern.permute.xlu0 5
    %8514 = vperm.xlu0 %8513, %v7910
    %v8515 = vpop.permute.xlu0 %8514
    %v8517 = vmul.f32 %v8481, %v8495
    %v8518 = vmul.f32 %v8487, %v8495
    %v8519 = vmul.f32 %v8482, %v8499
    %v8520 = vmul.f32 %v8488, %v8499
    %v8521 = vmul.f32 %v8483, %v8503
    %v8522 = vmul.f32 %v8489, %v8503
    %v8523 = vmul.f32 %v8484, %v8507
    %v8524 = vmul.f32 %v8490, %v8507
    %v8525 = vmul.f32 %v8485, %v8511
    %v8526 = vmul.f32 %v8491, %v8511
    %v8527 = vmul.f32 %v8486, %v8515
    %v8528 = vmul.f32 %v8492, %v8515
    %v8529 = vmul.f32 %v8517, %v5241
    %v8530 = vmul.f32 %v8518, %v5245
    %v8531 = vmul.f32 %v8519, %v5241
    %v8532 = vmul.f32 %v8520, %v5245
    %v8533 = vmul.f32 %v8521, %v5241
    %v8534 = vmul.f32 %v8522, %v5245
    %v8535 = vmul.f32 %v8523, %v5241
    %v8536 = vmul.f32 %v8524, %v5245
    %v8537 = vmul.f32 %v8525, %v5241
    %v8538 = vmul.f32 %v8526, %v5245
    %v8539 = vmul.f32 %v8527, %v5241
    %v8540 = vmul.f32 %v8528, %v5245
    %v8541 = vadd.f32 %v8445, %v8529
    %v8542 = vadd.f32 %v8446, %v8530
    %v8543 = vadd.f32 %v8447, %v8531
    %v8544 = vadd.f32 %v8448, %v8532
    %v8545 = vadd.f32 %v8449, %v8533
    %v8546 = vadd.f32 %v8450, %v8534
    %v8547 = vadd.f32 %v8451, %v8535
    %v8548 = vadd.f32 %v8452, %v8536
    %v8549 = vadd.f32 %v8453, %v8537
    %v8550 = vadd.f32 %v8454, %v8538
    %v8551 = vadd.f32 %v8455, %v8539
    %v8552 = vadd.f32 %v8456, %v8540
    %8553 = vrot.lane.b32.xlu0 %v8019, 113
    %v8554 = vpop.permute.xlu0 %8553
    %8555 = vrot.lane.b32.xlu0 %v8021, 113
    %v8556 = vpop.permute.xlu0 %8555
    %8557 = vrot.lane.b32.xlu0 %v8023, 113
    %v8558 = vpop.permute.xlu0 %8557
    %8559 = vrot.lane.b32.xlu0 %v8025, 113
    %v8560 = vpop.permute.xlu0 %8559
    %8561 = vrot.lane.b32.xlu0 %v8027, 113
    %v8562 = vpop.permute.xlu0 %8561
    %8563 = vrot.lane.b32.xlu0 %v8029, 113
    %v8564 = vpop.permute.xlu0 %8563
    %8565 = vrot.lane.b32.xlu0 %v8020, 113
    %v8566 = vpop.permute.xlu0 %8565
    %8567 = vrot.lane.b32.xlu0 %v8022, 113
    %v8568 = vpop.permute.xlu0 %8567
    %8569 = vrot.lane.b32.xlu0 %v8024, 113
    %v8570 = vpop.permute.xlu0 %8569
    %8571 = vrot.lane.b32.xlu0 %v8026, 113
    %v8572 = vpop.permute.xlu0 %8571
    %8573 = vrot.lane.b32.xlu0 %v8028, 113
    %v8574 = vpop.permute.xlu0 %8573
    %8575 = vrot.lane.b32.xlu0 %v8030, 113
    %v8576 = vpop.permute.xlu0 %8575
    %v8577 = vsel %vm839, %v8554, %v8566
    %v8578 = vsel %vm839, %v8556, %v8568
    %v8579 = vsel %vm839, %v8558, %v8570
    %v8580 = vsel %vm839, %v8560, %v8572
    %v8581 = vsel %vm839, %v8562, %v8574
    %v8582 = vsel %vm839, %v8564, %v8576
    %v8583 = vsel %vm839, %v8566, %v8554
    %v8584 = vsel %vm839, %v8568, %v8556
    %v8585 = vsel %vm839, %v8570, %v8558
    %v8586 = vsel %vm839, %v8572, %v8560
    %v8587 = vsel %vm839, %v8574, %v8562
    %v8588 = vsel %vm839, %v8576, %v8564
    %8589 = vset.pattern.permute.xlu0 6
    %8590 = vperm.xlu0 %8589, %v7905
    %v8591 = vpop.permute.xlu0 %8590
    %8593 = vset.pattern.permute.xlu0 6
    %8594 = vperm.xlu0 %8593, %v7906
    %v8595 = vpop.permute.xlu0 %8594
    %8597 = vset.pattern.permute.xlu0 6
    %8598 = vperm.xlu0 %8597, %v7907
    %v8599 = vpop.permute.xlu0 %8598
    %8601 = vset.pattern.permute.xlu0 6
    %8602 = vperm.xlu0 %8601, %v7908
    %v8603 = vpop.permute.xlu0 %8602
    %8605 = vset.pattern.permute.xlu0 6
    %8606 = vperm.xlu0 %8605, %v7909
    %v8607 = vpop.permute.xlu0 %8606
    %8609 = vset.pattern.permute.xlu0 6
    %8610 = vperm.xlu0 %8609, %v7910
    %v8611 = vpop.permute.xlu0 %8610
    %v8613 = vmul.f32 %v8577, %v8591
    %v8614 = vmul.f32 %v8583, %v8591
    %v8615 = vmul.f32 %v8578, %v8595
    %v8616 = vmul.f32 %v8584, %v8595
    %v8617 = vmul.f32 %v8579, %v8599
    %v8618 = vmul.f32 %v8585, %v8599
    %v8619 = vmul.f32 %v8580, %v8603
    %v8620 = vmul.f32 %v8586, %v8603
    %v8621 = vmul.f32 %v8581, %v8607
    %v8622 = vmul.f32 %v8587, %v8607
    %v8623 = vmul.f32 %v8582, %v8611
    %v8624 = vmul.f32 %v8588, %v8611
    %v8625 = vmul.f32 %v8613, %v5349
    %v8626 = vmul.f32 %v8614, %v5353
    %v8627 = vmul.f32 %v8615, %v5349
    %v8628 = vmul.f32 %v8616, %v5353
    %v8629 = vmul.f32 %v8617, %v5349
    %v8630 = vmul.f32 %v8618, %v5353
    %v8631 = vmul.f32 %v8619, %v5349
    %v8632 = vmul.f32 %v8620, %v5353
    %v8633 = vmul.f32 %v8621, %v5349
    %v8634 = vmul.f32 %v8622, %v5353
    %v8635 = vmul.f32 %v8623, %v5349
    %v8636 = vmul.f32 %v8624, %v5353
    %v8637 = vadd.f32 %v8541, %v8625
    %v8638 = vadd.f32 %v8542, %v8626
    %v8639 = vadd.f32 %v8543, %v8627
    %v8640 = vadd.f32 %v8544, %v8628
    %v8641 = vadd.f32 %v8545, %v8629
    %v8642 = vadd.f32 %v8546, %v8630
    %v8643 = vadd.f32 %v8547, %v8631
    %v8644 = vadd.f32 %v8548, %v8632
    %v8645 = vadd.f32 %v8549, %v8633
    %v8646 = vadd.f32 %v8550, %v8634
    %v8647 = vadd.f32 %v8551, %v8635
    %v8648 = vadd.f32 %v8552, %v8636
    %8649 = vrot.lane.b32.xlu0 %v8019, 112
    %v8650 = vpop.permute.xlu0 %8649
    %8651 = vrot.lane.b32.xlu0 %v8021, 112
    %v8652 = vpop.permute.xlu0 %8651
    %8653 = vrot.lane.b32.xlu0 %v8023, 112
    %v8654 = vpop.permute.xlu0 %8653
    %8655 = vrot.lane.b32.xlu0 %v8025, 112
    %v8656 = vpop.permute.xlu0 %8655
    %8657 = vrot.lane.b32.xlu0 %v8027, 112
    %v8658 = vpop.permute.xlu0 %8657
    %8659 = vrot.lane.b32.xlu0 %v8029, 112
    %v8660 = vpop.permute.xlu0 %8659
    %8661 = vrot.lane.b32.xlu0 %v8020, 112
    %v8662 = vpop.permute.xlu0 %8661
    %8663 = vrot.lane.b32.xlu0 %v8022, 112
    %v8664 = vpop.permute.xlu0 %8663
    %8665 = vrot.lane.b32.xlu0 %v8024, 112
    %v8666 = vpop.permute.xlu0 %8665
    %8667 = vrot.lane.b32.xlu0 %v8026, 112
    %v8668 = vpop.permute.xlu0 %8667
    %8669 = vrot.lane.b32.xlu0 %v8028, 112
    %v8670 = vpop.permute.xlu0 %8669
    %8671 = vrot.lane.b32.xlu0 %v8030, 112
    %v8672 = vpop.permute.xlu0 %8671
    %v8673 = vsel %vm949, %v8650, %v8662
    %v8674 = vsel %vm949, %v8652, %v8664
    %v8675 = vsel %vm949, %v8654, %v8666
    %v8676 = vsel %vm949, %v8656, %v8668
    %v8677 = vsel %vm949, %v8658, %v8670
    %v8678 = vsel %vm949, %v8660, %v8672
    %v8679 = vsel %vm949, %v8662, %v8650
    %v8680 = vsel %vm949, %v8664, %v8652
    %v8681 = vsel %vm949, %v8666, %v8654
    %v8682 = vsel %vm949, %v8668, %v8656
    %v8683 = vsel %vm949, %v8670, %v8658
    %v8684 = vsel %vm949, %v8672, %v8660
    %8685 = vset.pattern.permute.xlu0 7
    %8686 = vperm.xlu0 %8685, %v7905
    %v8687 = vpop.permute.xlu0 %8686
    %8689 = vset.pattern.permute.xlu0 7
    %8690 = vperm.xlu0 %8689, %v7906
    %v8691 = vpop.permute.xlu0 %8690
    %8693 = vset.pattern.permute.xlu0 7
    %8694 = vperm.xlu0 %8693, %v7907
    %v8695 = vpop.permute.xlu0 %8694
    %8697 = vset.pattern.permute.xlu0 7
    %8698 = vperm.xlu0 %8697, %v7908
    %v8699 = vpop.permute.xlu0 %8698
    %8701 = vset.pattern.permute.xlu0 7
    %8702 = vperm.xlu0 %8701, %v7909
    %v8703 = vpop.permute.xlu0 %8702
    %8705 = vset.pattern.permute.xlu0 7
    %8706 = vperm.xlu0 %8705, %v7910
    %v8707 = vpop.permute.xlu0 %8706
    %v8709 = vmul.f32 %v8673, %v8687
    %v8710 = vmul.f32 %v8679, %v8687
    %v8711 = vmul.f32 %v8674, %v8691
    %v8712 = vmul.f32 %v8680, %v8691
    %v8713 = vmul.f32 %v8675, %v8695
    %v8714 = vmul.f32 %v8681, %v8695
    %v8715 = vmul.f32 %v8676, %v8699
    %v8716 = vmul.f32 %v8682, %v8699
    %v8717 = vmul.f32 %v8677, %v8703
    %v8718 = vmul.f32 %v8683, %v8703
    %v8719 = vmul.f32 %v8678, %v8707
    %v8720 = vmul.f32 %v8684, %v8707
    %v8721 = vmul.f32 %v8709, %v5457
    %v8722 = vmul.f32 %v8710, %v5461
    %v8723 = vmul.f32 %v8711, %v5457
    %v8724 = vmul.f32 %v8712, %v5461
    %v8725 = vmul.f32 %v8713, %v5457
    %v8726 = vmul.f32 %v8714, %v5461
    %v8727 = vmul.f32 %v8715, %v5457
    %v8728 = vmul.f32 %v8716, %v5461
    %v8729 = vmul.f32 %v8717, %v5457
    %v8730 = vmul.f32 %v8718, %v5461
    %v8731 = vmul.f32 %v8719, %v5457
    %v8732 = vmul.f32 %v8720, %v5461
    %v8733 = vadd.f32 %v8637, %v8721
    %v8734 = vadd.f32 %v8638, %v8722
    %v8735 = vadd.f32 %v8639, %v8723
    %v8736 = vadd.f32 %v8640, %v8724
    %v8737 = vadd.f32 %v8641, %v8725
    %v8738 = vadd.f32 %v8642, %v8726
    %v8739 = vadd.f32 %v8643, %v8727
    %v8740 = vadd.f32 %v8644, %v8728
    %v8741 = vadd.f32 %v8645, %v8729
    %v8742 = vadd.f32 %v8646, %v8730
    %v8743 = vadd.f32 %v8647, %v8731
    %v8744 = vadd.f32 %v8648, %v8732
    %8745 = vrot.lane.b32.xlu0 %v8019, 111
    %v8746 = vpop.permute.xlu0 %8745
    %8747 = vrot.lane.b32.xlu0 %v8021, 111
    %v8748 = vpop.permute.xlu0 %8747
    %8749 = vrot.lane.b32.xlu0 %v8023, 111
    %v8750 = vpop.permute.xlu0 %8749
    %8751 = vrot.lane.b32.xlu0 %v8025, 111
    %v8752 = vpop.permute.xlu0 %8751
    %8753 = vrot.lane.b32.xlu0 %v8027, 111
    %v8754 = vpop.permute.xlu0 %8753
    %8755 = vrot.lane.b32.xlu0 %v8029, 111
    %v8756 = vpop.permute.xlu0 %8755
    %8757 = vrot.lane.b32.xlu0 %v8020, 111
    %v8758 = vpop.permute.xlu0 %8757
    %8759 = vrot.lane.b32.xlu0 %v8022, 111
    %v8760 = vpop.permute.xlu0 %8759
    %8761 = vrot.lane.b32.xlu0 %v8024, 111
    %v8762 = vpop.permute.xlu0 %8761
    %8763 = vrot.lane.b32.xlu0 %v8026, 111
    %v8764 = vpop.permute.xlu0 %8763
    %8765 = vrot.lane.b32.xlu0 %v8028, 111
    %v8766 = vpop.permute.xlu0 %8765
    %8767 = vrot.lane.b32.xlu0 %v8030, 111
    %v8768 = vpop.permute.xlu0 %8767
    %v8769 = vsel %vm1059, %v8746, %v8758
    %v8770 = vsel %vm1059, %v8748, %v8760
    %v8771 = vsel %vm1059, %v8750, %v8762
    %v8772 = vsel %vm1059, %v8752, %v8764
    %v8773 = vsel %vm1059, %v8754, %v8766
    %v8774 = vsel %vm1059, %v8756, %v8768
    %v8775 = vsel %vm1059, %v8758, %v8746
    %v8776 = vsel %vm1059, %v8760, %v8748
    %v8777 = vsel %vm1059, %v8762, %v8750
    %v8778 = vsel %vm1059, %v8764, %v8752
    %v8779 = vsel %vm1059, %v8766, %v8754
    %v8780 = vsel %vm1059, %v8768, %v8756
    %8781 = vset.pattern.permute.xlu0 8
    %8782 = vperm.xlu0 %8781, %v7905
    %v8783 = vpop.permute.xlu0 %8782
    %8785 = vset.pattern.permute.xlu0 8
    %8786 = vperm.xlu0 %8785, %v7906
    %v8787 = vpop.permute.xlu0 %8786
    %8789 = vset.pattern.permute.xlu0 8
    %8790 = vperm.xlu0 %8789, %v7907
    %v8791 = vpop.permute.xlu0 %8790
    %8793 = vset.pattern.permute.xlu0 8
    %8794 = vperm.xlu0 %8793, %v7908
    %v8795 = vpop.permute.xlu0 %8794
    %8797 = vset.pattern.permute.xlu0 8
    %8798 = vperm.xlu0 %8797, %v7909
    %v8799 = vpop.permute.xlu0 %8798
    %8801 = vset.pattern.permute.xlu0 8
    %8802 = vperm.xlu0 %8801, %v7910
    %v8803 = vpop.permute.xlu0 %8802
    %v8805 = vmul.f32 %v8769, %v8783
    %v8806 = vmul.f32 %v8775, %v8783
    %v8807 = vmul.f32 %v8770, %v8787
    %v8808 = vmul.f32 %v8776, %v8787
    %v8809 = vmul.f32 %v8771, %v8791
    %v8810 = vmul.f32 %v8777, %v8791
    %v8811 = vmul.f32 %v8772, %v8795
    %v8812 = vmul.f32 %v8778, %v8795
    %v8813 = vmul.f32 %v8773, %v8799
    %v8814 = vmul.f32 %v8779, %v8799
    %v8815 = vmul.f32 %v8774, %v8803
    %v8816 = vmul.f32 %v8780, %v8803
    %v8817 = vmul.f32 %v8805, %v5565
    %v8818 = vmul.f32 %v8806, %v5569
    %v8819 = vmul.f32 %v8807, %v5565
    %v8820 = vmul.f32 %v8808, %v5569
    %v8821 = vmul.f32 %v8809, %v5565
    %v8822 = vmul.f32 %v8810, %v5569
    %v8823 = vmul.f32 %v8811, %v5565
    %v8824 = vmul.f32 %v8812, %v5569
    %v8825 = vmul.f32 %v8813, %v5565
    %v8826 = vmul.f32 %v8814, %v5569
    %v8827 = vmul.f32 %v8815, %v5565
    %v8828 = vmul.f32 %v8816, %v5569
    %v8829 = vadd.f32 %v8733, %v8817
    %v8830 = vadd.f32 %v8734, %v8818
    %v8831 = vadd.f32 %v8735, %v8819
    %v8832 = vadd.f32 %v8736, %v8820
    %v8833 = vadd.f32 %v8737, %v8821
    %v8834 = vadd.f32 %v8738, %v8822
    %v8835 = vadd.f32 %v8739, %v8823
    %v8836 = vadd.f32 %v8740, %v8824
    %v8837 = vadd.f32 %v8741, %v8825
    %v8838 = vadd.f32 %v8742, %v8826
    %v8839 = vadd.f32 %v8743, %v8827
    %v8840 = vadd.f32 %v8744, %v8828
    %v8841 = vmax.f32 %v8829, 0.0
    %v8842 = vmax.f32 %v8830, 0.0
    %v8843 = vmax.f32 %v8831, 0.0
    %v8844 = vmax.f32 %v8832, 0.0
    %v8845 = vmax.f32 %v8833, 0.0
    %v8846 = vmax.f32 %v8834, 0.0
    %v8847 = vmax.f32 %v8835, 0.0
    %v8848 = vmax.f32 %v8836, 0.0
    %v8849 = vmax.f32 %v8837, 0.0
    %v8850 = vmax.f32 %v8838, 0.0
    %v8851 = vmax.f32 %v8839, 0.0
    %v8852 = vmax.f32 %v8840, 0.0
    %v8853 = vmin.f32 %v8841, 6.0
    %v8854 = vmin.f32 %v8842, 6.0
    %v8855 = vmin.f32 %v8843, 6.0
    %v8856 = vmin.f32 %v8844, 6.0
    %v8857 = vmin.f32 %v8845, 6.0
    %v8858 = vmin.f32 %v8846, 6.0
    %v8859 = vmin.f32 %v8847, 6.0
    %v8860 = vmin.f32 %v8848, 6.0
    %v8861 = vmin.f32 %v8849, 6.0
    %v8862 = vmin.f32 %v8850, 6.0
    %v8863 = vmin.f32 %v8851, 6.0
    %v8864 = vmin.f32 %v8852, 6.0
    %v8865 = vpack.c.bf16 %v8855, %v8853
    %v8866 = vpack.c.bf16 %v8856, %v8854
    %v8867 = vpack.c.bf16 %v8859, %v8857
    %v8868 = vpack.c.bf16 %v8860, %v8858
    %v8869 = vpack.c.bf16 %v8863, %v8861
    %v8870 = vpack.c.bf16 %v8864, %v8862
    %v8872 = vsel %vm1175, %v7911, 0
    %8874 = vmatprep.subr.bf16.mxu0 0
    %8875 = vmatpush1.bf16.msra.mxu0 0
    %8876 = vmatprep.subr.bf16.mxu0 0
    %8877 = vmatpush1.bf16.msra.mxu0 0
    %8878 = vmatprep.subr.bf16.mxu0 0
    %8879 = vmatpush1.bf16.msra.mxu0 0
    %8880 = vmatprep.subr.bf16.mxu0 0
    %8881 = vmatpush1.bf16.msra.mxu0 0
    %8882 = vmatprep.subr.bf16.mxu0 0
    %8883 = vmatpush1.bf16.msra.mxu0 0
    %8884 = vmatprep.subr.bf16.mxu0 %v8870
    %8885 = vmatpush1.bf16.msra.mxu0 %v8869
    %8886 = vmatprep.subr.bf16.mxu0 %v8868
    %8887 = vmatpush1.bf16.msra.mxu0 %v8867
    %8888 = vmatprep.subr.bf16.mxu0 %v8866
    %8889 = vmatpush1.bf16.msra.mxu0 %v8865
    %8890 = vmatprep.subr.bf16.mxu0 0
    %8891 = vmatpush2.bf16.msra.mxu0 0
    %8892 = vmatprep.subr.bf16.mxu0 0
    %8893 = vmatpush2.bf16.msra.mxu0 0
    %8894 = vmatprep.subr.bf16.mxu0 0
    %8895 = vmatpush2.bf16.msra.mxu0 0
    %8896 = vmatprep.subr.bf16.mxu0 0
    %8897 = vmatpush2.bf16.msra.mxu0 0
    %8898 = vmatprep.subr.bf16.mxu0 0
    %8899 = vmatpush2.bf16.msra.mxu0 0
    %8900 = vmatprep.subr.bf16.mxu0 0
    %8901 = vmatpush2.bf16.msra.mxu0 0
    %8902 = vmatprep.subr.bf16.mxu0 0
    %8903 = vmatpush2.bf16.msra.mxu0 0
    %8904 = vmatprep.subr.bf16.mxu0 0
    %8905 = vmatpush2.bf16.msra.mxu0 0
    %8906 = vmatprep.mubr.bf16.mxu0 0
    %8907 = vmatmul.mubr.bf16.gmra.mxu0 %v8872
    %v8908 = vpop.f32.mrf.mxu0
    %v8909 = vadd.f32 0.0, %v8908
    %v8910 = vpop.f32.mrf.mxu0
    %v8911 = vadd.f32 0.0, %v8910
    %v8912 = vpop.f32.mrf.mxu0
    %v8913 = vpop.f32.mrf.mxu0
    %8914 = vdwg.mxu0
    %v8915 = vadd.f32 %v7897, %v8909
    %v8916 = vadd.f32 %v7898, %v8911
    %v8917 = vld [vmem:[%s4483] sm:$0xf]
    %v8918 = vld [vmem:[%s4485] sm:$0xff]
    %v8919 = vpack.c.bf16 %v8915, %v8915
    %v8920 = vpack.c.bf16 %v8916, %v8916
    %8922 = vset.pattern.permute.xlu0 0
    %8923 = vperm.xlu0 %8922, %v8918
    %v8924 = vpop.permute.xlu0 %8923
    %v8927 = vsel %vm4494, %v8917, 0
    %v8930 = vsel %vm128, %v8919, 0
    %v8933 = vsel %vm128, %v8920, 0
    %8935 = vmatprep.subr.bf16.mxu0 0
    %8936 = vmatpush1.bf16.msra.mxu0 0
    %8937 = vmatprep.subr.bf16.mxu0 0
    %8938 = vmatpush1.bf16.msra.mxu0 0
    %8939 = vmatprep.subr.bf16.mxu0 0
    %8940 = vmatpush1.bf16.msra.mxu0 0
    %8941 = vmatprep.subr.bf16.mxu0 0
    %8942 = vmatpush1.bf16.msra.mxu0 0
    %8943 = vmatprep.subr.bf16.mxu0 0
    %8944 = vmatpush1.bf16.msra.mxu0 0
    %8945 = vmatprep.subr.bf16.mxu0 %v8933
    %8946 = vmatpush1.bf16.msra.mxu0 %v8930
    %8947 = vmatprep.subr.bf16.mxu0 %v7846
    %8948 = vmatpush1.bf16.msra.mxu0 %v7843
    %8949 = vmatprep.subr.bf16.mxu0 %v5684
    %8950 = vmatpush1.bf16.msra.mxu0 %v5681
    %8951 = vmatprep.subr.bf16.mxu0 0
    %8952 = vmatpush2.bf16.msra.mxu0 0
    %8953 = vmatprep.subr.bf16.mxu0 0
    %8954 = vmatpush2.bf16.msra.mxu0 0
    %8955 = vmatprep.subr.bf16.mxu0 0
    %8956 = vmatpush2.bf16.msra.mxu0 0
    %8957 = vmatprep.subr.bf16.mxu0 0
    %8958 = vmatpush2.bf16.msra.mxu0 0
    %8959 = vmatprep.subr.bf16.mxu0 0
    %8960 = vmatpush2.bf16.msra.mxu0 0
    %8961 = vmatprep.subr.bf16.mxu0 0
    %8962 = vmatpush2.bf16.msra.mxu0 0
    %8963 = vmatprep.subr.bf16.mxu0 0
    %8964 = vmatpush2.bf16.msra.mxu0 0
    %8965 = vmatprep.subr.bf16.mxu0 0
    %8966 = vmatpush2.bf16.msra.mxu0 0
    %8967 = vmatprep.mubr.bf16.mxu0 0
    %8968 = vmatmul.mubr.bf16.gmra.mxu0 %v8927
    %v8969 = vpop.f32.mrf.mxu0
    %v8970 = vadd.f32 %v8924, %v8969
    %v8971 = vpop.f32.mrf.mxu0
    %v8972 = vadd.f32 %v8924, %v8971
    %v8973 = vpop.f32.mrf.mxu0
    %v8974 = vpop.f32.mrf.mxu0
    %8975 = vdwg.mxu0
    %v8976 = vmax.f32 %v8970, 0.0
    %v8977 = vmax.f32 %v8972, 0.0
    %s8978 = scalar_lea.vmem %s7, 16
    %8979 = vst [vmem:[%s8978] sm:$0xff] %v5735
    %8980 = vst [vmem:[%s8978 + $0x8] sm:$0xff] %v5736
    %s8981 = scalar_lea.vmem %s8, 16
    %8982 = vst [vmem:[%s8981] sm:$0xff] %v6814
    %8983 = vst [vmem:[%s8981 + $0x8] sm:$0xff] %v6815
    %s8984 = scalar_lea.vmem %s9, 16
    %8985 = vst [vmem:[%s8984] sm:$0xff] %v7897
    %8986 = vst [vmem:[%s8984 + $0x8] sm:$0xff] %v7898
    %s8987 = scalar_lea.vmem %s10, 16
    %8988 = vst [vmem:[%s8987] sm:$0xff] %v8976
    %8989 = vst [vmem:[%s8987 + $0x8] sm:$0xff] %v8977
    // Predicated region
    $region46: #{first_block_forward.1} parent=1 // pred_check
      _
    $region47: #{first_block_forward.1} parent=1 // pred_check_branch
      %8991 = sbr.rel (0) target = $region49
    $region48: #{first_block_forward.1} parent=1 // pred_region
      _
    $region49: #{first_block_forward.1} parent=1 // pred_fallthru
      _
    // Predicated region
    $region50: #{first_block_forward.1} parent=1 // pred_check
      _
    $region51: #{first_block_forward.1} parent=1 // pred_check_branch
      %8993 = sbr.rel (0) target = $region53
    $region52: #{first_block_forward.1} parent=1 // pred_region
      _
    $region53: #{first_block_forward.1} parent=1 // pred_fallthru
      _
    // Predicated region
    $region54: #{first_block_forward.1} parent=1 // pred_check
      _
    $region55: #{first_block_forward.1} parent=1 // pred_check_branch
      %8995 = sbr.rel (0) target = $region57
    $region56: #{first_block_forward.1} parent=1 // pred_region
      _
    $region57: #{first_block_forward.1} parent=1 // pred_fallthru
      _
    // Predicated region
    $region58: #{first_block_forward.1} parent=1 // pred_check
      _
    $region59: #{first_block_forward.1} parent=1 // pred_check_branch
      %8997 = sbr.rel (0) target = $region61
    $region60: #{first_block_forward.1} parent=1 // pred_region
      _
    $region61: #{first_block_forward.1} parent=1 // pred_fallthru
      _
    // Predicated region
    $region62: #{first_block_forward.1} parent=1 // pred_check
      _
    $region63: #{first_block_forward.1} parent=1 // pred_check_branch
      %8999 = sbr.rel (0) target = $region65
    $region64: #{first_block_forward.1} parent=1 // pred_region
      _
    $region65: #{first_block_forward.1} parent=1 // pred_fallthru
      _
    // Predicated region
    $region66: #{first_block_forward.1} parent=1 // pred_check
      _
    $region67: #{first_block_forward.1} parent=1 // pred_check_branch
      %9001 = sbr.rel (0) target = $region69
    $region68: #{first_block_forward.1} parent=1 // pred_region
      _
    $region69: #{first_block_forward.1} parent=1 // pred_fallthru
      _
    // Predicated region
    $region70: #{first_block_forward.1} parent=1 // pred_check
      _
    $region71: #{first_block_forward.1} parent=1 // pred_check_branch
      %9003 = sbr.rel (0) target = $region73
    $region72: #{first_block_forward.1} parent=1 // pred_region
      _
    $region73: #{first_block_forward.1} parent=1 // pred_fallthru
      _
    // Predicated region
    $region74: #{first_block_forward.1} parent=1 // pred_check
      _
    $region75: #{first_block_forward.1} parent=1 // pred_check_branch
      %9005 = sbr.rel (0) target = $region77
    $region76: #{first_block_forward.1} parent=1 // pred_region
      _
    $region77: #{first_block_forward.1} parent=1 // pred_fallthru
      _
    %9006 = vsyncpa [#allocation3], 1
    %9007 = vsyncpa [#allocation5], 1
    %9008 = vsyncpa [#allocation8], 1

</llo_original>
